<compile_context>
chip_gen: v6e
topology: v6e:2x2x1
jax: 0.10.0
libtpu: 0.0.40
codegen_flags: <defaults>
</compile_context>

<pallas_src>
import math

import jax
import jax.numpy as jnp
from jax import lax
from jax.experimental import pallas as pl
from jax.experimental.pallas import tpu as pltpu

# Small, TPU-friendly stand-in for image_size=512 (same structure, 8 heads).
IMAGE_SIZE = 128
NUM_HEADS = 8
HEAD_DIM = IMAGE_SIZE // NUM_HEADS
L_IMG = 8                      # image_embedding sequence length (-> batch of feature maps)
L_TXT = 8                      # text_embedding sequence length
FC_OUT = IMAGE_SIZE * IMAGE_SIZE
FC_TILE_N = 8192               # 2 grid steps: one per TensorCore on v7x, 2 cheap steps otherwise


# --------------------------- kernel 1: one-shot MHA -------------------------- #

def _mha_kernel(img_ref, txt_ref, wq_ref, wk_ref, wv_ref, wo_ref,
                bq_ref, bk_ref, bv_ref, bo_ref, attn_ref, ctx_ref):
    """MultiheadAttention(Q=image emb, K=V=text emb), batch=1, 8 heads.

    All projection weights are pre-transposed to (in_features, out_features), so every
    matmul is a plain `x @ w` on the MXU.  Per-head context vectors are written into a
    VMEM (L_IMG, E) buffer so the output projection is a single K=E matmul.
    Runs exactly once (grid=(1,)); emits attn in bf16 for the FC kernel's MXU operand.
    """
    img = img_ref[...]
    txt = txt_ref[...]

    q = jnp.dot(img, wq_ref[...], preferred_element_type=jnp.float32) + bq_ref[...]
    k = jnp.dot(txt, wk_ref[...], preferred_element_type=jnp.float32) + bk_ref[...]
    v = jnp.dot(txt, wv_ref[...], preferred_element_type=jnp.float32) + bv_ref[...]

    scale = 1.0 / math.sqrt(HEAD_DIM)
    for h in range(NUM_HEADS):               # static unrolled loop over heads (runs once)
        sl = slice(h * HEAD_DIM, (h + 1) * HEAD_DIM)
        qh, kh, vh = q[:, sl], k[:, sl], v[:, sl]
        # scores: contract dim 1 of qh with dim 1 of kh (no explicit transpose)
        s = lax.dot_general(qh, kh, (((1,), (1,)), ((), ())),
                            preferred_element_type=jnp.float32) * scale
        s = s - jnp.max(s, axis=-1, keepdims=True)
        p = jnp.exp(s)
        p = p / jnp.sum(p, axis=-1, keepdims=True)
        ctx_ref[:, sl] = jnp.dot(p, vh, preferred_element_type=jnp.float32)

    attn = jnp.dot(ctx_ref[...], wo_ref[...],
                   preferred_element_type=jnp.float32) + bo_ref[...]
    attn_ref[...] = attn.astype(attn_ref.dtype)


def mha_pallas(img, txt, kp):
    small = lambda shape: pl.BlockSpec(shape, lambda i: (0, 0))
    return pl.pallas_call(
        _mha_kernel,
        out_shape=jax.ShapeDtypeStruct((L_IMG, IMAGE_SIZE), jnp.bfloat16),
        grid_spec=pltpu.PrefetchScalarGridSpec(
            num_scalar_prefetch=0,
            grid=(1,),
            in_specs=[
                small((L_IMG, IMAGE_SIZE)),            # image embedding
                small((L_TXT, IMAGE_SIZE)),            # text embedding
                small((IMAGE_SIZE, IMAGE_SIZE)),       # wq^T
                small((IMAGE_SIZE, IMAGE_SIZE)),       # wk^T
                small((IMAGE_SIZE, IMAGE_SIZE)),       # wv^T
                small((IMAGE_SIZE, IMAGE_SIZE)),       # wo^T
                small((1, IMAGE_SIZE)),                # bq
                small((1, IMAGE_SIZE)),                # bk
                small((1, IMAGE_SIZE)),                # bv
                small((1, IMAGE_SIZE)),                # bo
            ],
            out_specs=pl.BlockSpec((L_IMG, IMAGE_SIZE), lambda i: (0, 0)),
            scratch_shapes=[pltpu.VMEM((L_IMG, IMAGE_SIZE), jnp.float32)],  # ctx buffer
        ),
        compiler_params=pltpu.CompilerParams(dimension_semantics=("arbitrary",)),
    )(img, txt, kp["wq_t"], kp["wk_t"], kp["wv_t"], kp["wo_t"],
      kp["bq"], kp["bk"], kp["bv"], kp["bo"])


# --------------------- kernel 2: weight-streaming big FC --------------------- #

def _fc_kernel(attn_ref, wfc_ref, bfc_ref, out_ref):
    """One output-column tile of Linear(E -> E*E): bf16 x bf16 MXU matmul, f32 accumulate."""
    out = jnp.dot(attn_ref[...], wfc_ref[...],
                  preferred_element_type=jnp.float32) + bfc_ref[...]
    out_ref[...] = out.astype(out_ref.dtype)


def fc_pallas(attn_bf16, kp):
    grid = (FC_OUT // FC_TILE_N,)            # (2,)
    return pl.pallas_call(
        _fc_kernel,
        out_shape=jax.ShapeDtypeStruct((L_IMG, FC_OUT), jnp.float32),
        grid_spec=pltpu.PrefetchScalarGridSpec(
            num_scalar_prefetch=0,
            grid=grid,
            in_specs=[
                # attn is constant across grid steps -> single buffer is enough
                pl.BlockSpec((L_IMG, IMAGE_SIZE), lambda j: (0, 0),
                             pipeline_mode=pl.Buffered(1)),
                pl.BlockSpec((IMAGE_SIZE, FC_TILE_N), lambda j: (0, j)),  # w_fc^T tile (bf16)
                pl.BlockSpec((1, FC_TILE_N), lambda j: (0, j)),           # b_fc tile
            ],
            out_specs=pl.BlockSpec((L_IMG, FC_TILE_N), lambda j: (0, j)),  # lane-dense output
        ),
        compiler_params=pltpu.CompilerParams(dimension_semantics=("parallel",)),
    )(attn_bf16, kp["w_fc_t"], kp["b_fc"])


@jax.jit
def feature_map_generator(image_embedding, text_embedding, kernel_params):
    """Equivalent of FeatureMapGenerator.forward (returns (N, 1, H, W))."""
    attn = mha_pallas(image_embedding, text_embedding, kernel_params)    # (L_IMG, E) bf16
    fc_out = fc_pallas(attn, kernel_params)                              # (L_IMG, E*E) f32
    x = fc_out.reshape(-1, IMAGE_SIZE, IMAGE_SIZE)     # .view(-1, image_size, image_size)
    return x[:, None, :, :]                            # .unsqueeze(1)


# ------------------------------ params & reference --------------------------- #

def init_params(key):
    """Deterministic synthetic weights (PyTorch conventions / shapes)."""
    k0, k1, k2, k3 = jax.random.split(key, 4)
    in_proj = jax.random.normal(k0, (3 * IMAGE_SIZE, IMAGE_SIZE), jnp.float32) * 0.05
    wq, wk, wv = jnp.split(in_proj, 3, axis=0)          # each (E, E), out x in
    wo = jax.random.normal(k1, (IMAGE_SIZE, IMAGE_SIZE), jnp.float32) * 0.05
    w_fc = jax.random.normal(k2, (FC_OUT, IMAGE_SIZE), jnp.float32) * 0.02
    b_fc = jax.random.normal(k3, (1, FC_OUT), jnp.float32) * 0.01
    zeros_e = jnp.zeros((1, IMAGE_SIZE), jnp.float32)   # torch MHA inits proj biases to 0
    return dict(wq=wq, wk=wk, wv=wv, wo=wo,
                bq=zeros_e, bk=zeros_e, bv=zeros_e, bo=zeros_e,
                w_fc=w_fc, b_fc=b_fc)


def prepare_kernel_params(p):
    """One-time host-side prep: pre-transpose all weights, cast the big FC weight to bf16
    (the streamed dtype). No per-forward transposes or casts remain."""
    return dict(
        wq_t=jnp.asarray(p["wq"].T), wk_t=jnp.asarray(p["wk"].T),
        wv_t=jnp.asarray(p["wv"].T), wo_t=jnp.asarray(p["wo"].T),
        bq=p["bq"], bk=p["bk"], bv=p["bv"], bo=p["bo"],
        w_fc_t=jnp.asarray(p["w_fc"].T).astype(jnp.bfloat16),   # (E, E*E) bf16
        b_fc=p["b_fc"],
    )


def reference_forward(img, txt, p):
    """Pure-JAX reference mirroring torch.nn.MultiheadAttention + Linear.
    Mirrors the kernel's two intentional bf16 roundings (attn operand and FC weight);
    everything else is f32, matching the PyTorch model."""
    q = img @ p["wq"].T + p["bq"][0]
    k = txt @ p["wk"].T + p["bk"][0]
    v = txt @ p["wv"].T + p["bv"][0]
    qh = q.reshape(L_IMG, NUM_HEADS, HEAD_DIM).transpose(1, 0, 2)
    kh = k.reshape(L_TXT, NUM_HEADS, HEAD_DIM).transpose(1, 0, 2)
    vh = v.reshape(L_TXT, NUM_HEADS, HEAD_DIM).transpose(1, 0, 2)
    s = jnp.einsum("hqd,hkd->hqk", qh, kh) / math.sqrt(HEAD_DIM)
    a = jax.nn.softmax(s, axis=-1)
    ctx = jnp.einsum("hqk,hkd->hqd", a, vh).transpose(1, 0, 2).reshape(L_IMG, IMAGE_SIZE)
    attn = ctx @ p["wo"].T + p["bo"][0]
    attn_q = attn.astype(jnp.bfloat16).astype(jnp.float32)
    w_fc_q = p["w_fc"].astype(jnp.bfloat16).astype(jnp.float32)
    fc = attn_q @ w_fc_q.T + p["b_fc"][0]
    return fc.reshape(-1, IMAGE_SIZE, IMAGE_SIZE)[:, None, :, :]


# ----------------------------------- main ------------------------------------ #

if __name__ == "__main__":
    key = jax.random.PRNGKey(0)
    kp_key, ki, kt = jax.random.split(key, 3)
    params = init_params(kp_key)
    kernel_params = prepare_kernel_params(params)

    image_embedding = jax.random.normal(ki, (L_IMG, IMAGE_SIZE), jnp.float32)
    text_embedding = jax.random.normal(kt, (L_TXT, IMAGE_SIZE), jnp.float32)

    out = feature_map_generator(image_embedding, text_embedding, kernel_params)
    out = jax.block_until_ready(out)
    assert out.shape == (L_IMG, 1, IMAGE_SIZE, IMAGE_SIZE), out.shape

    ref = reference_forward(image_embedding, text_embedding, params)
    # bf16 weight stream + bf16 attn operand in the FC matmul (mirrored in the reference)
    assert jnp.allclose(out, ref, atol=5e-3, rtol=5e-3), "kernel/reference mismatch"

    print("KERNEL_OK")
</pallas_src>

<mosaic_0001>
module attributes {stable_mosaic.version = 11 : i64} {
  func.func @_mha_kernel(%arg0: i32, %arg1: memref<8x128xf32, #tpu.memory_space<vmem>>, %arg2: memref<8x128xf32, #tpu.memory_space<vmem>>, %arg3: memref<128x128xf32, #tpu.memory_space<vmem>>, %arg4: memref<128x128xf32, #tpu.memory_space<vmem>>, %arg5: memref<128x128xf32, #tpu.memory_space<vmem>>, %arg6: memref<128x128xf32, #tpu.memory_space<vmem>>, %arg7: memref<1x128xf32, #tpu.memory_space<vmem>>, %arg8: memref<1x128xf32, #tpu.memory_space<vmem>>, %arg9: memref<1x128xf32, #tpu.memory_space<vmem>>, %arg10: memref<1x128xf32, #tpu.memory_space<vmem>>, %arg11: memref<8x128xbf16, #tpu.memory_space<vmem>>, %arg12: memref<8x128xf32, #tpu.memory_space<vmem>>) attributes {dimension_semantics = [#tpu.dimension_semantics<arbitrary>], iteration_bounds = array<i64: 1>, scalar_prefetch = 0 : i64, scratch_operands = 1 : i64, tpu.core_type = #tpu.core_type<tc>, window_params = [{pipeline_mode = #tpu.pipeline_mode<synchronous>, transform_indices = @transform_0, window_bounds = array<i64: 8, 128>}, {pipeline_mode = #tpu.pipeline_mode<synchronous>, transform_indices = @transform_1, window_bounds = array<i64: 8, 128>}, {pipeline_mode = #tpu.pipeline_mode<synchronous>, transform_indices = @transform_2, window_bounds = array<i64: 128, 128>}, {pipeline_mode = #tpu.pipeline_mode<synchronous>, transform_indices = @transform_3, window_bounds = array<i64: 128, 128>}, {pipeline_mode = #tpu.pipeline_mode<synchronous>, transform_indices = @transform_4, window_bounds = array<i64: 128, 128>}, {pipeline_mode = #tpu.pipeline_mode<synchronous>, transform_indices = @transform_5, window_bounds = array<i64: 128, 128>}, {pipeline_mode = #tpu.pipeline_mode<synchronous>, transform_indices = @transform_6, window_bounds = array<i64: 1, 128>}, {pipeline_mode = #tpu.pipeline_mode<synchronous>, transform_indices = @transform_7, window_bounds = array<i64: 1, 128>}, {pipeline_mode = #tpu.pipeline_mode<synchronous>, transform_indices = @transform_8, window_bounds = array<i64: 1, 128>}, {pipeline_mode = #tpu.pipeline_mode<synchronous>, transform_indices = @transform_9, window_bounds = array<i64: 1, 128>}, {pipeline_mode = #tpu.pipeline_mode<synchronous>, transform_indices = @transform_10, window_bounds = array<i64: 8, 128>}]} {
    %c0 = arith.constant 0 : index
    %c0_0 = arith.constant 0 : index
    %0 = vector.load %arg1[%c0, %c0_0] : memref<8x128xf32, #tpu.memory_space<vmem>>, vector<8x128xf32>
    %c0_1 = arith.constant 0 : index
    %c0_2 = arith.constant 0 : index
    %1 = vector.load %arg2[%c0_1, %c0_2] : memref<8x128xf32, #tpu.memory_space<vmem>>, vector<8x128xf32>
    %c0_3 = arith.constant 0 : index
    %c0_4 = arith.constant 0 : index
    %2 = vector.load %arg3[%c0_3, %c0_4] : memref<128x128xf32, #tpu.memory_space<vmem>>, vector<128x128xf32>
    %cst = arith.constant dense<0.000000e+00> : vector<8x128xf32>
    %3 = tpu.matmul %0, %2, %cst {dimension_numbers = #tpu.dot_dimension_numbers<[1], [0], [0], [1], [0, 0, 1, 1], [], []>} : vector<8x128xf32>, vector<128x128xf32>, vector<8x128xf32> -> vector<8x128xf32>
    %c0_5 = arith.constant 0 : index
    %c0_6 = arith.constant 0 : index
    %4 = vector.load %arg7[%c0_5, %c0_6] : memref<1x128xf32, #tpu.memory_space<vmem>>, vector<1x128xf32>
    %5 = vector.broadcast %4 : vector<1x128xf32> to vector<8x128xf32>
    %6 = arith.addf %3, %5 : vector<8x128xf32>
    %c0_7 = arith.constant 0 : index
    %c0_8 = arith.constant 0 : index
    %7 = vector.load %arg4[%c0_7, %c0_8] : memref<128x128xf32, #tpu.memory_space<vmem>>, vector<128x128xf32>
    %cst_9 = arith.constant dense<0.000000e+00> : vector<8x128xf32>
    %8 = tpu.matmul %1, %7, %cst_9 {dimension_numbers = #tpu.dot_dimension_numbers<[1], [0], [0], [1], [0, 0, 1, 1], [], []>} : vector<8x128xf32>, vector<128x128xf32>, vector<8x128xf32> -> vector<8x128xf32>
    %c0_10 = arith.constant 0 : index
    %c0_11 = arith.constant 0 : index
    %9 = vector.load %arg8[%c0_10, %c0_11] : memref<1x128xf32, #tpu.memory_space<vmem>>, vector<1x128xf32>
    %10 = vector.broadcast %9 : vector<1x128xf32> to vector<8x128xf32>
    %11 = arith.addf %8, %10 : vector<8x128xf32>
    %c0_12 = arith.constant 0 : index
    %c0_13 = arith.constant 0 : index
    %12 = vector.load %arg5[%c0_12, %c0_13] : memref<128x128xf32, #tpu.memory_space<vmem>>, vector<128x128xf32>
    %cst_14 = arith.constant dense<0.000000e+00> : vector<8x128xf32>
    %13 = tpu.matmul %1, %12, %cst_14 {dimension_numbers = #tpu.dot_dimension_numbers<[1], [0], [0], [1], [0, 0, 1, 1], [], []>} : vector<8x128xf32>, vector<128x128xf32>, vector<8x128xf32> -> vector<8x128xf32>
    %c0_15 = arith.constant 0 : index
    %c0_16 = arith.constant 0 : index
    %14 = vector.load %arg9[%c0_15, %c0_16] : memref<1x128xf32, #tpu.memory_space<vmem>>, vector<1x128xf32>
    %15 = vector.broadcast %14 : vector<1x128xf32> to vector<8x128xf32>
    %16 = arith.addf %13, %15 : vector<8x128xf32>
    %17 = vector.extract_strided_slice %6 {offsets = [0, 0], sizes = [8, 16], strides = [1, 1]} : vector<8x128xf32> to vector<8x16xf32>
    %18 = vector.extract_strided_slice %11 {offsets = [0, 0], sizes = [8, 16], strides = [1, 1]} : vector<8x128xf32> to vector<8x16xf32>
    %19 = vector.extract_strided_slice %16 {offsets = [0, 0], sizes = [8, 16], strides = [1, 1]} : vector<8x128xf32> to vector<8x16xf32>
    %cst_17 = arith.constant dense<0.000000e+00> : vector<8x8xf32>
    %20 = tpu.matmul %17, %18, %cst_17 {dimension_numbers = #tpu.dot_dimension_numbers<[1], [1], [0], [0], [0, 0, 1, 0], [], []>} : vector<8x16xf32>, vector<8x16xf32>, vector<8x8xf32> -> vector<8x8xf32>
    %cst_18 = arith.constant 2.500000e-01 : f32
    %21 = vector.broadcast %cst_18 : f32 to vector<8x8xf32>
    %22 = arith.mulf %20, %21 : vector<8x8xf32>
    %cst_19 = arith.constant dense<0xFF800000> : vector<8xf32>
    %23 = vector.multi_reduction <maximumf>, %22, %cst_19 [1] : vector<8x8xf32> to vector<8xf32>
    %24 = vector.shape_cast %23 : vector<8xf32> to vector<8x1xf32>
    %25 = vector.broadcast %24 : vector<8x1xf32> to vector<8x8xf32>
    %26 = arith.subf %22, %25 : vector<8x8xf32>
    %27 = math.exp %26 : vector<8x8xf32>
    %cst_20 = arith.constant dense<0.000000e+00> : vector<8xf32>
    %28 = vector.multi_reduction <add>, %27, %cst_20 [1] : vector<8x8xf32> to vector<8xf32>
    %29 = vector.shape_cast %28 : vector<8xf32> to vector<8x1xf32>
    %30 = vector.broadcast %29 : vector<8x1xf32> to vector<8x8xf32>
    %31 = arith.divf %27, %30 : vector<8x8xf32>
    %cst_21 = arith.constant dense<0.000000e+00> : vector<8x16xf32>
    %32 = tpu.matmul %31, %19, %cst_21 {dimension_numbers = #tpu.dot_dimension_numbers<[1], [0], [0], [1], [0, 0, 1, 1], [], []>} : vector<8x8xf32>, vector<8x16xf32>, vector<8x16xf32> -> vector<8x16xf32>
    %c0_22 = arith.constant 0 : index
    %c0_23 = arith.constant 0 : index
    %33 = vector.load %arg12[%c0_22, %c0_23] : memref<8x128xf32, #tpu.memory_space<vmem>>, vector<8x16xf32>
    tpu.vector_store %arg12[%c0_22, %c0_23], %32 {strides = array<i32>} : memref<8x128xf32, #tpu.memory_space<vmem>>, vector<8x16xf32>,
    %34 = vector.extract_strided_slice %6 {offsets = [0, 16], sizes = [8, 16], strides = [1, 1]} : vector<8x128xf32> to vector<8x16xf32>
    %35 = vector.extract_strided_slice %11 {offsets = [0, 16], sizes = [8, 16], strides = [1, 1]} : vector<8x128xf32> to vector<8x16xf32>
    %36 = vector.extract_strided_slice %16 {offsets = [0, 16], sizes = [8, 16], strides = [1, 1]} : vector<8x128xf32> to vector<8x16xf32>
    %cst_24 = arith.constant dense<0.000000e+00> : vector<8x8xf32>
    %37 = tpu.matmul %34, %35, %cst_24 {dimension_numbers = #tpu.dot_dimension_numbers<[1], [1], [0], [0], [0, 0, 1, 0], [], []>} : vector<8x16xf32>, vector<8x16xf32>, vector<8x8xf32> -> vector<8x8xf32>
    %cst_25 = arith.constant 2.500000e-01 : f32
    %38 = vector.broadcast %cst_25 : f32 to vector<8x8xf32>
    %39 = arith.mulf %37, %38 : vector<8x8xf32>
    %cst_26 = arith.constant dense<0xFF800000> : vector<8xf32>
    %40 = vector.multi_reduction <maximumf>, %39, %cst_26 [1] : vector<8x8xf32> to vector<8xf32>
    %41 = vector.shape_cast %40 : vector<8xf32> to vector<8x1xf32>
    %42 = vector.broadcast %41 : vector<8x1xf32> to vector<8x8xf32>
    %43 = arith.subf %39, %42 : vector<8x8xf32>
    %44 = math.exp %43 : vector<8x8xf32>
    %cst_27 = arith.constant dense<0.000000e+00> : vector<8xf32>
    %45 = vector.multi_reduction <add>, %44, %cst_27 [1] : vector<8x8xf32> to vector<8xf32>
    %46 = vector.shape_cast %45 : vector<8xf32> to vector<8x1xf32>
    %47 = vector.broadcast %46 : vector<8x1xf32> to vector<8x8xf32>
    %48 = arith.divf %44, %47 : vector<8x8xf32>
    %cst_28 = arith.constant dense<0.000000e+00> : vector<8x16xf32>
    %49 = tpu.matmul %48, %36, %cst_28 {dimension_numbers = #tpu.dot_dimension_numbers<[1], [0], [0], [1], [0, 0, 1, 1], [], []>} : vector<8x8xf32>, vector<8x16xf32>, vector<8x16xf32> -> vector<8x16xf32>
    %c0_29 = arith.constant 0 : index
    %c16 = arith.constant 16 : index
    %50 = vector.load %arg12[%c0_29, %c16] : memref<8x128xf32, #tpu.memory_space<vmem>>, vector<8x16xf32>
    tpu.vector_store %arg12[%c0_29, %c16], %49 {strides = array<i32>} : memref<8x128xf32, #tpu.memory_space<vmem>>, vector<8x16xf32>,
    %51 = vector.extract_strided_slice %6 {offsets = [0, 32], sizes = [8, 16], strides = [1, 1]} : vector<8x128xf32> to vector<8x16xf32>
    %52 = vector.extract_strided_slice %11 {offsets = [0, 32], sizes = [8, 16], strides = [1, 1]} : vector<8x128xf32> to vector<8x16xf32>
    %53 = vector.extract_strided_slice %16 {offsets = [0, 32], sizes = [8, 16], strides = [1, 1]} : vector<8x128xf32> to vector<8x16xf32>
    %cst_30 = arith.constant dense<0.000000e+00> : vector<8x8xf32>
    %54 = tpu.matmul %51, %52, %cst_30 {dimension_numbers = #tpu.dot_dimension_numbers<[1], [1], [0], [0], [0, 0, 1, 0], [], []>} : vector<8x16xf32>, vector<8x16xf32>, vector<8x8xf32> -> vector<8x8xf32>
    %cst_31 = arith.constant 2.500000e-01 : f32
    %55 = vector.broadcast %cst_31 : f32 to vector<8x8xf32>
    %56 = arith.mulf %54, %55 : vector<8x8xf32>
    %cst_32 = arith.constant dense<0xFF800000> : vector<8xf32>
    %57 = vector.multi_reduction <maximumf>, %56, %cst_32 [1] : vector<8x8xf32> to vector<8xf32>
    %58 = vector.shape_cast %57 : vector<8xf32> to vector<8x1xf32>
    %59 = vector.broadcast %58 : vector<8x1xf32> to vector<8x8xf32>
    %60 = arith.subf %56, %59 : vector<8x8xf32>
    %61 = math.exp %60 : vector<8x8xf32>
    %cst_33 = arith.constant dense<0.000000e+00> : vector<8xf32>
    %62 = vector.multi_reduction <add>, %61, %cst_33 [1] : vector<8x8xf32> to vector<8xf32>
    %63 = vector.shape_cast %62 : vector<8xf32> to vector<8x1xf32>
    %64 = vector.broadcast %63 : vector<8x1xf32> to vector<8x8xf32>
    %65 = arith.divf %61, %64 : vector<8x8xf32>
    %cst_34 = arith.constant dense<0.000000e+00> : vector<8x16xf32>
    %66 = tpu.matmul %65, %53, %cst_34 {dimension_numbers = #tpu.dot_dimension_numbers<[1], [0], [0], [1], [0, 0, 1, 1], [], []>} : vector<8x8xf32>, vector<8x16xf32>, vector<8x16xf32> -> vector<8x16xf32>
    %c0_35 = arith.constant 0 : index
    %c32 = arith.constant 32 : index
    %67 = vector.load %arg12[%c0_35, %c32] : memref<8x128xf32, #tpu.memory_space<vmem>>, vector<8x16xf32>
    tpu.vector_store %arg12[%c0_35, %c32], %66 {strides = array<i32>} : memref<8x128xf32, #tpu.memory_space<vmem>>, vector<8x16xf32>,
    %68 = vector.extract_strided_slice %6 {offsets = [0, 48], sizes = [8, 16], strides = [1, 1]} : vector<8x128xf32> to vector<8x16xf32>
    %69 = vector.extract_strided_slice %11 {offsets = [0, 48], sizes = [8, 16], strides = [1, 1]} : vector<8x128xf32> to vector<8x16xf32>
    %70 = vector.extract_strided_slice %16 {offsets = [0, 48], sizes = [8, 16], strides = [1, 1]} : vector<8x128xf32> to vector<8x16xf32>
    %cst_36 = arith.constant dense<0.000000e+00> : vector<8x8xf32>
    %71 = tpu.matmul %68, %69, %cst_36 {dimension_numbers = #tpu.dot_dimension_numbers<[1], [1], [0], [0], [0, 0, 1, 0], [], []>} : vector<8x16xf32>, vector<8x16xf32>, vector<8x8xf32> -> vector<8x8xf32>
    %cst_37 = arith.constant 2.500000e-01 : f32
    %72 = vector.broadcast %cst_37 : f32 to vector<8x8xf32>
    %73 = arith.mulf %71, %72 : vector<8x8xf32>
    %cst_38 = arith.constant dense<0xFF800000> : vector<8xf32>
    %74 = vector.multi_reduction <maximumf>, %73, %cst_38 [1] : vector<8x8xf32> to vector<8xf32>
    %75 = vector.shape_cast %74 : vector<8xf32> to vector<8x1xf32>
    %76 = vector.broadcast %75 : vector<8x1xf32> to vector<8x8xf32>
    %77 = arith.subf %73, %76 : vector<8x8xf32>
    %78 = math.exp %77 : vector<8x8xf32>
    %cst_39 = arith.constant dense<0.000000e+00> : vector<8xf32>
    %79 = vector.multi_reduction <add>, %78, %cst_39 [1] : vector<8x8xf32> to vector<8xf32>
    %80 = vector.shape_cast %79 : vector<8xf32> to vector<8x1xf32>
    %81 = vector.broadcast %80 : vector<8x1xf32> to vector<8x8xf32>
    %82 = arith.divf %78, %81 : vector<8x8xf32>
    %cst_40 = arith.constant dense<0.000000e+00> : vector<8x16xf32>
    %83 = tpu.matmul %82, %70, %cst_40 {dimension_numbers = #tpu.dot_dimension_numbers<[1], [0], [0], [1], [0, 0, 1, 1], [], []>} : vector<8x8xf32>, vector<8x16xf32>, vector<8x16xf32> -> vector<8x16xf32>
    %c0_41 = arith.constant 0 : index
    %c48 = arith.constant 48 : index
    %84 = vector.load %arg12[%c0_41, %c48] : memref<8x128xf32, #tpu.memory_space<vmem>>, vector<8x16xf32>
    tpu.vector_store %arg12[%c0_41, %c48], %83 {strides = array<i32>} : memref<8x128xf32, #tpu.memory_space<vmem>>, vector<8x16xf32>,
    %85 = vector.extract_strided_slice %6 {offsets = [0, 64], sizes = [8, 16], strides = [1, 1]} : vector<8x128xf32> to vector<8x16xf32>
    %86 = vector.extract_strided_slice %11 {offsets = [0, 64], sizes = [8, 16], strides = [1, 1]} : vector<8x128xf32> to vector<8x16xf32>
    %87 = vector.extract_strided_slice %16 {offsets = [0, 64], sizes = [8, 16], strides = [1, 1]} : vector<8x128xf32> to vector<8x16xf32>
    %cst_42 = arith.constant dense<0.000000e+00> : vector<8x8xf32>
    %88 = tpu.matmul %85, %86, %cst_42 {dimension_numbers = #tpu.dot_dimension_numbers<[1], [1], [0], [0], [0, 0, 1, 0], [], []>} : vector<8x16xf32>, vector<8x16xf32>, vector<8x8xf32> -> vector<8x8xf32>
    %cst_43 = arith.constant 2.500000e-01 : f32
    %89 = vector.broadcast %cst_43 : f32 to vector<8x8xf32>
    %90 = arith.mulf %88, %89 : vector<8x8xf32>
    %cst_44 = arith.constant dense<0xFF800000> : vector<8xf32>
    %91 = vector.multi_reduction <maximumf>, %90, %cst_44 [1] : vector<8x8xf32> to vector<8xf32>
    %92 = vector.shape_cast %91 : vector<8xf32> to vector<8x1xf32>
    %93 = vector.broadcast %92 : vector<8x1xf32> to vector<8x8xf32>
    %94 = arith.subf %90, %93 : vector<8x8xf32>
    %95 = math.exp %94 : vector<8x8xf32>
    %cst_45 = arith.constant dense<0.000000e+00> : vector<8xf32>
    %96 = vector.multi_reduction <add>, %95, %cst_45 [1] : vector<8x8xf32> to vector<8xf32>
    %97 = vector.shape_cast %96 : vector<8xf32> to vector<8x1xf32>
    %98 = vector.broadcast %97 : vector<8x1xf32> to vector<8x8xf32>
    %99 = arith.divf %95, %98 : vector<8x8xf32>
    %cst_46 = arith.constant dense<0.000000e+00> : vector<8x16xf32>
    %100 = tpu.matmul %99, %87, %cst_46 {dimension_numbers = #tpu.dot_dimension_numbers<[1], [0], [0], [1], [0, 0, 1, 1], [], []>} : vector<8x8xf32>, vector<8x16xf32>, vector<8x16xf32> -> vector<8x16xf32>
    %c0_47 = arith.constant 0 : index
    %c64 = arith.constant 64 : index
    %101 = vector.load %arg12[%c0_47, %c64] : memref<8x128xf32, #tpu.memory_space<vmem>>, vector<8x16xf32>
    tpu.vector_store %arg12[%c0_47, %c64], %100 {strides = array<i32>} : memref<8x128xf32, #tpu.memory_space<vmem>>, vector<8x16xf32>,
    %102 = vector.extract_strided_slice %6 {offsets = [0, 80], sizes = [8, 16], strides = [1, 1]} : vector<8x128xf32> to vector<8x16xf32>
    %103 = vector.extract_strided_slice %11 {offsets = [0, 80], sizes = [8, 16], strides = [1, 1]} : vector<8x128xf32> to vector<8x16xf32>
    %104 = vector.extract_strided_slice %16 {offsets = [0, 80], sizes = [8, 16], strides = [1, 1]} : vector<8x128xf32> to vector<8x16xf32>
    %cst_48 = arith.constant dense<0.000000e+00> : vector<8x8xf32>
    %105 = tpu.matmul %102, %103, %cst_48 {dimension_numbers = #tpu.dot_dimension_numbers<[1], [1], [0], [0], [0, 0, 1, 0], [], []>} : vector<8x16xf32>, vector<8x16xf32>, vector<8x8xf32> -> vector<8x8xf32>
    %cst_49 = arith.constant 2.500000e-01 : f32
    %106 = vector.broadcast %cst_49 : f32 to vector<8x8xf32>
    %107 = arith.mulf %105, %106 : vector<8x8xf32>
    %cst_50 = arith.constant dense<0xFF800000> : vector<8xf32>
    %108 = vector.multi_reduction <maximumf>, %107, %cst_50 [1] : vector<8x8xf32> to vector<8xf32>
    %109 = vector.shape_cast %108 : vector<8xf32> to vector<8x1xf32>
    %110 = vector.broadcast %109 : vector<8x1xf32> to vector<8x8xf32>
    %111 = arith.subf %107, %110 : vector<8x8xf32>
    %112 = math.exp %111 : vector<8x8xf32>
    %cst_51 = arith.constant dense<0.000000e+00> : vector<8xf32>
    %113 = vector.multi_reduction <add>, %112, %cst_51 [1] : vector<8x8xf32> to vector<8xf32>
    %114 = vector.shape_cast %113 : vector<8xf32> to vector<8x1xf32>
    %115 = vector.broadcast %114 : vector<8x1xf32> to vector<8x8xf32>
    %116 = arith.divf %112, %115 : vector<8x8xf32>
    %cst_52 = arith.constant dense<0.000000e+00> : vector<8x16xf32>
    %117 = tpu.matmul %116, %104, %cst_52 {dimension_numbers = #tpu.dot_dimension_numbers<[1], [0], [0], [1], [0, 0, 1, 1], [], []>} : vector<8x8xf32>, vector<8x16xf32>, vector<8x16xf32> -> vector<8x16xf32>
    %c0_53 = arith.constant 0 : index
    %c80 = arith.constant 80 : index
    %118 = vector.load %arg12[%c0_53, %c80] : memref<8x128xf32, #tpu.memory_space<vmem>>, vector<8x16xf32>
    tpu.vector_store %arg12[%c0_53, %c80], %117 {strides = array<i32>} : memref<8x128xf32, #tpu.memory_space<vmem>>, vector<8x16xf32>,
    %119 = vector.extract_strided_slice %6 {offsets = [0, 96], sizes = [8, 16], strides = [1, 1]} : vector<8x128xf32> to vector<8x16xf32>
    %120 = vector.extract_strided_slice %11 {offsets = [0, 96], sizes = [8, 16], strides = [1, 1]} : vector<8x128xf32> to vector<8x16xf32>
    %121 = vector.extract_strided_slice %16 {offsets = [0, 96], sizes = [8, 16], strides = [1, 1]} : vector<8x128xf32> to vector<8x16xf32>
    %cst_54 = arith.constant dense<0.000000e+00> : vector<8x8xf32>
    %122 = tpu.matmul %119, %120, %cst_54 {dimension_numbers = #tpu.dot_dimension_numbers<[1], [1], [0], [0], [0, 0, 1, 0], [], []>} : vector<8x16xf32>, vector<8x16xf32>, vector<8x8xf32> -> vector<8x8xf32>
    %cst_55 = arith.constant 2.500000e-01 : f32
    %123 = vector.broadcast %cst_55 : f32 to vector<8x8xf32>
    %124 = arith.mulf %122, %123 : vector<8x8xf32>
    %cst_56 = arith.constant dense<0xFF800000> : vector<8xf32>
    %125 = vector.multi_reduction <maximumf>, %124, %cst_56 [1] : vector<8x8xf32> to vector<8xf32>
    %126 = vector.shape_cast %125 : vector<8xf32> to vector<8x1xf32>
    %127 = vector.broadcast %126 : vector<8x1xf32> to vector<8x8xf32>
    %128 = arith.subf %124, %127 : vector<8x8xf32>
    %129 = math.exp %128 : vector<8x8xf32>
    %cst_57 = arith.constant dense<0.000000e+00> : vector<8xf32>
    %130 = vector.multi_reduction <add>, %129, %cst_57 [1] : vector<8x8xf32> to vector<8xf32>
    %131 = vector.shape_cast %130 : vector<8xf32> to vector<8x1xf32>
    %132 = vector.broadcast %131 : vector<8x1xf32> to vector<8x8xf32>
    %133 = arith.divf %129, %132 : vector<8x8xf32>
    %cst_58 = arith.constant dense<0.000000e+00> : vector<8x16xf32>
    %134 = tpu.matmul %133, %121, %cst_58 {dimension_numbers = #tpu.dot_dimension_numbers<[1], [0], [0], [1], [0, 0, 1, 1], [], []>} : vector<8x8xf32>, vector<8x16xf32>, vector<8x16xf32> -> vector<8x16xf32>
    %c0_59 = arith.constant 0 : index
    %c96 = arith.constant 96 : index
    %135 = vector.load %arg12[%c0_59, %c96] : memref<8x128xf32, #tpu.memory_space<vmem>>, vector<8x16xf32>
    tpu.vector_store %arg12[%c0_59, %c96], %134 {strides = array<i32>} : memref<8x128xf32, #tpu.memory_space<vmem>>, vector<8x16xf32>,
    %136 = vector.extract_strided_slice %6 {offsets = [0, 112], sizes = [8, 16], strides = [1, 1]} : vector<8x128xf32> to vector<8x16xf32>
    %137 = vector.extract_strided_slice %11 {offsets = [0, 112], sizes = [8, 16], strides = [1, 1]} : vector<8x128xf32> to vector<8x16xf32>
    %138 = vector.extract_strided_slice %16 {offsets = [0, 112], sizes = [8, 16], strides = [1, 1]} : vector<8x128xf32> to vector<8x16xf32>
    %cst_60 = arith.constant dense<0.000000e+00> : vector<8x8xf32>
    %139 = tpu.matmul %136, %137, %cst_60 {dimension_numbers = #tpu.dot_dimension_numbers<[1], [1], [0], [0], [0, 0, 1, 0], [], []>} : vector<8x16xf32>, vector<8x16xf32>, vector<8x8xf32> -> vector<8x8xf32>
    %cst_61 = arith.constant 2.500000e-01 : f32
    %140 = vector.broadcast %cst_61 : f32 to vector<8x8xf32>
    %141 = arith.mulf %139, %140 : vector<8x8xf32>
    %cst_62 = arith.constant dense<0xFF800000> : vector<8xf32>
    %142 = vector.multi_reduction <maximumf>, %141, %cst_62 [1] : vector<8x8xf32> to vector<8xf32>
    %143 = vector.shape_cast %142 : vector<8xf32> to vector<8x1xf32>
    %144 = vector.broadcast %143 : vector<8x1xf32> to vector<8x8xf32>
    %145 = arith.subf %141, %144 : vector<8x8xf32>
    %146 = math.exp %145 : vector<8x8xf32>
    %cst_63 = arith.constant dense<0.000000e+00> : vector<8xf32>
    %147 = vector.multi_reduction <add>, %146, %cst_63 [1] : vector<8x8xf32> to vector<8xf32>
    %148 = vector.shape_cast %147 : vector<8xf32> to vector<8x1xf32>
    %149 = vector.broadcast %148 : vector<8x1xf32> to vector<8x8xf32>
    %150 = arith.divf %146, %149 : vector<8x8xf32>
    %cst_64 = arith.constant dense<0.000000e+00> : vector<8x16xf32>
    %151 = tpu.matmul %150, %138, %cst_64 {dimension_numbers = #tpu.dot_dimension_numbers<[1], [0], [0], [1], [0, 0, 1, 1], [], []>} : vector<8x8xf32>, vector<8x16xf32>, vector<8x16xf32> -> vector<8x16xf32>
    %c0_65 = arith.constant 0 : index
    %c112 = arith.constant 112 : index
    %152 = vector.load %arg12[%c0_65, %c112] : memref<8x128xf32, #tpu.memory_space<vmem>>, vector<8x16xf32>
    tpu.vector_store %arg12[%c0_65, %c112], %151 {strides = array<i32>} : memref<8x128xf32, #tpu.memory_space<vmem>>, vector<8x16xf32>,
    %c0_66 = arith.constant 0 : index
    %c0_67 = arith.constant 0 : index
    %153 = vector.load %arg12[%c0_66, %c0_67] : memref<8x128xf32, #tpu.memory_space<vmem>>, vector<8x128xf32>
    %c0_68 = arith.constant 0 : index
    %c0_69 = arith.constant 0 : index
    %154 = vector.load %arg6[%c0_68, %c0_69] : memref<128x128xf32, #tpu.memory_space<vmem>>, vector<128x128xf32>
    %cst_70 = arith.constant dense<0.000000e+00> : vector<8x128xf32>
    %155 = tpu.matmul %153, %154, %cst_70 {dimension_numbers = #tpu.dot_dimension_numbers<[1], [0], [0], [1], [0, 0, 1, 1], [], []>} : vector<8x128xf32>, vector<128x128xf32>, vector<8x128xf32> -> vector<8x128xf32>
    %c0_71 = arith.constant 0 : index
    %c0_72 = arith.constant 0 : index
    %156 = vector.load %arg10[%c0_71, %c0_72] : memref<1x128xf32, #tpu.memory_space<vmem>>, vector<1x128xf32>
    %157 = vector.broadcast %156 : vector<1x128xf32> to vector<8x128xf32>
    %158 = arith.addf %155, %157 : vector<8x128xf32>
    %159 = arith.truncf %158 : vector<8x128xf32> to vector<8x128xbf16>
    %c0_73 = arith.constant 0 : index
    %c0_74 = arith.constant 0 : index
    %160 = vector.load %arg11[%c0_73, %c0_74] : memref<8x128xbf16, #tpu.memory_space<vmem>>, vector<8x128xbf16>
    tpu.vector_store %arg11[%c0_73, %c0_74], %159 {strides = array<i32>} : memref<8x128xbf16, #tpu.memory_space<vmem>>, vector<8x128xbf16>,
    return
  }
  func.func @transform_0(%arg0: i32) -> (i32, i32) {
    %c0_i32 = arith.constant 0 : i32
    %c0_i32_0 = arith.constant 0 : i32
    %c0_i32_1 = arith.constant 0 : i32
    return %c0_i32, %c0_i32_0 : i32, i32
  }
  func.func @transform_1(%arg0: i32) -> (i32, i32) {
    %c0_i32 = arith.constant 0 : i32
    %c0_i32_0 = arith.constant 0 : i32
    %c0_i32_1 = arith.constant 0 : i32
    return %c0_i32, %c0_i32_0 : i32, i32
  }
  func.func @transform_2(%arg0: i32) -> (i32, i32) {
    %c0_i32 = arith.constant 0 : i32
    %c0_i32_0 = arith.constant 0 : i32
    %c0_i32_1 = arith.constant 0 : i32
    return %c0_i32, %c0_i32_0 : i32, i32
  }
  func.func @transform_3(%arg0: i32) -> (i32, i32) {
    %c0_i32 = arith.constant 0 : i32
    %c0_i32_0 = arith.constant 0 : i32
    %c0_i32_1 = arith.constant 0 : i32
    return %c0_i32, %c0_i32_0 : i32, i32
  }
  func.func @transform_4(%arg0: i32) -> (i32, i32) {
    %c0_i32 = arith.constant 0 : i32
    %c0_i32_0 = arith.constant 0 : i32
    %c0_i32_1 = arith.constant 0 : i32
    return %c0_i32, %c0_i32_0 : i32, i32
  }
  func.func @transform_5(%arg0: i32) -> (i32, i32) {
    %c0_i32 = arith.constant 0 : i32
    %c0_i32_0 = arith.constant 0 : i32
    %c0_i32_1 = arith.constant 0 : i32
    return %c0_i32, %c0_i32_0 : i32, i32
  }
  func.func @transform_6(%arg0: i32) -> (i32, i32) {
    %c0_i32 = arith.constant 0 : i32
    %c0_i32_0 = arith.constant 0 : i32
    %c0_i32_1 = arith.constant 0 : i32
    return %c0_i32, %c0_i32_0 : i32, i32
  }
  func.func @transform_7(%arg0: i32) -> (i32, i32) {
    %c0_i32 = arith.constant 0 : i32
    %c0_i32_0 = arith.constant 0 : i32
    %c0_i32_1 = arith.constant 0 : i32
    return %c0_i32, %c0_i32_0 : i32, i32
  }
  func.func @transform_8(%arg0: i32) -> (i32, i32) {
    %c0_i32 = arith.constant 0 : i32
    %c0_i32_0 = arith.constant 0 : i32
    %c0_i32_1 = arith.constant 0 : i32
    return %c0_i32, %c0_i32_0 : i32, i32
  }
  func.func @transform_9(%arg0: i32) -> (i32, i32) {
    %c0_i32 = arith.constant 0 : i32
    %c0_i32_0 = arith.constant 0 : i32
    %c0_i32_1 = arith.constant 0 : i32
    return %c0_i32, %c0_i32_0 : i32, i32
  }
  func.func @transform_10(%arg0: i32) -> (i32, i32) {
    %c0_i32 = arith.constant 0 : i32
    %c0_i32_0 = arith.constant 0 : i32
    %c0_i32_1 = arith.constant 0 : i32
    return %c0_i32, %c0_i32_0 : i32, i32
  }
}

module attributes {stable_mosaic.version = 11 : i64} {
  func.func @_fc_kernel(%arg0: i32, %arg1: memref<8x128xbf16, #tpu.memory_space<vmem>>, %arg2: memref<128x8192xbf16, #tpu.memory_space<vmem>>, %arg3: memref<1x8192xf32, #tpu.memory_space<vmem>>, %arg4: memref<8x8192xf32, #tpu.memory_space<vmem>>) attributes {dimension_semantics = [#tpu.dimension_semantics<parallel>], iteration_bounds = array<i64: 2>, scalar_prefetch = 0 : i64, scratch_operands = 0 : i64, tpu.core_type = #tpu.core_type<tc>, window_params = [{pipeline_mode = #tpu.pipeline_mode<synchronous>, transform_indices = @transform_0, window_bounds = array<i64: 8, 128>}, {transform_indices = @transform_1, window_bounds = array<i64: 128, 8192>}, {transform_indices = @transform_2, window_bounds = array<i64: 1, 8192>}, {transform_indices = @transform_3, window_bounds = array<i64: 8, 8192>}]} {
    %c0 = arith.constant 0 : index
    %c0_0 = arith.constant 0 : index
    %0 = vector.load %arg1[%c0, %c0_0] : memref<8x128xbf16, #tpu.memory_space<vmem>>, vector<8x128xbf16>
    %c0_1 = arith.constant 0 : index
    %c0_2 = arith.constant 0 : index
    %1 = vector.load %arg2[%c0_1, %c0_2] : memref<128x8192xbf16, #tpu.memory_space<vmem>>, vector<128x8192xbf16>
    %cst = arith.constant dense<0.000000e+00> : vector<8x8192xf32>
    %2 = tpu.matmul %0, %1, %cst {dimension_numbers = #tpu.dot_dimension_numbers<[1], [0], [0], [1], [0, 0, 1, 1], [], []>} : vector<8x128xbf16>, vector<128x8192xbf16>, vector<8x8192xf32> -> vector<8x8192xf32>
    %c0_3 = arith.constant 0 : index
    %c0_4 = arith.constant 0 : index
    %3 = vector.load %arg3[%c0_3, %c0_4] : memref<1x8192xf32, #tpu.memory_space<vmem>>, vector<1x8192xf32>
    %4 = vector.broadcast %3 : vector<1x8192xf32> to vector<8x8192xf32>
    %5 = arith.addf %2, %4 : vector<8x8192xf32>
    %c0_5 = arith.constant 0 : index
    %c0_6 = arith.constant 0 : index
    %6 = vector.load %arg4[%c0_5, %c0_6] : memref<8x8192xf32, #tpu.memory_space<vmem>>, vector<8x8192xf32>
    tpu.vector_store %arg4[%c0_5, %c0_6], %5 {strides = array<i32>} : memref<8x8192xf32, #tpu.memory_space<vmem>>, vector<8x8192xf32>,
    return
  }
  func.func @transform_0(%arg0: i32) -> (i32, i32) {
    %c0_i32 = arith.constant 0 : i32
    %c0_i32_0 = arith.constant 0 : i32
    %c0_i32_1 = arith.constant 0 : i32
    return %c0_i32, %c0_i32_0 : i32, i32
  }
  func.func @transform_1(%arg0: i32) -> (i32, i32) {
    %c0_i32 = arith.constant 0 : i32
    %c0_i32_0 = arith.constant 0 : i32
    return %c0_i32, %arg0 : i32, i32
  }
  func.func @transform_2(%arg0: i32) -> (i32, i32) {
    %c0_i32 = arith.constant 0 : i32
    %c0_i32_0 = arith.constant 0 : i32
    return %c0_i32, %arg0 : i32, i32
  }
  func.func @transform_3(%arg0: i32) -> (i32, i32) {
    %c0_i32 = arith.constant 0 : i32
    %c0_i32_0 = arith.constant 0 : i32
    return %c0_i32, %arg0 : i32, i32
  }
}

</mosaic_0001>

<llo_original>
// kernel: feature_map_generator.2
$region0: #{feature_map_generator.2}
  #allocation0 [shape = 'u32[]', space=smem, size = 0x4, offset = 0x4, fixed_abs, tag = 'smem constant byte address 0x4 - core index']
  #allocation1 [shape = 'u32[144,128]{1,0:T(1,128)}', space=vmem, size = 0x12000, scoped, tag = 'internal scratch']
  #allocation2 [shape = 'f32[8,128]{1,0:T(8,128)}', space=vmem, size = 0x1000, scoped, tag = 'scratch operand']
  %s0 = inlined_call_operand.hbm [shape: f32[8,128], index: 0, kind: input, shape index: {}]
  %s1 = inlined_call_operand.hbm [shape: f32[8,128], index: 1, kind: input, shape index: {}]
  %s2 = inlined_call_operand.hbm [shape: f32[128,128], index: 2, kind: input, shape index: {}]
  %s3 = inlined_call_operand.hbm [shape: f32[128,128], index: 3, kind: input, shape index: {}]
  %s4 = inlined_call_operand.hbm [shape: f32[128,128], index: 4, kind: input, shape index: {}]
  %s5 = inlined_call_operand.hbm [shape: f32[128,128], index: 5, kind: input, shape index: {}]
  %s6 = inlined_call_operand.hbm [shape: f32[1,128], index: 6, kind: input, shape index: {}]
  %s7 = inlined_call_operand.hbm [shape: f32[1,128], index: 7, kind: input, shape index: {}]
  %s8 = inlined_call_operand.hbm [shape: f32[1,128], index: 8, kind: input, shape index: {}]
  %s9 = inlined_call_operand.hbm [shape: f32[1,128], index: 9, kind: input, shape index: {}]
  %s10 = inlined_call_operand.vmem [shape: bf16[8,128], index: 10, kind: output, shape index: {}]
  %s11 = sld [smem:[#allocation0]]
  $region90: #{feature_map_generator.2} parent=0
    _
  %s13 = ssub.s32 1, %s11
  %s14 = scalar_select 0, %s13, %s11
  $region1: #{feature_map_generator.2} parent=0
    #allocation3 [shape = 'u8[4096]{0}', space=vmem, size = 0x1000, scoped, tag = 'input window, operand 0, single buffered']
    #allocation4 [shape = 's32[1]{0}', space=sflag, size = 0x4, scoped, tag = 'scoped memory for feature_map_generator.2']
    #allocation5 [shape = 'u8[4096]{0}', space=vmem, size = 0x1000, scoped, tag = 'input window, operand 1, single buffered']
    #allocation6 [shape = 's32[1]{0}', space=sflag, size = 0x4, scoped, tag = 'scoped memory for feature_map_generator.2']
    #allocation7 [shape = 'u8[65536]{0}', space=vmem, size = 0x10000, scoped, tag = 'input window, operand 2, single buffered']
    #allocation8 [shape = 'u8[65536]{0}', space=vmem, size = 0x10000, scoped, tag = 'input window, operand 3, single buffered']
    #allocation9 [shape = 's32[1]{0}', space=sflag, size = 0x4, scoped, tag = 'scoped memory for feature_map_generator.2']
    #allocation10 [shape = 'u8[65536]{0}', space=vmem, size = 0x10000, scoped, tag = 'input window, operand 4, single buffered']
    #allocation11 [shape = 'u8[65536]{0}', space=vmem, size = 0x10000, scoped, tag = 'input window, operand 5, single buffered']
    #allocation12 [shape = 's32[1]{0}', space=sflag, size = 0x4, scoped, tag = 'scoped memory for feature_map_generator.2']
    #allocation13 [shape = 'u8[512]{0}', space=vmem, size = 0x400, scoped, tag = 'input window, operand 6, single buffered']
    #allocation14 [shape = 'u8[512]{0}', space=vmem, size = 0x400, scoped, tag = 'input window, operand 7, single buffered']
    #allocation15 [shape = 's32[1]{0}', space=sflag, size = 0x4, scoped, tag = 'scoped memory for feature_map_generator.2']
    #allocation16 [shape = 'u8[512]{0}', space=vmem, size = 0x400, scoped, tag = 'input window, operand 8, single buffered']
    #allocation17 [shape = 'u8[512]{0}', space=vmem, size = 0x400, scoped, tag = 'input window, operand 9, single buffered']
    #allocation18 [shape = 's32[1]{0}', space=sflag, size = 0x4, scoped, tag = 'scoped memory for feature_map_generator.2']
    %15 = vsyncpa [#allocation4], 0
    %16 = vsyncpa [#allocation6], 0
    %17 = vsyncpa [#allocation9], 0
    %18 = vsyncpa [#allocation12], 0
    %19 = vsyncpa [#allocation15], 0
    %20 = vsyncpa [#allocation18], 0
    // Predicated region
    $region2: #{feature_map_generator.2} parent=1 // pred_check
      _
    $region3: #{feature_map_generator.2} parent=1 // pred_check_branch
      %22 = sbr.rel (0) target = $region5
    $region4: #{feature_map_generator.2} parent=1 // pred_region
      %s24 = ssub.s32 128, 128
      %25 = vsyncadd [#allocation4], %s24
      %s27 = sshll.u32 [#allocation3], 4
      %s28 = int_to_ptr.vmem [resolvable:$true] %s27
      %30 = dma.hbm_to_vmem [thread:$0]  %s0, 128, %s28, [#allocation4]
    $region5: #{feature_map_generator.2} parent=1 // pred_fallthru
      _
    // Predicated region
    $region6: #{feature_map_generator.2} parent=1 // pred_check
      _
    $region7: #{feature_map_generator.2} parent=1 // pred_check_branch
      %32 = sbr.rel (0) target = $region9
    $region8: #{feature_map_generator.2} parent=1 // pred_region
      %s34 = ssub.s32 128, 128
      %35 = vsyncadd [#allocation6], %s34
      %s37 = sshll.u32 [#allocation5], 4
      %s38 = int_to_ptr.vmem [resolvable:$true] %s37
      %40 = dma.hbm_to_vmem [thread:$0]  %s1, 128, %s38, [#allocation6]
    $region9: #{feature_map_generator.2} parent=1 // pred_fallthru
      _
    // Predicated region
    $region10: #{feature_map_generator.2} parent=1 // pred_check
      _
    $region11: #{feature_map_generator.2} parent=1 // pred_check_branch
      %42 = sbr.rel (0) target = $region13
    $region12: #{feature_map_generator.2} parent=1 // pred_region
      %s44 = ssub.s32 2048, 2048
      %45 = vsyncadd [#allocation6], %s44
      %s46 = sshll.u32 [#allocation7], 4
      %s47 = int_to_ptr.vmem [resolvable:$true] %s46
      %52 = dma.hbm_to_vmem [thread:$0]  %s2, 2048, %s47, [#allocation6], 128, 128, 8
    $region13: #{feature_map_generator.2} parent=1 // pred_fallthru
      _
    // Predicated region
    $region14: #{feature_map_generator.2} parent=1 // pred_check
      _
    $region15: #{feature_map_generator.2} parent=1 // pred_check_branch
      %54 = sbr.rel (0) target = $region17
    $region16: #{feature_map_generator.2} parent=1 // pred_region
      %s56 = ssub.s32 2048, 2048
      %57 = vsyncadd [#allocation9], %s56
      %s58 = sshll.u32 [#allocation8], 4
      %s59 = int_to_ptr.vmem [resolvable:$true] %s58
      %64 = dma.hbm_to_vmem [thread:$0]  %s3, 2048, %s59, [#allocation9], 128, 128, 8
    $region17: #{feature_map_generator.2} parent=1 // pred_fallthru
      _
    // Predicated region
    $region18: #{feature_map_generator.2} parent=1 // pred_check
      _
    $region19: #{feature_map_generator.2} parent=1 // pred_check_branch
      %66 = sbr.rel (0) target = $region21
    $region20: #{feature_map_generator.2} parent=1 // pred_region
      %s68 = ssub.s32 2048, 2048
      %69 = vsyncadd [#allocation9], %s68
      %s70 = sshll.u32 [#allocation10], 4
      %s71 = int_to_ptr.vmem [resolvable:$true] %s70
      %76 = dma.hbm_to_vmem [thread:$0]  %s4, 2048, %s71, [#allocation9], 128, 128, 8
    $region21: #{feature_map_generator.2} parent=1 // pred_fallthru
      _
    // Predicated region
    $region22: #{feature_map_generator.2} parent=1 // pred_check
      _
    $region23: #{feature_map_generator.2} parent=1 // pred_check_branch
      %78 = sbr.rel (0) target = $region25
    $region24: #{feature_map_generator.2} parent=1 // pred_region
      %s80 = ssub.s32 2048, 2048
      %81 = vsyncadd [#allocation12], %s80
      %s82 = sshll.u32 [#allocation11], 4
      %s83 = int_to_ptr.vmem [resolvable:$true] %s82
      %88 = dma.hbm_to_vmem [thread:$0]  %s5, 2048, %s83, [#allocation12], 128, 128, 8
    $region25: #{feature_map_generator.2} parent=1 // pred_fallthru
      _
    // Predicated region
    $region26: #{feature_map_generator.2} parent=1 // pred_check
      _
    $region27: #{feature_map_generator.2} parent=1 // pred_check_branch
      %90 = sbr.rel (0) target = $region29
    $region28: #{feature_map_generator.2} parent=1 // pred_region
      %s92 = ssub.s32 16, 16
      %93 = vsyncadd [#allocation12], %s92
      %s95 = sshll.u32 [#allocation13], 4
      %s96 = int_to_ptr.vmem [resolvable:$true] %s95
      %98 = dma.hbm_to_vmem [thread:$0]  %s6, 16, %s96, [#allocation12]
    $region29: #{feature_map_generator.2} parent=1 // pred_fallthru
      _
    // Predicated region
    $region30: #{feature_map_generator.2} parent=1 // pred_check
      _
    $region31: #{feature_map_generator.2} parent=1 // pred_check_branch
      %100 = sbr.rel (0) target = $region33
    $region32: #{feature_map_generator.2} parent=1 // pred_region
      %s102 = ssub.s32 16, 16
      %103 = vsyncadd [#allocation15], %s102
      %s105 = sshll.u32 [#allocation14], 4
      %s106 = int_to_ptr.vmem [resolvable:$true] %s105
      %108 = dma.hbm_to_vmem [thread:$0]  %s7, 16, %s106, [#allocation15]
    $region33: #{feature_map_generator.2} parent=1 // pred_fallthru
      _
    // Predicated region
    $region34: #{feature_map_generator.2} parent=1 // pred_check
      _
    $region35: #{feature_map_generator.2} parent=1 // pred_check_branch
      %110 = sbr.rel (0) target = $region37
    $region36: #{feature_map_generator.2} parent=1 // pred_region
      %s112 = ssub.s32 16, 16
      %113 = vsyncadd [#allocation15], %s112
      %s115 = sshll.u32 [#allocation16], 4
      %s116 = int_to_ptr.vmem [resolvable:$true] %s115
      %118 = dma.hbm_to_vmem [thread:$0]  %s8, 16, %s116, [#allocation15]
    $region37: #{feature_map_generator.2} parent=1 // pred_fallthru
      _
    // Predicated region
    $region38: #{feature_map_generator.2} parent=1 // pred_check
      _
    $region39: #{feature_map_generator.2} parent=1 // pred_check_branch
      %120 = sbr.rel (0) target = $region41
    $region40: #{feature_map_generator.2} parent=1 // pred_region
      %s122 = ssub.s32 16, 16
      %123 = vsyncadd [#allocation18], %s122
      %s125 = sshll.u32 [#allocation17], 4
      %s126 = int_to_ptr.vmem [resolvable:$true] %s125
      %128 = dma.hbm_to_vmem [thread:$0]  %s9, 16, %s126, [#allocation18]
    $region41: #{feature_map_generator.2} parent=1 // pred_fallthru
      _
    // Predicated region
    $region42: #{feature_map_generator.2} parent=1 // pred_check
      _
    $region43: #{feature_map_generator.2} parent=1 // pred_check_branch
      %130 = sbr.rel (0) target = $region45
    $region44: #{feature_map_generator.2} parent=1 // pred_region
      %131 = dma.done [#allocation4], 128
    $region45: #{feature_map_generator.2} parent=1 // pred_fallthru
      _
    // Predicated region
    $region46: #{feature_map_generator.2} parent=1 // pred_check
      _
    $region47: #{feature_map_generator.2} parent=1 // pred_check_branch
      %133 = sbr.rel (0) target = $region49
    $region48: #{feature_map_generator.2} parent=1 // pred_region
      %134 = dma.done [#allocation6], 128
    $region49: #{feature_map_generator.2} parent=1 // pred_fallthru
      _
    // Predicated region
    $region50: #{feature_map_generator.2} parent=1 // pred_check
      _
    $region51: #{feature_map_generator.2} parent=1 // pred_check_branch
      %136 = sbr.rel (0) target = $region53
    $region52: #{feature_map_generator.2} parent=1 // pred_region
      %137 = dma.done [#allocation6], 2048
    $region53: #{feature_map_generator.2} parent=1 // pred_fallthru
      _
    // Predicated region
    $region54: #{feature_map_generator.2} parent=1 // pred_check
      _
    $region55: #{feature_map_generator.2} parent=1 // pred_check_branch
      %139 = sbr.rel (0) target = $region57
    $region56: #{feature_map_generator.2} parent=1 // pred_region
      %140 = dma.done [#allocation9], 2048
    $region57: #{feature_map_generator.2} parent=1 // pred_fallthru
      _
    // Predicated region
    $region58: #{feature_map_generator.2} parent=1 // pred_check
      _
    $region59: #{feature_map_generator.2} parent=1 // pred_check_branch
      %142 = sbr.rel (0) target = $region61
    $region60: #{feature_map_generator.2} parent=1 // pred_region
      %143 = dma.done [#allocation9], 2048
    $region61: #{feature_map_generator.2} parent=1 // pred_fallthru
      _
    // Predicated region
    $region62: #{feature_map_generator.2} parent=1 // pred_check
      _
    $region63: #{feature_map_generator.2} parent=1 // pred_check_branch
      %145 = sbr.rel (0) target = $region65
    $region64: #{feature_map_generator.2} parent=1 // pred_region
      %146 = dma.done [#allocation12], 2048
    $region65: #{feature_map_generator.2} parent=1 // pred_fallthru
      _
    // Predicated region
    $region66: #{feature_map_generator.2} parent=1 // pred_check
      _
    $region67: #{feature_map_generator.2} parent=1 // pred_check_branch
      %148 = sbr.rel (0) target = $region69
    $region68: #{feature_map_generator.2} parent=1 // pred_region
      %149 = dma.done [#allocation12], 16
    $region69: #{feature_map_generator.2} parent=1 // pred_fallthru
      _
    // Predicated region
    $region70: #{feature_map_generator.2} parent=1 // pred_check
      _
    $region71: #{feature_map_generator.2} parent=1 // pred_check_branch
      %151 = sbr.rel (0) target = $region73
    $region72: #{feature_map_generator.2} parent=1 // pred_region
      %152 = dma.done [#allocation15], 16
    $region73: #{feature_map_generator.2} parent=1 // pred_fallthru
      _
    // Predicated region
    $region74: #{feature_map_generator.2} parent=1 // pred_check
      _
    $region75: #{feature_map_generator.2} parent=1 // pred_check_branch
      %154 = sbr.rel (0) target = $region77
    $region76: #{feature_map_generator.2} parent=1 // pred_region
      %155 = dma.done [#allocation15], 16
    $region77: #{feature_map_generator.2} parent=1 // pred_fallthru
      _
    // Predicated region
    $region78: #{feature_map_generator.2} parent=1 // pred_check
      _
    $region79: #{feature_map_generator.2} parent=1 // pred_check_branch
      %157 = sbr.rel (0) target = $region81
    $region80: #{feature_map_generator.2} parent=1 // pred_region
      %158 = dma.done [#allocation18], 16
    $region81: #{feature_map_generator.2} parent=1 // pred_fallthru
      _
    %v159 = vld [vmem:[#allocation3] sm:$0xff]
    %v160 = vld [vmem:[#allocation5] sm:$0xff]
    %v161 = vld [vmem:[#allocation7] sm:$0xff]
    %v162 = vld [vmem:[#allocation7 + $0x8] sm:$0xff]
    %v163 = vld [vmem:[#allocation7 + $0x10] sm:$0xff]
    %v164 = vld [vmem:[#allocation7 + $0x18] sm:$0xff]
    %v165 = vld [vmem:[#allocation7 + $0x20] sm:$0xff]
    %v166 = vld [vmem:[#allocation7 + $0x28] sm:$0xff]
    %v167 = vld [vmem:[#allocation7 + $0x30] sm:$0xff]
    %v168 = vld [vmem:[#allocation7 + $0x38] sm:$0xff]
    %v169 = vld [vmem:[#allocation7 + $0x40] sm:$0xff]
    %v170 = vld [vmem:[#allocation7 + $0x48] sm:$0xff]
    %v171 = vld [vmem:[#allocation7 + $0x50] sm:$0xff]
    %v172 = vld [vmem:[#allocation7 + $0x58] sm:$0xff]
    %v173 = vld [vmem:[#allocation7 + $0x60] sm:$0xff]
    %v174 = vld [vmem:[#allocation7 + $0x68] sm:$0xff]
    %v175 = vld [vmem:[#allocation7 + $0x70] sm:$0xff]
    %v176 = vld [vmem:[#allocation7 + $0x78] sm:$0xff]
    %v177 = vld [vmem:[#allocation13] sm:$0x1]
    %v179 = vlaneseq
    %v180 = vshrl.u32 %v179, 7
    %v181 = vsub.s32 0, %v180
    %v182 = vrot.slane %v177, %v181
    %184 = vmatprep.subr.mxu0 0.0
    %185 = vmatpush1.msra.mxu0 %v176
    %186 = vmatprep.subr.mxu0 0.0
    %187 = vmatpush1.msra.mxu0 %v175
    %188 = vmatprep.subr.mxu0 0.0
    %189 = vmatpush1.msra.mxu0 %v174
    %190 = vmatprep.subr.mxu0 0.0
    %191 = vmatpush1.msra.mxu0 %v173
    %192 = vmatprep.subr.mxu0 0.0
    %193 = vmatpush1.msra.mxu0 %v172
    %194 = vmatprep.subr.mxu0 0.0
    %195 = vmatpush1.msra.mxu0 %v171
    %196 = vmatprep.subr.mxu0 0.0
    %197 = vmatpush1.msra.mxu0 %v170
    %198 = vmatprep.subr.mxu0 0.0
    %199 = vmatpush1.msra.mxu0 %v169
    %200 = vmatprep.subr.mxu0 0.0
    %201 = vmatpush1.msra.mxu0 %v168
    %202 = vmatprep.subr.mxu0 0.0
    %203 = vmatpush1.msra.mxu0 %v167
    %204 = vmatprep.subr.mxu0 0.0
    %205 = vmatpush1.msra.mxu0 %v166
    %206 = vmatprep.subr.mxu0 0.0
    %207 = vmatpush1.msra.mxu0 %v165
    %208 = vmatprep.subr.mxu0 0.0
    %209 = vmatpush1.msra.mxu0 %v164
    %210 = vmatprep.subr.mxu0 0.0
    %211 = vmatpush1.msra.mxu0 %v163
    %212 = vmatprep.subr.mxu0 0.0
    %213 = vmatpush1.msra.mxu0 %v162
    %214 = vmatprep.subr.mxu0 0.0
    %215 = vmatpush1.msra.mxu0 %v161
    %216 = vmatprep.subr.mxu0 0.0
    %217 = vmatpush2.msra.mxu0 0.0
    %218 = vmatprep.subr.mxu0 0.0
    %219 = vmatpush2.msra.mxu0 0.0
    %220 = vmatprep.subr.mxu0 0.0
    %221 = vmatpush2.msra.mxu0 0.0
    %222 = vmatprep.subr.mxu0 0.0
    %223 = vmatpush2.msra.mxu0 0.0
    %224 = vmatprep.subr.mxu0 0.0
    %225 = vmatpush2.msra.mxu0 0.0
    %226 = vmatprep.subr.mxu0 0.0
    %227 = vmatpush2.msra.mxu0 0.0
    %228 = vmatprep.subr.mxu0 0.0
    %229 = vmatpush2.msra.mxu0 0.0
    %230 = vmatprep.subr.mxu0 0.0
    %231 = vmatpush2.msra.mxu0 0.0
    %232 = vmatprep.subr.mxu0 0.0
    %233 = vmatpush2.msra.mxu0 0.0
    %234 = vmatprep.subr.mxu0 0.0
    %235 = vmatpush2.msra.mxu0 0.0
    %236 = vmatprep.subr.mxu0 0.0
    %237 = vmatpush2.msra.mxu0 0.0
    %238 = vmatprep.subr.mxu0 0.0
    %239 = vmatpush2.msra.mxu0 0.0
    %240 = vmatprep.subr.mxu0 0.0
    %241 = vmatpush2.msra.mxu0 0.0
    %242 = vmatprep.subr.mxu0 0.0
    %243 = vmatpush2.msra.mxu0 0.0
    %244 = vmatprep.subr.mxu0 0.0
    %245 = vmatpush2.msra.mxu0 0.0
    %246 = vmatprep.subr.mxu0 0.0
    %247 = vmatpush2.msra.mxu0 0.0
    %248 = vmatprep.mubr.f32.mxu0 0.0
    %249 = vmatmul.mubr.f32.gmra.mxu0 %v159
    %v250 = vpop.f32.mrf.mxu0
    %v251 = vadd.f32 %v182, %v250
    %v252 = vpop.f32.mrf.mxu0
    %253 = vdwg.mxu0
    %v254 = vld [vmem:[#allocation8] sm:$0xff]
    %v255 = vld [vmem:[#allocation8 + $0x8] sm:$0xff]
    %v256 = vld [vmem:[#allocation8 + $0x10] sm:$0xff]
    %v257 = vld [vmem:[#allocation8 + $0x18] sm:$0xff]
    %v258 = vld [vmem:[#allocation8 + $0x20] sm:$0xff]
    %v259 = vld [vmem:[#allocation8 + $0x28] sm:$0xff]
    %v260 = vld [vmem:[#allocation8 + $0x30] sm:$0xff]
    %v261 = vld [vmem:[#allocation8 + $0x38] sm:$0xff]
    %v262 = vld [vmem:[#allocation8 + $0x40] sm:$0xff]
    %v263 = vld [vmem:[#allocation8 + $0x48] sm:$0xff]
    %v264 = vld [vmem:[#allocation8 + $0x50] sm:$0xff]
    %v265 = vld [vmem:[#allocation8 + $0x58] sm:$0xff]
    %v266 = vld [vmem:[#allocation8 + $0x60] sm:$0xff]
    %v267 = vld [vmem:[#allocation8 + $0x68] sm:$0xff]
    %v268 = vld [vmem:[#allocation8 + $0x70] sm:$0xff]
    %v269 = vld [vmem:[#allocation8 + $0x78] sm:$0xff]
    %v270 = vld [vmem:[#allocation14] sm:$0x1]
    %v272 = vlaneseq
    %v273 = vshrl.u32 %v272, 7
    %v274 = vsub.s32 0, %v273
    %v275 = vrot.slane %v270, %v274
    %277 = vmatprep.subr.mxu0 0.0
    %278 = vmatpush1.msra.mxu0 %v269
    %279 = vmatprep.subr.mxu0 0.0
    %280 = vmatpush1.msra.mxu0 %v268
    %281 = vmatprep.subr.mxu0 0.0
    %282 = vmatpush1.msra.mxu0 %v267
    %283 = vmatprep.subr.mxu0 0.0
    %284 = vmatpush1.msra.mxu0 %v266
    %285 = vmatprep.subr.mxu0 0.0
    %286 = vmatpush1.msra.mxu0 %v265
    %287 = vmatprep.subr.mxu0 0.0
    %288 = vmatpush1.msra.mxu0 %v264
    %289 = vmatprep.subr.mxu0 0.0
    %290 = vmatpush1.msra.mxu0 %v263
    %291 = vmatprep.subr.mxu0 0.0
    %292 = vmatpush1.msra.mxu0 %v262
    %293 = vmatprep.subr.mxu0 0.0
    %294 = vmatpush1.msra.mxu0 %v261
    %295 = vmatprep.subr.mxu0 0.0
    %296 = vmatpush1.msra.mxu0 %v260
    %297 = vmatprep.subr.mxu0 0.0
    %298 = vmatpush1.msra.mxu0 %v259
    %299 = vmatprep.subr.mxu0 0.0
    %300 = vmatpush1.msra.mxu0 %v258
    %301 = vmatprep.subr.mxu0 0.0
    %302 = vmatpush1.msra.mxu0 %v257
    %303 = vmatprep.subr.mxu0 0.0
    %304 = vmatpush1.msra.mxu0 %v256
    %305 = vmatprep.subr.mxu0 0.0
    %306 = vmatpush1.msra.mxu0 %v255
    %307 = vmatprep.subr.mxu0 0.0
    %308 = vmatpush1.msra.mxu0 %v254
    %309 = vmatprep.subr.mxu0 0.0
    %310 = vmatpush2.msra.mxu0 0.0
    %311 = vmatprep.subr.mxu0 0.0
    %312 = vmatpush2.msra.mxu0 0.0
    %313 = vmatprep.subr.mxu0 0.0
    %314 = vmatpush2.msra.mxu0 0.0
    %315 = vmatprep.subr.mxu0 0.0
    %316 = vmatpush2.msra.mxu0 0.0
    %317 = vmatprep.subr.mxu0 0.0
    %318 = vmatpush2.msra.mxu0 0.0
    %319 = vmatprep.subr.mxu0 0.0
    %320 = vmatpush2.msra.mxu0 0.0
    %321 = vmatprep.subr.mxu0 0.0
    %322 = vmatpush2.msra.mxu0 0.0
    %323 = vmatprep.subr.mxu0 0.0
    %324 = vmatpush2.msra.mxu0 0.0
    %325 = vmatprep.subr.mxu0 0.0
    %326 = vmatpush2.msra.mxu0 0.0
    %327 = vmatprep.subr.mxu0 0.0
    %328 = vmatpush2.msra.mxu0 0.0
    %329 = vmatprep.subr.mxu0 0.0
    %330 = vmatpush2.msra.mxu0 0.0
    %331 = vmatprep.subr.mxu0 0.0
    %332 = vmatpush2.msra.mxu0 0.0
    %333 = vmatprep.subr.mxu0 0.0
    %334 = vmatpush2.msra.mxu0 0.0
    %335 = vmatprep.subr.mxu0 0.0
    %336 = vmatpush2.msra.mxu0 0.0
    %337 = vmatprep.subr.mxu0 0.0
    %338 = vmatpush2.msra.mxu0 0.0
    %339 = vmatprep.subr.mxu0 0.0
    %340 = vmatpush2.msra.mxu0 0.0
    %341 = vmatprep.mubr.f32.mxu0 0.0
    %342 = vmatmul.mubr.f32.gmra.mxu0 %v160
    %v343 = vpop.f32.mrf.mxu0
    %v344 = vadd.f32 %v275, %v343
    %v345 = vpop.f32.mrf.mxu0
    %346 = vdwg.mxu0
    %v347 = vld [vmem:[#allocation10] sm:$0xff]
    %v348 = vld [vmem:[#allocation10 + $0x8] sm:$0xff]
    %v349 = vld [vmem:[#allocation10 + $0x10] sm:$0xff]
    %v350 = vld [vmem:[#allocation10 + $0x18] sm:$0xff]
    %v351 = vld [vmem:[#allocation10 + $0x20] sm:$0xff]
    %v352 = vld [vmem:[#allocation10 + $0x28] sm:$0xff]
    %v353 = vld [vmem:[#allocation10 + $0x30] sm:$0xff]
    %v354 = vld [vmem:[#allocation10 + $0x38] sm:$0xff]
    %v355 = vld [vmem:[#allocation10 + $0x40] sm:$0xff]
    %v356 = vld [vmem:[#allocation10 + $0x48] sm:$0xff]
    %v357 = vld [vmem:[#allocation10 + $0x50] sm:$0xff]
    %v358 = vld [vmem:[#allocation10 + $0x58] sm:$0xff]
    %v359 = vld [vmem:[#allocation10 + $0x60] sm:$0xff]
    %v360 = vld [vmem:[#allocation10 + $0x68] sm:$0xff]
    %v361 = vld [vmem:[#allocation10 + $0x70] sm:$0xff]
    %v362 = vld [vmem:[#allocation10 + $0x78] sm:$0xff]
    %v363 = vld [vmem:[#allocation16] sm:$0x1]
    %v365 = vlaneseq
    %v366 = vshrl.u32 %v365, 7
    %v367 = vsub.s32 0, %v366
    %v368 = vrot.slane %v363, %v367
    %370 = vmatprep.subr.mxu0 0.0
    %371 = vmatpush1.msra.mxu0 %v362
    %372 = vmatprep.subr.mxu0 0.0
    %373 = vmatpush1.msra.mxu0 %v361
    %374 = vmatprep.subr.mxu0 0.0
    %375 = vmatpush1.msra.mxu0 %v360
    %376 = vmatprep.subr.mxu0 0.0
    %377 = vmatpush1.msra.mxu0 %v359
    %378 = vmatprep.subr.mxu0 0.0
    %379 = vmatpush1.msra.mxu0 %v358
    %380 = vmatprep.subr.mxu0 0.0
    %381 = vmatpush1.msra.mxu0 %v357
    %382 = vmatprep.subr.mxu0 0.0
    %383 = vmatpush1.msra.mxu0 %v356
    %384 = vmatprep.subr.mxu0 0.0
    %385 = vmatpush1.msra.mxu0 %v355
    %386 = vmatprep.subr.mxu0 0.0
    %387 = vmatpush1.msra.mxu0 %v354
    %388 = vmatprep.subr.mxu0 0.0
    %389 = vmatpush1.msra.mxu0 %v353
    %390 = vmatprep.subr.mxu0 0.0
    %391 = vmatpush1.msra.mxu0 %v352
    %392 = vmatprep.subr.mxu0 0.0
    %393 = vmatpush1.msra.mxu0 %v351
    %394 = vmatprep.subr.mxu0 0.0
    %395 = vmatpush1.msra.mxu0 %v350
    %396 = vmatprep.subr.mxu0 0.0
    %397 = vmatpush1.msra.mxu0 %v349
    %398 = vmatprep.subr.mxu0 0.0
    %399 = vmatpush1.msra.mxu0 %v348
    %400 = vmatprep.subr.mxu0 0.0
    %401 = vmatpush1.msra.mxu0 %v347
    %402 = vmatprep.subr.mxu0 0.0
    %403 = vmatpush2.msra.mxu0 0.0
    %404 = vmatprep.subr.mxu0 0.0
    %405 = vmatpush2.msra.mxu0 0.0
    %406 = vmatprep.subr.mxu0 0.0
    %407 = vmatpush2.msra.mxu0 0.0
    %408 = vmatprep.subr.mxu0 0.0
    %409 = vmatpush2.msra.mxu0 0.0
    %410 = vmatprep.subr.mxu0 0.0
    %411 = vmatpush2.msra.mxu0 0.0
    %412 = vmatprep.subr.mxu0 0.0
    %413 = vmatpush2.msra.mxu0 0.0
    %414 = vmatprep.subr.mxu0 0.0
    %415 = vmatpush2.msra.mxu0 0.0
    %416 = vmatprep.subr.mxu0 0.0
    %417 = vmatpush2.msra.mxu0 0.0
    %418 = vmatprep.subr.mxu0 0.0
    %419 = vmatpush2.msra.mxu0 0.0
    %420 = vmatprep.subr.mxu0 0.0
    %421 = vmatpush2.msra.mxu0 0.0
    %422 = vmatprep.subr.mxu0 0.0
    %423 = vmatpush2.msra.mxu0 0.0
    %424 = vmatprep.subr.mxu0 0.0
    %425 = vmatpush2.msra.mxu0 0.0
    %426 = vmatprep.subr.mxu0 0.0
    %427 = vmatpush2.msra.mxu0 0.0
    %428 = vmatprep.subr.mxu0 0.0
    %429 = vmatpush2.msra.mxu0 0.0
    %430 = vmatprep.subr.mxu0 0.0
    %431 = vmatpush2.msra.mxu0 0.0
    %432 = vmatprep.subr.mxu0 0.0
    %433 = vmatpush2.msra.mxu0 0.0
    %434 = vmatprep.mubr.f32.mxu0 0.0
    %435 = vmatmul.mubr.f32.gmra.mxu0 %v160
    %v436 = vpop.f32.mrf.mxu0
    %v437 = vadd.f32 %v368, %v436
    %v438 = vpop.f32.mrf.mxu0
    %439 = vdwg.mxu0
    %vm440 = vcmask 130048
    %v442 = vsel %vm440, %v251, 0
    %v445 = vsel %vm440, %v344, 0
    %447 = vmatprep.subr.mxu0 0.0
    %448 = vmatpush1.xpose.msra.mxu0 0.0
    %449 = vmatprep.subr.mxu0 0.0
    %450 = vmatpush1.xpose.msra.mxu0 0.0
    %451 = vmatprep.subr.mxu0 0.0
    %452 = vmatpush1.xpose.msra.mxu0 0.0
    %453 = vmatprep.subr.mxu0 0.0
    %454 = vmatpush1.xpose.msra.mxu0 0.0
    %455 = vmatprep.subr.mxu0 0.0
    %456 = vmatpush1.xpose.msra.mxu0 0.0
    %457 = vmatprep.subr.mxu0 0.0
    %458 = vmatpush1.xpose.msra.mxu0 0.0
    %459 = vmatprep.subr.mxu0 0.0
    %460 = vmatpush1.xpose.msra.mxu0 0.0
    %461 = vmatprep.subr.mxu0 0.0
    %462 = vmatpush1.xpose.msra.mxu0 0.0
    %463 = vmatprep.subr.mxu0 0.0
    %464 = vmatpush1.xpose.msra.mxu0 0.0
    %465 = vmatprep.subr.mxu0 0.0
    %466 = vmatpush1.xpose.msra.mxu0 0.0
    %467 = vmatprep.subr.mxu0 0.0
    %468 = vmatpush1.xpose.msra.mxu0 0.0
    %469 = vmatprep.subr.mxu0 0.0
    %470 = vmatpush1.xpose.msra.mxu0 0.0
    %471 = vmatprep.subr.mxu0 0.0
    %472 = vmatpush1.xpose.msra.mxu0 0.0
    %473 = vmatprep.subr.mxu0 0.0
    %474 = vmatpush1.xpose.msra.mxu0 0.0
    %475 = vmatprep.subr.mxu0 0.0
    %476 = vmatpush1.xpose.msra.mxu0 0.0
    %477 = vmatprep.subr.mxu0 0.0
    %478 = vmatpush1.xpose.msra.mxu0 %v445
    %479 = vmatprep.subr.mxu0 0.0
    %480 = vmatpush2.xpose.msra.mxu0 0.0
    %481 = vmatprep.subr.mxu0 0.0
    %482 = vmatpush2.xpose.msra.mxu0 0.0
    %483 = vmatprep.subr.mxu0 0.0
    %484 = vmatpush2.xpose.msra.mxu0 0.0
    %485 = vmatprep.subr.mxu0 0.0
    %486 = vmatpush2.xpose.msra.mxu0 0.0
    %487 = vmatprep.subr.mxu0 0.0
    %488 = vmatpush2.xpose.msra.mxu0 0.0
    %489 = vmatprep.subr.mxu0 0.0
    %490 = vmatpush2.xpose.msra.mxu0 0.0
    %491 = vmatprep.subr.mxu0 0.0
    %492 = vmatpush2.xpose.msra.mxu0 0.0
    %493 = vmatprep.subr.mxu0 0.0
    %494 = vmatpush2.xpose.msra.mxu0 0.0
    %495 = vmatprep.subr.mxu0 0.0
    %496 = vmatpush2.xpose.msra.mxu0 0.0
    %497 = vmatprep.subr.mxu0 0.0
    %498 = vmatpush2.xpose.msra.mxu0 0.0
    %499 = vmatprep.subr.mxu0 0.0
    %500 = vmatpush2.xpose.msra.mxu0 0.0
    %501 = vmatprep.subr.mxu0 0.0
    %502 = vmatpush2.xpose.msra.mxu0 0.0
    %503 = vmatprep.subr.mxu0 0.0
    %504 = vmatpush2.xpose.msra.mxu0 0.0
    %505 = vmatprep.subr.mxu0 0.0
    %506 = vmatpush2.xpose.msra.mxu0 0.0
    %507 = vmatprep.subr.mxu0 0.0
    %508 = vmatpush2.xpose.msra.mxu0 0.0
    %509 = vmatprep.subr.mxu0 0.0
    %510 = vmatpush2.xpose.msra.mxu0 0.0
    %511 = vmatprep.mubr.f32.mxu0 0.0
    %512 = vmatmul.mubr.f32.gmra.mxu0 %v442
    %v513 = vpop.f32.mrf.mxu0
    %v514 = vadd.f32 0.0, %v513
    %v515 = vpop.f32.mrf.mxu0
    %516 = vdwg.mxu0
    %v517 = vmul.f32 %v514, 0.25
    %vm518 = vcmask 64512
    %v519 = vsel %vm518, %v517, -inf
    %520 = vmax.xlane.f32.xlu0 %v519
    %v521 = vpop.xlane.xlu0 %520
    %v522 = vsub.f32 %v517, %v521
    %v523 = vmul.f32 %v522, 1.442695
    %v524 = vpow.pop %v523
    %v525 = vsel %vm518, %v524, 0.0
    %526 = vadd.xlane.f32.xlu0 %v525
    %v527 = vpop.xlane.xlu0 %526
    %v528 = vrcp.pop %v527
    %v529 = vmul.f32 %v524, %v528
    %v531 = vsel %vm518, %v529, 0
    %533 = vmatprep.subr.mxu0 0.0
    %534 = vmatpush1.msra.mxu0 0.0
    %535 = vmatprep.subr.mxu0 0.0
    %536 = vmatpush1.msra.mxu0 0.0
    %537 = vmatprep.subr.mxu0 0.0
    %538 = vmatpush1.msra.mxu0 0.0
    %539 = vmatprep.subr.mxu0 0.0
    %540 = vmatpush1.msra.mxu0 0.0
    %541 = vmatprep.subr.mxu0 0.0
    %542 = vmatpush1.msra.mxu0 0.0
    %543 = vmatprep.subr.mxu0 0.0
    %544 = vmatpush1.msra.mxu0 0.0
    %545 = vmatprep.subr.mxu0 0.0
    %546 = vmatpush1.msra.mxu0 0.0
    %547 = vmatprep.subr.mxu0 0.0
    %548 = vmatpush1.msra.mxu0 0.0
    %549 = vmatprep.subr.mxu0 0.0
    %550 = vmatpush1.msra.mxu0 0.0
    %551 = vmatprep.subr.mxu0 0.0
    %552 = vmatpush1.msra.mxu0 0.0
    %553 = vmatprep.subr.mxu0 0.0
    %554 = vmatpush1.msra.mxu0 0.0
    %555 = vmatprep.subr.mxu0 0.0
    %556 = vmatpush1.msra.mxu0 0.0
    %557 = vmatprep.subr.mxu0 0.0
    %558 = vmatpush1.msra.mxu0 0.0
    %559 = vmatprep.subr.mxu0 0.0
    %560 = vmatpush1.msra.mxu0 0.0
    %561 = vmatprep.subr.mxu0 0.0
    %562 = vmatpush1.msra.mxu0 0.0
    %563 = vmatprep.subr.mxu0 0.0
    %564 = vmatpush1.msra.mxu0 %v437
    %565 = vmatprep.subr.mxu0 0.0
    %566 = vmatpush2.msra.mxu0 0.0
    %567 = vmatprep.subr.mxu0 0.0
    %568 = vmatpush2.msra.mxu0 0.0
    %569 = vmatprep.subr.mxu0 0.0
    %570 = vmatpush2.msra.mxu0 0.0
    %571 = vmatprep.subr.mxu0 0.0
    %572 = vmatpush2.msra.mxu0 0.0
    %573 = vmatprep.subr.mxu0 0.0
    %574 = vmatpush2.msra.mxu0 0.0
    %575 = vmatprep.subr.mxu0 0.0
    %576 = vmatpush2.msra.mxu0 0.0
    %577 = vmatprep.subr.mxu0 0.0
    %578 = vmatpush2.msra.mxu0 0.0
    %579 = vmatprep.subr.mxu0 0.0
    %580 = vmatpush2.msra.mxu0 0.0
    %581 = vmatprep.subr.mxu0 0.0
    %582 = vmatpush2.msra.mxu0 0.0
    %583 = vmatprep.subr.mxu0 0.0
    %584 = vmatpush2.msra.mxu0 0.0
    %585 = vmatprep.subr.mxu0 0.0
    %586 = vmatpush2.msra.mxu0 0.0
    %587 = vmatprep.subr.mxu0 0.0
    %588 = vmatpush2.msra.mxu0 0.0
    %589 = vmatprep.subr.mxu0 0.0
    %590 = vmatpush2.msra.mxu0 0.0
    %591 = vmatprep.subr.mxu0 0.0
    %592 = vmatpush2.msra.mxu0 0.0
    %593 = vmatprep.subr.mxu0 0.0
    %594 = vmatpush2.msra.mxu0 0.0
    %595 = vmatprep.subr.mxu0 0.0
    %596 = vmatpush2.msra.mxu0 0.0
    %597 = vmatprep.mubr.f32.mxu0 0.0
    %598 = vmatmul.mubr.f32.gmra.mxu0 %v531
    %v599 = vpop.f32.mrf.mxu0
    %v600 = vadd.f32 0.0, %v599
    %v601 = vpop.f32.mrf.mxu0
    %602 = vdwg.mxu0
    %603 = vst.msk [vmem:[#allocation2] sm:$0xff] %vm440, %v600
    %604 = vrot.lane.b32.xlu0 %v251, 112
    %v605 = vpop.permute.xlu0 %604
    %606 = vrot.lane.b32.xlu0 %v344, 112
    %v607 = vpop.permute.xlu0 %606
    %v608 = vsel %vm440, %v605, 0
    %v610 = vsel %vm440, %v607, 0
    %612 = vmatprep.subr.mxu0 0.0
    %613 = vmatpush1.xpose.msra.mxu0 0.0
    %614 = vmatprep.subr.mxu0 0.0
    %615 = vmatpush1.xpose.msra.mxu0 0.0
    %616 = vmatprep.subr.mxu0 0.0
    %617 = vmatpush1.xpose.msra.mxu0 0.0
    %618 = vmatprep.subr.mxu0 0.0
    %619 = vmatpush1.xpose.msra.mxu0 0.0
    %620 = vmatprep.subr.mxu0 0.0
    %621 = vmatpush1.xpose.msra.mxu0 0.0
    %622 = vmatprep.subr.mxu0 0.0
    %623 = vmatpush1.xpose.msra.mxu0 0.0
    %624 = vmatprep.subr.mxu0 0.0
    %625 = vmatpush1.xpose.msra.mxu0 0.0
    %626 = vmatprep.subr.mxu0 0.0
    %627 = vmatpush1.xpose.msra.mxu0 0.0
    %628 = vmatprep.subr.mxu0 0.0
    %629 = vmatpush1.xpose.msra.mxu0 0.0
    %630 = vmatprep.subr.mxu0 0.0
    %631 = vmatpush1.xpose.msra.mxu0 0.0
    %632 = vmatprep.subr.mxu0 0.0
    %633 = vmatpush1.xpose.msra.mxu0 0.0
    %634 = vmatprep.subr.mxu0 0.0
    %635 = vmatpush1.xpose.msra.mxu0 0.0
    %636 = vmatprep.subr.mxu0 0.0
    %637 = vmatpush1.xpose.msra.mxu0 0.0
    %638 = vmatprep.subr.mxu0 0.0
    %639 = vmatpush1.xpose.msra.mxu0 0.0
    %640 = vmatprep.subr.mxu0 0.0
    %641 = vmatpush1.xpose.msra.mxu0 0.0
    %642 = vmatprep.subr.mxu0 0.0
    %643 = vmatpush1.xpose.msra.mxu0 %v610
    %644 = vmatprep.subr.mxu0 0.0
    %645 = vmatpush2.xpose.msra.mxu0 0.0
    %646 = vmatprep.subr.mxu0 0.0
    %647 = vmatpush2.xpose.msra.mxu0 0.0
    %648 = vmatprep.subr.mxu0 0.0
    %649 = vmatpush2.xpose.msra.mxu0 0.0
    %650 = vmatprep.subr.mxu0 0.0
    %651 = vmatpush2.xpose.msra.mxu0 0.0
    %652 = vmatprep.subr.mxu0 0.0
    %653 = vmatpush2.xpose.msra.mxu0 0.0
    %654 = vmatprep.subr.mxu0 0.0
    %655 = vmatpush2.xpose.msra.mxu0 0.0
    %656 = vmatprep.subr.mxu0 0.0
    %657 = vmatpush2.xpose.msra.mxu0 0.0
    %658 = vmatprep.subr.mxu0 0.0
    %659 = vmatpush2.xpose.msra.mxu0 0.0
    %660 = vmatprep.subr.mxu0 0.0
    %661 = vmatpush2.xpose.msra.mxu0 0.0
    %662 = vmatprep.subr.mxu0 0.0
    %663 = vmatpush2.xpose.msra.mxu0 0.0
    %664 = vmatprep.subr.mxu0 0.0
    %665 = vmatpush2.xpose.msra.mxu0 0.0
    %666 = vmatprep.subr.mxu0 0.0
    %667 = vmatpush2.xpose.msra.mxu0 0.0
    %668 = vmatprep.subr.mxu0 0.0
    %669 = vmatpush2.xpose.msra.mxu0 0.0
    %670 = vmatprep.subr.mxu0 0.0
    %671 = vmatpush2.xpose.msra.mxu0 0.0
    %672 = vmatprep.subr.mxu0 0.0
    %673 = vmatpush2.xpose.msra.mxu0 0.0
    %674 = vmatprep.subr.mxu0 0.0
    %675 = vmatpush2.xpose.msra.mxu0 0.0
    %676 = vmatprep.mubr.f32.mxu0 0.0
    %677 = vmatmul.mubr.f32.gmra.mxu0 %v608
    %v678 = vpop.f32.mrf.mxu0
    %v679 = vadd.f32 0.0, %v678
    %v680 = vpop.f32.mrf.mxu0
    %681 = vdwg.mxu0
    %v682 = vmul.f32 %v679, 0.25
    %v683 = vsel %vm518, %v682, -inf
    %684 = vmax.xlane.f32.xlu0 %v683
    %v685 = vpop.xlane.xlu0 %684
    %v686 = vsub.f32 %v682, %v685
    %v687 = vmul.f32 %v686, 1.442695
    %v688 = vpow.pop %v687
    %v689 = vsel %vm518, %v688, 0.0
    %690 = vadd.xlane.f32.xlu0 %v689
    %v691 = vpop.xlane.xlu0 %690
    %v692 = vrcp.pop %v691
    %v693 = vmul.f32 %v688, %v692
    %695 = vrot.lane.b32.xlu0 %v437, 112
    %v696 = vpop.permute.xlu0 %695
    %v699 = vsel %vm518, %v693, 0
    %701 = vmatprep.subr.mxu0 0.0
    %702 = vmatpush1.msra.mxu0 0.0
    %703 = vmatprep.subr.mxu0 0.0
    %704 = vmatpush1.msra.mxu0 0.0
    %705 = vmatprep.subr.mxu0 0.0
    %706 = vmatpush1.msra.mxu0 0.0
    %707 = vmatprep.subr.mxu0 0.0
    %708 = vmatpush1.msra.mxu0 0.0
    %709 = vmatprep.subr.mxu0 0.0
    %710 = vmatpush1.msra.mxu0 0.0
    %711 = vmatprep.subr.mxu0 0.0
    %712 = vmatpush1.msra.mxu0 0.0
    %713 = vmatprep.subr.mxu0 0.0
    %714 = vmatpush1.msra.mxu0 0.0
    %715 = vmatprep.subr.mxu0 0.0
    %716 = vmatpush1.msra.mxu0 0.0
    %717 = vmatprep.subr.mxu0 0.0
    %718 = vmatpush1.msra.mxu0 0.0
    %719 = vmatprep.subr.mxu0 0.0
    %720 = vmatpush1.msra.mxu0 0.0
    %721 = vmatprep.subr.mxu0 0.0
    %722 = vmatpush1.msra.mxu0 0.0
    %723 = vmatprep.subr.mxu0 0.0
    %724 = vmatpush1.msra.mxu0 0.0
    %725 = vmatprep.subr.mxu0 0.0
    %726 = vmatpush1.msra.mxu0 0.0
    %727 = vmatprep.subr.mxu0 0.0
    %728 = vmatpush1.msra.mxu0 0.0
    %729 = vmatprep.subr.mxu0 0.0
    %730 = vmatpush1.msra.mxu0 0.0
    %731 = vmatprep.subr.mxu0 0.0
    %732 = vmatpush1.msra.mxu0 %v696
    %733 = vmatprep.subr.mxu0 0.0
    %734 = vmatpush2.msra.mxu0 0.0
    %735 = vmatprep.subr.mxu0 0.0
    %736 = vmatpush2.msra.mxu0 0.0
    %737 = vmatprep.subr.mxu0 0.0
    %738 = vmatpush2.msra.mxu0 0.0
    %739 = vmatprep.subr.mxu0 0.0
    %740 = vmatpush2.msra.mxu0 0.0
    %741 = vmatprep.subr.mxu0 0.0
    %742 = vmatpush2.msra.mxu0 0.0
    %743 = vmatprep.subr.mxu0 0.0
    %744 = vmatpush2.msra.mxu0 0.0
    %745 = vmatprep.subr.mxu0 0.0
    %746 = vmatpush2.msra.mxu0 0.0
    %747 = vmatprep.subr.mxu0 0.0
    %748 = vmatpush2.msra.mxu0 0.0
    %749 = vmatprep.subr.mxu0 0.0
    %750 = vmatpush2.msra.mxu0 0.0
    %751 = vmatprep.subr.mxu0 0.0
    %752 = vmatpush2.msra.mxu0 0.0
    %753 = vmatprep.subr.mxu0 0.0
    %754 = vmatpush2.msra.mxu0 0.0
    %755 = vmatprep.subr.mxu0 0.0
    %756 = vmatpush2.msra.mxu0 0.0
    %757 = vmatprep.subr.mxu0 0.0
    %758 = vmatpush2.msra.mxu0 0.0
    %759 = vmatprep.subr.mxu0 0.0
    %760 = vmatpush2.msra.mxu0 0.0
    %761 = vmatprep.subr.mxu0 0.0
    %762 = vmatpush2.msra.mxu0 0.0
    %763 = vmatprep.subr.mxu0 0.0
    %764 = vmatpush2.msra.mxu0 0.0
    %765 = vmatprep.mubr.f32.mxu0 0.0
    %766 = vmatmul.mubr.f32.gmra.mxu0 %v699
    %v767 = vpop.f32.mrf.mxu0
    %v768 = vadd.f32 0.0, %v767
    %v769 = vpop.f32.mrf.mxu0
    %770 = vdwg.mxu0
    %772 = vrot.lane.b32.xlu0 %v768, 16
    %v773 = vpop.permute.xlu0 %772
    %vm775 = vcmask 261248
    %776 = vst.msk [vmem:[#allocation2] sm:$0xff] %vm775, %v773
    %777 = vrot.lane.b32.xlu0 %v251, 96
    %v778 = vpop.permute.xlu0 %777
    %779 = vrot.lane.b32.xlu0 %v344, 96
    %v780 = vpop.permute.xlu0 %779
    %v781 = vsel %vm440, %v778, 0
    %v783 = vsel %vm440, %v780, 0
    %785 = vmatprep.subr.mxu0 0.0
    %786 = vmatpush1.xpose.msra.mxu0 0.0
    %787 = vmatprep.subr.mxu0 0.0
    %788 = vmatpush1.xpose.msra.mxu0 0.0
    %789 = vmatprep.subr.mxu0 0.0
    %790 = vmatpush1.xpose.msra.mxu0 0.0
    %791 = vmatprep.subr.mxu0 0.0
    %792 = vmatpush1.xpose.msra.mxu0 0.0
    %793 = vmatprep.subr.mxu0 0.0
    %794 = vmatpush1.xpose.msra.mxu0 0.0
    %795 = vmatprep.subr.mxu0 0.0
    %796 = vmatpush1.xpose.msra.mxu0 0.0
    %797 = vmatprep.subr.mxu0 0.0
    %798 = vmatpush1.xpose.msra.mxu0 0.0
    %799 = vmatprep.subr.mxu0 0.0
    %800 = vmatpush1.xpose.msra.mxu0 0.0
    %801 = vmatprep.subr.mxu0 0.0
    %802 = vmatpush1.xpose.msra.mxu0 0.0
    %803 = vmatprep.subr.mxu0 0.0
    %804 = vmatpush1.xpose.msra.mxu0 0.0
    %805 = vmatprep.subr.mxu0 0.0
    %806 = vmatpush1.xpose.msra.mxu0 0.0
    %807 = vmatprep.subr.mxu0 0.0
    %808 = vmatpush1.xpose.msra.mxu0 0.0
    %809 = vmatprep.subr.mxu0 0.0
    %810 = vmatpush1.xpose.msra.mxu0 0.0
    %811 = vmatprep.subr.mxu0 0.0
    %812 = vmatpush1.xpose.msra.mxu0 0.0
    %813 = vmatprep.subr.mxu0 0.0
    %814 = vmatpush1.xpose.msra.mxu0 0.0
    %815 = vmatprep.subr.mxu0 0.0
    %816 = vmatpush1.xpose.msra.mxu0 %v783
    %817 = vmatprep.subr.mxu0 0.0
    %818 = vmatpush2.xpose.msra.mxu0 0.0
    %819 = vmatprep.subr.mxu0 0.0
    %820 = vmatpush2.xpose.msra.mxu0 0.0
    %821 = vmatprep.subr.mxu0 0.0
    %822 = vmatpush2.xpose.msra.mxu0 0.0
    %823 = vmatprep.subr.mxu0 0.0
    %824 = vmatpush2.xpose.msra.mxu0 0.0
    %825 = vmatprep.subr.mxu0 0.0
    %826 = vmatpush2.xpose.msra.mxu0 0.0
    %827 = vmatprep.subr.mxu0 0.0
    %828 = vmatpush2.xpose.msra.mxu0 0.0
    %829 = vmatprep.subr.mxu0 0.0
    %830 = vmatpush2.xpose.msra.mxu0 0.0
    %831 = vmatprep.subr.mxu0 0.0
    %832 = vmatpush2.xpose.msra.mxu0 0.0
    %833 = vmatprep.subr.mxu0 0.0
    %834 = vmatpush2.xpose.msra.mxu0 0.0
    %835 = vmatprep.subr.mxu0 0.0
    %836 = vmatpush2.xpose.msra.mxu0 0.0
    %837 = vmatprep.subr.mxu0 0.0
    %838 = vmatpush2.xpose.msra.mxu0 0.0
    %839 = vmatprep.subr.mxu0 0.0
    %840 = vmatpush2.xpose.msra.mxu0 0.0
    %841 = vmatprep.subr.mxu0 0.0
    %842 = vmatpush2.xpose.msra.mxu0 0.0
    %843 = vmatprep.subr.mxu0 0.0
    %844 = vmatpush2.xpose.msra.mxu0 0.0
    %845 = vmatprep.subr.mxu0 0.0
    %846 = vmatpush2.xpose.msra.mxu0 0.0
    %847 = vmatprep.subr.mxu0 0.0
    %848 = vmatpush2.xpose.msra.mxu0 0.0
    %849 = vmatprep.mubr.f32.mxu0 0.0
    %850 = vmatmul.mubr.f32.gmra.mxu0 %v781
    %v851 = vpop.f32.mrf.mxu0
    %v852 = vadd.f32 0.0, %v851
    %v853 = vpop.f32.mrf.mxu0
    %854 = vdwg.mxu0
    %v855 = vmul.f32 %v852, 0.25
    %v856 = vsel %vm518, %v855, -inf
    %857 = vmax.xlane.f32.xlu0 %v856
    %v858 = vpop.xlane.xlu0 %857
    %v859 = vsub.f32 %v855, %v858
    %v860 = vmul.f32 %v859, 1.442695
    %v861 = vpow.pop %v860
    %v862 = vsel %vm518, %v861, 0.0
    %863 = vadd.xlane.f32.xlu0 %v862
    %v864 = vpop.xlane.xlu0 %863
    %v865 = vrcp.pop %v864
    %v866 = vmul.f32 %v861, %v865
    %867 = vrot.lane.b32.xlu0 %v437, 96
    %v868 = vpop.permute.xlu0 %867
    %v871 = vsel %vm518, %v866, 0
    %873 = vmatprep.subr.mxu0 0.0
    %874 = vmatpush1.msra.mxu0 0.0
    %875 = vmatprep.subr.mxu0 0.0
    %876 = vmatpush1.msra.mxu0 0.0
    %877 = vmatprep.subr.mxu0 0.0
    %878 = vmatpush1.msra.mxu0 0.0
    %879 = vmatprep.subr.mxu0 0.0
    %880 = vmatpush1.msra.mxu0 0.0
    %881 = vmatprep.subr.mxu0 0.0
    %882 = vmatpush1.msra.mxu0 0.0
    %883 = vmatprep.subr.mxu0 0.0
    %884 = vmatpush1.msra.mxu0 0.0
    %885 = vmatprep.subr.mxu0 0.0
    %886 = vmatpush1.msra.mxu0 0.0
    %887 = vmatprep.subr.mxu0 0.0
    %888 = vmatpush1.msra.mxu0 0.0
    %889 = vmatprep.subr.mxu0 0.0
    %890 = vmatpush1.msra.mxu0 0.0
    %891 = vmatprep.subr.mxu0 0.0
    %892 = vmatpush1.msra.mxu0 0.0
    %893 = vmatprep.subr.mxu0 0.0
    %894 = vmatpush1.msra.mxu0 0.0
    %895 = vmatprep.subr.mxu0 0.0
    %896 = vmatpush1.msra.mxu0 0.0
    %897 = vmatprep.subr.mxu0 0.0
    %898 = vmatpush1.msra.mxu0 0.0
    %899 = vmatprep.subr.mxu0 0.0
    %900 = vmatpush1.msra.mxu0 0.0
    %901 = vmatprep.subr.mxu0 0.0
    %902 = vmatpush1.msra.mxu0 0.0
    %903 = vmatprep.subr.mxu0 0.0
    %904 = vmatpush1.msra.mxu0 %v868
    %905 = vmatprep.subr.mxu0 0.0
    %906 = vmatpush2.msra.mxu0 0.0
    %907 = vmatprep.subr.mxu0 0.0
    %908 = vmatpush2.msra.mxu0 0.0
    %909 = vmatprep.subr.mxu0 0.0
    %910 = vmatpush2.msra.mxu0 0.0
    %911 = vmatprep.subr.mxu0 0.0
    %912 = vmatpush2.msra.mxu0 0.0
    %913 = vmatprep.subr.mxu0 0.0
    %914 = vmatpush2.msra.mxu0 0.0
    %915 = vmatprep.subr.mxu0 0.0
    %916 = vmatpush2.msra.mxu0 0.0
    %917 = vmatprep.subr.mxu0 0.0
    %918 = vmatpush2.msra.mxu0 0.0
    %919 = vmatprep.subr.mxu0 0.0
    %920 = vmatpush2.msra.mxu0 0.0
    %921 = vmatprep.subr.mxu0 0.0
    %922 = vmatpush2.msra.mxu0 0.0
    %923 = vmatprep.subr.mxu0 0.0
    %924 = vmatpush2.msra.mxu0 0.0
    %925 = vmatprep.subr.mxu0 0.0
    %926 = vmatpush2.msra.mxu0 0.0
    %927 = vmatprep.subr.mxu0 0.0
    %928 = vmatpush2.msra.mxu0 0.0
    %929 = vmatprep.subr.mxu0 0.0
    %930 = vmatpush2.msra.mxu0 0.0
    %931 = vmatprep.subr.mxu0 0.0
    %932 = vmatpush2.msra.mxu0 0.0
    %933 = vmatprep.subr.mxu0 0.0
    %934 = vmatpush2.msra.mxu0 0.0
    %935 = vmatprep.subr.mxu0 0.0
    %936 = vmatpush2.msra.mxu0 0.0
    %937 = vmatprep.mubr.f32.mxu0 0.0
    %938 = vmatmul.mubr.f32.gmra.mxu0 %v871
    %v939 = vpop.f32.mrf.mxu0
    %v940 = vadd.f32 0.0, %v939
    %v941 = vpop.f32.mrf.mxu0
    %942 = vdwg.mxu0
    %944 = vrot.lane.b32.xlu0 %v940, 32
    %v945 = vpop.permute.xlu0 %944
    %vm947 = vcmask 392448
    %948 = vst.msk [vmem:[#allocation2] sm:$0xff] %vm947, %v945
    %949 = vrot.lane.b32.xlu0 %v251, 80
    %v950 = vpop.permute.xlu0 %949
    %951 = vrot.lane.b32.xlu0 %v344, 80
    %v952 = vpop.permute.xlu0 %951
    %v953 = vsel %vm440, %v950, 0
    %v955 = vsel %vm440, %v952, 0
    %957 = vmatprep.subr.mxu0 0.0
    %958 = vmatpush1.xpose.msra.mxu0 0.0
    %959 = vmatprep.subr.mxu0 0.0
    %960 = vmatpush1.xpose.msra.mxu0 0.0
    %961 = vmatprep.subr.mxu0 0.0
    %962 = vmatpush1.xpose.msra.mxu0 0.0
    %963 = vmatprep.subr.mxu0 0.0
    %964 = vmatpush1.xpose.msra.mxu0 0.0
    %965 = vmatprep.subr.mxu0 0.0
    %966 = vmatpush1.xpose.msra.mxu0 0.0
    %967 = vmatprep.subr.mxu0 0.0
    %968 = vmatpush1.xpose.msra.mxu0 0.0
    %969 = vmatprep.subr.mxu0 0.0
    %970 = vmatpush1.xpose.msra.mxu0 0.0
    %971 = vmatprep.subr.mxu0 0.0
    %972 = vmatpush1.xpose.msra.mxu0 0.0
    %973 = vmatprep.subr.mxu0 0.0
    %974 = vmatpush1.xpose.msra.mxu0 0.0
    %975 = vmatprep.subr.mxu0 0.0
    %976 = vmatpush1.xpose.msra.mxu0 0.0
    %977 = vmatprep.subr.mxu0 0.0
    %978 = vmatpush1.xpose.msra.mxu0 0.0
    %979 = vmatprep.subr.mxu0 0.0
    %980 = vmatpush1.xpose.msra.mxu0 0.0
    %981 = vmatprep.subr.mxu0 0.0
    %982 = vmatpush1.xpose.msra.mxu0 0.0
    %983 = vmatprep.subr.mxu0 0.0
    %984 = vmatpush1.xpose.msra.mxu0 0.0
    %985 = vmatprep.subr.mxu0 0.0
    %986 = vmatpush1.xpose.msra.mxu0 0.0
    %987 = vmatprep.subr.mxu0 0.0
    %988 = vmatpush1.xpose.msra.mxu0 %v955
    %989 = vmatprep.subr.mxu0 0.0
    %990 = vmatpush2.xpose.msra.mxu0 0.0
    %991 = vmatprep.subr.mxu0 0.0
    %992 = vmatpush2.xpose.msra.mxu0 0.0
    %993 = vmatprep.subr.mxu0 0.0
    %994 = vmatpush2.xpose.msra.mxu0 0.0
    %995 = vmatprep.subr.mxu0 0.0
    %996 = vmatpush2.xpose.msra.mxu0 0.0
    %997 = vmatprep.subr.mxu0 0.0
    %998 = vmatpush2.xpose.msra.mxu0 0.0
    %999 = vmatprep.subr.mxu0 0.0
    %1000 = vmatpush2.xpose.msra.mxu0 0.0
    %1001 = vmatprep.subr.mxu0 0.0
    %1002 = vmatpush2.xpose.msra.mxu0 0.0
    %1003 = vmatprep.subr.mxu0 0.0
    %1004 = vmatpush2.xpose.msra.mxu0 0.0
    %1005 = vmatprep.subr.mxu0 0.0
    %1006 = vmatpush2.xpose.msra.mxu0 0.0
    %1007 = vmatprep.subr.mxu0 0.0
    %1008 = vmatpush2.xpose.msra.mxu0 0.0
    %1009 = vmatprep.subr.mxu0 0.0
    %1010 = vmatpush2.xpose.msra.mxu0 0.0
    %1011 = vmatprep.subr.mxu0 0.0
    %1012 = vmatpush2.xpose.msra.mxu0 0.0
    %1013 = vmatprep.subr.mxu0 0.0
    %1014 = vmatpush2.xpose.msra.mxu0 0.0
    %1015 = vmatprep.subr.mxu0 0.0
    %1016 = vmatpush2.xpose.msra.mxu0 0.0
    %1017 = vmatprep.subr.mxu0 0.0
    %1018 = vmatpush2.xpose.msra.mxu0 0.0
    %1019 = vmatprep.subr.mxu0 0.0
    %1020 = vmatpush2.xpose.msra.mxu0 0.0
    %1021 = vmatprep.mubr.f32.mxu0 0.0
    %1022 = vmatmul.mubr.f32.gmra.mxu0 %v953
    %v1023 = vpop.f32.mrf.mxu0
    %v1024 = vadd.f32 0.0, %v1023
    %v1025 = vpop.f32.mrf.mxu0
    %1026 = vdwg.mxu0
    %v1027 = vmul.f32 %v1024, 0.25
    %v1028 = vsel %vm518, %v1027, -inf
    %1029 = vmax.xlane.f32.xlu0 %v1028
    %v1030 = vpop.xlane.xlu0 %1029
    %v1031 = vsub.f32 %v1027, %v1030
    %v1032 = vmul.f32 %v1031, 1.442695
    %v1033 = vpow.pop %v1032
    %v1034 = vsel %vm518, %v1033, 0.0
    %1035 = vadd.xlane.f32.xlu0 %v1034
    %v1036 = vpop.xlane.xlu0 %1035
    %v1037 = vrcp.pop %v1036
    %v1038 = vmul.f32 %v1033, %v1037
    %1039 = vrot.lane.b32.xlu0 %v437, 80
    %v1040 = vpop.permute.xlu0 %1039
    %v1043 = vsel %vm518, %v1038, 0
    %1045 = vmatprep.subr.mxu0 0.0
    %1046 = vmatpush1.msra.mxu0 0.0
    %1047 = vmatprep.subr.mxu0 0.0
    %1048 = vmatpush1.msra.mxu0 0.0
    %1049 = vmatprep.subr.mxu0 0.0
    %1050 = vmatpush1.msra.mxu0 0.0
    %1051 = vmatprep.subr.mxu0 0.0
    %1052 = vmatpush1.msra.mxu0 0.0
    %1053 = vmatprep.subr.mxu0 0.0
    %1054 = vmatpush1.msra.mxu0 0.0
    %1055 = vmatprep.subr.mxu0 0.0
    %1056 = vmatpush1.msra.mxu0 0.0
    %1057 = vmatprep.subr.mxu0 0.0
    %1058 = vmatpush1.msra.mxu0 0.0
    %1059 = vmatprep.subr.mxu0 0.0
    %1060 = vmatpush1.msra.mxu0 0.0
    %1061 = vmatprep.subr.mxu0 0.0
    %1062 = vmatpush1.msra.mxu0 0.0
    %1063 = vmatprep.subr.mxu0 0.0
    %1064 = vmatpush1.msra.mxu0 0.0
    %1065 = vmatprep.subr.mxu0 0.0
    %1066 = vmatpush1.msra.mxu0 0.0
    %1067 = vmatprep.subr.mxu0 0.0
    %1068 = vmatpush1.msra.mxu0 0.0
    %1069 = vmatprep.subr.mxu0 0.0
    %1070 = vmatpush1.msra.mxu0 0.0
    %1071 = vmatprep.subr.mxu0 0.0
    %1072 = vmatpush1.msra.mxu0 0.0
    %1073 = vmatprep.subr.mxu0 0.0
    %1074 = vmatpush1.msra.mxu0 0.0
    %1075 = vmatprep.subr.mxu0 0.0
    %1076 = vmatpush1.msra.mxu0 %v1040
    %1077 = vmatprep.subr.mxu0 0.0
    %1078 = vmatpush2.msra.mxu0 0.0
    %1079 = vmatprep.subr.mxu0 0.0
    %1080 = vmatpush2.msra.mxu0 0.0
    %1081 = vmatprep.subr.mxu0 0.0
    %1082 = vmatpush2.msra.mxu0 0.0
    %1083 = vmatprep.subr.mxu0 0.0
    %1084 = vmatpush2.msra.mxu0 0.0
    %1085 = vmatprep.subr.mxu0 0.0
    %1086 = vmatpush2.msra.mxu0 0.0
    %1087 = vmatprep.subr.mxu0 0.0
    %1088 = vmatpush2.msra.mxu0 0.0
    %1089 = vmatprep.subr.mxu0 0.0
    %1090 = vmatpush2.msra.mxu0 0.0
    %1091 = vmatprep.subr.mxu0 0.0
    %1092 = vmatpush2.msra.mxu0 0.0
    %1093 = vmatprep.subr.mxu0 0.0
    %1094 = vmatpush2.msra.mxu0 0.0
    %1095 = vmatprep.subr.mxu0 0.0
    %1096 = vmatpush2.msra.mxu0 0.0
    %1097 = vmatprep.subr.mxu0 0.0
    %1098 = vmatpush2.msra.mxu0 0.0
    %1099 = vmatprep.subr.mxu0 0.0
    %1100 = vmatpush2.msra.mxu0 0.0
    %1101 = vmatprep.subr.mxu0 0.0
    %1102 = vmatpush2.msra.mxu0 0.0
    %1103 = vmatprep.subr.mxu0 0.0
    %1104 = vmatpush2.msra.mxu0 0.0
    %1105 = vmatprep.subr.mxu0 0.0
    %1106 = vmatpush2.msra.mxu0 0.0
    %1107 = vmatprep.subr.mxu0 0.0
    %1108 = vmatpush2.msra.mxu0 0.0
    %1109 = vmatprep.mubr.f32.mxu0 0.0
    %1110 = vmatmul.mubr.f32.gmra.mxu0 %v1043
    %v1111 = vpop.f32.mrf.mxu0
    %v1112 = vadd.f32 0.0, %v1111
    %v1113 = vpop.f32.mrf.mxu0
    %1114 = vdwg.mxu0
    %1116 = vrot.lane.b32.xlu0 %v1112, 48
    %v1117 = vpop.permute.xlu0 %1116
    %vm1119 = vcmask 523648
    %1120 = vst.msk [vmem:[#allocation2] sm:$0xff] %vm1119, %v1117
    %1121 = vrot.lane.b32.xlu0 %v251, 64
    %v1122 = vpop.permute.xlu0 %1121
    %1123 = vrot.lane.b32.xlu0 %v344, 64
    %v1124 = vpop.permute.xlu0 %1123
    %v1125 = vsel %vm440, %v1122, 0
    %v1127 = vsel %vm440, %v1124, 0
    %1129 = vmatprep.subr.mxu0 0.0
    %1130 = vmatpush1.xpose.msra.mxu0 0.0
    %1131 = vmatprep.subr.mxu0 0.0
    %1132 = vmatpush1.xpose.msra.mxu0 0.0
    %1133 = vmatprep.subr.mxu0 0.0
    %1134 = vmatpush1.xpose.msra.mxu0 0.0
    %1135 = vmatprep.subr.mxu0 0.0
    %1136 = vmatpush1.xpose.msra.mxu0 0.0
    %1137 = vmatprep.subr.mxu0 0.0
    %1138 = vmatpush1.xpose.msra.mxu0 0.0
    %1139 = vmatprep.subr.mxu0 0.0
    %1140 = vmatpush1.xpose.msra.mxu0 0.0
    %1141 = vmatprep.subr.mxu0 0.0
    %1142 = vmatpush1.xpose.msra.mxu0 0.0
    %1143 = vmatprep.subr.mxu0 0.0
    %1144 = vmatpush1.xpose.msra.mxu0 0.0
    %1145 = vmatprep.subr.mxu0 0.0
    %1146 = vmatpush1.xpose.msra.mxu0 0.0
    %1147 = vmatprep.subr.mxu0 0.0
    %1148 = vmatpush1.xpose.msra.mxu0 0.0
    %1149 = vmatprep.subr.mxu0 0.0
    %1150 = vmatpush1.xpose.msra.mxu0 0.0
    %1151 = vmatprep.subr.mxu0 0.0
    %1152 = vmatpush1.xpose.msra.mxu0 0.0
    %1153 = vmatprep.subr.mxu0 0.0
    %1154 = vmatpush1.xpose.msra.mxu0 0.0
    %1155 = vmatprep.subr.mxu0 0.0
    %1156 = vmatpush1.xpose.msra.mxu0 0.0
    %1157 = vmatprep.subr.mxu0 0.0
    %1158 = vmatpush1.xpose.msra.mxu0 0.0
    %1159 = vmatprep.subr.mxu0 0.0
    %1160 = vmatpush1.xpose.msra.mxu0 %v1127
    %1161 = vmatprep.subr.mxu0 0.0
    %1162 = vmatpush2.xpose.msra.mxu0 0.0
    %1163 = vmatprep.subr.mxu0 0.0
    %1164 = vmatpush2.xpose.msra.mxu0 0.0
    %1165 = vmatprep.subr.mxu0 0.0
    %1166 = vmatpush2.xpose.msra.mxu0 0.0
    %1167 = vmatprep.subr.mxu0 0.0
    %1168 = vmatpush2.xpose.msra.mxu0 0.0
    %1169 = vmatprep.subr.mxu0 0.0
    %1170 = vmatpush2.xpose.msra.mxu0 0.0
    %1171 = vmatprep.subr.mxu0 0.0
    %1172 = vmatpush2.xpose.msra.mxu0 0.0
    %1173 = vmatprep.subr.mxu0 0.0
    %1174 = vmatpush2.xpose.msra.mxu0 0.0
    %1175 = vmatprep.subr.mxu0 0.0
    %1176 = vmatpush2.xpose.msra.mxu0 0.0
    %1177 = vmatprep.subr.mxu0 0.0
    %1178 = vmatpush2.xpose.msra.mxu0 0.0
    %1179 = vmatprep.subr.mxu0 0.0
    %1180 = vmatpush2.xpose.msra.mxu0 0.0
    %1181 = vmatprep.subr.mxu0 0.0
    %1182 = vmatpush2.xpose.msra.mxu0 0.0
    %1183 = vmatprep.subr.mxu0 0.0
    %1184 = vmatpush2.xpose.msra.mxu0 0.0
    %1185 = vmatprep.subr.mxu0 0.0
    %1186 = vmatpush2.xpose.msra.mxu0 0.0
    %1187 = vmatprep.subr.mxu0 0.0
    %1188 = vmatpush2.xpose.msra.mxu0 0.0
    %1189 = vmatprep.subr.mxu0 0.0
    %1190 = vmatpush2.xpose.msra.mxu0 0.0
    %1191 = vmatprep.subr.mxu0 0.0
    %1192 = vmatpush2.xpose.msra.mxu0 0.0
    %1193 = vmatprep.mubr.f32.mxu0 0.0
    %1194 = vmatmul.mubr.f32.gmra.mxu0 %v1125
    %v1195 = vpop.f32.mrf.mxu0
    %v1196 = vadd.f32 0.0, %v1195
    %v1197 = vpop.f32.mrf.mxu0
    %1198 = vdwg.mxu0
    %v1199 = vmul.f32 %v1196, 0.25
    %v1200 = vsel %vm518, %v1199, -inf
    %1201 = vmax.xlane.f32.xlu0 %v1200
    %v1202 = vpop.xlane.xlu0 %1201
    %v1203 = vsub.f32 %v1199, %v1202
    %v1204 = vmul.f32 %v1203, 1.442695
    %v1205 = vpow.pop %v1204
    %v1206 = vsel %vm518, %v1205, 0.0
    %1207 = vadd.xlane.f32.xlu0 %v1206
    %v1208 = vpop.xlane.xlu0 %1207
    %v1209 = vrcp.pop %v1208
    %v1210 = vmul.f32 %v1205, %v1209
    %1211 = vrot.lane.b32.xlu0 %v437, 64
    %v1212 = vpop.permute.xlu0 %1211
    %v1215 = vsel %vm518, %v1210, 0
    %1217 = vmatprep.subr.mxu0 0.0
    %1218 = vmatpush1.msra.mxu0 0.0
    %1219 = vmatprep.subr.mxu0 0.0
    %1220 = vmatpush1.msra.mxu0 0.0
    %1221 = vmatprep.subr.mxu0 0.0
    %1222 = vmatpush1.msra.mxu0 0.0
    %1223 = vmatprep.subr.mxu0 0.0
    %1224 = vmatpush1.msra.mxu0 0.0
    %1225 = vmatprep.subr.mxu0 0.0
    %1226 = vmatpush1.msra.mxu0 0.0
    %1227 = vmatprep.subr.mxu0 0.0
    %1228 = vmatpush1.msra.mxu0 0.0
    %1229 = vmatprep.subr.mxu0 0.0
    %1230 = vmatpush1.msra.mxu0 0.0
    %1231 = vmatprep.subr.mxu0 0.0
    %1232 = vmatpush1.msra.mxu0 0.0
    %1233 = vmatprep.subr.mxu0 0.0
    %1234 = vmatpush1.msra.mxu0 0.0
    %1235 = vmatprep.subr.mxu0 0.0
    %1236 = vmatpush1.msra.mxu0 0.0
    %1237 = vmatprep.subr.mxu0 0.0
    %1238 = vmatpush1.msra.mxu0 0.0
    %1239 = vmatprep.subr.mxu0 0.0
    %1240 = vmatpush1.msra.mxu0 0.0
    %1241 = vmatprep.subr.mxu0 0.0
    %1242 = vmatpush1.msra.mxu0 0.0
    %1243 = vmatprep.subr.mxu0 0.0
    %1244 = vmatpush1.msra.mxu0 0.0
    %1245 = vmatprep.subr.mxu0 0.0
    %1246 = vmatpush1.msra.mxu0 0.0
    %1247 = vmatprep.subr.mxu0 0.0
    %1248 = vmatpush1.msra.mxu0 %v1212
    %1249 = vmatprep.subr.mxu0 0.0
    %1250 = vmatpush2.msra.mxu0 0.0
    %1251 = vmatprep.subr.mxu0 0.0
    %1252 = vmatpush2.msra.mxu0 0.0
    %1253 = vmatprep.subr.mxu0 0.0
    %1254 = vmatpush2.msra.mxu0 0.0
    %1255 = vmatprep.subr.mxu0 0.0
    %1256 = vmatpush2.msra.mxu0 0.0
    %1257 = vmatprep.subr.mxu0 0.0
    %1258 = vmatpush2.msra.mxu0 0.0
    %1259 = vmatprep.subr.mxu0 0.0
    %1260 = vmatpush2.msra.mxu0 0.0
    %1261 = vmatprep.subr.mxu0 0.0
    %1262 = vmatpush2.msra.mxu0 0.0
    %1263 = vmatprep.subr.mxu0 0.0
    %1264 = vmatpush2.msra.mxu0 0.0
    %1265 = vmatprep.subr.mxu0 0.0
    %1266 = vmatpush2.msra.mxu0 0.0
    %1267 = vmatprep.subr.mxu0 0.0
    %1268 = vmatpush2.msra.mxu0 0.0
    %1269 = vmatprep.subr.mxu0 0.0
    %1270 = vmatpush2.msra.mxu0 0.0
    %1271 = vmatprep.subr.mxu0 0.0
    %1272 = vmatpush2.msra.mxu0 0.0
    %1273 = vmatprep.subr.mxu0 0.0
    %1274 = vmatpush2.msra.mxu0 0.0
    %1275 = vmatprep.subr.mxu0 0.0
    %1276 = vmatpush2.msra.mxu0 0.0
    %1277 = vmatprep.subr.mxu0 0.0
    %1278 = vmatpush2.msra.mxu0 0.0
    %1279 = vmatprep.subr.mxu0 0.0
    %1280 = vmatpush2.msra.mxu0 0.0
    %1281 = vmatprep.mubr.f32.mxu0 0.0
    %1282 = vmatmul.mubr.f32.gmra.mxu0 %v1215
    %v1283 = vpop.f32.mrf.mxu0
    %v1284 = vadd.f32 0.0, %v1283
    %v1285 = vpop.f32.mrf.mxu0
    %1286 = vdwg.mxu0
    %1288 = vrot.lane.b32.xlu0 %v1284, 64
    %v1289 = vpop.permute.xlu0 %1288
    %vm1291 = vcmask 654848
    %1292 = vst.msk [vmem:[#allocation2] sm:$0xff] %vm1291, %v1289
    %1293 = vrot.lane.b32.xlu0 %v251, 48
    %v1294 = vpop.permute.xlu0 %1293
    %1295 = vrot.lane.b32.xlu0 %v344, 48
    %v1296 = vpop.permute.xlu0 %1295
    %v1297 = vsel %vm440, %v1294, 0
    %v1299 = vsel %vm440, %v1296, 0
    %1301 = vmatprep.subr.mxu0 0.0
    %1302 = vmatpush1.xpose.msra.mxu0 0.0
    %1303 = vmatprep.subr.mxu0 0.0
    %1304 = vmatpush1.xpose.msra.mxu0 0.0
    %1305 = vmatprep.subr.mxu0 0.0
    %1306 = vmatpush1.xpose.msra.mxu0 0.0
    %1307 = vmatprep.subr.mxu0 0.0
    %1308 = vmatpush1.xpose.msra.mxu0 0.0
    %1309 = vmatprep.subr.mxu0 0.0
    %1310 = vmatpush1.xpose.msra.mxu0 0.0
    %1311 = vmatprep.subr.mxu0 0.0
    %1312 = vmatpush1.xpose.msra.mxu0 0.0
    %1313 = vmatprep.subr.mxu0 0.0
    %1314 = vmatpush1.xpose.msra.mxu0 0.0
    %1315 = vmatprep.subr.mxu0 0.0
    %1316 = vmatpush1.xpose.msra.mxu0 0.0
    %1317 = vmatprep.subr.mxu0 0.0
    %1318 = vmatpush1.xpose.msra.mxu0 0.0
    %1319 = vmatprep.subr.mxu0 0.0
    %1320 = vmatpush1.xpose.msra.mxu0 0.0
    %1321 = vmatprep.subr.mxu0 0.0
    %1322 = vmatpush1.xpose.msra.mxu0 0.0
    %1323 = vmatprep.subr.mxu0 0.0
    %1324 = vmatpush1.xpose.msra.mxu0 0.0
    %1325 = vmatprep.subr.mxu0 0.0
    %1326 = vmatpush1.xpose.msra.mxu0 0.0
    %1327 = vmatprep.subr.mxu0 0.0
    %1328 = vmatpush1.xpose.msra.mxu0 0.0
    %1329 = vmatprep.subr.mxu0 0.0
    %1330 = vmatpush1.xpose.msra.mxu0 0.0
    %1331 = vmatprep.subr.mxu0 0.0
    %1332 = vmatpush1.xpose.msra.mxu0 %v1299
    %1333 = vmatprep.subr.mxu0 0.0
    %1334 = vmatpush2.xpose.msra.mxu0 0.0
    %1335 = vmatprep.subr.mxu0 0.0
    %1336 = vmatpush2.xpose.msra.mxu0 0.0
    %1337 = vmatprep.subr.mxu0 0.0
    %1338 = vmatpush2.xpose.msra.mxu0 0.0
    %1339 = vmatprep.subr.mxu0 0.0
    %1340 = vmatpush2.xpose.msra.mxu0 0.0
    %1341 = vmatprep.subr.mxu0 0.0
    %1342 = vmatpush2.xpose.msra.mxu0 0.0
    %1343 = vmatprep.subr.mxu0 0.0
    %1344 = vmatpush2.xpose.msra.mxu0 0.0
    %1345 = vmatprep.subr.mxu0 0.0
    %1346 = vmatpush2.xpose.msra.mxu0 0.0
    %1347 = vmatprep.subr.mxu0 0.0
    %1348 = vmatpush2.xpose.msra.mxu0 0.0
    %1349 = vmatprep.subr.mxu0 0.0
    %1350 = vmatpush2.xpose.msra.mxu0 0.0
    %1351 = vmatprep.subr.mxu0 0.0
    %1352 = vmatpush2.xpose.msra.mxu0 0.0
    %1353 = vmatprep.subr.mxu0 0.0
    %1354 = vmatpush2.xpose.msra.mxu0 0.0
    %1355 = vmatprep.subr.mxu0 0.0
    %1356 = vmatpush2.xpose.msra.mxu0 0.0
    %1357 = vmatprep.subr.mxu0 0.0
    %1358 = vmatpush2.xpose.msra.mxu0 0.0
    %1359 = vmatprep.subr.mxu0 0.0
    %1360 = vmatpush2.xpose.msra.mxu0 0.0
    %1361 = vmatprep.subr.mxu0 0.0
    %1362 = vmatpush2.xpose.msra.mxu0 0.0
    %1363 = vmatprep.subr.mxu0 0.0
    %1364 = vmatpush2.xpose.msra.mxu0 0.0
    %1365 = vmatprep.mubr.f32.mxu0 0.0
    %1366 = vmatmul.mubr.f32.gmra.mxu0 %v1297
    %v1367 = vpop.f32.mrf.mxu0
    %v1368 = vadd.f32 0.0, %v1367
    %v1369 = vpop.f32.mrf.mxu0
    %1370 = vdwg.mxu0
    %v1371 = vmul.f32 %v1368, 0.25
    %v1372 = vsel %vm518, %v1371, -inf
    %1373 = vmax.xlane.f32.xlu0 %v1372
    %v1374 = vpop.xlane.xlu0 %1373
    %v1375 = vsub.f32 %v1371, %v1374
    %v1376 = vmul.f32 %v1375, 1.442695
    %v1377 = vpow.pop %v1376
    %v1378 = vsel %vm518, %v1377, 0.0
    %1379 = vadd.xlane.f32.xlu0 %v1378
    %v1380 = vpop.xlane.xlu0 %1379
    %v1381 = vrcp.pop %v1380
    %v1382 = vmul.f32 %v1377, %v1381
    %1383 = vrot.lane.b32.xlu0 %v437, 48
    %v1384 = vpop.permute.xlu0 %1383
    %v1387 = vsel %vm518, %v1382, 0
    %1389 = vmatprep.subr.mxu0 0.0
    %1390 = vmatpush1.msra.mxu0 0.0
    %1391 = vmatprep.subr.mxu0 0.0
    %1392 = vmatpush1.msra.mxu0 0.0
    %1393 = vmatprep.subr.mxu0 0.0
    %1394 = vmatpush1.msra.mxu0 0.0
    %1395 = vmatprep.subr.mxu0 0.0
    %1396 = vmatpush1.msra.mxu0 0.0
    %1397 = vmatprep.subr.mxu0 0.0
    %1398 = vmatpush1.msra.mxu0 0.0
    %1399 = vmatprep.subr.mxu0 0.0
    %1400 = vmatpush1.msra.mxu0 0.0
    %1401 = vmatprep.subr.mxu0 0.0
    %1402 = vmatpush1.msra.mxu0 0.0
    %1403 = vmatprep.subr.mxu0 0.0
    %1404 = vmatpush1.msra.mxu0 0.0
    %1405 = vmatprep.subr.mxu0 0.0
    %1406 = vmatpush1.msra.mxu0 0.0
    %1407 = vmatprep.subr.mxu0 0.0
    %1408 = vmatpush1.msra.mxu0 0.0
    %1409 = vmatprep.subr.mxu0 0.0
    %1410 = vmatpush1.msra.mxu0 0.0
    %1411 = vmatprep.subr.mxu0 0.0
    %1412 = vmatpush1.msra.mxu0 0.0
    %1413 = vmatprep.subr.mxu0 0.0
    %1414 = vmatpush1.msra.mxu0 0.0
    %1415 = vmatprep.subr.mxu0 0.0
    %1416 = vmatpush1.msra.mxu0 0.0
    %1417 = vmatprep.subr.mxu0 0.0
    %1418 = vmatpush1.msra.mxu0 0.0
    %1419 = vmatprep.subr.mxu0 0.0
    %1420 = vmatpush1.msra.mxu0 %v1384
    %1421 = vmatprep.subr.mxu0 0.0
    %1422 = vmatpush2.msra.mxu0 0.0
    %1423 = vmatprep.subr.mxu0 0.0
    %1424 = vmatpush2.msra.mxu0 0.0
    %1425 = vmatprep.subr.mxu0 0.0
    %1426 = vmatpush2.msra.mxu0 0.0
    %1427 = vmatprep.subr.mxu0 0.0
    %1428 = vmatpush2.msra.mxu0 0.0
    %1429 = vmatprep.subr.mxu0 0.0
    %1430 = vmatpush2.msra.mxu0 0.0
    %1431 = vmatprep.subr.mxu0 0.0
    %1432 = vmatpush2.msra.mxu0 0.0
    %1433 = vmatprep.subr.mxu0 0.0
    %1434 = vmatpush2.msra.mxu0 0.0
    %1435 = vmatprep.subr.mxu0 0.0
    %1436 = vmatpush2.msra.mxu0 0.0
    %1437 = vmatprep.subr.mxu0 0.0
    %1438 = vmatpush2.msra.mxu0 0.0
    %1439 = vmatprep.subr.mxu0 0.0
    %1440 = vmatpush2.msra.mxu0 0.0
    %1441 = vmatprep.subr.mxu0 0.0
    %1442 = vmatpush2.msra.mxu0 0.0
    %1443 = vmatprep.subr.mxu0 0.0
    %1444 = vmatpush2.msra.mxu0 0.0
    %1445 = vmatprep.subr.mxu0 0.0
    %1446 = vmatpush2.msra.mxu0 0.0
    %1447 = vmatprep.subr.mxu0 0.0
    %1448 = vmatpush2.msra.mxu0 0.0
    %1449 = vmatprep.subr.mxu0 0.0
    %1450 = vmatpush2.msra.mxu0 0.0
    %1451 = vmatprep.subr.mxu0 0.0
    %1452 = vmatpush2.msra.mxu0 0.0
    %1453 = vmatprep.mubr.f32.mxu0 0.0
    %1454 = vmatmul.mubr.f32.gmra.mxu0 %v1387
    %v1455 = vpop.f32.mrf.mxu0
    %v1456 = vadd.f32 0.0, %v1455
    %v1457 = vpop.f32.mrf.mxu0
    %1458 = vdwg.mxu0
    %1460 = vrot.lane.b32.xlu0 %v1456, 80
    %v1461 = vpop.permute.xlu0 %1460
    %vm1463 = vcmask 786048
    %1464 = vst.msk [vmem:[#allocation2] sm:$0xff] %vm1463, %v1461
    %1465 = vrot.lane.b32.xlu0 %v251, 32
    %v1466 = vpop.permute.xlu0 %1465
    %1467 = vrot.lane.b32.xlu0 %v344, 32
    %v1468 = vpop.permute.xlu0 %1467
    %v1469 = vsel %vm440, %v1466, 0
    %v1471 = vsel %vm440, %v1468, 0
    %1473 = vmatprep.subr.mxu0 0.0
    %1474 = vmatpush1.xpose.msra.mxu0 0.0
    %1475 = vmatprep.subr.mxu0 0.0
    %1476 = vmatpush1.xpose.msra.mxu0 0.0
    %1477 = vmatprep.subr.mxu0 0.0
    %1478 = vmatpush1.xpose.msra.mxu0 0.0
    %1479 = vmatprep.subr.mxu0 0.0
    %1480 = vmatpush1.xpose.msra.mxu0 0.0
    %1481 = vmatprep.subr.mxu0 0.0
    %1482 = vmatpush1.xpose.msra.mxu0 0.0
    %1483 = vmatprep.subr.mxu0 0.0
    %1484 = vmatpush1.xpose.msra.mxu0 0.0
    %1485 = vmatprep.subr.mxu0 0.0
    %1486 = vmatpush1.xpose.msra.mxu0 0.0
    %1487 = vmatprep.subr.mxu0 0.0
    %1488 = vmatpush1.xpose.msra.mxu0 0.0
    %1489 = vmatprep.subr.mxu0 0.0
    %1490 = vmatpush1.xpose.msra.mxu0 0.0
    %1491 = vmatprep.subr.mxu0 0.0
    %1492 = vmatpush1.xpose.msra.mxu0 0.0
    %1493 = vmatprep.subr.mxu0 0.0
    %1494 = vmatpush1.xpose.msra.mxu0 0.0
    %1495 = vmatprep.subr.mxu0 0.0
    %1496 = vmatpush1.xpose.msra.mxu0 0.0
    %1497 = vmatprep.subr.mxu0 0.0
    %1498 = vmatpush1.xpose.msra.mxu0 0.0
    %1499 = vmatprep.subr.mxu0 0.0
    %1500 = vmatpush1.xpose.msra.mxu0 0.0
    %1501 = vmatprep.subr.mxu0 0.0
    %1502 = vmatpush1.xpose.msra.mxu0 0.0
    %1503 = vmatprep.subr.mxu0 0.0
    %1504 = vmatpush1.xpose.msra.mxu0 %v1471
    %1505 = vmatprep.subr.mxu0 0.0
    %1506 = vmatpush2.xpose.msra.mxu0 0.0
    %1507 = vmatprep.subr.mxu0 0.0
    %1508 = vmatpush2.xpose.msra.mxu0 0.0
    %1509 = vmatprep.subr.mxu0 0.0
    %1510 = vmatpush2.xpose.msra.mxu0 0.0
    %1511 = vmatprep.subr.mxu0 0.0
    %1512 = vmatpush2.xpose.msra.mxu0 0.0
    %1513 = vmatprep.subr.mxu0 0.0
    %1514 = vmatpush2.xpose.msra.mxu0 0.0
    %1515 = vmatprep.subr.mxu0 0.0
    %1516 = vmatpush2.xpose.msra.mxu0 0.0
    %1517 = vmatprep.subr.mxu0 0.0
    %1518 = vmatpush2.xpose.msra.mxu0 0.0
    %1519 = vmatprep.subr.mxu0 0.0
    %1520 = vmatpush2.xpose.msra.mxu0 0.0
    %1521 = vmatprep.subr.mxu0 0.0
    %1522 = vmatpush2.xpose.msra.mxu0 0.0
    %1523 = vmatprep.subr.mxu0 0.0
    %1524 = vmatpush2.xpose.msra.mxu0 0.0
    %1525 = vmatprep.subr.mxu0 0.0
    %1526 = vmatpush2.xpose.msra.mxu0 0.0
    %1527 = vmatprep.subr.mxu0 0.0
    %1528 = vmatpush2.xpose.msra.mxu0 0.0
    %1529 = vmatprep.subr.mxu0 0.0
    %1530 = vmatpush2.xpose.msra.mxu0 0.0
    %1531 = vmatprep.subr.mxu0 0.0
    %1532 = vmatpush2.xpose.msra.mxu0 0.0
    %1533 = vmatprep.subr.mxu0 0.0
    %1534 = vmatpush2.xpose.msra.mxu0 0.0
    %1535 = vmatprep.subr.mxu0 0.0
    %1536 = vmatpush2.xpose.msra.mxu0 0.0
    %1537 = vmatprep.mubr.f32.mxu0 0.0
    %1538 = vmatmul.mubr.f32.gmra.mxu0 %v1469
    %v1539 = vpop.f32.mrf.mxu0
    %v1540 = vadd.f32 0.0, %v1539
    %v1541 = vpop.f32.mrf.mxu0
    %1542 = vdwg.mxu0
    %v1543 = vmul.f32 %v1540, 0.25
    %v1544 = vsel %vm518, %v1543, -inf
    %1545 = vmax.xlane.f32.xlu0 %v1544
    %v1546 = vpop.xlane.xlu0 %1545
    %v1547 = vsub.f32 %v1543, %v1546
    %v1548 = vmul.f32 %v1547, 1.442695
    %v1549 = vpow.pop %v1548
    %v1550 = vsel %vm518, %v1549, 0.0
    %1551 = vadd.xlane.f32.xlu0 %v1550
    %v1552 = vpop.xlane.xlu0 %1551
    %v1553 = vrcp.pop %v1552
    %v1554 = vmul.f32 %v1549, %v1553
    %1555 = vrot.lane.b32.xlu0 %v437, 32
    %v1556 = vpop.permute.xlu0 %1555
    %v1559 = vsel %vm518, %v1554, 0
    %1561 = vmatprep.subr.mxu0 0.0
    %1562 = vmatpush1.msra.mxu0 0.0
    %1563 = vmatprep.subr.mxu0 0.0
    %1564 = vmatpush1.msra.mxu0 0.0
    %1565 = vmatprep.subr.mxu0 0.0
    %1566 = vmatpush1.msra.mxu0 0.0
    %1567 = vmatprep.subr.mxu0 0.0
    %1568 = vmatpush1.msra.mxu0 0.0
    %1569 = vmatprep.subr.mxu0 0.0
    %1570 = vmatpush1.msra.mxu0 0.0
    %1571 = vmatprep.subr.mxu0 0.0
    %1572 = vmatpush1.msra.mxu0 0.0
    %1573 = vmatprep.subr.mxu0 0.0
    %1574 = vmatpush1.msra.mxu0 0.0
    %1575 = vmatprep.subr.mxu0 0.0
    %1576 = vmatpush1.msra.mxu0 0.0
    %1577 = vmatprep.subr.mxu0 0.0
    %1578 = vmatpush1.msra.mxu0 0.0
    %1579 = vmatprep.subr.mxu0 0.0
    %1580 = vmatpush1.msra.mxu0 0.0
    %1581 = vmatprep.subr.mxu0 0.0
    %1582 = vmatpush1.msra.mxu0 0.0
    %1583 = vmatprep.subr.mxu0 0.0
    %1584 = vmatpush1.msra.mxu0 0.0
    %1585 = vmatprep.subr.mxu0 0.0
    %1586 = vmatpush1.msra.mxu0 0.0
    %1587 = vmatprep.subr.mxu0 0.0
    %1588 = vmatpush1.msra.mxu0 0.0
    %1589 = vmatprep.subr.mxu0 0.0
    %1590 = vmatpush1.msra.mxu0 0.0
    %1591 = vmatprep.subr.mxu0 0.0
    %1592 = vmatpush1.msra.mxu0 %v1556
    %1593 = vmatprep.subr.mxu0 0.0
    %1594 = vmatpush2.msra.mxu0 0.0
    %1595 = vmatprep.subr.mxu0 0.0
    %1596 = vmatpush2.msra.mxu0 0.0
    %1597 = vmatprep.subr.mxu0 0.0
    %1598 = vmatpush2.msra.mxu0 0.0
    %1599 = vmatprep.subr.mxu0 0.0
    %1600 = vmatpush2.msra.mxu0 0.0
    %1601 = vmatprep.subr.mxu0 0.0
    %1602 = vmatpush2.msra.mxu0 0.0
    %1603 = vmatprep.subr.mxu0 0.0
    %1604 = vmatpush2.msra.mxu0 0.0
    %1605 = vmatprep.subr.mxu0 0.0
    %1606 = vmatpush2.msra.mxu0 0.0
    %1607 = vmatprep.subr.mxu0 0.0
    %1608 = vmatpush2.msra.mxu0 0.0
    %1609 = vmatprep.subr.mxu0 0.0
    %1610 = vmatpush2.msra.mxu0 0.0
    %1611 = vmatprep.subr.mxu0 0.0
    %1612 = vmatpush2.msra.mxu0 0.0
    %1613 = vmatprep.subr.mxu0 0.0
    %1614 = vmatpush2.msra.mxu0 0.0
    %1615 = vmatprep.subr.mxu0 0.0
    %1616 = vmatpush2.msra.mxu0 0.0
    %1617 = vmatprep.subr.mxu0 0.0
    %1618 = vmatpush2.msra.mxu0 0.0
    %1619 = vmatprep.subr.mxu0 0.0
    %1620 = vmatpush2.msra.mxu0 0.0
    %1621 = vmatprep.subr.mxu0 0.0
    %1622 = vmatpush2.msra.mxu0 0.0
    %1623 = vmatprep.subr.mxu0 0.0
    %1624 = vmatpush2.msra.mxu0 0.0
    %1625 = vmatprep.mubr.f32.mxu0 0.0
    %1626 = vmatmul.mubr.f32.gmra.mxu0 %v1559
    %v1627 = vpop.f32.mrf.mxu0
    %v1628 = vadd.f32 0.0, %v1627
    %v1629 = vpop.f32.mrf.mxu0
    %1630 = vdwg.mxu0
    %1632 = vrot.lane.b32.xlu0 %v1628, 96
    %v1633 = vpop.permute.xlu0 %1632
    %vm1635 = vcmask 917248
    %1636 = vst.msk [vmem:[#allocation2] sm:$0xff] %vm1635, %v1633
    %1637 = vrot.lane.b32.xlu0 %v251, 16
    %v1638 = vpop.permute.xlu0 %1637
    %1639 = vrot.lane.b32.xlu0 %v344, 16
    %v1640 = vpop.permute.xlu0 %1639
    %v1641 = vsel %vm440, %v1638, 0
    %v1643 = vsel %vm440, %v1640, 0
    %1645 = vmatprep.subr.mxu0 0.0
    %1646 = vmatpush1.xpose.msra.mxu0 0.0
    %1647 = vmatprep.subr.mxu0 0.0
    %1648 = vmatpush1.xpose.msra.mxu0 0.0
    %1649 = vmatprep.subr.mxu0 0.0
    %1650 = vmatpush1.xpose.msra.mxu0 0.0
    %1651 = vmatprep.subr.mxu0 0.0
    %1652 = vmatpush1.xpose.msra.mxu0 0.0
    %1653 = vmatprep.subr.mxu0 0.0
    %1654 = vmatpush1.xpose.msra.mxu0 0.0
    %1655 = vmatprep.subr.mxu0 0.0
    %1656 = vmatpush1.xpose.msra.mxu0 0.0
    %1657 = vmatprep.subr.mxu0 0.0
    %1658 = vmatpush1.xpose.msra.mxu0 0.0
    %1659 = vmatprep.subr.mxu0 0.0
    %1660 = vmatpush1.xpose.msra.mxu0 0.0
    %1661 = vmatprep.subr.mxu0 0.0
    %1662 = vmatpush1.xpose.msra.mxu0 0.0
    %1663 = vmatprep.subr.mxu0 0.0
    %1664 = vmatpush1.xpose.msra.mxu0 0.0
    %1665 = vmatprep.subr.mxu0 0.0
    %1666 = vmatpush1.xpose.msra.mxu0 0.0
    %1667 = vmatprep.subr.mxu0 0.0
    %1668 = vmatpush1.xpose.msra.mxu0 0.0
    %1669 = vmatprep.subr.mxu0 0.0
    %1670 = vmatpush1.xpose.msra.mxu0 0.0
    %1671 = vmatprep.subr.mxu0 0.0
    %1672 = vmatpush1.xpose.msra.mxu0 0.0
    %1673 = vmatprep.subr.mxu0 0.0
    %1674 = vmatpush1.xpose.msra.mxu0 0.0
    %1675 = vmatprep.subr.mxu0 0.0
    %1676 = vmatpush1.xpose.msra.mxu0 %v1643
    %1677 = vmatprep.subr.mxu0 0.0
    %1678 = vmatpush2.xpose.msra.mxu0 0.0
    %1679 = vmatprep.subr.mxu0 0.0
    %1680 = vmatpush2.xpose.msra.mxu0 0.0
    %1681 = vmatprep.subr.mxu0 0.0
    %1682 = vmatpush2.xpose.msra.mxu0 0.0
    %1683 = vmatprep.subr.mxu0 0.0
    %1684 = vmatpush2.xpose.msra.mxu0 0.0
    %1685 = vmatprep.subr.mxu0 0.0
    %1686 = vmatpush2.xpose.msra.mxu0 0.0
    %1687 = vmatprep.subr.mxu0 0.0
    %1688 = vmatpush2.xpose.msra.mxu0 0.0
    %1689 = vmatprep.subr.mxu0 0.0
    %1690 = vmatpush2.xpose.msra.mxu0 0.0
    %1691 = vmatprep.subr.mxu0 0.0
    %1692 = vmatpush2.xpose.msra.mxu0 0.0
    %1693 = vmatprep.subr.mxu0 0.0
    %1694 = vmatpush2.xpose.msra.mxu0 0.0
    %1695 = vmatprep.subr.mxu0 0.0
    %1696 = vmatpush2.xpose.msra.mxu0 0.0
    %1697 = vmatprep.subr.mxu0 0.0
    %1698 = vmatpush2.xpose.msra.mxu0 0.0
    %1699 = vmatprep.subr.mxu0 0.0
    %1700 = vmatpush2.xpose.msra.mxu0 0.0
    %1701 = vmatprep.subr.mxu0 0.0
    %1702 = vmatpush2.xpose.msra.mxu0 0.0
    %1703 = vmatprep.subr.mxu0 0.0
    %1704 = vmatpush2.xpose.msra.mxu0 0.0
    %1705 = vmatprep.subr.mxu0 0.0
    %1706 = vmatpush2.xpose.msra.mxu0 0.0
    %1707 = vmatprep.subr.mxu0 0.0
    %1708 = vmatpush2.xpose.msra.mxu0 0.0
    %1709 = vmatprep.mubr.f32.mxu0 0.0
    %1710 = vmatmul.mubr.f32.gmra.mxu0 %v1641
    %v1711 = vpop.f32.mrf.mxu0
    %v1712 = vadd.f32 0.0, %v1711
    %v1713 = vpop.f32.mrf.mxu0
    %1714 = vdwg.mxu0
    %v1715 = vmul.f32 %v1712, 0.25
    %v1716 = vsel %vm518, %v1715, -inf
    %1717 = vmax.xlane.f32.xlu0 %v1716
    %v1718 = vpop.xlane.xlu0 %1717
    %v1719 = vsub.f32 %v1715, %v1718
    %v1720 = vmul.f32 %v1719, 1.442695
    %v1721 = vpow.pop %v1720
    %v1722 = vsel %vm518, %v1721, 0.0
    %1723 = vadd.xlane.f32.xlu0 %v1722
    %v1724 = vpop.xlane.xlu0 %1723
    %v1725 = vrcp.pop %v1724
    %v1726 = vmul.f32 %v1721, %v1725
    %1727 = vrot.lane.b32.xlu0 %v437, 16
    %v1728 = vpop.permute.xlu0 %1727
    %v1731 = vsel %vm518, %v1726, 0
    %1733 = vmatprep.subr.mxu0 0.0
    %1734 = vmatpush1.msra.mxu0 0.0
    %1735 = vmatprep.subr.mxu0 0.0
    %1736 = vmatpush1.msra.mxu0 0.0
    %1737 = vmatprep.subr.mxu0 0.0
    %1738 = vmatpush1.msra.mxu0 0.0
    %1739 = vmatprep.subr.mxu0 0.0
    %1740 = vmatpush1.msra.mxu0 0.0
    %1741 = vmatprep.subr.mxu0 0.0
    %1742 = vmatpush1.msra.mxu0 0.0
    %1743 = vmatprep.subr.mxu0 0.0
    %1744 = vmatpush1.msra.mxu0 0.0
    %1745 = vmatprep.subr.mxu0 0.0
    %1746 = vmatpush1.msra.mxu0 0.0
    %1747 = vmatprep.subr.mxu0 0.0
    %1748 = vmatpush1.msra.mxu0 0.0
    %1749 = vmatprep.subr.mxu0 0.0
    %1750 = vmatpush1.msra.mxu0 0.0
    %1751 = vmatprep.subr.mxu0 0.0
    %1752 = vmatpush1.msra.mxu0 0.0
    %1753 = vmatprep.subr.mxu0 0.0
    %1754 = vmatpush1.msra.mxu0 0.0
    %1755 = vmatprep.subr.mxu0 0.0
    %1756 = vmatpush1.msra.mxu0 0.0
    %1757 = vmatprep.subr.mxu0 0.0
    %1758 = vmatpush1.msra.mxu0 0.0
    %1759 = vmatprep.subr.mxu0 0.0
    %1760 = vmatpush1.msra.mxu0 0.0
    %1761 = vmatprep.subr.mxu0 0.0
    %1762 = vmatpush1.msra.mxu0 0.0
    %1763 = vmatprep.subr.mxu0 0.0
    %1764 = vmatpush1.msra.mxu0 %v1728
    %1765 = vmatprep.subr.mxu0 0.0
    %1766 = vmatpush2.msra.mxu0 0.0
    %1767 = vmatprep.subr.mxu0 0.0
    %1768 = vmatpush2.msra.mxu0 0.0
    %1769 = vmatprep.subr.mxu0 0.0
    %1770 = vmatpush2.msra.mxu0 0.0
    %1771 = vmatprep.subr.mxu0 0.0
    %1772 = vmatpush2.msra.mxu0 0.0
    %1773 = vmatprep.subr.mxu0 0.0
    %1774 = vmatpush2.msra.mxu0 0.0
    %1775 = vmatprep.subr.mxu0 0.0
    %1776 = vmatpush2.msra.mxu0 0.0
    %1777 = vmatprep.subr.mxu0 0.0
    %1778 = vmatpush2.msra.mxu0 0.0
    %1779 = vmatprep.subr.mxu0 0.0
    %1780 = vmatpush2.msra.mxu0 0.0
    %1781 = vmatprep.subr.mxu0 0.0
    %1782 = vmatpush2.msra.mxu0 0.0
    %1783 = vmatprep.subr.mxu0 0.0
    %1784 = vmatpush2.msra.mxu0 0.0
    %1785 = vmatprep.subr.mxu0 0.0
    %1786 = vmatpush2.msra.mxu0 0.0
    %1787 = vmatprep.subr.mxu0 0.0
    %1788 = vmatpush2.msra.mxu0 0.0
    %1789 = vmatprep.subr.mxu0 0.0
    %1790 = vmatpush2.msra.mxu0 0.0
    %1791 = vmatprep.subr.mxu0 0.0
    %1792 = vmatpush2.msra.mxu0 0.0
    %1793 = vmatprep.subr.mxu0 0.0
    %1794 = vmatpush2.msra.mxu0 0.0
    %1795 = vmatprep.subr.mxu0 0.0
    %1796 = vmatpush2.msra.mxu0 0.0
    %1797 = vmatprep.mubr.f32.mxu0 0.0
    %1798 = vmatmul.mubr.f32.gmra.mxu0 %v1731
    %v1799 = vpop.f32.mrf.mxu0
    %v1800 = vadd.f32 0.0, %v1799
    %v1801 = vpop.f32.mrf.mxu0
    %1802 = vdwg.mxu0
    %1804 = vrot.lane.b32.xlu0 %v1800, 112
    %v1805 = vpop.permute.xlu0 %1804
    %vm1807 = vcmask 1048448
    %1808 = vst.msk [vmem:[#allocation2] sm:$0xff] %vm1807, %v1805
    %v1809 = vld [vmem:[#allocation2] sm:$0xff]
    %v1810 = vld [vmem:[#allocation11] sm:$0xff]
    %v1811 = vld [vmem:[#allocation11 + $0x8] sm:$0xff]
    %v1812 = vld [vmem:[#allocation11 + $0x10] sm:$0xff]
    %v1813 = vld [vmem:[#allocation11 + $0x18] sm:$0xff]
    %v1814 = vld [vmem:[#allocation11 + $0x20] sm:$0xff]
    %v1815 = vld [vmem:[#allocation11 + $0x28] sm:$0xff]
    %v1816 = vld [vmem:[#allocation11 + $0x30] sm:$0xff]
    %v1817 = vld [vmem:[#allocation11 + $0x38] sm:$0xff]
    %v1818 = vld [vmem:[#allocation11 + $0x40] sm:$0xff]
    %v1819 = vld [vmem:[#allocation11 + $0x48] sm:$0xff]
    %v1820 = vld [vmem:[#allocation11 + $0x50] sm:$0xff]
    %v1821 = vld [vmem:[#allocation11 + $0x58] sm:$0xff]
    %v1822 = vld [vmem:[#allocation11 + $0x60] sm:$0xff]
    %v1823 = vld [vmem:[#allocation11 + $0x68] sm:$0xff]
    %v1824 = vld [vmem:[#allocation11 + $0x70] sm:$0xff]
    %v1825 = vld [vmem:[#allocation11 + $0x78] sm:$0xff]
    %v1826 = vld [vmem:[#allocation17] sm:$0x1]
    %v1828 = vlaneseq
    %v1829 = vshrl.u32 %v1828, 7
    %v1830 = vsub.s32 0, %v1829
    %v1831 = vrot.slane %v1826, %v1830
    %1833 = vmatprep.subr.mxu0 0.0
    %1834 = vmatpush1.msra.mxu0 %v1825
    %1835 = vmatprep.subr.mxu0 0.0
    %1836 = vmatpush1.msra.mxu0 %v1824
    %1837 = vmatprep.subr.mxu0 0.0
    %1838 = vmatpush1.msra.mxu0 %v1823
    %1839 = vmatprep.subr.mxu0 0.0
    %1840 = vmatpush1.msra.mxu0 %v1822
    %1841 = vmatprep.subr.mxu0 0.0
    %1842 = vmatpush1.msra.mxu0 %v1821
    %1843 = vmatprep.subr.mxu0 0.0
    %1844 = vmatpush1.msra.mxu0 %v1820
    %1845 = vmatprep.subr.mxu0 0.0
    %1846 = vmatpush1.msra.mxu0 %v1819
    %1847 = vmatprep.subr.mxu0 0.0
    %1848 = vmatpush1.msra.mxu0 %v1818
    %1849 = vmatprep.subr.mxu0 0.0
    %1850 = vmatpush1.msra.mxu0 %v1817
    %1851 = vmatprep.subr.mxu0 0.0
    %1852 = vmatpush1.msra.mxu0 %v1816
    %1853 = vmatprep.subr.mxu0 0.0
    %1854 = vmatpush1.msra.mxu0 %v1815
    %1855 = vmatprep.subr.mxu0 0.0
    %1856 = vmatpush1.msra.mxu0 %v1814
    %1857 = vmatprep.subr.mxu0 0.0
    %1858 = vmatpush1.msra.mxu0 %v1813
    %1859 = vmatprep.subr.mxu0 0.0
    %1860 = vmatpush1.msra.mxu0 %v1812
    %1861 = vmatprep.subr.mxu0 0.0
    %1862 = vmatpush1.msra.mxu0 %v1811
    %1863 = vmatprep.subr.mxu0 0.0
    %1864 = vmatpush1.msra.mxu0 %v1810
    %1865 = vmatprep.subr.mxu0 0.0
    %1866 = vmatpush2.msra.mxu0 0.0
    %1867 = vmatprep.subr.mxu0 0.0
    %1868 = vmatpush2.msra.mxu0 0.0
    %1869 = vmatprep.subr.mxu0 0.0
    %1870 = vmatpush2.msra.mxu0 0.0
    %1871 = vmatprep.subr.mxu0 0.0
    %1872 = vmatpush2.msra.mxu0 0.0
    %1873 = vmatprep.subr.mxu0 0.0
    %1874 = vmatpush2.msra.mxu0 0.0
    %1875 = vmatprep.subr.mxu0 0.0
    %1876 = vmatpush2.msra.mxu0 0.0
    %1877 = vmatprep.subr.mxu0 0.0
    %1878 = vmatpush2.msra.mxu0 0.0
    %1879 = vmatprep.subr.mxu0 0.0
    %1880 = vmatpush2.msra.mxu0 0.0
    %1881 = vmatprep.subr.mxu0 0.0
    %1882 = vmatpush2.msra.mxu0 0.0
    %1883 = vmatprep.subr.mxu0 0.0
    %1884 = vmatpush2.msra.mxu0 0.0
    %1885 = vmatprep.subr.mxu0 0.0
    %1886 = vmatpush2.msra.mxu0 0.0
    %1887 = vmatprep.subr.mxu0 0.0
    %1888 = vmatpush2.msra.mxu0 0.0
    %1889 = vmatprep.subr.mxu0 0.0
    %1890 = vmatpush2.msra.mxu0 0.0
    %1891 = vmatprep.subr.mxu0 0.0
    %1892 = vmatpush2.msra.mxu0 0.0
    %1893 = vmatprep.subr.mxu0 0.0
    %1894 = vmatpush2.msra.mxu0 0.0
    %1895 = vmatprep.subr.mxu0 0.0
    %1896 = vmatpush2.msra.mxu0 0.0
    %1897 = vmatprep.mubr.f32.mxu0 0.0
    %1898 = vmatmul.mubr.f32.gmra.mxu0 %v1809
    %v1899 = vpop.f32.mrf.mxu0
    %v1900 = vadd.f32 %v1831, %v1899
    %v1901 = vpop.f32.mrf.mxu0
    %1902 = vdwg.mxu0
    %v1903 = vpack.c.bf16 %v1900, %v1900
    %1904 = vst [vmem:[%s10] sm:$0xf] %v1903
    // Predicated region
    $region82: #{feature_map_generator.2} parent=1 // pred_check
      _
    $region83: #{feature_map_generator.2} parent=1 // pred_check_branch
      %1906 = sbr.rel (0) target = $region85
    $region84: #{feature_map_generator.2} parent=1 // pred_region
      _
    $region85: #{feature_map_generator.2} parent=1 // pred_fallthru
      _
    // Predicated region
    $region86: #{feature_map_generator.2} parent=1 // pred_check
      _
    $region87: #{feature_map_generator.2} parent=1 // pred_check_branch
      %1908 = sbr.rel (0) target = $region89
    $region88: #{feature_map_generator.2} parent=1 // pred_region
      _
    $region89: #{feature_map_generator.2} parent=1 // pred_fallthru
      _
    %1909 = vsyncpa [#allocation4], 1
    %1910 = vsyncpa [#allocation6], 1
    %1911 = vsyncpa [#allocation9], 1
    %1912 = vsyncpa [#allocation12], 1
    %1913 = vsyncpa [#allocation15], 1
    %1914 = vsyncpa [#allocation18], 1

// kernel: feature_map_generator.3
$region0: #{feature_map_generator.3}
  #allocation0 [shape = 'u32[]', space=smem, size = 0x4, offset = 0x4, fixed_abs, tag = 'smem constant byte address 0x4 - core index']
  #allocation1 [shape = 'u32[144,128]{1,0:T(1,128)}', space=vmem, size = 0x12000, scoped, tag = 'internal scratch']
  %s0 = inlined_call_operand.vmem [shape: bf16[8,128], index: 0, kind: input, shape index: {}]
  %s1 = inlined_call_operand.hbm [shape: bf16[128,16384], index: 1, kind: input, shape index: {}]
  %s2 = inlined_call_operand.hbm [shape: f32[1,16384], index: 2, kind: input, shape index: {}]
  %s3 = inlined_call_operand.vmem [shape: f32[8,16384], index: 3, kind: output, shape index: {}]
  %s4 = sld [smem:[#allocation0]]
  $region53: #{feature_map_generator.3} parent=0
    _
  %s6 = ssub.s32 1, %s4
  %s7 = scalar_select 0, %s6, %s4
  $region1: #{feature_map_generator.3} parent=0
    #allocation2 [shape = 'u8[4194304]{0}', space=vmem, size = 0x400000, scoped, tag = 'input window, operand 1']
    #allocation3 [shape = 's32[2]{0}', space=sflag, size = 0x8, scoped, tag = 'scoped memory for feature_map_generator.3']
    #allocation4 [shape = 'u8[65536]{0}', space=vmem, size = 0x10000, scoped, tag = 'input window, operand 2']
    #allocation5 [shape = 's32[2]{0}', space=sflag, size = 0x8, scoped, tag = 'scoped memory for feature_map_generator.3']
    %8 = vsyncpa [#allocation3], 0
    %s9 = scalar_lea.sflag [#allocation3], 1
    %10 = vsyncpa %s9, 0
    %11 = vsyncpa [#allocation5], 0
    %s12 = scalar_lea.sflag [#allocation5], 1
    %13 = vsyncpa %s12, 0
    loop: start=0, step=1, limit=4
    $region2: #{feature_map_generator.3} parent=1 // loop_pre_header
      _
    $region3: #{feature_map_generator.3} parent=1 // loop_header
      %s15 = sphi 0, %s19
      %p16 = scmp.ge.s32.totalorder %s15, 4
      %s23 = sphi 0, %s23
      %s25 = sphi 0, %s23
      %s26 = sphi 0, %s25
      %s40 = sphi 0, %s26
      %s46 = sphi 0, %s48
      %s49 = sphi 0, %s46
      %s50 = sphi 0, %s49
      %s66 = sphi 0, %s50
      %s72 = sphi 0, %s74
      %s75 = sphi 0, %s72
      %s76 = sphi 0, %s75
      %s92 = sphi 0, %s76
      %s98 = sphi 0, %s100
      %s101 = sphi 0, %s98
      %s102 = sphi 0, %s101
      %s118 = sphi 0, %s102
    $region4: #{feature_map_generator.3} parent=1 // loop_header_branch
      %18 = sbr.rel (%p16) target = $region8
    $region5: #{feature_map_generator.3} parent=1 // loop_body
      %s20 = ssub.s32 %s15, 1
      %s21 = ssub.s32 %s15, 2
      %s22 = sadd.s32 %s15, 1
      %s24 = sadd.s32 %s23, 1
      %p27 = scmp.eq.s32.totalorder %s15, 1
      %p28 = scmp.ne.s32.totalorder %s23, %s25
      %p29 = scmp.eq.s32.totalorder %s15, 0
      %p30 = por %p28, %p29
      %p31 = scmp.ne.s32.totalorder %s23, %s25
      %p32 = scmp.eq.s32.totalorder %s20, 1
      %p33 = por %p31, %p32
      %p34 = scmp.ne.s32.totalorder %s25, %s26
      %p35 = scmp.eq.s32.totalorder %s20, 0
      %p36 = por %p34, %p35
      %p37 = scmp.ne.s32.totalorder %s25, %s26
      %p38 = scmp.eq.s32.totalorder %s21, 1
      %p39 = por %p37, %p38
      %p41 = scmp.ne.s32.totalorder %s26, %s40
      %p42 = scmp.eq.s32.totalorder %s21, 0
      %p43 = por %p41, %p42
      %s44 = ssub.s32 %s15, %s22
      %p45 = scmp.eq.s32.totalorder %s44, 0
      %s47 = sadd.s32 %s46, 1
      %s48 = scalar_select %p45, %s46, %s47
      %p51 = pneg %p45
      %p52 = scmp.eq.s32.totalorder %s15, 1
      %p53 = por %p51, %p52
      %p54 = scmp.ne.s32.totalorder %s46, %s49
      %p55 = scmp.eq.s32.totalorder %s15, 0
      %p56 = por %p54, %p55
      %p57 = scmp.ne.s32.totalorder %s46, %s49
      %p58 = scmp.eq.s32.totalorder %s20, 1
      %p59 = por %p57, %p58
      %p60 = scmp.ne.s32.totalorder %s49, %s50
      %p61 = scmp.eq.s32.totalorder %s20, 0
      %p62 = por %p60, %p61
      %p63 = scmp.ne.s32.totalorder %s49, %s50
      %p64 = scmp.eq.s32.totalorder %s21, 1
      %p65 = por %p63, %p64
      %p67 = scmp.ne.s32.totalorder %s50, %s66
      %p68 = scmp.eq.s32.totalorder %s21, 0
      %p69 = por %p67, %p68
      %s70 = ssub.s32 %s15, %s22
      %p71 = scmp.eq.s32.totalorder %s70, 0
      %s73 = sadd.s32 %s72, 1
      %s74 = scalar_select %p71, %s72, %s73
      %p77 = pneg %p71
      %p78 = scmp.eq.s32.totalorder %s15, 1
      %p79 = por %p77, %p78
      %p80 = scmp.ne.s32.totalorder %s72, %s75
      %p81 = scmp.eq.s32.totalorder %s15, 0
      %p82 = por %p80, %p81
      %p83 = scmp.ne.s32.totalorder %s72, %s75
      %p84 = scmp.eq.s32.totalorder %s20, 1
      %p85 = por %p83, %p84
      %p86 = scmp.ne.s32.totalorder %s75, %s76
      %p87 = scmp.eq.s32.totalorder %s20, 0
      %p88 = por %p86, %p87
      %p89 = scmp.ne.s32.totalorder %s75, %s76
      %p90 = scmp.eq.s32.totalorder %s21, 1
      %p91 = por %p89, %p90
      %p93 = scmp.ne.s32.totalorder %s76, %s92
      %p94 = scmp.eq.s32.totalorder %s21, 0
      %p95 = por %p93, %p94
      %s96 = ssub.s32 %s15, %s22
      %p97 = scmp.eq.s32.totalorder %s96, 0
      %s99 = sadd.s32 %s98, 1
      %s100 = scalar_select %p97, %s98, %s99
      %p103 = pneg %p97
      %p104 = scmp.eq.s32.totalorder %s15, 1
      %p105 = por %p103, %p104
      %p106 = scmp.ne.s32.totalorder %s98, %s101
      %p107 = scmp.eq.s32.totalorder %s15, 0
      %p108 = por %p106, %p107
      %p109 = scmp.ne.s32.totalorder %s98, %s101
      %p110 = scmp.eq.s32.totalorder %s20, 1
      %p111 = por %p109, %p110
      %p112 = scmp.ne.s32.totalorder %s101, %s102
      %p113 = scmp.eq.s32.totalorder %s20, 0
      %p114 = por %p112, %p113
      %p115 = scmp.ne.s32.totalorder %s101, %s102
      %p116 = scmp.eq.s32.totalorder %s21, 1
      %p117 = por %p115, %p116
      %p119 = scmp.ne.s32.totalorder %s102, %s118
      %p120 = scmp.eq.s32.totalorder %s21, 0
      %p121 = por %p119, %p120
      %p122 = scmp.le.s32.totalorder 1, %s15
      %p123 = scmp.lt.s32.totalorder %s15, 3
      %p124 = pnand %p122, %p123
      %p125 = pneg %p124
      // Predicated region
      $region9: #{feature_map_generator.3} parent=5 // pred_check
        _
      $region10: #{feature_map_generator.3} parent=5 // pred_check_branch
        %127 = sbr.rel (%p124) target = $region12
      $region11: #{feature_map_generator.3} parent=5 // pred_region
        %s128 = ssub.s32 %s15, 1
        // Predicated region
        $region13: #{feature_map_generator.3} parent=11 // pred_check
          %p129 = pneg %p36
        $region14: #{feature_map_generator.3} parent=11 // pred_check_branch
          %131 = sbr.rel (%p129) target = $region16
        $region15: #{feature_map_generator.3} parent=11 // pred_region
          _
        $region16: #{feature_map_generator.3} parent=11 // pred_fallthru
          _
      $region12: #{feature_map_generator.3} parent=5 // pred_fallthru
        _
      %p132 = scmp.lt.s32.totalorder %s15, 2
      // Predicated region
      $region17: #{feature_map_generator.3} parent=5 // pred_check
        %p133 = pneg %p132
      $region18: #{feature_map_generator.3} parent=5 // pred_check_branch
        %135 = sbr.rel (%p133) target = $region20
      $region19: #{feature_map_generator.3} parent=5 // pred_region
        // Predicated region
        $region21: #{feature_map_generator.3} parent=19 // pred_check
          %p136 = pneg %p56
        $region22: #{feature_map_generator.3} parent=19 // pred_check_branch
          %138 = sbr.rel (%p136) target = $region24
        $region23: #{feature_map_generator.3} parent=19 // pred_region
          %s139 = sand.u32 %s46, 1
          %s140 = scalar_lea.sflag [#allocation3], %s139
          %s141 = sand.u32 %s46, 1
          %s142 = smul.addr %s141, 4096
          %s143 = scalar_lea.vmem [#allocation2], %s142
          %s144 = smul.u32 64, %s15
          %s146 = ssub.s32 65536, 65536
          %147 = vsyncadd %s140, %s146
          %s148 = smul.addr %s144, 64
          %s149 = scalar_lea.hbm %s1, %s148
          %s150 = sshll.u32 %s143, 4
          %s151 = int_to_ptr.vmem [resolvable:$true] %s150
          %156 = dma.hbm_to_vmem [thread:$0]  %s149, 65536, %s151, %s140, 8192, 4096, 256
        $region24: #{feature_map_generator.3} parent=19 // pred_fallthru
          _
        // Predicated region
        $region25: #{feature_map_generator.3} parent=19 // pred_check
          %p157 = pneg %p82
        $region26: #{feature_map_generator.3} parent=19 // pred_check_branch
          %159 = sbr.rel (%p157) target = $region28
        $region27: #{feature_map_generator.3} parent=19 // pred_region
          %s160 = sand.u32 %s72, 1
          %s161 = scalar_lea.sflag [#allocation5], %s160
          %s162 = sand.u32 %s72, 1
          %s163 = smul.addr %s162, 64
          %s164 = scalar_lea.vmem [#allocation4], %s163
          %s165 = smul.u32 64, %s15
          %s167 = ssub.s32 1024, 1024
          %168 = vsyncadd %s161, %s167
          %s169 = smul.addr %s165, 16
          %s170 = scalar_lea.hbm %s2, %s169
          %s172 = sshll.u32 %s164, 4
          %s173 = int_to_ptr.vmem [resolvable:$true] %s172
          %175 = dma.hbm_to_vmem [thread:$0]  %s170, 1024, %s173, %s161
        $region28: #{feature_map_generator.3} parent=19 // pred_fallthru
          _
      $region20: #{feature_map_generator.3} parent=5 // pred_fallthru
        _
      %p176 = scmp.le.s32.totalorder 1, %s15
      %p177 = scmp.lt.s32.totalorder %s15, 3
      %p178 = pnand %p176, %p177
      %p179 = pneg %p178
      // Predicated region
      $region29: #{feature_map_generator.3} parent=5 // pred_check
        _
      $region30: #{feature_map_generator.3} parent=5 // pred_check_branch
        %181 = sbr.rel (%p178) target = $region32
      $region31: #{feature_map_generator.3} parent=5 // pred_region
        %s182 = ssub.s32 %s15, 1
        %s183 = sand.u32 %s49, 1
        %s184 = scalar_lea.sflag [#allocation3], %s183
        %s185 = sand.u32 %s49, 1
        %s186 = smul.addr %s185, 4096
        %s187 = scalar_lea.vmem [#allocation2], %s186
        // Predicated region
        $region33: #{feature_map_generator.3} parent=31 // pred_check
          %p188 = pneg %p62
        $region34: #{feature_map_generator.3} parent=31 // pred_check_branch
          %190 = sbr.rel (%p188) target = $region36
        $region35: #{feature_map_generator.3} parent=31 // pred_region
          %191 = dma.done %s184, 65536
        $region36: #{feature_map_generator.3} parent=31 // pred_fallthru
          _
        %s192 = sand.u32 %s75, 1
        %s193 = scalar_lea.sflag [#allocation5], %s192
        %s194 = sand.u32 %s75, 1
        %s195 = smul.addr %s194, 64
        %s196 = scalar_lea.vmem [#allocation4], %s195
        // Predicated region
        $region37: #{feature_map_generator.3} parent=31 // pred_check
          %p197 = pneg %p88
        $region38: #{feature_map_generator.3} parent=31 // pred_check_branch
          %199 = sbr.rel (%p197) target = $region40
        $region39: #{feature_map_generator.3} parent=31 // pred_region
          %200 = dma.done %s193, 1024
        $region40: #{feature_map_generator.3} parent=31 // pred_fallthru
          _
        %p201 = pneg %p36
        %p202 = pneg %p33
        %s203 = sand.u32 %s49, 1
        %s204 = scalar_lea.sflag [#allocation3], %s203
        %s205 = sand.u32 %s49, 1
        %s206 = smul.addr %s205, 4096
        %s207 = scalar_lea.vmem [#allocation2], %s206
        %p208 = pneg %p62
        %p209 = pneg %p59
        %s210 = sand.u32 %s75, 1
        %s211 = scalar_lea.sflag [#allocation5], %s210
        %s212 = sand.u32 %s75, 1
        %s213 = smul.addr %s212, 64
        %s214 = scalar_lea.vmem [#allocation4], %s213
        %p215 = pneg %p88
        %p216 = pneg %p85
        %p217 = pneg %p114
        %p218 = pneg %p111
        %s219 = smul.u32 64, %s20
        %p220 = scmp.lt.s32.totalorder %s219, 127
        %s221 = scalar_select %p220, %s219, 127
        %s222 = smul.addr %s221, 8
        %s223 = scalar_lea.vmem %s3, %s222
        %s224 = smul.u32 64, %s20
        %s225 = smul.u32 64, %s20
        %s226 = smul.u32 64, %s20
        %p227 = scmp.lt.s32.totalorder %s226, 127
        %s228 = scalar_select %p227, %s226, 127
        %s229 = smul.addr %s228, 8
        %s230 = scalar_lea.vmem %s3, %s229
        %s231 = smul.u32 64, %s20
        %v233 = vld [vmem:[%s0] sm:$0xf]
        %v234 = vld [vmem:[%s187] sm:$0xff]
        %v235 = vld [vmem:[%s187 + $0x8] sm:$0xff]
        %v236 = vld [vmem:[%s187 + $0x10] sm:$0xff]
        %v237 = vld [vmem:[%s187 + $0x18] sm:$0xff]
        %v238 = vld [vmem:[%s187 + $0x20] sm:$0xff]
        %v239 = vld [vmem:[%s187 + $0x28] sm:$0xff]
        %v240 = vld [vmem:[%s187 + $0x30] sm:$0xff]
        %v241 = vld [vmem:[%s187 + $0x38] sm:$0xff]
        %v242 = vld [vmem:[%s187 + $0x40] sm:$0xff]
        %v243 = vld [vmem:[%s187 + $0x48] sm:$0xff]
        %v244 = vld [vmem:[%s187 + $0x50] sm:$0xff]
        %v245 = vld [vmem:[%s187 + $0x58] sm:$0xff]
        %v246 = vld [vmem:[%s187 + $0x60] sm:$0xff]
        %v247 = vld [vmem:[%s187 + $0x68] sm:$0xff]
        %v248 = vld [vmem:[%s187 + $0x70] sm:$0xff]
        %v249 = vld [vmem:[%s187 + $0x78] sm:$0xff]
        %v250 = vld [vmem:[%s187 + $0x80] sm:$0xff]
        %v251 = vld [vmem:[%s187 + $0x88] sm:$0xff]
        %v252 = vld [vmem:[%s187 + $0x90] sm:$0xff]
        %v253 = vld [vmem:[%s187 + $0x98] sm:$0xff]
        %v254 = vld [vmem:[%s187 + $0xa0] sm:$0xff]
        %v255 = vld [vmem:[%s187 + $0xa8] sm:$0xff]
        %v256 = vld [vmem:[%s187 + $0xb0] sm:$0xff]
        %v257 = vld [vmem:[%s187 + $0xb8] sm:$0xff]
        %v258 = vld [vmem:[%s187 + $0xc0] sm:$0xff]
        %v259 = vld [vmem:[%s187 + $0xc8] sm:$0xff]
        %v260 = vld [vmem:[%s187 + $0xd0] sm:$0xff]
        %v261 = vld [vmem:[%s187 + $0xd8] sm:$0xff]
        %v262 = vld [vmem:[%s187 + $0xe0] sm:$0xff]
        %v263 = vld [vmem:[%s187 + $0xe8] sm:$0xff]
        %v264 = vld [vmem:[%s187 + $0xf0] sm:$0xff]
        %v265 = vld [vmem:[%s187 + $0xf8] sm:$0xff]
        %v266 = vld [vmem:[%s187 + $0x100] sm:$0xff]
        %v267 = vld [vmem:[%s187 + $0x108] sm:$0xff]
        %v268 = vld [vmem:[%s187 + $0x110] sm:$0xff]
        %v269 = vld [vmem:[%s187 + $0x118] sm:$0xff]
        %v270 = vld [vmem:[%s187 + $0x120] sm:$0xff]
        %v271 = vld [vmem:[%s187 + $0x128] sm:$0xff]
        %v272 = vld [vmem:[%s187 + $0x130] sm:$0xff]
        %v273 = vld [vmem:[%s187 + $0x138] sm:$0xff]
        %v274 = vld [vmem:[%s187 + $0x140] sm:$0xff]
        %v275 = vld [vmem:[%s187 + $0x148] sm:$0xff]
        %v276 = vld [vmem:[%s187 + $0x150] sm:$0xff]
        %v277 = vld [vmem:[%s187 + $0x158] sm:$0xff]
        %v278 = vld [vmem:[%s187 + $0x160] sm:$0xff]
        %v279 = vld [vmem:[%s187 + $0x168] sm:$0xff]
        %v280 = vld [vmem:[%s187 + $0x170] sm:$0xff]
        %v281 = vld [vmem:[%s187 + $0x178] sm:$0xff]
        %v282 = vld [vmem:[%s187 + $0x180] sm:$0xff]
        %v283 = vld [vmem:[%s187 + $0x188] sm:$0xff]
        %v284 = vld [vmem:[%s187 + $0x190] sm:$0xff]
        %v285 = vld [vmem:[%s187 + $0x198] sm:$0xff]
        %v286 = vld [vmem:[%s187 + $0x1a0] sm:$0xff]
        %v287 = vld [vmem:[%s187 + $0x1a8] sm:$0xff]
        %v288 = vld [vmem:[%s187 + $0x1b0] sm:$0xff]
        %v289 = vld [vmem:[%s187 + $0x1b8] sm:$0xff]
        %v290 = vld [vmem:[%s187 + $0x1c0] sm:$0xff]
        %v291 = vld [vmem:[%s187 + $0x1c8] sm:$0xff]
        %v292 = vld [vmem:[%s187 + $0x1d0] sm:$0xff]
        %v293 = vld [vmem:[%s187 + $0x1d8] sm:$0xff]
        %v294 = vld [vmem:[%s187 + $0x1e0] sm:$0xff]
        %v295 = vld [vmem:[%s187 + $0x1e8] sm:$0xff]
        %v296 = vld [vmem:[%s187 + $0x1f0] sm:$0xff]
        %v297 = vld [vmem:[%s187 + $0x1f8] sm:$0xff]
        %v298 = vld [vmem:[%s187 + $0x200] sm:$0xff]
        %v299 = vld [vmem:[%s187 + $0x208] sm:$0xff]
        %v300 = vld [vmem:[%s187 + $0x210] sm:$0xff]
        %v301 = vld [vmem:[%s187 + $0x218] sm:$0xff]
        %v302 = vld [vmem:[%s187 + $0x220] sm:$0xff]
        %v303 = vld [vmem:[%s187 + $0x228] sm:$0xff]
        %v304 = vld [vmem:[%s187 + $0x230] sm:$0xff]
        %v305 = vld [vmem:[%s187 + $0x238] sm:$0xff]
        %v306 = vld [vmem:[%s187 + $0x240] sm:$0xff]
        %v307 = vld [vmem:[%s187 + $0x248] sm:$0xff]
        %v308 = vld [vmem:[%s187 + $0x250] sm:$0xff]
        %v309 = vld [vmem:[%s187 + $0x258] sm:$0xff]
        %v310 = vld [vmem:[%s187 + $0x260] sm:$0xff]
        %v311 = vld [vmem:[%s187 + $0x268] sm:$0xff]
        %v312 = vld [vmem:[%s187 + $0x270] sm:$0xff]
        %v313 = vld [vmem:[%s187 + $0x278] sm:$0xff]
        %v314 = vld [vmem:[%s187 + $0x280] sm:$0xff]
        %v315 = vld [vmem:[%s187 + $0x288] sm:$0xff]
        %v316 = vld [vmem:[%s187 + $0x290] sm:$0xff]
        %v317 = vld [vmem:[%s187 + $0x298] sm:$0xff]
        %v318 = vld [vmem:[%s187 + $0x2a0] sm:$0xff]
        %v319 = vld [vmem:[%s187 + $0x2a8] sm:$0xff]
        %v320 = vld [vmem:[%s187 + $0x2b0] sm:$0xff]
        %v321 = vld [vmem:[%s187 + $0x2b8] sm:$0xff]
        %v322 = vld [vmem:[%s187 + $0x2c0] sm:$0xff]
        %v323 = vld [vmem:[%s187 + $0x2c8] sm:$0xff]
        %v324 = vld [vmem:[%s187 + $0x2d0] sm:$0xff]
        %v325 = vld [vmem:[%s187 + $0x2d8] sm:$0xff]
        %v326 = vld [vmem:[%s187 + $0x2e0] sm:$0xff]
        %v327 = vld [vmem:[%s187 + $0x2e8] sm:$0xff]
        %v328 = vld [vmem:[%s187 + $0x2f0] sm:$0xff]
        %v329 = vld [vmem:[%s187 + $0x2f8] sm:$0xff]
        %v330 = vld [vmem:[%s187 + $0x300] sm:$0xff]
        %v331 = vld [vmem:[%s187 + $0x308] sm:$0xff]
        %v332 = vld [vmem:[%s187 + $0x310] sm:$0xff]
        %v333 = vld [vmem:[%s187 + $0x318] sm:$0xff]
        %v334 = vld [vmem:[%s187 + $0x320] sm:$0xff]
        %v335 = vld [vmem:[%s187 + $0x328] sm:$0xff]
        %v336 = vld [vmem:[%s187 + $0x330] sm:$0xff]
        %v337 = vld [vmem:[%s187 + $0x338] sm:$0xff]
        %v338 = vld [vmem:[%s187 + $0x340] sm:$0xff]
        %v339 = vld [vmem:[%s187 + $0x348] sm:$0xff]
        %v340 = vld [vmem:[%s187 + $0x350] sm:$0xff]
        %v341 = vld [vmem:[%s187 + $0x358] sm:$0xff]
        %v342 = vld [vmem:[%s187 + $0x360] sm:$0xff]
        %v343 = vld [vmem:[%s187 + $0x368] sm:$0xff]
        %v344 = vld [vmem:[%s187 + $0x370] sm:$0xff]
        %v345 = vld [vmem:[%s187 + $0x378] sm:$0xff]
        %v346 = vld [vmem:[%s187 + $0x380] sm:$0xff]
        %v347 = vld [vmem:[%s187 + $0x388] sm:$0xff]
        %v348 = vld [vmem:[%s187 + $0x390] sm:$0xff]
        %v349 = vld [vmem:[%s187 + $0x398] sm:$0xff]
        %v350 = vld [vmem:[%s187 + $0x3a0] sm:$0xff]
        %v351 = vld [vmem:[%s187 + $0x3a8] sm:$0xff]
        %v352 = vld [vmem:[%s187 + $0x3b0] sm:$0xff]
        %v353 = vld [vmem:[%s187 + $0x3b8] sm:$0xff]
        %v354 = vld [vmem:[%s187 + $0x3c0] sm:$0xff]
        %v355 = vld [vmem:[%s187 + $0x3c8] sm:$0xff]
        %v356 = vld [vmem:[%s187 + $0x3d0] sm:$0xff]
        %v357 = vld [vmem:[%s187 + $0x3d8] sm:$0xff]
        %v358 = vld [vmem:[%s187 + $0x3e0] sm:$0xff]
        %v359 = vld [vmem:[%s187 + $0x3e8] sm:$0xff]
        %v360 = vld [vmem:[%s187 + $0x3f0] sm:$0xff]
        %v361 = vld [vmem:[%s187 + $0x3f8] sm:$0xff]
        %v362 = vld [vmem:[%s187 + $0x400] sm:$0xff]
        %v363 = vld [vmem:[%s187 + $0x408] sm:$0xff]
        %v364 = vld [vmem:[%s187 + $0x410] sm:$0xff]
        %v365 = vld [vmem:[%s187 + $0x418] sm:$0xff]
        %v366 = vld [vmem:[%s187 + $0x420] sm:$0xff]
        %v367 = vld [vmem:[%s187 + $0x428] sm:$0xff]
        %v368 = vld [vmem:[%s187 + $0x430] sm:$0xff]
        %v369 = vld [vmem:[%s187 + $0x438] sm:$0xff]
        %v370 = vld [vmem:[%s187 + $0x440] sm:$0xff]
        %v371 = vld [vmem:[%s187 + $0x448] sm:$0xff]
        %v372 = vld [vmem:[%s187 + $0x450] sm:$0xff]
        %v373 = vld [vmem:[%s187 + $0x458] sm:$0xff]
        %v374 = vld [vmem:[%s187 + $0x460] sm:$0xff]
        %v375 = vld [vmem:[%s187 + $0x468] sm:$0xff]
        %v376 = vld [vmem:[%s187 + $0x470] sm:$0xff]
        %v377 = vld [vmem:[%s187 + $0x478] sm:$0xff]
        %v378 = vld [vmem:[%s187 + $0x480] sm:$0xff]
        %v379 = vld [vmem:[%s187 + $0x488] sm:$0xff]
        %v380 = vld [vmem:[%s187 + $0x490] sm:$0xff]
        %v381 = vld [vmem:[%s187 + $0x498] sm:$0xff]
        %v382 = vld [vmem:[%s187 + $0x4a0] sm:$0xff]
        %v383 = vld [vmem:[%s187 + $0x4a8] sm:$0xff]
        %v384 = vld [vmem:[%s187 + $0x4b0] sm:$0xff]
        %v385 = vld [vmem:[%s187 + $0x4b8] sm:$0xff]
        %v386 = vld [vmem:[%s187 + $0x4c0] sm:$0xff]
        %v387 = vld [vmem:[%s187 + $0x4c8] sm:$0xff]
        %v388 = vld [vmem:[%s187 + $0x4d0] sm:$0xff]
        %v389 = vld [vmem:[%s187 + $0x4d8] sm:$0xff]
        %v390 = vld [vmem:[%s187 + $0x4e0] sm:$0xff]
        %v391 = vld [vmem:[%s187 + $0x4e8] sm:$0xff]
        %v392 = vld [vmem:[%s187 + $0x4f0] sm:$0xff]
        %v393 = vld [vmem:[%s187 + $0x4f8] sm:$0xff]
        %v394 = vld [vmem:[%s187 + $0x500] sm:$0xff]
        %v395 = vld [vmem:[%s187 + $0x508] sm:$0xff]
        %v396 = vld [vmem:[%s187 + $0x510] sm:$0xff]
        %v397 = vld [vmem:[%s187 + $0x518] sm:$0xff]
        %v398 = vld [vmem:[%s187 + $0x520] sm:$0xff]
        %v399 = vld [vmem:[%s187 + $0x528] sm:$0xff]
        %v400 = vld [vmem:[%s187 + $0x530] sm:$0xff]
        %v401 = vld [vmem:[%s187 + $0x538] sm:$0xff]
        %v402 = vld [vmem:[%s187 + $0x540] sm:$0xff]
        %v403 = vld [vmem:[%s187 + $0x548] sm:$0xff]
        %v404 = vld [vmem:[%s187 + $0x550] sm:$0xff]
        %v405 = vld [vmem:[%s187 + $0x558] sm:$0xff]
        %v406 = vld [vmem:[%s187 + $0x560] sm:$0xff]
        %v407 = vld [vmem:[%s187 + $0x568] sm:$0xff]
        %v408 = vld [vmem:[%s187 + $0x570] sm:$0xff]
        %v409 = vld [vmem:[%s187 + $0x578] sm:$0xff]
        %v410 = vld [vmem:[%s187 + $0x580] sm:$0xff]
        %v411 = vld [vmem:[%s187 + $0x588] sm:$0xff]
        %v412 = vld [vmem:[%s187 + $0x590] sm:$0xff]
        %v413 = vld [vmem:[%s187 + $0x598] sm:$0xff]
        %v414 = vld [vmem:[%s187 + $0x5a0] sm:$0xff]
        %v415 = vld [vmem:[%s187 + $0x5a8] sm:$0xff]
        %v416 = vld [vmem:[%s187 + $0x5b0] sm:$0xff]
        %v417 = vld [vmem:[%s187 + $0x5b8] sm:$0xff]
        %v418 = vld [vmem:[%s187 + $0x5c0] sm:$0xff]
        %v419 = vld [vmem:[%s187 + $0x5c8] sm:$0xff]
        %v420 = vld [vmem:[%s187 + $0x5d0] sm:$0xff]
        %v421 = vld [vmem:[%s187 + $0x5d8] sm:$0xff]
        %v422 = vld [vmem:[%s187 + $0x5e0] sm:$0xff]
        %v423 = vld [vmem:[%s187 + $0x5e8] sm:$0xff]
        %v424 = vld [vmem:[%s187 + $0x5f0] sm:$0xff]
        %v425 = vld [vmem:[%s187 + $0x5f8] sm:$0xff]
        %v426 = vld [vmem:[%s187 + $0x600] sm:$0xff]
        %v427 = vld [vmem:[%s187 + $0x608] sm:$0xff]
        %v428 = vld [vmem:[%s187 + $0x610] sm:$0xff]
        %v429 = vld [vmem:[%s187 + $0x618] sm:$0xff]
        %v430 = vld [vmem:[%s187 + $0x620] sm:$0xff]
        %v431 = vld [vmem:[%s187 + $0x628] sm:$0xff]
        %v432 = vld [vmem:[%s187 + $0x630] sm:$0xff]
        %v433 = vld [vmem:[%s187 + $0x638] sm:$0xff]
        %v434 = vld [vmem:[%s187 + $0x640] sm:$0xff]
        %v435 = vld [vmem:[%s187 + $0x648] sm:$0xff]
        %v436 = vld [vmem:[%s187 + $0x650] sm:$0xff]
        %v437 = vld [vmem:[%s187 + $0x658] sm:$0xff]
        %v438 = vld [vmem:[%s187 + $0x660] sm:$0xff]
        %v439 = vld [vmem:[%s187 + $0x668] sm:$0xff]
        %v440 = vld [vmem:[%s187 + $0x670] sm:$0xff]
        %v441 = vld [vmem:[%s187 + $0x678] sm:$0xff]
        %v442 = vld [vmem:[%s187 + $0x680] sm:$0xff]
        %v443 = vld [vmem:[%s187 + $0x688] sm:$0xff]
        %v444 = vld [vmem:[%s187 + $0x690] sm:$0xff]
        %v445 = vld [vmem:[%s187 + $0x698] sm:$0xff]
        %v446 = vld [vmem:[%s187 + $0x6a0] sm:$0xff]
        %v447 = vld [vmem:[%s187 + $0x6a8] sm:$0xff]
        %v448 = vld [vmem:[%s187 + $0x6b0] sm:$0xff]
        %v449 = vld [vmem:[%s187 + $0x6b8] sm:$0xff]
        %v450 = vld [vmem:[%s187 + $0x6c0] sm:$0xff]
        %v451 = vld [vmem:[%s187 + $0x6c8] sm:$0xff]
        %v452 = vld [vmem:[%s187 + $0x6d0] sm:$0xff]
        %v453 = vld [vmem:[%s187 + $0x6d8] sm:$0xff]
        %v454 = vld [vmem:[%s187 + $0x6e0] sm:$0xff]
        %v455 = vld [vmem:[%s187 + $0x6e8] sm:$0xff]
        %v456 = vld [vmem:[%s187 + $0x6f0] sm:$0xff]
        %v457 = vld [vmem:[%s187 + $0x6f8] sm:$0xff]
        %v458 = vld [vmem:[%s187 + $0x700] sm:$0xff]
        %v459 = vld [vmem:[%s187 + $0x708] sm:$0xff]
        %v460 = vld [vmem:[%s187 + $0x710] sm:$0xff]
        %v461 = vld [vmem:[%s187 + $0x718] sm:$0xff]
        %v462 = vld [vmem:[%s187 + $0x720] sm:$0xff]
        %v463 = vld [vmem:[%s187 + $0x728] sm:$0xff]
        %v464 = vld [vmem:[%s187 + $0x730] sm:$0xff]
        %v465 = vld [vmem:[%s187 + $0x738] sm:$0xff]
        %v466 = vld [vmem:[%s187 + $0x740] sm:$0xff]
        %v467 = vld [vmem:[%s187 + $0x748] sm:$0xff]
        %v468 = vld [vmem:[%s187 + $0x750] sm:$0xff]
        %v469 = vld [vmem:[%s187 + $0x758] sm:$0xff]
        %v470 = vld [vmem:[%s187 + $0x760] sm:$0xff]
        %v471 = vld [vmem:[%s187 + $0x768] sm:$0xff]
        %v472 = vld [vmem:[%s187 + $0x770] sm:$0xff]
        %v473 = vld [vmem:[%s187 + $0x778] sm:$0xff]
        %v474 = vld [vmem:[%s187 + $0x780] sm:$0xff]
        %v475 = vld [vmem:[%s187 + $0x788] sm:$0xff]
        %v476 = vld [vmem:[%s187 + $0x790] sm:$0xff]
        %v477 = vld [vmem:[%s187 + $0x798] sm:$0xff]
        %v478 = vld [vmem:[%s187 + $0x7a0] sm:$0xff]
        %v479 = vld [vmem:[%s187 + $0x7a8] sm:$0xff]
        %v480 = vld [vmem:[%s187 + $0x7b0] sm:$0xff]
        %v481 = vld [vmem:[%s187 + $0x7b8] sm:$0xff]
        %v482 = vld [vmem:[%s187 + $0x7c0] sm:$0xff]
        %v483 = vld [vmem:[%s187 + $0x7c8] sm:$0xff]
        %v484 = vld [vmem:[%s187 + $0x7d0] sm:$0xff]
        %v485 = vld [vmem:[%s187 + $0x7d8] sm:$0xff]
        %v486 = vld [vmem:[%s187 + $0x7e0] sm:$0xff]
        %v487 = vld [vmem:[%s187 + $0x7e8] sm:$0xff]
        %v488 = vld [vmem:[%s187 + $0x7f0] sm:$0xff]
        %v489 = vld [vmem:[%s187 + $0x7f8] sm:$0xff]
        %v490 = vld [vmem:[%s187 + $0x800] sm:$0xff]
        %v491 = vld [vmem:[%s187 + $0x808] sm:$0xff]
        %v492 = vld [vmem:[%s187 + $0x810] sm:$0xff]
        %v493 = vld [vmem:[%s187 + $0x818] sm:$0xff]
        %v494 = vld [vmem:[%s187 + $0x820] sm:$0xff]
        %v495 = vld [vmem:[%s187 + $0x828] sm:$0xff]
        %v496 = vld [vmem:[%s187 + $0x830] sm:$0xff]
        %v497 = vld [vmem:[%s187 + $0x838] sm:$0xff]
        %v498 = vld [vmem:[%s187 + $0x840] sm:$0xff]
        %v499 = vld [vmem:[%s187 + $0x848] sm:$0xff]
        %v500 = vld [vmem:[%s187 + $0x850] sm:$0xff]
        %v501 = vld [vmem:[%s187 + $0x858] sm:$0xff]
        %v502 = vld [vmem:[%s187 + $0x860] sm:$0xff]
        %v503 = vld [vmem:[%s187 + $0x868] sm:$0xff]
        %v504 = vld [vmem:[%s187 + $0x870] sm:$0xff]
        %v505 = vld [vmem:[%s187 + $0x878] sm:$0xff]
        %v506 = vld [vmem:[%s187 + $0x880] sm:$0xff]
        %v507 = vld [vmem:[%s187 + $0x888] sm:$0xff]
        %v508 = vld [vmem:[%s187 + $0x890] sm:$0xff]
        %v509 = vld [vmem:[%s187 + $0x898] sm:$0xff]
        %v510 = vld [vmem:[%s187 + $0x8a0] sm:$0xff]
        %v511 = vld [vmem:[%s187 + $0x8a8] sm:$0xff]
        %v512 = vld [vmem:[%s187 + $0x8b0] sm:$0xff]
        %v513 = vld [vmem:[%s187 + $0x8b8] sm:$0xff]
        %v514 = vld [vmem:[%s187 + $0x8c0] sm:$0xff]
        %v515 = vld [vmem:[%s187 + $0x8c8] sm:$0xff]
        %v516 = vld [vmem:[%s187 + $0x8d0] sm:$0xff]
        %v517 = vld [vmem:[%s187 + $0x8d8] sm:$0xff]
        %v518 = vld [vmem:[%s187 + $0x8e0] sm:$0xff]
        %v519 = vld [vmem:[%s187 + $0x8e8] sm:$0xff]
        %v520 = vld [vmem:[%s187 + $0x8f0] sm:$0xff]
        %v521 = vld [vmem:[%s187 + $0x8f8] sm:$0xff]
        %v522 = vld [vmem:[%s187 + $0x900] sm:$0xff]
        %v523 = vld [vmem:[%s187 + $0x908] sm:$0xff]
        %v524 = vld [vmem:[%s187 + $0x910] sm:$0xff]
        %v525 = vld [vmem:[%s187 + $0x918] sm:$0xff]
        %v526 = vld [vmem:[%s187 + $0x920] sm:$0xff]
        %v527 = vld [vmem:[%s187 + $0x928] sm:$0xff]
        %v528 = vld [vmem:[%s187 + $0x930] sm:$0xff]
        %v529 = vld [vmem:[%s187 + $0x938] sm:$0xff]
        %v530 = vld [vmem:[%s187 + $0x940] sm:$0xff]
        %v531 = vld [vmem:[%s187 + $0x948] sm:$0xff]
        %v532 = vld [vmem:[%s187 + $0x950] sm:$0xff]
        %v533 = vld [vmem:[%s187 + $0x958] sm:$0xff]
        %v534 = vld [vmem:[%s187 + $0x960] sm:$0xff]
        %v535 = vld [vmem:[%s187 + $0x968] sm:$0xff]
        %v536 = vld [vmem:[%s187 + $0x970] sm:$0xff]
        %v537 = vld [vmem:[%s187 + $0x978] sm:$0xff]
        %v538 = vld [vmem:[%s187 + $0x980] sm:$0xff]
        %v539 = vld [vmem:[%s187 + $0x988] sm:$0xff]
        %v540 = vld [vmem:[%s187 + $0x990] sm:$0xff]
        %v541 = vld [vmem:[%s187 + $0x998] sm:$0xff]
        %v542 = vld [vmem:[%s187 + $0x9a0] sm:$0xff]
        %v543 = vld [vmem:[%s187 + $0x9a8] sm:$0xff]
        %v544 = vld [vmem:[%s187 + $0x9b0] sm:$0xff]
        %v545 = vld [vmem:[%s187 + $0x9b8] sm:$0xff]
        %v546 = vld [vmem:[%s187 + $0x9c0] sm:$0xff]
        %v547 = vld [vmem:[%s187 + $0x9c8] sm:$0xff]
        %v548 = vld [vmem:[%s187 + $0x9d0] sm:$0xff]
        %v549 = vld [vmem:[%s187 + $0x9d8] sm:$0xff]
        %v550 = vld [vmem:[%s187 + $0x9e0] sm:$0xff]
        %v551 = vld [vmem:[%s187 + $0x9e8] sm:$0xff]
        %v552 = vld [vmem:[%s187 + $0x9f0] sm:$0xff]
        %v553 = vld [vmem:[%s187 + $0x9f8] sm:$0xff]
        %v554 = vld [vmem:[%s187 + $0xa00] sm:$0xff]
        %v555 = vld [vmem:[%s187 + $0xa08] sm:$0xff]
        %v556 = vld [vmem:[%s187 + $0xa10] sm:$0xff]
        %v557 = vld [vmem:[%s187 + $0xa18] sm:$0xff]
        %v558 = vld [vmem:[%s187 + $0xa20] sm:$0xff]
        %v559 = vld [vmem:[%s187 + $0xa28] sm:$0xff]
        %v560 = vld [vmem:[%s187 + $0xa30] sm:$0xff]
        %v561 = vld [vmem:[%s187 + $0xa38] sm:$0xff]
        %v562 = vld [vmem:[%s187 + $0xa40] sm:$0xff]
        %v563 = vld [vmem:[%s187 + $0xa48] sm:$0xff]
        %v564 = vld [vmem:[%s187 + $0xa50] sm:$0xff]
        %v565 = vld [vmem:[%s187 + $0xa58] sm:$0xff]
        %v566 = vld [vmem:[%s187 + $0xa60] sm:$0xff]
        %v567 = vld [vmem:[%s187 + $0xa68] sm:$0xff]
        %v568 = vld [vmem:[%s187 + $0xa70] sm:$0xff]
        %v569 = vld [vmem:[%s187 + $0xa78] sm:$0xff]
        %v570 = vld [vmem:[%s187 + $0xa80] sm:$0xff]
        %v571 = vld [vmem:[%s187 + $0xa88] sm:$0xff]
        %v572 = vld [vmem:[%s187 + $0xa90] sm:$0xff]
        %v573 = vld [vmem:[%s187 + $0xa98] sm:$0xff]
        %v574 = vld [vmem:[%s187 + $0xaa0] sm:$0xff]
        %v575 = vld [vmem:[%s187 + $0xaa8] sm:$0xff]
        %v576 = vld [vmem:[%s187 + $0xab0] sm:$0xff]
        %v577 = vld [vmem:[%s187 + $0xab8] sm:$0xff]
        %v578 = vld [vmem:[%s187 + $0xac0] sm:$0xff]
        %v579 = vld [vmem:[%s187 + $0xac8] sm:$0xff]
        %v580 = vld [vmem:[%s187 + $0xad0] sm:$0xff]
        %v581 = vld [vmem:[%s187 + $0xad8] sm:$0xff]
        %v582 = vld [vmem:[%s187 + $0xae0] sm:$0xff]
        %v583 = vld [vmem:[%s187 + $0xae8] sm:$0xff]
        %v584 = vld [vmem:[%s187 + $0xaf0] sm:$0xff]
        %v585 = vld [vmem:[%s187 + $0xaf8] sm:$0xff]
        %v586 = vld [vmem:[%s187 + $0xb00] sm:$0xff]
        %v587 = vld [vmem:[%s187 + $0xb08] sm:$0xff]
        %v588 = vld [vmem:[%s187 + $0xb10] sm:$0xff]
        %v589 = vld [vmem:[%s187 + $0xb18] sm:$0xff]
        %v590 = vld [vmem:[%s187 + $0xb20] sm:$0xff]
        %v591 = vld [vmem:[%s187 + $0xb28] sm:$0xff]
        %v592 = vld [vmem:[%s187 + $0xb30] sm:$0xff]
        %v593 = vld [vmem:[%s187 + $0xb38] sm:$0xff]
        %v594 = vld [vmem:[%s187 + $0xb40] sm:$0xff]
        %v595 = vld [vmem:[%s187 + $0xb48] sm:$0xff]
        %v596 = vld [vmem:[%s187 + $0xb50] sm:$0xff]
        %v597 = vld [vmem:[%s187 + $0xb58] sm:$0xff]
        %v598 = vld [vmem:[%s187 + $0xb60] sm:$0xff]
        %v599 = vld [vmem:[%s187 + $0xb68] sm:$0xff]
        %v600 = vld [vmem:[%s187 + $0xb70] sm:$0xff]
        %v601 = vld [vmem:[%s187 + $0xb78] sm:$0xff]
        %v602 = vld [vmem:[%s187 + $0xb80] sm:$0xff]
        %v603 = vld [vmem:[%s187 + $0xb88] sm:$0xff]
        %v604 = vld [vmem:[%s187 + $0xb90] sm:$0xff]
        %v605 = vld [vmem:[%s187 + $0xb98] sm:$0xff]
        %v606 = vld [vmem:[%s187 + $0xba0] sm:$0xff]
        %v607 = vld [vmem:[%s187 + $0xba8] sm:$0xff]
        %v608 = vld [vmem:[%s187 + $0xbb0] sm:$0xff]
        %v609 = vld [vmem:[%s187 + $0xbb8] sm:$0xff]
        %v610 = vld [vmem:[%s187 + $0xbc0] sm:$0xff]
        %v611 = vld [vmem:[%s187 + $0xbc8] sm:$0xff]
        %v612 = vld [vmem:[%s187 + $0xbd0] sm:$0xff]
        %v613 = vld [vmem:[%s187 + $0xbd8] sm:$0xff]
        %v614 = vld [vmem:[%s187 + $0xbe0] sm:$0xff]
        %v615 = vld [vmem:[%s187 + $0xbe8] sm:$0xff]
        %v616 = vld [vmem:[%s187 + $0xbf0] sm:$0xff]
        %v617 = vld [vmem:[%s187 + $0xbf8] sm:$0xff]
        %v618 = vld [vmem:[%s187 + $0xc00] sm:$0xff]
        %v619 = vld [vmem:[%s187 + $0xc08] sm:$0xff]
        %v620 = vld [vmem:[%s187 + $0xc10] sm:$0xff]
        %v621 = vld [vmem:[%s187 + $0xc18] sm:$0xff]
        %v622 = vld [vmem:[%s187 + $0xc20] sm:$0xff]
        %v623 = vld [vmem:[%s187 + $0xc28] sm:$0xff]
        %v624 = vld [vmem:[%s187 + $0xc30] sm:$0xff]
        %v625 = vld [vmem:[%s187 + $0xc38] sm:$0xff]
        %v626 = vld [vmem:[%s187 + $0xc40] sm:$0xff]
        %v627 = vld [vmem:[%s187 + $0xc48] sm:$0xff]
        %v628 = vld [vmem:[%s187 + $0xc50] sm:$0xff]
        %v629 = vld [vmem:[%s187 + $0xc58] sm:$0xff]
        %v630 = vld [vmem:[%s187 + $0xc60] sm:$0xff]
        %v631 = vld [vmem:[%s187 + $0xc68] sm:$0xff]
        %v632 = vld [vmem:[%s187 + $0xc70] sm:$0xff]
        %v633 = vld [vmem:[%s187 + $0xc78] sm:$0xff]
        %v634 = vld [vmem:[%s187 + $0xc80] sm:$0xff]
        %v635 = vld [vmem:[%s187 + $0xc88] sm:$0xff]
        %v636 = vld [vmem:[%s187 + $0xc90] sm:$0xff]
        %v637 = vld [vmem:[%s187 + $0xc98] sm:$0xff]
        %v638 = vld [vmem:[%s187 + $0xca0] sm:$0xff]
        %v639 = vld [vmem:[%s187 + $0xca8] sm:$0xff]
        %v640 = vld [vmem:[%s187 + $0xcb0] sm:$0xff]
        %v641 = vld [vmem:[%s187 + $0xcb8] sm:$0xff]
        %v642 = vld [vmem:[%s187 + $0xcc0] sm:$0xff]
        %v643 = vld [vmem:[%s187 + $0xcc8] sm:$0xff]
        %v644 = vld [vmem:[%s187 + $0xcd0] sm:$0xff]
        %v645 = vld [vmem:[%s187 + $0xcd8] sm:$0xff]
        %v646 = vld [vmem:[%s187 + $0xce0] sm:$0xff]
        %v647 = vld [vmem:[%s187 + $0xce8] sm:$0xff]
        %v648 = vld [vmem:[%s187 + $0xcf0] sm:$0xff]
        %v649 = vld [vmem:[%s187 + $0xcf8] sm:$0xff]
        %v650 = vld [vmem:[%s187 + $0xd00] sm:$0xff]
        %v651 = vld [vmem:[%s187 + $0xd08] sm:$0xff]
        %v652 = vld [vmem:[%s187 + $0xd10] sm:$0xff]
        %v653 = vld [vmem:[%s187 + $0xd18] sm:$0xff]
        %v654 = vld [vmem:[%s187 + $0xd20] sm:$0xff]
        %v655 = vld [vmem:[%s187 + $0xd28] sm:$0xff]
        %v656 = vld [vmem:[%s187 + $0xd30] sm:$0xff]
        %v657 = vld [vmem:[%s187 + $0xd38] sm:$0xff]
        %v658 = vld [vmem:[%s187 + $0xd40] sm:$0xff]
        %v659 = vld [vmem:[%s187 + $0xd48] sm:$0xff]
        %v660 = vld [vmem:[%s187 + $0xd50] sm:$0xff]
        %v661 = vld [vmem:[%s187 + $0xd58] sm:$0xff]
        %v662 = vld [vmem:[%s187 + $0xd60] sm:$0xff]
        %v663 = vld [vmem:[%s187 + $0xd68] sm:$0xff]
        %v664 = vld [vmem:[%s187 + $0xd70] sm:$0xff]
        %v665 = vld [vmem:[%s187 + $0xd78] sm:$0xff]
        %v666 = vld [vmem:[%s187 + $0xd80] sm:$0xff]
        %v667 = vld [vmem:[%s187 + $0xd88] sm:$0xff]
        %v668 = vld [vmem:[%s187 + $0xd90] sm:$0xff]
        %v669 = vld [vmem:[%s187 + $0xd98] sm:$0xff]
        %v670 = vld [vmem:[%s187 + $0xda0] sm:$0xff]
        %v671 = vld [vmem:[%s187 + $0xda8] sm:$0xff]
        %v672 = vld [vmem:[%s187 + $0xdb0] sm:$0xff]
        %v673 = vld [vmem:[%s187 + $0xdb8] sm:$0xff]
        %v674 = vld [vmem:[%s187 + $0xdc0] sm:$0xff]
        %v675 = vld [vmem:[%s187 + $0xdc8] sm:$0xff]
        %v676 = vld [vmem:[%s187 + $0xdd0] sm:$0xff]
        %v677 = vld [vmem:[%s187 + $0xdd8] sm:$0xff]
        %v678 = vld [vmem:[%s187 + $0xde0] sm:$0xff]
        %v679 = vld [vmem:[%s187 + $0xde8] sm:$0xff]
        %v680 = vld [vmem:[%s187 + $0xdf0] sm:$0xff]
        %v681 = vld [vmem:[%s187 + $0xdf8] sm:$0xff]
        %v682 = vld [vmem:[%s187 + $0xe00] sm:$0xff]
        %v683 = vld [vmem:[%s187 + $0xe08] sm:$0xff]
        %v684 = vld [vmem:[%s187 + $0xe10] sm:$0xff]
        %v685 = vld [vmem:[%s187 + $0xe18] sm:$0xff]
        %v686 = vld [vmem:[%s187 + $0xe20] sm:$0xff]
        %v687 = vld [vmem:[%s187 + $0xe28] sm:$0xff]
        %v688 = vld [vmem:[%s187 + $0xe30] sm:$0xff]
        %v689 = vld [vmem:[%s187 + $0xe38] sm:$0xff]
        %v690 = vld [vmem:[%s187 + $0xe40] sm:$0xff]
        %v691 = vld [vmem:[%s187 + $0xe48] sm:$0xff]
        %v692 = vld [vmem:[%s187 + $0xe50] sm:$0xff]
        %v693 = vld [vmem:[%s187 + $0xe58] sm:$0xff]
        %v694 = vld [vmem:[%s187 + $0xe60] sm:$0xff]
        %v695 = vld [vmem:[%s187 + $0xe68] sm:$0xff]
        %v696 = vld [vmem:[%s187 + $0xe70] sm:$0xff]
        %v697 = vld [vmem:[%s187 + $0xe78] sm:$0xff]
        %v698 = vld [vmem:[%s187 + $0xe80] sm:$0xff]
        %v699 = vld [vmem:[%s187 + $0xe88] sm:$0xff]
        %v700 = vld [vmem:[%s187 + $0xe90] sm:$0xff]
        %v701 = vld [vmem:[%s187 + $0xe98] sm:$0xff]
        %v702 = vld [vmem:[%s187 + $0xea0] sm:$0xff]
        %v703 = vld [vmem:[%s187 + $0xea8] sm:$0xff]
        %v704 = vld [vmem:[%s187 + $0xeb0] sm:$0xff]
        %v705 = vld [vmem:[%s187 + $0xeb8] sm:$0xff]
        %v706 = vld [vmem:[%s187 + $0xec0] sm:$0xff]
        %v707 = vld [vmem:[%s187 + $0xec8] sm:$0xff]
        %v708 = vld [vmem:[%s187 + $0xed0] sm:$0xff]
        %v709 = vld [vmem:[%s187 + $0xed8] sm:$0xff]
        %v710 = vld [vmem:[%s187 + $0xee0] sm:$0xff]
        %v711 = vld [vmem:[%s187 + $0xee8] sm:$0xff]
        %v712 = vld [vmem:[%s187 + $0xef0] sm:$0xff]
        %v713 = vld [vmem:[%s187 + $0xef8] sm:$0xff]
        %v714 = vld [vmem:[%s187 + $0xf00] sm:$0xff]
        %v715 = vld [vmem:[%s187 + $0xf08] sm:$0xff]
        %v716 = vld [vmem:[%s187 + $0xf10] sm:$0xff]
        %v717 = vld [vmem:[%s187 + $0xf18] sm:$0xff]
        %v718 = vld [vmem:[%s187 + $0xf20] sm:$0xff]
        %v719 = vld [vmem:[%s187 + $0xf28] sm:$0xff]
        %v720 = vld [vmem:[%s187 + $0xf30] sm:$0xff]
        %v721 = vld [vmem:[%s187 + $0xf38] sm:$0xff]
        %v722 = vld [vmem:[%s187 + $0xf40] sm:$0xff]
        %v723 = vld [vmem:[%s187 + $0xf48] sm:$0xff]
        %v724 = vld [vmem:[%s187 + $0xf50] sm:$0xff]
        %v725 = vld [vmem:[%s187 + $0xf58] sm:$0xff]
        %v726 = vld [vmem:[%s187 + $0xf60] sm:$0xff]
        %v727 = vld [vmem:[%s187 + $0xf68] sm:$0xff]
        %v728 = vld [vmem:[%s187 + $0xf70] sm:$0xff]
        %v729 = vld [vmem:[%s187 + $0xf78] sm:$0xff]
        %v730 = vld [vmem:[%s187 + $0xf80] sm:$0xff]
        %v731 = vld [vmem:[%s187 + $0xf88] sm:$0xff]
        %v732 = vld [vmem:[%s187 + $0xf90] sm:$0xff]
        %v733 = vld [vmem:[%s187 + $0xf98] sm:$0xff]
        %v734 = vld [vmem:[%s187 + $0xfa0] sm:$0xff]
        %v735 = vld [vmem:[%s187 + $0xfa8] sm:$0xff]
        %v736 = vld [vmem:[%s187 + $0xfb0] sm:$0xff]
        %v737 = vld [vmem:[%s187 + $0xfb8] sm:$0xff]
        %v738 = vld [vmem:[%s187 + $0xfc0] sm:$0xff]
        %v739 = vld [vmem:[%s187 + $0xfc8] sm:$0xff]
        %v740 = vld [vmem:[%s187 + $0xfd0] sm:$0xff]
        %v741 = vld [vmem:[%s187 + $0xfd8] sm:$0xff]
        %v742 = vld [vmem:[%s187 + $0xfe0] sm:$0xff]
        %v743 = vld [vmem:[%s187 + $0xfe8] sm:$0xff]
        %v744 = vld [vmem:[%s187 + $0xff0] sm:$0xff]
        %v745 = vld [vmem:[%s187 + $0xff8] sm:$0xff]
        %v746 = vld [vmem:[%s196] sm:$0xff]
        %v747 = vld [vmem:[%s196 + $0x8] sm:$0xff]
        %v748 = vld [vmem:[%s196 + $0x10] sm:$0xff]
        %v749 = vld [vmem:[%s196 + $0x18] sm:$0xff]
        %v750 = vld [vmem:[%s196 + $0x20] sm:$0xff]
        %v751 = vld [vmem:[%s196 + $0x28] sm:$0xff]
        %v752 = vld [vmem:[%s196 + $0x30] sm:$0xff]
        %v753 = vld [vmem:[%s196 + $0x38] sm:$0xff]
        %v762 = vlaneseq
        %v763 = vshrl.u32 %v762, 7
        %v764 = vsub.s32 0, %v763
        %v765 = vrot.slane %v746, %v764
        %v766 = vlaneseq
        %v767 = vshrl.u32 %v766, 7
        %v768 = vsub.s32 1, %v767
        %v769 = vrot.slane %v746, %v768
        %v770 = vlaneseq
        %v771 = vshrl.u32 %v770, 7
        %v772 = vsub.s32 2, %v771
        %v773 = vrot.slane %v746, %v772
        %v774 = vlaneseq
        %v775 = vshrl.u32 %v774, 7
        %v776 = vsub.s32 3, %v775
        %v777 = vrot.slane %v746, %v776
        %v778 = vlaneseq
        %v779 = vshrl.u32 %v778, 7
        %v780 = vsub.s32 4, %v779
        %v781 = vrot.slane %v746, %v780
        %v782 = vlaneseq
        %v783 = vshrl.u32 %v782, 7
        %v784 = vsub.s32 5, %v783
        %v785 = vrot.slane %v746, %v784
        %v786 = vlaneseq
        %v787 = vshrl.u32 %v786, 7
        %v788 = vsub.s32 6, %v787
        %v789 = vrot.slane %v746, %v788
        %v790 = vlaneseq
        %v791 = vshrl.u32 %v790, 7
        %v792 = vsub.s32 7, %v791
        %v793 = vrot.slane %v746, %v792
        %v794 = vlaneseq
        %v795 = vshrl.u32 %v794, 7
        %v796 = vsub.s32 0, %v795
        %v797 = vrot.slane %v747, %v796
        %v798 = vlaneseq
        %v799 = vshrl.u32 %v798, 7
        %v800 = vsub.s32 1, %v799
        %v801 = vrot.slane %v747, %v800
        %v802 = vlaneseq
        %v803 = vshrl.u32 %v802, 7
        %v804 = vsub.s32 2, %v803
        %v805 = vrot.slane %v747, %v804
        %v806 = vlaneseq
        %v807 = vshrl.u32 %v806, 7
        %v808 = vsub.s32 3, %v807
        %v809 = vrot.slane %v747, %v808
        %v810 = vlaneseq
        %v811 = vshrl.u32 %v810, 7
        %v812 = vsub.s32 4, %v811
        %v813 = vrot.slane %v747, %v812
        %v814 = vlaneseq
        %v815 = vshrl.u32 %v814, 7
        %v816 = vsub.s32 5, %v815
        %v817 = vrot.slane %v747, %v816
        %v818 = vlaneseq
        %v819 = vshrl.u32 %v818, 7
        %v820 = vsub.s32 6, %v819
        %v821 = vrot.slane %v747, %v820
        %v822 = vlaneseq
        %v823 = vshrl.u32 %v822, 7
        %v824 = vsub.s32 7, %v823
        %v825 = vrot.slane %v747, %v824
        %v826 = vlaneseq
        %v827 = vshrl.u32 %v826, 7
        %v828 = vsub.s32 0, %v827
        %v829 = vrot.slane %v748, %v828
        %v830 = vlaneseq
        %v831 = vshrl.u32 %v830, 7
        %v832 = vsub.s32 1, %v831
        %v833 = vrot.slane %v748, %v832
        %v834 = vlaneseq
        %v835 = vshrl.u32 %v834, 7
        %v836 = vsub.s32 2, %v835
        %v837 = vrot.slane %v748, %v836
        %v838 = vlaneseq
        %v839 = vshrl.u32 %v838, 7
        %v840 = vsub.s32 3, %v839
        %v841 = vrot.slane %v748, %v840
        %v842 = vlaneseq
        %v843 = vshrl.u32 %v842, 7
        %v844 = vsub.s32 4, %v843
        %v845 = vrot.slane %v748, %v844
        %v846 = vlaneseq
        %v847 = vshrl.u32 %v846, 7
        %v848 = vsub.s32 5, %v847
        %v849 = vrot.slane %v748, %v848
        %v850 = vlaneseq
        %v851 = vshrl.u32 %v850, 7
        %v852 = vsub.s32 6, %v851
        %v853 = vrot.slane %v748, %v852
        %v854 = vlaneseq
        %v855 = vshrl.u32 %v854, 7
        %v856 = vsub.s32 7, %v855
        %v857 = vrot.slane %v748, %v856
        %v858 = vlaneseq
        %v859 = vshrl.u32 %v858, 7
        %v860 = vsub.s32 0, %v859
        %v861 = vrot.slane %v749, %v860
        %v862 = vlaneseq
        %v863 = vshrl.u32 %v862, 7
        %v864 = vsub.s32 1, %v863
        %v865 = vrot.slane %v749, %v864
        %v866 = vlaneseq
        %v867 = vshrl.u32 %v866, 7
        %v868 = vsub.s32 2, %v867
        %v869 = vrot.slane %v749, %v868
        %v870 = vlaneseq
        %v871 = vshrl.u32 %v870, 7
        %v872 = vsub.s32 3, %v871
        %v873 = vrot.slane %v749, %v872
        %v874 = vlaneseq
        %v875 = vshrl.u32 %v874, 7
        %v876 = vsub.s32 4, %v875
        %v877 = vrot.slane %v749, %v876
        %v878 = vlaneseq
        %v879 = vshrl.u32 %v878, 7
        %v880 = vsub.s32 5, %v879
        %v881 = vrot.slane %v749, %v880
        %v882 = vlaneseq
        %v883 = vshrl.u32 %v882, 7
        %v884 = vsub.s32 6, %v883
        %v885 = vrot.slane %v749, %v884
        %v886 = vlaneseq
        %v887 = vshrl.u32 %v886, 7
        %v888 = vsub.s32 7, %v887
        %v889 = vrot.slane %v749, %v888
        %v890 = vlaneseq
        %v891 = vshrl.u32 %v890, 7
        %v892 = vsub.s32 0, %v891
        %v893 = vrot.slane %v750, %v892
        %v894 = vlaneseq
        %v895 = vshrl.u32 %v894, 7
        %v896 = vsub.s32 1, %v895
        %v897 = vrot.slane %v750, %v896
        %v898 = vlaneseq
        %v899 = vshrl.u32 %v898, 7
        %v900 = vsub.s32 2, %v899
        %v901 = vrot.slane %v750, %v900
        %v902 = vlaneseq
        %v903 = vshrl.u32 %v902, 7
        %v904 = vsub.s32 3, %v903
        %v905 = vrot.slane %v750, %v904
        %v906 = vlaneseq
        %v907 = vshrl.u32 %v906, 7
        %v908 = vsub.s32 4, %v907
        %v909 = vrot.slane %v750, %v908
        %v910 = vlaneseq
        %v911 = vshrl.u32 %v910, 7
        %v912 = vsub.s32 5, %v911
        %v913 = vrot.slane %v750, %v912
        %v914 = vlaneseq
        %v915 = vshrl.u32 %v914, 7
        %v916 = vsub.s32 6, %v915
        %v917 = vrot.slane %v750, %v916
        %v918 = vlaneseq
        %v919 = vshrl.u32 %v918, 7
        %v920 = vsub.s32 7, %v919
        %v921 = vrot.slane %v750, %v920
        %v922 = vlaneseq
        %v923 = vshrl.u32 %v922, 7
        %v924 = vsub.s32 0, %v923
        %v925 = vrot.slane %v751, %v924
        %v926 = vlaneseq
        %v927 = vshrl.u32 %v926, 7
        %v928 = vsub.s32 1, %v927
        %v929 = vrot.slane %v751, %v928
        %v930 = vlaneseq
        %v931 = vshrl.u32 %v930, 7
        %v932 = vsub.s32 2, %v931
        %v933 = vrot.slane %v751, %v932
        %v934 = vlaneseq
        %v935 = vshrl.u32 %v934, 7
        %v936 = vsub.s32 3, %v935
        %v937 = vrot.slane %v751, %v936
        %v938 = vlaneseq
        %v939 = vshrl.u32 %v938, 7
        %v940 = vsub.s32 4, %v939
        %v941 = vrot.slane %v751, %v940
        %v942 = vlaneseq
        %v943 = vshrl.u32 %v942, 7
        %v944 = vsub.s32 5, %v943
        %v945 = vrot.slane %v751, %v944
        %v946 = vlaneseq
        %v947 = vshrl.u32 %v946, 7
        %v948 = vsub.s32 6, %v947
        %v949 = vrot.slane %v751, %v948
        %v950 = vlaneseq
        %v951 = vshrl.u32 %v950, 7
        %v952 = vsub.s32 7, %v951
        %v953 = vrot.slane %v751, %v952
        %v954 = vlaneseq
        %v955 = vshrl.u32 %v954, 7
        %v956 = vsub.s32 0, %v955
        %v957 = vrot.slane %v752, %v956
        %v958 = vlaneseq
        %v959 = vshrl.u32 %v958, 7
        %v960 = vsub.s32 1, %v959
        %v961 = vrot.slane %v752, %v960
        %v962 = vlaneseq
        %v963 = vshrl.u32 %v962, 7
        %v964 = vsub.s32 2, %v963
        %v965 = vrot.slane %v752, %v964
        %v966 = vlaneseq
        %v967 = vshrl.u32 %v966, 7
        %v968 = vsub.s32 3, %v967
        %v969 = vrot.slane %v752, %v968
        %v970 = vlaneseq
        %v971 = vshrl.u32 %v970, 7
        %v972 = vsub.s32 4, %v971
        %v973 = vrot.slane %v752, %v972
        %v974 = vlaneseq
        %v975 = vshrl.u32 %v974, 7
        %v976 = vsub.s32 5, %v975
        %v977 = vrot.slane %v752, %v976
        %v978 = vlaneseq
        %v979 = vshrl.u32 %v978, 7
        %v980 = vsub.s32 6, %v979
        %v981 = vrot.slane %v752, %v980
        %v982 = vlaneseq
        %v983 = vshrl.u32 %v982, 7
        %v984 = vsub.s32 7, %v983
        %v985 = vrot.slane %v752, %v984
        %v986 = vlaneseq
        %v987 = vshrl.u32 %v986, 7
        %v988 = vsub.s32 0, %v987
        %v989 = vrot.slane %v753, %v988
        %v990 = vlaneseq
        %v991 = vshrl.u32 %v990, 7
        %v992 = vsub.s32 1, %v991
        %v993 = vrot.slane %v753, %v992
        %v994 = vlaneseq
        %v995 = vshrl.u32 %v994, 7
        %v996 = vsub.s32 2, %v995
        %v997 = vrot.slane %v753, %v996
        %v998 = vlaneseq
        %v999 = vshrl.u32 %v998, 7
        %v1000 = vsub.s32 3, %v999
        %v1001 = vrot.slane %v753, %v1000
        %v1002 = vlaneseq
        %v1003 = vshrl.u32 %v1002, 7
        %v1004 = vsub.s32 4, %v1003
        %v1005 = vrot.slane %v753, %v1004
        %v1006 = vlaneseq
        %v1007 = vshrl.u32 %v1006, 7
        %v1008 = vsub.s32 5, %v1007
        %v1009 = vrot.slane %v753, %v1008
        %v1010 = vlaneseq
        %v1011 = vshrl.u32 %v1010, 7
        %v1012 = vsub.s32 6, %v1011
        %v1013 = vrot.slane %v753, %v1012
        %v1014 = vlaneseq
        %v1015 = vshrl.u32 %v1014, 7
        %v1016 = vsub.s32 7, %v1015
        %v1017 = vrot.slane %v753, %v1016
        %v1594 = vunpack.c.l.b16 %v234
        %v1595 = vunpack.c.h.b16 %v234
        %v1596 = vunpack.c.l.b16 %v235
        %v1597 = vunpack.c.h.b16 %v235
        %v1598 = vunpack.c.l.b16 %v236
        %v1599 = vunpack.c.h.b16 %v236
        %v1600 = vunpack.c.l.b16 %v237
        %v1601 = vunpack.c.h.b16 %v237
        %v1602 = vunpack.c.l.b16 %v238
        %v1603 = vunpack.c.h.b16 %v238
        %v1604 = vunpack.c.l.b16 %v239
        %v1605 = vunpack.c.h.b16 %v239
        %v1606 = vunpack.c.l.b16 %v240
        %v1607 = vunpack.c.h.b16 %v240
        %v1608 = vunpack.c.l.b16 %v241
        %v1609 = vunpack.c.h.b16 %v241
        %v1610 = vunpack.c.l.b16 %v242
        %v1611 = vunpack.c.h.b16 %v242
        %v1612 = vunpack.c.l.b16 %v243
        %v1613 = vunpack.c.h.b16 %v243
        %v1614 = vunpack.c.l.b16 %v244
        %v1615 = vunpack.c.h.b16 %v244
        %v1616 = vunpack.c.l.b16 %v245
        %v1617 = vunpack.c.h.b16 %v245
        %v1618 = vunpack.c.l.b16 %v246
        %v1619 = vunpack.c.h.b16 %v246
        %v1620 = vunpack.c.l.b16 %v247
        %v1621 = vunpack.c.h.b16 %v247
        %v1622 = vunpack.c.l.b16 %v248
        %v1623 = vunpack.c.h.b16 %v248
        %v1624 = vunpack.c.l.b16 %v249
        %v1625 = vunpack.c.h.b16 %v249
        %v1626 = vunpack.c.l.b16 %v250
        %v1627 = vunpack.c.h.b16 %v250
        %v1628 = vunpack.c.l.b16 %v251
        %v1629 = vunpack.c.h.b16 %v251
        %v1630 = vunpack.c.l.b16 %v252
        %v1631 = vunpack.c.h.b16 %v252
        %v1632 = vunpack.c.l.b16 %v253
        %v1633 = vunpack.c.h.b16 %v253
        %v1634 = vunpack.c.l.b16 %v254
        %v1635 = vunpack.c.h.b16 %v254
        %v1636 = vunpack.c.l.b16 %v255
        %v1637 = vunpack.c.h.b16 %v255
        %v1638 = vunpack.c.l.b16 %v256
        %v1639 = vunpack.c.h.b16 %v256
        %v1640 = vunpack.c.l.b16 %v257
        %v1641 = vunpack.c.h.b16 %v257
        %v1642 = vunpack.c.l.b16 %v258
        %v1643 = vunpack.c.h.b16 %v258
        %v1644 = vunpack.c.l.b16 %v259
        %v1645 = vunpack.c.h.b16 %v259
        %v1646 = vunpack.c.l.b16 %v260
        %v1647 = vunpack.c.h.b16 %v260
        %v1648 = vunpack.c.l.b16 %v261
        %v1649 = vunpack.c.h.b16 %v261
        %v1650 = vunpack.c.l.b16 %v262
        %v1651 = vunpack.c.h.b16 %v262
        %v1652 = vunpack.c.l.b16 %v263
        %v1653 = vunpack.c.h.b16 %v263
        %v1654 = vunpack.c.l.b16 %v264
        %v1655 = vunpack.c.h.b16 %v264
        %v1656 = vunpack.c.l.b16 %v265
        %v1657 = vunpack.c.h.b16 %v265
        %v1658 = vunpack.c.l.b16 %v266
        %v1659 = vunpack.c.h.b16 %v266
        %v1660 = vunpack.c.l.b16 %v267
        %v1661 = vunpack.c.h.b16 %v267
        %v1662 = vunpack.c.l.b16 %v268
        %v1663 = vunpack.c.h.b16 %v268
        %v1664 = vunpack.c.l.b16 %v269
        %v1665 = vunpack.c.h.b16 %v269
        %v1666 = vunpack.c.l.b16 %v270
        %v1667 = vunpack.c.h.b16 %v270
        %v1668 = vunpack.c.l.b16 %v271
        %v1669 = vunpack.c.h.b16 %v271
        %v1670 = vunpack.c.l.b16 %v272
        %v1671 = vunpack.c.h.b16 %v272
        %v1672 = vunpack.c.l.b16 %v273
        %v1673 = vunpack.c.h.b16 %v273
        %v1674 = vunpack.c.l.b16 %v274
        %v1675 = vunpack.c.h.b16 %v274
        %v1676 = vunpack.c.l.b16 %v275
        %v1677 = vunpack.c.h.b16 %v275
        %v1678 = vunpack.c.l.b16 %v276
        %v1679 = vunpack.c.h.b16 %v276
        %v1680 = vunpack.c.l.b16 %v277
        %v1681 = vunpack.c.h.b16 %v277
        %v1682 = vunpack.c.l.b16 %v278
        %v1683 = vunpack.c.h.b16 %v278
        %v1684 = vunpack.c.l.b16 %v279
        %v1685 = vunpack.c.h.b16 %v279
        %v1686 = vunpack.c.l.b16 %v280
        %v1687 = vunpack.c.h.b16 %v280
        %v1688 = vunpack.c.l.b16 %v281
        %v1689 = vunpack.c.h.b16 %v281
        %v1690 = vunpack.c.l.b16 %v282
        %v1691 = vunpack.c.h.b16 %v282
        %v1692 = vunpack.c.l.b16 %v283
        %v1693 = vunpack.c.h.b16 %v283
        %v1694 = vunpack.c.l.b16 %v284
        %v1695 = vunpack.c.h.b16 %v284
        %v1696 = vunpack.c.l.b16 %v285
        %v1697 = vunpack.c.h.b16 %v285
        %v1698 = vunpack.c.l.b16 %v286
        %v1699 = vunpack.c.h.b16 %v286
        %v1700 = vunpack.c.l.b16 %v287
        %v1701 = vunpack.c.h.b16 %v287
        %v1702 = vunpack.c.l.b16 %v288
        %v1703 = vunpack.c.h.b16 %v288
        %v1704 = vunpack.c.l.b16 %v289
        %v1705 = vunpack.c.h.b16 %v289
        %v1706 = vunpack.c.l.b16 %v290
        %v1707 = vunpack.c.h.b16 %v290
        %v1708 = vunpack.c.l.b16 %v291
        %v1709 = vunpack.c.h.b16 %v291
        %v1710 = vunpack.c.l.b16 %v292
        %v1711 = vunpack.c.h.b16 %v292
        %v1712 = vunpack.c.l.b16 %v293
        %v1713 = vunpack.c.h.b16 %v293
        %v1714 = vunpack.c.l.b16 %v294
        %v1715 = vunpack.c.h.b16 %v294
        %v1716 = vunpack.c.l.b16 %v295
        %v1717 = vunpack.c.h.b16 %v295
        %v1718 = vunpack.c.l.b16 %v296
        %v1719 = vunpack.c.h.b16 %v296
        %v1720 = vunpack.c.l.b16 %v297
        %v1721 = vunpack.c.h.b16 %v297
        %v1722 = vunpack.c.l.b16 %v298
        %v1723 = vunpack.c.h.b16 %v298
        %v1724 = vunpack.c.l.b16 %v299
        %v1725 = vunpack.c.h.b16 %v299
        %v1726 = vunpack.c.l.b16 %v300
        %v1727 = vunpack.c.h.b16 %v300
        %v1728 = vunpack.c.l.b16 %v301
        %v1729 = vunpack.c.h.b16 %v301
        %v1730 = vunpack.c.l.b16 %v302
        %v1731 = vunpack.c.h.b16 %v302
        %v1732 = vunpack.c.l.b16 %v303
        %v1733 = vunpack.c.h.b16 %v303
        %v1734 = vunpack.c.l.b16 %v304
        %v1735 = vunpack.c.h.b16 %v304
        %v1736 = vunpack.c.l.b16 %v305
        %v1737 = vunpack.c.h.b16 %v305
        %v1738 = vunpack.c.l.b16 %v306
        %v1739 = vunpack.c.h.b16 %v306
        %v1740 = vunpack.c.l.b16 %v307
        %v1741 = vunpack.c.h.b16 %v307
        %v1742 = vunpack.c.l.b16 %v308
        %v1743 = vunpack.c.h.b16 %v308
        %v1744 = vunpack.c.l.b16 %v309
        %v1745 = vunpack.c.h.b16 %v309
        %v1746 = vunpack.c.l.b16 %v310
        %v1747 = vunpack.c.h.b16 %v310
        %v1748 = vunpack.c.l.b16 %v311
        %v1749 = vunpack.c.h.b16 %v311
        %v1750 = vunpack.c.l.b16 %v312
        %v1751 = vunpack.c.h.b16 %v312
        %v1752 = vunpack.c.l.b16 %v313
        %v1753 = vunpack.c.h.b16 %v313
        %v1754 = vunpack.c.l.b16 %v314
        %v1755 = vunpack.c.h.b16 %v314
        %v1756 = vunpack.c.l.b16 %v315
        %v1757 = vunpack.c.h.b16 %v315
        %v1758 = vunpack.c.l.b16 %v316
        %v1759 = vunpack.c.h.b16 %v316
        %v1760 = vunpack.c.l.b16 %v317
        %v1761 = vunpack.c.h.b16 %v317
        %v1762 = vunpack.c.l.b16 %v318
        %v1763 = vunpack.c.h.b16 %v318
        %v1764 = vunpack.c.l.b16 %v319
        %v1765 = vunpack.c.h.b16 %v319
        %v1766 = vunpack.c.l.b16 %v320
        %v1767 = vunpack.c.h.b16 %v320
        %v1768 = vunpack.c.l.b16 %v321
        %v1769 = vunpack.c.h.b16 %v321
        %v1770 = vunpack.c.l.b16 %v322
        %v1771 = vunpack.c.h.b16 %v322
        %v1772 = vunpack.c.l.b16 %v323
        %v1773 = vunpack.c.h.b16 %v323
        %v1774 = vunpack.c.l.b16 %v324
        %v1775 = vunpack.c.h.b16 %v324
        %v1776 = vunpack.c.l.b16 %v325
        %v1777 = vunpack.c.h.b16 %v325
        %v1778 = vunpack.c.l.b16 %v326
        %v1779 = vunpack.c.h.b16 %v326
        %v1780 = vunpack.c.l.b16 %v327
        %v1781 = vunpack.c.h.b16 %v327
        %v1782 = vunpack.c.l.b16 %v328
        %v1783 = vunpack.c.h.b16 %v328
        %v1784 = vunpack.c.l.b16 %v329
        %v1785 = vunpack.c.h.b16 %v329
        %v1786 = vunpack.c.l.b16 %v330
        %v1787 = vunpack.c.h.b16 %v330
        %v1788 = vunpack.c.l.b16 %v331
        %v1789 = vunpack.c.h.b16 %v331
        %v1790 = vunpack.c.l.b16 %v332
        %v1791 = vunpack.c.h.b16 %v332
        %v1792 = vunpack.c.l.b16 %v333
        %v1793 = vunpack.c.h.b16 %v333
        %v1794 = vunpack.c.l.b16 %v334
        %v1795 = vunpack.c.h.b16 %v334
        %v1796 = vunpack.c.l.b16 %v335
        %v1797 = vunpack.c.h.b16 %v335
        %v1798 = vunpack.c.l.b16 %v336
        %v1799 = vunpack.c.h.b16 %v336
        %v1800 = vunpack.c.l.b16 %v337
        %v1801 = vunpack.c.h.b16 %v337
        %v1802 = vunpack.c.l.b16 %v338
        %v1803 = vunpack.c.h.b16 %v338
        %v1804 = vunpack.c.l.b16 %v339
        %v1805 = vunpack.c.h.b16 %v339
        %v1806 = vunpack.c.l.b16 %v340
        %v1807 = vunpack.c.h.b16 %v340
        %v1808 = vunpack.c.l.b16 %v341
        %v1809 = vunpack.c.h.b16 %v341
        %v1810 = vunpack.c.l.b16 %v342
        %v1811 = vunpack.c.h.b16 %v342
        %v1812 = vunpack.c.l.b16 %v343
        %v1813 = vunpack.c.h.b16 %v343
        %v1814 = vunpack.c.l.b16 %v344
        %v1815 = vunpack.c.h.b16 %v344
        %v1816 = vunpack.c.l.b16 %v345
        %v1817 = vunpack.c.h.b16 %v345
        %v1818 = vunpack.c.l.b16 %v346
        %v1819 = vunpack.c.h.b16 %v346
        %v1820 = vunpack.c.l.b16 %v347
        %v1821 = vunpack.c.h.b16 %v347
        %v1822 = vunpack.c.l.b16 %v348
        %v1823 = vunpack.c.h.b16 %v348
        %v1824 = vunpack.c.l.b16 %v349
        %v1825 = vunpack.c.h.b16 %v349
        %v1826 = vunpack.c.l.b16 %v350
        %v1827 = vunpack.c.h.b16 %v350
        %v1828 = vunpack.c.l.b16 %v351
        %v1829 = vunpack.c.h.b16 %v351
        %v1830 = vunpack.c.l.b16 %v352
        %v1831 = vunpack.c.h.b16 %v352
        %v1832 = vunpack.c.l.b16 %v353
        %v1833 = vunpack.c.h.b16 %v353
        %v1834 = vunpack.c.l.b16 %v354
        %v1835 = vunpack.c.h.b16 %v354
        %v1836 = vunpack.c.l.b16 %v355
        %v1837 = vunpack.c.h.b16 %v355
        %v1838 = vunpack.c.l.b16 %v356
        %v1839 = vunpack.c.h.b16 %v356
        %v1840 = vunpack.c.l.b16 %v357
        %v1841 = vunpack.c.h.b16 %v357
        %v1842 = vunpack.c.l.b16 %v358
        %v1843 = vunpack.c.h.b16 %v358
        %v1844 = vunpack.c.l.b16 %v359
        %v1845 = vunpack.c.h.b16 %v359
        %v1846 = vunpack.c.l.b16 %v360
        %v1847 = vunpack.c.h.b16 %v360
        %v1848 = vunpack.c.l.b16 %v361
        %v1849 = vunpack.c.h.b16 %v361
        %v1850 = vunpack.c.l.b16 %v362
        %v1851 = vunpack.c.h.b16 %v362
        %v1852 = vunpack.c.l.b16 %v363
        %v1853 = vunpack.c.h.b16 %v363
        %v1854 = vunpack.c.l.b16 %v364
        %v1855 = vunpack.c.h.b16 %v364
        %v1856 = vunpack.c.l.b16 %v365
        %v1857 = vunpack.c.h.b16 %v365
        %v1858 = vunpack.c.l.b16 %v366
        %v1859 = vunpack.c.h.b16 %v366
        %v1860 = vunpack.c.l.b16 %v367
        %v1861 = vunpack.c.h.b16 %v367
        %v1862 = vunpack.c.l.b16 %v368
        %v1863 = vunpack.c.h.b16 %v368
        %v1864 = vunpack.c.l.b16 %v369
        %v1865 = vunpack.c.h.b16 %v369
        %v1866 = vunpack.c.l.b16 %v370
        %v1867 = vunpack.c.h.b16 %v370
        %v1868 = vunpack.c.l.b16 %v371
        %v1869 = vunpack.c.h.b16 %v371
        %v1870 = vunpack.c.l.b16 %v372
        %v1871 = vunpack.c.h.b16 %v372
        %v1872 = vunpack.c.l.b16 %v373
        %v1873 = vunpack.c.h.b16 %v373
        %v1874 = vunpack.c.l.b16 %v374
        %v1875 = vunpack.c.h.b16 %v374
        %v1876 = vunpack.c.l.b16 %v375
        %v1877 = vunpack.c.h.b16 %v375
        %v1878 = vunpack.c.l.b16 %v376
        %v1879 = vunpack.c.h.b16 %v376
        %v1880 = vunpack.c.l.b16 %v377
        %v1881 = vunpack.c.h.b16 %v377
        %v1882 = vunpack.c.l.b16 %v378
        %v1883 = vunpack.c.h.b16 %v378
        %v1884 = vunpack.c.l.b16 %v379
        %v1885 = vunpack.c.h.b16 %v379
        %v1886 = vunpack.c.l.b16 %v380
        %v1887 = vunpack.c.h.b16 %v380
        %v1888 = vunpack.c.l.b16 %v381
        %v1889 = vunpack.c.h.b16 %v381
        %v1890 = vunpack.c.l.b16 %v382
        %v1891 = vunpack.c.h.b16 %v382
        %v1892 = vunpack.c.l.b16 %v383
        %v1893 = vunpack.c.h.b16 %v383
        %v1894 = vunpack.c.l.b16 %v384
        %v1895 = vunpack.c.h.b16 %v384
        %v1896 = vunpack.c.l.b16 %v385
        %v1897 = vunpack.c.h.b16 %v385
        %v1898 = vunpack.c.l.b16 %v386
        %v1899 = vunpack.c.h.b16 %v386
        %v1900 = vunpack.c.l.b16 %v387
        %v1901 = vunpack.c.h.b16 %v387
        %v1902 = vunpack.c.l.b16 %v388
        %v1903 = vunpack.c.h.b16 %v388
        %v1904 = vunpack.c.l.b16 %v389
        %v1905 = vunpack.c.h.b16 %v389
        %v1906 = vunpack.c.l.b16 %v390
        %v1907 = vunpack.c.h.b16 %v390
        %v1908 = vunpack.c.l.b16 %v391
        %v1909 = vunpack.c.h.b16 %v391
        %v1910 = vunpack.c.l.b16 %v392
        %v1911 = vunpack.c.h.b16 %v392
        %v1912 = vunpack.c.l.b16 %v393
        %v1913 = vunpack.c.h.b16 %v393
        %v1914 = vunpack.c.l.b16 %v394
        %v1915 = vunpack.c.h.b16 %v394
        %v1916 = vunpack.c.l.b16 %v395
        %v1917 = vunpack.c.h.b16 %v395
        %v1918 = vunpack.c.l.b16 %v396
        %v1919 = vunpack.c.h.b16 %v396
        %v1920 = vunpack.c.l.b16 %v397
        %v1921 = vunpack.c.h.b16 %v397
        %v1922 = vunpack.c.l.b16 %v398
        %v1923 = vunpack.c.h.b16 %v398
        %v1924 = vunpack.c.l.b16 %v399
        %v1925 = vunpack.c.h.b16 %v399
        %v1926 = vunpack.c.l.b16 %v400
        %v1927 = vunpack.c.h.b16 %v400
        %v1928 = vunpack.c.l.b16 %v401
        %v1929 = vunpack.c.h.b16 %v401
        %v1930 = vunpack.c.l.b16 %v402
        %v1931 = vunpack.c.h.b16 %v402
        %v1932 = vunpack.c.l.b16 %v403
        %v1933 = vunpack.c.h.b16 %v403
        %v1934 = vunpack.c.l.b16 %v404
        %v1935 = vunpack.c.h.b16 %v404
        %v1936 = vunpack.c.l.b16 %v405
        %v1937 = vunpack.c.h.b16 %v405
        %v1938 = vunpack.c.l.b16 %v406
        %v1939 = vunpack.c.h.b16 %v406
        %v1940 = vunpack.c.l.b16 %v407
        %v1941 = vunpack.c.h.b16 %v407
        %v1942 = vunpack.c.l.b16 %v408
        %v1943 = vunpack.c.h.b16 %v408
        %v1944 = vunpack.c.l.b16 %v409
        %v1945 = vunpack.c.h.b16 %v409
        %v1946 = vunpack.c.l.b16 %v410
        %v1947 = vunpack.c.h.b16 %v410
        %v1948 = vunpack.c.l.b16 %v411
        %v1949 = vunpack.c.h.b16 %v411
        %v1950 = vunpack.c.l.b16 %v412
        %v1951 = vunpack.c.h.b16 %v412
        %v1952 = vunpack.c.l.b16 %v413
        %v1953 = vunpack.c.h.b16 %v413
        %v1954 = vunpack.c.l.b16 %v414
        %v1955 = vunpack.c.h.b16 %v414
        %v1956 = vunpack.c.l.b16 %v415
        %v1957 = vunpack.c.h.b16 %v415
        %v1958 = vunpack.c.l.b16 %v416
        %v1959 = vunpack.c.h.b16 %v416
        %v1960 = vunpack.c.l.b16 %v417
        %v1961 = vunpack.c.h.b16 %v417
        %v1962 = vunpack.c.l.b16 %v418
        %v1963 = vunpack.c.h.b16 %v418
        %v1964 = vunpack.c.l.b16 %v419
        %v1965 = vunpack.c.h.b16 %v419
        %v1966 = vunpack.c.l.b16 %v420
        %v1967 = vunpack.c.h.b16 %v420
        %v1968 = vunpack.c.l.b16 %v421
        %v1969 = vunpack.c.h.b16 %v421
        %v1970 = vunpack.c.l.b16 %v422
        %v1971 = vunpack.c.h.b16 %v422
        %v1972 = vunpack.c.l.b16 %v423
        %v1973 = vunpack.c.h.b16 %v423
        %v1974 = vunpack.c.l.b16 %v424
        %v1975 = vunpack.c.h.b16 %v424
        %v1976 = vunpack.c.l.b16 %v425
        %v1977 = vunpack.c.h.b16 %v425
        %v1978 = vunpack.c.l.b16 %v426
        %v1979 = vunpack.c.h.b16 %v426
        %v1980 = vunpack.c.l.b16 %v427
        %v1981 = vunpack.c.h.b16 %v427
        %v1982 = vunpack.c.l.b16 %v428
        %v1983 = vunpack.c.h.b16 %v428
        %v1984 = vunpack.c.l.b16 %v429
        %v1985 = vunpack.c.h.b16 %v429
        %v1986 = vunpack.c.l.b16 %v430
        %v1987 = vunpack.c.h.b16 %v430
        %v1988 = vunpack.c.l.b16 %v431
        %v1989 = vunpack.c.h.b16 %v431
        %v1990 = vunpack.c.l.b16 %v432
        %v1991 = vunpack.c.h.b16 %v432
        %v1992 = vunpack.c.l.b16 %v433
        %v1993 = vunpack.c.h.b16 %v433
        %v1994 = vunpack.c.l.b16 %v434
        %v1995 = vunpack.c.h.b16 %v434
        %v1996 = vunpack.c.l.b16 %v435
        %v1997 = vunpack.c.h.b16 %v435
        %v1998 = vunpack.c.l.b16 %v436
        %v1999 = vunpack.c.h.b16 %v436
        %v2000 = vunpack.c.l.b16 %v437
        %v2001 = vunpack.c.h.b16 %v437
        %v2002 = vunpack.c.l.b16 %v438
        %v2003 = vunpack.c.h.b16 %v438
        %v2004 = vunpack.c.l.b16 %v439
        %v2005 = vunpack.c.h.b16 %v439
        %v2006 = vunpack.c.l.b16 %v440
        %v2007 = vunpack.c.h.b16 %v440
        %v2008 = vunpack.c.l.b16 %v441
        %v2009 = vunpack.c.h.b16 %v441
        %v2010 = vunpack.c.l.b16 %v442
        %v2011 = vunpack.c.h.b16 %v442
        %v2012 = vunpack.c.l.b16 %v443
        %v2013 = vunpack.c.h.b16 %v443
        %v2014 = vunpack.c.l.b16 %v444
        %v2015 = vunpack.c.h.b16 %v444
        %v2016 = vunpack.c.l.b16 %v445
        %v2017 = vunpack.c.h.b16 %v445
        %v2018 = vunpack.c.l.b16 %v446
        %v2019 = vunpack.c.h.b16 %v446
        %v2020 = vunpack.c.l.b16 %v447
        %v2021 = vunpack.c.h.b16 %v447
        %v2022 = vunpack.c.l.b16 %v448
        %v2023 = vunpack.c.h.b16 %v448
        %v2024 = vunpack.c.l.b16 %v449
        %v2025 = vunpack.c.h.b16 %v449
        %v2026 = vunpack.c.l.b16 %v450
        %v2027 = vunpack.c.h.b16 %v450
        %v2028 = vunpack.c.l.b16 %v451
        %v2029 = vunpack.c.h.b16 %v451
        %v2030 = vunpack.c.l.b16 %v452
        %v2031 = vunpack.c.h.b16 %v452
        %v2032 = vunpack.c.l.b16 %v453
        %v2033 = vunpack.c.h.b16 %v453
        %v2034 = vunpack.c.l.b16 %v454
        %v2035 = vunpack.c.h.b16 %v454
        %v2036 = vunpack.c.l.b16 %v455
        %v2037 = vunpack.c.h.b16 %v455
        %v2038 = vunpack.c.l.b16 %v456
        %v2039 = vunpack.c.h.b16 %v456
        %v2040 = vunpack.c.l.b16 %v457
        %v2041 = vunpack.c.h.b16 %v457
        %v2042 = vunpack.c.l.b16 %v458
        %v2043 = vunpack.c.h.b16 %v458
        %v2044 = vunpack.c.l.b16 %v459
        %v2045 = vunpack.c.h.b16 %v459
        %v2046 = vunpack.c.l.b16 %v460
        %v2047 = vunpack.c.h.b16 %v460
        %v2048 = vunpack.c.l.b16 %v461
        %v2049 = vunpack.c.h.b16 %v461
        %v2050 = vunpack.c.l.b16 %v462
        %v2051 = vunpack.c.h.b16 %v462
        %v2052 = vunpack.c.l.b16 %v463
        %v2053 = vunpack.c.h.b16 %v463
        %v2054 = vunpack.c.l.b16 %v464
        %v2055 = vunpack.c.h.b16 %v464
        %v2056 = vunpack.c.l.b16 %v465
        %v2057 = vunpack.c.h.b16 %v465
        %v2058 = vunpack.c.l.b16 %v466
        %v2059 = vunpack.c.h.b16 %v466
        %v2060 = vunpack.c.l.b16 %v467
        %v2061 = vunpack.c.h.b16 %v467
        %v2062 = vunpack.c.l.b16 %v468
        %v2063 = vunpack.c.h.b16 %v468
        %v2064 = vunpack.c.l.b16 %v469
        %v2065 = vunpack.c.h.b16 %v469
        %v2066 = vunpack.c.l.b16 %v470
        %v2067 = vunpack.c.h.b16 %v470
        %v2068 = vunpack.c.l.b16 %v471
        %v2069 = vunpack.c.h.b16 %v471
        %v2070 = vunpack.c.l.b16 %v472
        %v2071 = vunpack.c.h.b16 %v472
        %v2072 = vunpack.c.l.b16 %v473
        %v2073 = vunpack.c.h.b16 %v473
        %v2074 = vunpack.c.l.b16 %v474
        %v2075 = vunpack.c.h.b16 %v474
        %v2076 = vunpack.c.l.b16 %v475
        %v2077 = vunpack.c.h.b16 %v475
        %v2078 = vunpack.c.l.b16 %v476
        %v2079 = vunpack.c.h.b16 %v476
        %v2080 = vunpack.c.l.b16 %v477
        %v2081 = vunpack.c.h.b16 %v477
        %v2082 = vunpack.c.l.b16 %v478
        %v2083 = vunpack.c.h.b16 %v478
        %v2084 = vunpack.c.l.b16 %v479
        %v2085 = vunpack.c.h.b16 %v479
        %v2086 = vunpack.c.l.b16 %v480
        %v2087 = vunpack.c.h.b16 %v480
        %v2088 = vunpack.c.l.b16 %v481
        %v2089 = vunpack.c.h.b16 %v481
        %v2090 = vunpack.c.l.b16 %v482
        %v2091 = vunpack.c.h.b16 %v482
        %v2092 = vunpack.c.l.b16 %v483
        %v2093 = vunpack.c.h.b16 %v483
        %v2094 = vunpack.c.l.b16 %v484
        %v2095 = vunpack.c.h.b16 %v484
        %v2096 = vunpack.c.l.b16 %v485
        %v2097 = vunpack.c.h.b16 %v485
        %v2098 = vunpack.c.l.b16 %v486
        %v2099 = vunpack.c.h.b16 %v486
        %v2100 = vunpack.c.l.b16 %v487
        %v2101 = vunpack.c.h.b16 %v487
        %v2102 = vunpack.c.l.b16 %v488
        %v2103 = vunpack.c.h.b16 %v488
        %v2104 = vunpack.c.l.b16 %v489
        %v2105 = vunpack.c.h.b16 %v489
        %v2106 = vunpack.c.l.b16 %v490
        %v2107 = vunpack.c.h.b16 %v490
        %v2108 = vunpack.c.l.b16 %v491
        %v2109 = vunpack.c.h.b16 %v491
        %v2110 = vunpack.c.l.b16 %v492
        %v2111 = vunpack.c.h.b16 %v492
        %v2112 = vunpack.c.l.b16 %v493
        %v2113 = vunpack.c.h.b16 %v493
        %v2114 = vunpack.c.l.b16 %v494
        %v2115 = vunpack.c.h.b16 %v494
        %v2116 = vunpack.c.l.b16 %v495
        %v2117 = vunpack.c.h.b16 %v495
        %v2118 = vunpack.c.l.b16 %v496
        %v2119 = vunpack.c.h.b16 %v496
        %v2120 = vunpack.c.l.b16 %v497
        %v2121 = vunpack.c.h.b16 %v497
        %v2122 = vunpack.c.l.b16 %v498
        %v2123 = vunpack.c.h.b16 %v498
        %v2124 = vunpack.c.l.b16 %v499
        %v2125 = vunpack.c.h.b16 %v499
        %v2126 = vunpack.c.l.b16 %v500
        %v2127 = vunpack.c.h.b16 %v500
        %v2128 = vunpack.c.l.b16 %v501
        %v2129 = vunpack.c.h.b16 %v501
        %v2130 = vunpack.c.l.b16 %v502
        %v2131 = vunpack.c.h.b16 %v502
        %v2132 = vunpack.c.l.b16 %v503
        %v2133 = vunpack.c.h.b16 %v503
        %v2134 = vunpack.c.l.b16 %v504
        %v2135 = vunpack.c.h.b16 %v504
        %v2136 = vunpack.c.l.b16 %v505
        %v2137 = vunpack.c.h.b16 %v505
        %v2138 = vunpack.c.l.b16 %v506
        %v2139 = vunpack.c.h.b16 %v506
        %v2140 = vunpack.c.l.b16 %v507
        %v2141 = vunpack.c.h.b16 %v507
        %v2142 = vunpack.c.l.b16 %v508
        %v2143 = vunpack.c.h.b16 %v508
        %v2144 = vunpack.c.l.b16 %v509
        %v2145 = vunpack.c.h.b16 %v509
        %v2146 = vunpack.c.l.b16 %v510
        %v2147 = vunpack.c.h.b16 %v510
        %v2148 = vunpack.c.l.b16 %v511
        %v2149 = vunpack.c.h.b16 %v511
        %v2150 = vunpack.c.l.b16 %v512
        %v2151 = vunpack.c.h.b16 %v512
        %v2152 = vunpack.c.l.b16 %v513
        %v2153 = vunpack.c.h.b16 %v513
        %v2154 = vunpack.c.l.b16 %v514
        %v2155 = vunpack.c.h.b16 %v514
        %v2156 = vunpack.c.l.b16 %v515
        %v2157 = vunpack.c.h.b16 %v515
        %v2158 = vunpack.c.l.b16 %v516
        %v2159 = vunpack.c.h.b16 %v516
        %v2160 = vunpack.c.l.b16 %v517
        %v2161 = vunpack.c.h.b16 %v517
        %v2162 = vunpack.c.l.b16 %v518
        %v2163 = vunpack.c.h.b16 %v518
        %v2164 = vunpack.c.l.b16 %v519
        %v2165 = vunpack.c.h.b16 %v519
        %v2166 = vunpack.c.l.b16 %v520
        %v2167 = vunpack.c.h.b16 %v520
        %v2168 = vunpack.c.l.b16 %v521
        %v2169 = vunpack.c.h.b16 %v521
        %v2170 = vunpack.c.l.b16 %v522
        %v2171 = vunpack.c.h.b16 %v522
        %v2172 = vunpack.c.l.b16 %v523
        %v2173 = vunpack.c.h.b16 %v523
        %v2174 = vunpack.c.l.b16 %v524
        %v2175 = vunpack.c.h.b16 %v524
        %v2176 = vunpack.c.l.b16 %v525
        %v2177 = vunpack.c.h.b16 %v525
        %v2178 = vunpack.c.l.b16 %v526
        %v2179 = vunpack.c.h.b16 %v526
        %v2180 = vunpack.c.l.b16 %v527
        %v2181 = vunpack.c.h.b16 %v527
        %v2182 = vunpack.c.l.b16 %v528
        %v2183 = vunpack.c.h.b16 %v528
        %v2184 = vunpack.c.l.b16 %v529
        %v2185 = vunpack.c.h.b16 %v529
        %v2186 = vunpack.c.l.b16 %v530
        %v2187 = vunpack.c.h.b16 %v530
        %v2188 = vunpack.c.l.b16 %v531
        %v2189 = vunpack.c.h.b16 %v531
        %v2190 = vunpack.c.l.b16 %v532
        %v2191 = vunpack.c.h.b16 %v532
        %v2192 = vunpack.c.l.b16 %v533
        %v2193 = vunpack.c.h.b16 %v533
        %v2194 = vunpack.c.l.b16 %v534
        %v2195 = vunpack.c.h.b16 %v534
        %v2196 = vunpack.c.l.b16 %v535
        %v2197 = vunpack.c.h.b16 %v535
        %v2198 = vunpack.c.l.b16 %v536
        %v2199 = vunpack.c.h.b16 %v536
        %v2200 = vunpack.c.l.b16 %v537
        %v2201 = vunpack.c.h.b16 %v537
        %v2202 = vunpack.c.l.b16 %v538
        %v2203 = vunpack.c.h.b16 %v538
        %v2204 = vunpack.c.l.b16 %v539
        %v2205 = vunpack.c.h.b16 %v539
        %v2206 = vunpack.c.l.b16 %v540
        %v2207 = vunpack.c.h.b16 %v540
        %v2208 = vunpack.c.l.b16 %v541
        %v2209 = vunpack.c.h.b16 %v541
        %v2210 = vunpack.c.l.b16 %v542
        %v2211 = vunpack.c.h.b16 %v542
        %v2212 = vunpack.c.l.b16 %v543
        %v2213 = vunpack.c.h.b16 %v543
        %v2214 = vunpack.c.l.b16 %v544
        %v2215 = vunpack.c.h.b16 %v544
        %v2216 = vunpack.c.l.b16 %v545
        %v2217 = vunpack.c.h.b16 %v545
        %v2218 = vunpack.c.l.b16 %v546
        %v2219 = vunpack.c.h.b16 %v546
        %v2220 = vunpack.c.l.b16 %v547
        %v2221 = vunpack.c.h.b16 %v547
        %v2222 = vunpack.c.l.b16 %v548
        %v2223 = vunpack.c.h.b16 %v548
        %v2224 = vunpack.c.l.b16 %v549
        %v2225 = vunpack.c.h.b16 %v549
        %v2226 = vunpack.c.l.b16 %v550
        %v2227 = vunpack.c.h.b16 %v550
        %v2228 = vunpack.c.l.b16 %v551
        %v2229 = vunpack.c.h.b16 %v551
        %v2230 = vunpack.c.l.b16 %v552
        %v2231 = vunpack.c.h.b16 %v552
        %v2232 = vunpack.c.l.b16 %v553
        %v2233 = vunpack.c.h.b16 %v553
        %v2234 = vunpack.c.l.b16 %v554
        %v2235 = vunpack.c.h.b16 %v554
        %v2236 = vunpack.c.l.b16 %v555
        %v2237 = vunpack.c.h.b16 %v555
        %v2238 = vunpack.c.l.b16 %v556
        %v2239 = vunpack.c.h.b16 %v556
        %v2240 = vunpack.c.l.b16 %v557
        %v2241 = vunpack.c.h.b16 %v557
        %v2242 = vunpack.c.l.b16 %v558
        %v2243 = vunpack.c.h.b16 %v558
        %v2244 = vunpack.c.l.b16 %v559
        %v2245 = vunpack.c.h.b16 %v559
        %v2246 = vunpack.c.l.b16 %v560
        %v2247 = vunpack.c.h.b16 %v560
        %v2248 = vunpack.c.l.b16 %v561
        %v2249 = vunpack.c.h.b16 %v561
        %v2250 = vunpack.c.l.b16 %v562
        %v2251 = vunpack.c.h.b16 %v562
        %v2252 = vunpack.c.l.b16 %v563
        %v2253 = vunpack.c.h.b16 %v563
        %v2254 = vunpack.c.l.b16 %v564
        %v2255 = vunpack.c.h.b16 %v564
        %v2256 = vunpack.c.l.b16 %v565
        %v2257 = vunpack.c.h.b16 %v565
        %v2258 = vunpack.c.l.b16 %v566
        %v2259 = vunpack.c.h.b16 %v566
        %v2260 = vunpack.c.l.b16 %v567
        %v2261 = vunpack.c.h.b16 %v567
        %v2262 = vunpack.c.l.b16 %v568
        %v2263 = vunpack.c.h.b16 %v568
        %v2264 = vunpack.c.l.b16 %v569
        %v2265 = vunpack.c.h.b16 %v569
        %v2266 = vunpack.c.l.b16 %v570
        %v2267 = vunpack.c.h.b16 %v570
        %v2268 = vunpack.c.l.b16 %v571
        %v2269 = vunpack.c.h.b16 %v571
        %v2270 = vunpack.c.l.b16 %v572
        %v2271 = vunpack.c.h.b16 %v572
        %v2272 = vunpack.c.l.b16 %v573
        %v2273 = vunpack.c.h.b16 %v573
        %v2274 = vunpack.c.l.b16 %v574
        %v2275 = vunpack.c.h.b16 %v574
        %v2276 = vunpack.c.l.b16 %v575
        %v2277 = vunpack.c.h.b16 %v575
        %v2278 = vunpack.c.l.b16 %v576
        %v2279 = vunpack.c.h.b16 %v576
        %v2280 = vunpack.c.l.b16 %v577
        %v2281 = vunpack.c.h.b16 %v577
        %v2282 = vunpack.c.l.b16 %v578
        %v2283 = vunpack.c.h.b16 %v578
        %v2284 = vunpack.c.l.b16 %v579
        %v2285 = vunpack.c.h.b16 %v579
        %v2286 = vunpack.c.l.b16 %v580
        %v2287 = vunpack.c.h.b16 %v580
        %v2288 = vunpack.c.l.b16 %v581
        %v2289 = vunpack.c.h.b16 %v581
        %v2290 = vunpack.c.l.b16 %v582
        %v2291 = vunpack.c.h.b16 %v582
        %v2292 = vunpack.c.l.b16 %v583
        %v2293 = vunpack.c.h.b16 %v583
        %v2294 = vunpack.c.l.b16 %v584
        %v2295 = vunpack.c.h.b16 %v584
        %v2296 = vunpack.c.l.b16 %v585
        %v2297 = vunpack.c.h.b16 %v585
        %v2298 = vunpack.c.l.b16 %v586
        %v2299 = vunpack.c.h.b16 %v586
        %v2300 = vunpack.c.l.b16 %v587
        %v2301 = vunpack.c.h.b16 %v587
        %v2302 = vunpack.c.l.b16 %v588
        %v2303 = vunpack.c.h.b16 %v588
        %v2304 = vunpack.c.l.b16 %v589
        %v2305 = vunpack.c.h.b16 %v589
        %v2306 = vunpack.c.l.b16 %v590
        %v2307 = vunpack.c.h.b16 %v590
        %v2308 = vunpack.c.l.b16 %v591
        %v2309 = vunpack.c.h.b16 %v591
        %v2310 = vunpack.c.l.b16 %v592
        %v2311 = vunpack.c.h.b16 %v592
        %v2312 = vunpack.c.l.b16 %v593
        %v2313 = vunpack.c.h.b16 %v593
        %v2314 = vunpack.c.l.b16 %v594
        %v2315 = vunpack.c.h.b16 %v594
        %v2316 = vunpack.c.l.b16 %v595
        %v2317 = vunpack.c.h.b16 %v595
        %v2318 = vunpack.c.l.b16 %v596
        %v2319 = vunpack.c.h.b16 %v596
        %v2320 = vunpack.c.l.b16 %v597
        %v2321 = vunpack.c.h.b16 %v597
        %v2322 = vunpack.c.l.b16 %v598
        %v2323 = vunpack.c.h.b16 %v598
        %v2324 = vunpack.c.l.b16 %v599
        %v2325 = vunpack.c.h.b16 %v599
        %v2326 = vunpack.c.l.b16 %v600
        %v2327 = vunpack.c.h.b16 %v600
        %v2328 = vunpack.c.l.b16 %v601
        %v2329 = vunpack.c.h.b16 %v601
        %v2330 = vunpack.c.l.b16 %v602
        %v2331 = vunpack.c.h.b16 %v602
        %v2332 = vunpack.c.l.b16 %v603
        %v2333 = vunpack.c.h.b16 %v603
        %v2334 = vunpack.c.l.b16 %v604
        %v2335 = vunpack.c.h.b16 %v604
        %v2336 = vunpack.c.l.b16 %v605
        %v2337 = vunpack.c.h.b16 %v605
        %v2338 = vunpack.c.l.b16 %v606
        %v2339 = vunpack.c.h.b16 %v606
        %v2340 = vunpack.c.l.b16 %v607
        %v2341 = vunpack.c.h.b16 %v607
        %v2342 = vunpack.c.l.b16 %v608
        %v2343 = vunpack.c.h.b16 %v608
        %v2344 = vunpack.c.l.b16 %v609
        %v2345 = vunpack.c.h.b16 %v609
        %v2346 = vunpack.c.l.b16 %v610
        %v2347 = vunpack.c.h.b16 %v610
        %v2348 = vunpack.c.l.b16 %v611
        %v2349 = vunpack.c.h.b16 %v611
        %v2350 = vunpack.c.l.b16 %v612
        %v2351 = vunpack.c.h.b16 %v612
        %v2352 = vunpack.c.l.b16 %v613
        %v2353 = vunpack.c.h.b16 %v613
        %v2354 = vunpack.c.l.b16 %v614
        %v2355 = vunpack.c.h.b16 %v614
        %v2356 = vunpack.c.l.b16 %v615
        %v2357 = vunpack.c.h.b16 %v615
        %v2358 = vunpack.c.l.b16 %v616
        %v2359 = vunpack.c.h.b16 %v616
        %v2360 = vunpack.c.l.b16 %v617
        %v2361 = vunpack.c.h.b16 %v617
        %v2362 = vunpack.c.l.b16 %v618
        %v2363 = vunpack.c.h.b16 %v618
        %v2364 = vunpack.c.l.b16 %v619
        %v2365 = vunpack.c.h.b16 %v619
        %v2366 = vunpack.c.l.b16 %v620
        %v2367 = vunpack.c.h.b16 %v620
        %v2368 = vunpack.c.l.b16 %v621
        %v2369 = vunpack.c.h.b16 %v621
        %v2370 = vunpack.c.l.b16 %v622
        %v2371 = vunpack.c.h.b16 %v622
        %v2372 = vunpack.c.l.b16 %v623
        %v2373 = vunpack.c.h.b16 %v623
        %v2374 = vunpack.c.l.b16 %v624
        %v2375 = vunpack.c.h.b16 %v624
        %v2376 = vunpack.c.l.b16 %v625
        %v2377 = vunpack.c.h.b16 %v625
        %v2378 = vunpack.c.l.b16 %v626
        %v2379 = vunpack.c.h.b16 %v626
        %v2380 = vunpack.c.l.b16 %v627
        %v2381 = vunpack.c.h.b16 %v627
        %v2382 = vunpack.c.l.b16 %v628
        %v2383 = vunpack.c.h.b16 %v628
        %v2384 = vunpack.c.l.b16 %v629
        %v2385 = vunpack.c.h.b16 %v629
        %v2386 = vunpack.c.l.b16 %v630
        %v2387 = vunpack.c.h.b16 %v630
        %v2388 = vunpack.c.l.b16 %v631
        %v2389 = vunpack.c.h.b16 %v631
        %v2390 = vunpack.c.l.b16 %v632
        %v2391 = vunpack.c.h.b16 %v632
        %v2392 = vunpack.c.l.b16 %v633
        %v2393 = vunpack.c.h.b16 %v633
        %v2394 = vunpack.c.l.b16 %v634
        %v2395 = vunpack.c.h.b16 %v634
        %v2396 = vunpack.c.l.b16 %v635
        %v2397 = vunpack.c.h.b16 %v635
        %v2398 = vunpack.c.l.b16 %v636
        %v2399 = vunpack.c.h.b16 %v636
        %v2400 = vunpack.c.l.b16 %v637
        %v2401 = vunpack.c.h.b16 %v637
        %v2402 = vunpack.c.l.b16 %v638
        %v2403 = vunpack.c.h.b16 %v638
        %v2404 = vunpack.c.l.b16 %v639
        %v2405 = vunpack.c.h.b16 %v639
        %v2406 = vunpack.c.l.b16 %v640
        %v2407 = vunpack.c.h.b16 %v640
        %v2408 = vunpack.c.l.b16 %v641
        %v2409 = vunpack.c.h.b16 %v641
        %v2410 = vunpack.c.l.b16 %v642
        %v2411 = vunpack.c.h.b16 %v642
        %v2412 = vunpack.c.l.b16 %v643
        %v2413 = vunpack.c.h.b16 %v643
        %v2414 = vunpack.c.l.b16 %v644
        %v2415 = vunpack.c.h.b16 %v644
        %v2416 = vunpack.c.l.b16 %v645
        %v2417 = vunpack.c.h.b16 %v645
        %v2418 = vunpack.c.l.b16 %v646
        %v2419 = vunpack.c.h.b16 %v646
        %v2420 = vunpack.c.l.b16 %v647
        %v2421 = vunpack.c.h.b16 %v647
        %v2422 = vunpack.c.l.b16 %v648
        %v2423 = vunpack.c.h.b16 %v648
        %v2424 = vunpack.c.l.b16 %v649
        %v2425 = vunpack.c.h.b16 %v649
        %v2426 = vunpack.c.l.b16 %v650
        %v2427 = vunpack.c.h.b16 %v650
        %v2428 = vunpack.c.l.b16 %v651
        %v2429 = vunpack.c.h.b16 %v651
        %v2430 = vunpack.c.l.b16 %v652
        %v2431 = vunpack.c.h.b16 %v652
        %v2432 = vunpack.c.l.b16 %v653
        %v2433 = vunpack.c.h.b16 %v653
        %v2434 = vunpack.c.l.b16 %v654
        %v2435 = vunpack.c.h.b16 %v654
        %v2436 = vunpack.c.l.b16 %v655
        %v2437 = vunpack.c.h.b16 %v655
        %v2438 = vunpack.c.l.b16 %v656
        %v2439 = vunpack.c.h.b16 %v656
        %v2440 = vunpack.c.l.b16 %v657
        %v2441 = vunpack.c.h.b16 %v657
        %v2442 = vunpack.c.l.b16 %v658
        %v2443 = vunpack.c.h.b16 %v658
        %v2444 = vunpack.c.l.b16 %v659
        %v2445 = vunpack.c.h.b16 %v659
        %v2446 = vunpack.c.l.b16 %v660
        %v2447 = vunpack.c.h.b16 %v660
        %v2448 = vunpack.c.l.b16 %v661
        %v2449 = vunpack.c.h.b16 %v661
        %v2450 = vunpack.c.l.b16 %v662
        %v2451 = vunpack.c.h.b16 %v662
        %v2452 = vunpack.c.l.b16 %v663
        %v2453 = vunpack.c.h.b16 %v663
        %v2454 = vunpack.c.l.b16 %v664
        %v2455 = vunpack.c.h.b16 %v664
        %v2456 = vunpack.c.l.b16 %v665
        %v2457 = vunpack.c.h.b16 %v665
        %v2458 = vunpack.c.l.b16 %v666
        %v2459 = vunpack.c.h.b16 %v666
        %v2460 = vunpack.c.l.b16 %v667
        %v2461 = vunpack.c.h.b16 %v667
        %v2462 = vunpack.c.l.b16 %v668
        %v2463 = vunpack.c.h.b16 %v668
        %v2464 = vunpack.c.l.b16 %v669
        %v2465 = vunpack.c.h.b16 %v669
        %v2466 = vunpack.c.l.b16 %v670
        %v2467 = vunpack.c.h.b16 %v670
        %v2468 = vunpack.c.l.b16 %v671
        %v2469 = vunpack.c.h.b16 %v671
        %v2470 = vunpack.c.l.b16 %v672
        %v2471 = vunpack.c.h.b16 %v672
        %v2472 = vunpack.c.l.b16 %v673
        %v2473 = vunpack.c.h.b16 %v673
        %v2474 = vunpack.c.l.b16 %v674
        %v2475 = vunpack.c.h.b16 %v674
        %v2476 = vunpack.c.l.b16 %v675
        %v2477 = vunpack.c.h.b16 %v675
        %v2478 = vunpack.c.l.b16 %v676
        %v2479 = vunpack.c.h.b16 %v676
        %v2480 = vunpack.c.l.b16 %v677
        %v2481 = vunpack.c.h.b16 %v677
        %v2482 = vunpack.c.l.b16 %v678
        %v2483 = vunpack.c.h.b16 %v678
        %v2484 = vunpack.c.l.b16 %v679
        %v2485 = vunpack.c.h.b16 %v679
        %v2486 = vunpack.c.l.b16 %v680
        %v2487 = vunpack.c.h.b16 %v680
        %v2488 = vunpack.c.l.b16 %v681
        %v2489 = vunpack.c.h.b16 %v681
        %v2490 = vunpack.c.l.b16 %v682
        %v2491 = vunpack.c.h.b16 %v682
        %v2492 = vunpack.c.l.b16 %v683
        %v2493 = vunpack.c.h.b16 %v683
        %v2494 = vunpack.c.l.b16 %v684
        %v2495 = vunpack.c.h.b16 %v684
        %v2496 = vunpack.c.l.b16 %v685
        %v2497 = vunpack.c.h.b16 %v685
        %v2498 = vunpack.c.l.b16 %v686
        %v2499 = vunpack.c.h.b16 %v686
        %v2500 = vunpack.c.l.b16 %v687
        %v2501 = vunpack.c.h.b16 %v687
        %v2502 = vunpack.c.l.b16 %v688
        %v2503 = vunpack.c.h.b16 %v688
        %v2504 = vunpack.c.l.b16 %v689
        %v2505 = vunpack.c.h.b16 %v689
        %v2506 = vunpack.c.l.b16 %v690
        %v2507 = vunpack.c.h.b16 %v690
        %v2508 = vunpack.c.l.b16 %v691
        %v2509 = vunpack.c.h.b16 %v691
        %v2510 = vunpack.c.l.b16 %v692
        %v2511 = vunpack.c.h.b16 %v692
        %v2512 = vunpack.c.l.b16 %v693
        %v2513 = vunpack.c.h.b16 %v693
        %v2514 = vunpack.c.l.b16 %v694
        %v2515 = vunpack.c.h.b16 %v694
        %v2516 = vunpack.c.l.b16 %v695
        %v2517 = vunpack.c.h.b16 %v695
        %v2518 = vunpack.c.l.b16 %v696
        %v2519 = vunpack.c.h.b16 %v696
        %v2520 = vunpack.c.l.b16 %v697
        %v2521 = vunpack.c.h.b16 %v697
        %v2522 = vunpack.c.l.b16 %v698
        %v2523 = vunpack.c.h.b16 %v698
        %v2524 = vunpack.c.l.b16 %v699
        %v2525 = vunpack.c.h.b16 %v699
        %v2526 = vunpack.c.l.b16 %v700
        %v2527 = vunpack.c.h.b16 %v700
        %v2528 = vunpack.c.l.b16 %v701
        %v2529 = vunpack.c.h.b16 %v701
        %v2530 = vunpack.c.l.b16 %v702
        %v2531 = vunpack.c.h.b16 %v702
        %v2532 = vunpack.c.l.b16 %v703
        %v2533 = vunpack.c.h.b16 %v703
        %v2534 = vunpack.c.l.b16 %v704
        %v2535 = vunpack.c.h.b16 %v704
        %v2536 = vunpack.c.l.b16 %v705
        %v2537 = vunpack.c.h.b16 %v705
        %v2538 = vunpack.c.l.b16 %v706
        %v2539 = vunpack.c.h.b16 %v706
        %v2540 = vunpack.c.l.b16 %v707
        %v2541 = vunpack.c.h.b16 %v707
        %v2542 = vunpack.c.l.b16 %v708
        %v2543 = vunpack.c.h.b16 %v708
        %v2544 = vunpack.c.l.b16 %v709
        %v2545 = vunpack.c.h.b16 %v709
        %v2546 = vunpack.c.l.b16 %v710
        %v2547 = vunpack.c.h.b16 %v710
        %v2548 = vunpack.c.l.b16 %v711
        %v2549 = vunpack.c.h.b16 %v711
        %v2550 = vunpack.c.l.b16 %v712
        %v2551 = vunpack.c.h.b16 %v712
        %v2552 = vunpack.c.l.b16 %v713
        %v2553 = vunpack.c.h.b16 %v713
        %v2554 = vunpack.c.l.b16 %v714
        %v2555 = vunpack.c.h.b16 %v714
        %v2556 = vunpack.c.l.b16 %v715
        %v2557 = vunpack.c.h.b16 %v715
        %v2558 = vunpack.c.l.b16 %v716
        %v2559 = vunpack.c.h.b16 %v716
        %v2560 = vunpack.c.l.b16 %v717
        %v2561 = vunpack.c.h.b16 %v717
        %v2562 = vunpack.c.l.b16 %v718
        %v2563 = vunpack.c.h.b16 %v718
        %v2564 = vunpack.c.l.b16 %v719
        %v2565 = vunpack.c.h.b16 %v719
        %v2566 = vunpack.c.l.b16 %v720
        %v2567 = vunpack.c.h.b16 %v720
        %v2568 = vunpack.c.l.b16 %v721
        %v2569 = vunpack.c.h.b16 %v721
        %v2570 = vunpack.c.l.b16 %v722
        %v2571 = vunpack.c.h.b16 %v722
        %v2572 = vunpack.c.l.b16 %v723
        %v2573 = vunpack.c.h.b16 %v723
        %v2574 = vunpack.c.l.b16 %v724
        %v2575 = vunpack.c.h.b16 %v724
        %v2576 = vunpack.c.l.b16 %v725
        %v2577 = vunpack.c.h.b16 %v725
        %v2578 = vunpack.c.l.b16 %v726
        %v2579 = vunpack.c.h.b16 %v726
        %v2580 = vunpack.c.l.b16 %v727
        %v2581 = vunpack.c.h.b16 %v727
        %v2582 = vunpack.c.l.b16 %v728
        %v2583 = vunpack.c.h.b16 %v728
        %v2584 = vunpack.c.l.b16 %v729
        %v2585 = vunpack.c.h.b16 %v729
        %v2586 = vunpack.c.l.b16 %v730
        %v2587 = vunpack.c.h.b16 %v730
        %v2588 = vunpack.c.l.b16 %v731
        %v2589 = vunpack.c.h.b16 %v731
        %v2590 = vunpack.c.l.b16 %v732
        %v2591 = vunpack.c.h.b16 %v732
        %v2592 = vunpack.c.l.b16 %v733
        %v2593 = vunpack.c.h.b16 %v733
        %v2594 = vunpack.c.l.b16 %v734
        %v2595 = vunpack.c.h.b16 %v734
        %v2596 = vunpack.c.l.b16 %v735
        %v2597 = vunpack.c.h.b16 %v735
        %v2598 = vunpack.c.l.b16 %v736
        %v2599 = vunpack.c.h.b16 %v736
        %v2600 = vunpack.c.l.b16 %v737
        %v2601 = vunpack.c.h.b16 %v737
        %v2602 = vunpack.c.l.b16 %v738
        %v2603 = vunpack.c.h.b16 %v738
        %v2604 = vunpack.c.l.b16 %v739
        %v2605 = vunpack.c.h.b16 %v739
        %v2606 = vunpack.c.l.b16 %v740
        %v2607 = vunpack.c.h.b16 %v740
        %v2608 = vunpack.c.l.b16 %v741
        %v2609 = vunpack.c.h.b16 %v741
        %v2610 = vunpack.c.l.b16 %v742
        %v2611 = vunpack.c.h.b16 %v742
        %v2612 = vunpack.c.l.b16 %v743
        %v2613 = vunpack.c.h.b16 %v743
        %v2614 = vunpack.c.l.b16 %v744
        %v2615 = vunpack.c.h.b16 %v744
        %v2616 = vunpack.c.l.b16 %v745
        %v2617 = vunpack.c.h.b16 %v745
        %v2618 = vpack.c.b16 %v1658, %v1594
        %v2619 = vpack.c.b16 %v1659, %v1595
        %v2620 = vpack.c.b16 %v1660, %v1596
        %v2621 = vpack.c.b16 %v1661, %v1597
        %v2622 = vpack.c.b16 %v1662, %v1598
        %v2623 = vpack.c.b16 %v1663, %v1599
        %v2624 = vpack.c.b16 %v1664, %v1600
        %v2625 = vpack.c.b16 %v1665, %v1601
        %v2626 = vpack.c.b16 %v1666, %v1602
        %v2627 = vpack.c.b16 %v1667, %v1603
        %v2628 = vpack.c.b16 %v1668, %v1604
        %v2629 = vpack.c.b16 %v1669, %v1605
        %v2630 = vpack.c.b16 %v1670, %v1606
        %v2631 = vpack.c.b16 %v1671, %v1607
        %v2632 = vpack.c.b16 %v1672, %v1608
        %v2633 = vpack.c.b16 %v1673, %v1609
        %v2634 = vpack.c.b16 %v1674, %v1610
        %v2635 = vpack.c.b16 %v1675, %v1611
        %v2636 = vpack.c.b16 %v1676, %v1612
        %v2637 = vpack.c.b16 %v1677, %v1613
        %v2638 = vpack.c.b16 %v1678, %v1614
        %v2639 = vpack.c.b16 %v1679, %v1615
        %v2640 = vpack.c.b16 %v1680, %v1616
        %v2641 = vpack.c.b16 %v1681, %v1617
        %v2642 = vpack.c.b16 %v1682, %v1618
        %v2643 = vpack.c.b16 %v1683, %v1619
        %v2644 = vpack.c.b16 %v1684, %v1620
        %v2645 = vpack.c.b16 %v1685, %v1621
        %v2646 = vpack.c.b16 %v1686, %v1622
        %v2647 = vpack.c.b16 %v1687, %v1623
        %v2648 = vpack.c.b16 %v1688, %v1624
        %v2649 = vpack.c.b16 %v1689, %v1625
        %v2650 = vpack.c.b16 %v1690, %v1626
        %v2651 = vpack.c.b16 %v1691, %v1627
        %v2652 = vpack.c.b16 %v1692, %v1628
        %v2653 = vpack.c.b16 %v1693, %v1629
        %v2654 = vpack.c.b16 %v1694, %v1630
        %v2655 = vpack.c.b16 %v1695, %v1631
        %v2656 = vpack.c.b16 %v1696, %v1632
        %v2657 = vpack.c.b16 %v1697, %v1633
        %v2658 = vpack.c.b16 %v1698, %v1634
        %v2659 = vpack.c.b16 %v1699, %v1635
        %v2660 = vpack.c.b16 %v1700, %v1636
        %v2661 = vpack.c.b16 %v1701, %v1637
        %v2662 = vpack.c.b16 %v1702, %v1638
        %v2663 = vpack.c.b16 %v1703, %v1639
        %v2664 = vpack.c.b16 %v1704, %v1640
        %v2665 = vpack.c.b16 %v1705, %v1641
        %v2666 = vpack.c.b16 %v1706, %v1642
        %v2667 = vpack.c.b16 %v1707, %v1643
        %v2668 = vpack.c.b16 %v1708, %v1644
        %v2669 = vpack.c.b16 %v1709, %v1645
        %v2670 = vpack.c.b16 %v1710, %v1646
        %v2671 = vpack.c.b16 %v1711, %v1647
        %v2672 = vpack.c.b16 %v1712, %v1648
        %v2673 = vpack.c.b16 %v1713, %v1649
        %v2674 = vpack.c.b16 %v1714, %v1650
        %v2675 = vpack.c.b16 %v1715, %v1651
        %v2676 = vpack.c.b16 %v1716, %v1652
        %v2677 = vpack.c.b16 %v1717, %v1653
        %v2678 = vpack.c.b16 %v1718, %v1654
        %v2679 = vpack.c.b16 %v1719, %v1655
        %v2680 = vpack.c.b16 %v1720, %v1656
        %v2681 = vpack.c.b16 %v1721, %v1657
        %v2682 = vpack.c.b16 %v1786, %v1722
        %v2683 = vpack.c.b16 %v1787, %v1723
        %v2684 = vpack.c.b16 %v1788, %v1724
        %v2685 = vpack.c.b16 %v1789, %v1725
        %v2686 = vpack.c.b16 %v1790, %v1726
        %v2687 = vpack.c.b16 %v1791, %v1727
        %v2688 = vpack.c.b16 %v1792, %v1728
        %v2689 = vpack.c.b16 %v1793, %v1729
        %v2690 = vpack.c.b16 %v1794, %v1730
        %v2691 = vpack.c.b16 %v1795, %v1731
        %v2692 = vpack.c.b16 %v1796, %v1732
        %v2693 = vpack.c.b16 %v1797, %v1733
        %v2694 = vpack.c.b16 %v1798, %v1734
        %v2695 = vpack.c.b16 %v1799, %v1735
        %v2696 = vpack.c.b16 %v1800, %v1736
        %v2697 = vpack.c.b16 %v1801, %v1737
        %v2698 = vpack.c.b16 %v1802, %v1738
        %v2699 = vpack.c.b16 %v1803, %v1739
        %v2700 = vpack.c.b16 %v1804, %v1740
        %v2701 = vpack.c.b16 %v1805, %v1741
        %v2702 = vpack.c.b16 %v1806, %v1742
        %v2703 = vpack.c.b16 %v1807, %v1743
        %v2704 = vpack.c.b16 %v1808, %v1744
        %v2705 = vpack.c.b16 %v1809, %v1745
        %v2706 = vpack.c.b16 %v1810, %v1746
        %v2707 = vpack.c.b16 %v1811, %v1747
        %v2708 = vpack.c.b16 %v1812, %v1748
        %v2709 = vpack.c.b16 %v1813, %v1749
        %v2710 = vpack.c.b16 %v1814, %v1750
        %v2711 = vpack.c.b16 %v1815, %v1751
        %v2712 = vpack.c.b16 %v1816, %v1752
        %v2713 = vpack.c.b16 %v1817, %v1753
        %v2714 = vpack.c.b16 %v1818, %v1754
        %v2715 = vpack.c.b16 %v1819, %v1755
        %v2716 = vpack.c.b16 %v1820, %v1756
        %v2717 = vpack.c.b16 %v1821, %v1757
        %v2718 = vpack.c.b16 %v1822, %v1758
        %v2719 = vpack.c.b16 %v1823, %v1759
        %v2720 = vpack.c.b16 %v1824, %v1760
        %v2721 = vpack.c.b16 %v1825, %v1761
        %v2722 = vpack.c.b16 %v1826, %v1762
        %v2723 = vpack.c.b16 %v1827, %v1763
        %v2724 = vpack.c.b16 %v1828, %v1764
        %v2725 = vpack.c.b16 %v1829, %v1765
        %v2726 = vpack.c.b16 %v1830, %v1766
        %v2727 = vpack.c.b16 %v1831, %v1767
        %v2728 = vpack.c.b16 %v1832, %v1768
        %v2729 = vpack.c.b16 %v1833, %v1769
        %v2730 = vpack.c.b16 %v1834, %v1770
        %v2731 = vpack.c.b16 %v1835, %v1771
        %v2732 = vpack.c.b16 %v1836, %v1772
        %v2733 = vpack.c.b16 %v1837, %v1773
        %v2734 = vpack.c.b16 %v1838, %v1774
        %v2735 = vpack.c.b16 %v1839, %v1775
        %v2736 = vpack.c.b16 %v1840, %v1776
        %v2737 = vpack.c.b16 %v1841, %v1777
        %v2738 = vpack.c.b16 %v1842, %v1778
        %v2739 = vpack.c.b16 %v1843, %v1779
        %v2740 = vpack.c.b16 %v1844, %v1780
        %v2741 = vpack.c.b16 %v1845, %v1781
        %v2742 = vpack.c.b16 %v1846, %v1782
        %v2743 = vpack.c.b16 %v1847, %v1783
        %v2744 = vpack.c.b16 %v1848, %v1784
        %v2745 = vpack.c.b16 %v1849, %v1785
        %v2746 = vpack.c.b16 %v1914, %v1850
        %v2747 = vpack.c.b16 %v1915, %v1851
        %v2748 = vpack.c.b16 %v1916, %v1852
        %v2749 = vpack.c.b16 %v1917, %v1853
        %v2750 = vpack.c.b16 %v1918, %v1854
        %v2751 = vpack.c.b16 %v1919, %v1855
        %v2752 = vpack.c.b16 %v1920, %v1856
        %v2753 = vpack.c.b16 %v1921, %v1857
        %v2754 = vpack.c.b16 %v1922, %v1858
        %v2755 = vpack.c.b16 %v1923, %v1859
        %v2756 = vpack.c.b16 %v1924, %v1860
        %v2757 = vpack.c.b16 %v1925, %v1861
        %v2758 = vpack.c.b16 %v1926, %v1862
        %v2759 = vpack.c.b16 %v1927, %v1863
        %v2760 = vpack.c.b16 %v1928, %v1864
        %v2761 = vpack.c.b16 %v1929, %v1865
        %v2762 = vpack.c.b16 %v1930, %v1866
        %v2763 = vpack.c.b16 %v1931, %v1867
        %v2764 = vpack.c.b16 %v1932, %v1868
        %v2765 = vpack.c.b16 %v1933, %v1869
        %v2766 = vpack.c.b16 %v1934, %v1870
        %v2767 = vpack.c.b16 %v1935, %v1871
        %v2768 = vpack.c.b16 %v1936, %v1872
        %v2769 = vpack.c.b16 %v1937, %v1873
        %v2770 = vpack.c.b16 %v1938, %v1874
        %v2771 = vpack.c.b16 %v1939, %v1875
        %v2772 = vpack.c.b16 %v1940, %v1876
        %v2773 = vpack.c.b16 %v1941, %v1877
        %v2774 = vpack.c.b16 %v1942, %v1878
        %v2775 = vpack.c.b16 %v1943, %v1879
        %v2776 = vpack.c.b16 %v1944, %v1880
        %v2777 = vpack.c.b16 %v1945, %v1881
        %v2778 = vpack.c.b16 %v1946, %v1882
        %v2779 = vpack.c.b16 %v1947, %v1883
        %v2780 = vpack.c.b16 %v1948, %v1884
        %v2781 = vpack.c.b16 %v1949, %v1885
        %v2782 = vpack.c.b16 %v1950, %v1886
        %v2783 = vpack.c.b16 %v1951, %v1887
        %v2784 = vpack.c.b16 %v1952, %v1888
        %v2785 = vpack.c.b16 %v1953, %v1889
        %v2786 = vpack.c.b16 %v1954, %v1890
        %v2787 = vpack.c.b16 %v1955, %v1891
        %v2788 = vpack.c.b16 %v1956, %v1892
        %v2789 = vpack.c.b16 %v1957, %v1893
        %v2790 = vpack.c.b16 %v1958, %v1894
        %v2791 = vpack.c.b16 %v1959, %v1895
        %v2792 = vpack.c.b16 %v1960, %v1896
        %v2793 = vpack.c.b16 %v1961, %v1897
        %v2794 = vpack.c.b16 %v1962, %v1898
        %v2795 = vpack.c.b16 %v1963, %v1899
        %v2796 = vpack.c.b16 %v1964, %v1900
        %v2797 = vpack.c.b16 %v1965, %v1901
        %v2798 = vpack.c.b16 %v1966, %v1902
        %v2799 = vpack.c.b16 %v1967, %v1903
        %v2800 = vpack.c.b16 %v1968, %v1904
        %v2801 = vpack.c.b16 %v1969, %v1905
        %v2802 = vpack.c.b16 %v1970, %v1906
        %v2803 = vpack.c.b16 %v1971, %v1907
        %v2804 = vpack.c.b16 %v1972, %v1908
        %v2805 = vpack.c.b16 %v1973, %v1909
        %v2806 = vpack.c.b16 %v1974, %v1910
        %v2807 = vpack.c.b16 %v1975, %v1911
        %v2808 = vpack.c.b16 %v1976, %v1912
        %v2809 = vpack.c.b16 %v1977, %v1913
        %v2810 = vpack.c.b16 %v2042, %v1978
        %v2811 = vpack.c.b16 %v2043, %v1979
        %v2812 = vpack.c.b16 %v2044, %v1980
        %v2813 = vpack.c.b16 %v2045, %v1981
        %v2814 = vpack.c.b16 %v2046, %v1982
        %v2815 = vpack.c.b16 %v2047, %v1983
        %v2816 = vpack.c.b16 %v2048, %v1984
        %v2817 = vpack.c.b16 %v2049, %v1985
        %v2818 = vpack.c.b16 %v2050, %v1986
        %v2819 = vpack.c.b16 %v2051, %v1987
        %v2820 = vpack.c.b16 %v2052, %v1988
        %v2821 = vpack.c.b16 %v2053, %v1989
        %v2822 = vpack.c.b16 %v2054, %v1990
        %v2823 = vpack.c.b16 %v2055, %v1991
        %v2824 = vpack.c.b16 %v2056, %v1992
        %v2825 = vpack.c.b16 %v2057, %v1993
        %v2826 = vpack.c.b16 %v2058, %v1994
        %v2827 = vpack.c.b16 %v2059, %v1995
        %v2828 = vpack.c.b16 %v2060, %v1996
        %v2829 = vpack.c.b16 %v2061, %v1997
        %v2830 = vpack.c.b16 %v2062, %v1998
        %v2831 = vpack.c.b16 %v2063, %v1999
        %v2832 = vpack.c.b16 %v2064, %v2000
        %v2833 = vpack.c.b16 %v2065, %v2001
        %v2834 = vpack.c.b16 %v2066, %v2002
        %v2835 = vpack.c.b16 %v2067, %v2003
        %v2836 = vpack.c.b16 %v2068, %v2004
        %v2837 = vpack.c.b16 %v2069, %v2005
        %v2838 = vpack.c.b16 %v2070, %v2006
        %v2839 = vpack.c.b16 %v2071, %v2007
        %v2840 = vpack.c.b16 %v2072, %v2008
        %v2841 = vpack.c.b16 %v2073, %v2009
        %v2842 = vpack.c.b16 %v2074, %v2010
        %v2843 = vpack.c.b16 %v2075, %v2011
        %v2844 = vpack.c.b16 %v2076, %v2012
        %v2845 = vpack.c.b16 %v2077, %v2013
        %v2846 = vpack.c.b16 %v2078, %v2014
        %v2847 = vpack.c.b16 %v2079, %v2015
        %v2848 = vpack.c.b16 %v2080, %v2016
        %v2849 = vpack.c.b16 %v2081, %v2017
        %v2850 = vpack.c.b16 %v2082, %v2018
        %v2851 = vpack.c.b16 %v2083, %v2019
        %v2852 = vpack.c.b16 %v2084, %v2020
        %v2853 = vpack.c.b16 %v2085, %v2021
        %v2854 = vpack.c.b16 %v2086, %v2022
        %v2855 = vpack.c.b16 %v2087, %v2023
        %v2856 = vpack.c.b16 %v2088, %v2024
        %v2857 = vpack.c.b16 %v2089, %v2025
        %v2858 = vpack.c.b16 %v2090, %v2026
        %v2859 = vpack.c.b16 %v2091, %v2027
        %v2860 = vpack.c.b16 %v2092, %v2028
        %v2861 = vpack.c.b16 %v2093, %v2029
        %v2862 = vpack.c.b16 %v2094, %v2030
        %v2863 = vpack.c.b16 %v2095, %v2031
        %v2864 = vpack.c.b16 %v2096, %v2032
        %v2865 = vpack.c.b16 %v2097, %v2033
        %v2866 = vpack.c.b16 %v2098, %v2034
        %v2867 = vpack.c.b16 %v2099, %v2035
        %v2868 = vpack.c.b16 %v2100, %v2036
        %v2869 = vpack.c.b16 %v2101, %v2037
        %v2870 = vpack.c.b16 %v2102, %v2038
        %v2871 = vpack.c.b16 %v2103, %v2039
        %v2872 = vpack.c.b16 %v2104, %v2040
        %v2873 = vpack.c.b16 %v2105, %v2041
        %v2874 = vpack.c.b16 %v2170, %v2106
        %v2875 = vpack.c.b16 %v2171, %v2107
        %v2876 = vpack.c.b16 %v2172, %v2108
        %v2877 = vpack.c.b16 %v2173, %v2109
        %v2878 = vpack.c.b16 %v2174, %v2110
        %v2879 = vpack.c.b16 %v2175, %v2111
        %v2880 = vpack.c.b16 %v2176, %v2112
        %v2881 = vpack.c.b16 %v2177, %v2113
        %v2882 = vpack.c.b16 %v2178, %v2114
        %v2883 = vpack.c.b16 %v2179, %v2115
        %v2884 = vpack.c.b16 %v2180, %v2116
        %v2885 = vpack.c.b16 %v2181, %v2117
        %v2886 = vpack.c.b16 %v2182, %v2118
        %v2887 = vpack.c.b16 %v2183, %v2119
        %v2888 = vpack.c.b16 %v2184, %v2120
        %v2889 = vpack.c.b16 %v2185, %v2121
        %v2890 = vpack.c.b16 %v2186, %v2122
        %v2891 = vpack.c.b16 %v2187, %v2123
        %v2892 = vpack.c.b16 %v2188, %v2124
        %v2893 = vpack.c.b16 %v2189, %v2125
        %v2894 = vpack.c.b16 %v2190, %v2126
        %v2895 = vpack.c.b16 %v2191, %v2127
        %v2896 = vpack.c.b16 %v2192, %v2128
        %v2897 = vpack.c.b16 %v2193, %v2129
        %v2898 = vpack.c.b16 %v2194, %v2130
        %v2899 = vpack.c.b16 %v2195, %v2131
        %v2900 = vpack.c.b16 %v2196, %v2132
        %v2901 = vpack.c.b16 %v2197, %v2133
        %v2902 = vpack.c.b16 %v2198, %v2134
        %v2903 = vpack.c.b16 %v2199, %v2135
        %v2904 = vpack.c.b16 %v2200, %v2136
        %v2905 = vpack.c.b16 %v2201, %v2137
        %v2906 = vpack.c.b16 %v2202, %v2138
        %v2907 = vpack.c.b16 %v2203, %v2139
        %v2908 = vpack.c.b16 %v2204, %v2140
        %v2909 = vpack.c.b16 %v2205, %v2141
        %v2910 = vpack.c.b16 %v2206, %v2142
        %v2911 = vpack.c.b16 %v2207, %v2143
        %v2912 = vpack.c.b16 %v2208, %v2144
        %v2913 = vpack.c.b16 %v2209, %v2145
        %v2914 = vpack.c.b16 %v2210, %v2146
        %v2915 = vpack.c.b16 %v2211, %v2147
        %v2916 = vpack.c.b16 %v2212, %v2148
        %v2917 = vpack.c.b16 %v2213, %v2149
        %v2918 = vpack.c.b16 %v2214, %v2150
        %v2919 = vpack.c.b16 %v2215, %v2151
        %v2920 = vpack.c.b16 %v2216, %v2152
        %v2921 = vpack.c.b16 %v2217, %v2153
        %v2922 = vpack.c.b16 %v2218, %v2154
        %v2923 = vpack.c.b16 %v2219, %v2155
        %v2924 = vpack.c.b16 %v2220, %v2156
        %v2925 = vpack.c.b16 %v2221, %v2157
        %v2926 = vpack.c.b16 %v2222, %v2158
        %v2927 = vpack.c.b16 %v2223, %v2159
        %v2928 = vpack.c.b16 %v2224, %v2160
        %v2929 = vpack.c.b16 %v2225, %v2161
        %v2930 = vpack.c.b16 %v2226, %v2162
        %v2931 = vpack.c.b16 %v2227, %v2163
        %v2932 = vpack.c.b16 %v2228, %v2164
        %v2933 = vpack.c.b16 %v2229, %v2165
        %v2934 = vpack.c.b16 %v2230, %v2166
        %v2935 = vpack.c.b16 %v2231, %v2167
        %v2936 = vpack.c.b16 %v2232, %v2168
        %v2937 = vpack.c.b16 %v2233, %v2169
        %v2938 = vpack.c.b16 %v2298, %v2234
        %v2939 = vpack.c.b16 %v2299, %v2235
        %v2940 = vpack.c.b16 %v2300, %v2236
        %v2941 = vpack.c.b16 %v2301, %v2237
        %v2942 = vpack.c.b16 %v2302, %v2238
        %v2943 = vpack.c.b16 %v2303, %v2239
        %v2944 = vpack.c.b16 %v2304, %v2240
        %v2945 = vpack.c.b16 %v2305, %v2241
        %v2946 = vpack.c.b16 %v2306, %v2242
        %v2947 = vpack.c.b16 %v2307, %v2243
        %v2948 = vpack.c.b16 %v2308, %v2244
        %v2949 = vpack.c.b16 %v2309, %v2245
        %v2950 = vpack.c.b16 %v2310, %v2246
        %v2951 = vpack.c.b16 %v2311, %v2247
        %v2952 = vpack.c.b16 %v2312, %v2248
        %v2953 = vpack.c.b16 %v2313, %v2249
        %v2954 = vpack.c.b16 %v2314, %v2250
        %v2955 = vpack.c.b16 %v2315, %v2251
        %v2956 = vpack.c.b16 %v2316, %v2252
        %v2957 = vpack.c.b16 %v2317, %v2253
        %v2958 = vpack.c.b16 %v2318, %v2254
        %v2959 = vpack.c.b16 %v2319, %v2255
        %v2960 = vpack.c.b16 %v2320, %v2256
        %v2961 = vpack.c.b16 %v2321, %v2257
        %v2962 = vpack.c.b16 %v2322, %v2258
        %v2963 = vpack.c.b16 %v2323, %v2259
        %v2964 = vpack.c.b16 %v2324, %v2260
        %v2965 = vpack.c.b16 %v2325, %v2261
        %v2966 = vpack.c.b16 %v2326, %v2262
        %v2967 = vpack.c.b16 %v2327, %v2263
        %v2968 = vpack.c.b16 %v2328, %v2264
        %v2969 = vpack.c.b16 %v2329, %v2265
        %v2970 = vpack.c.b16 %v2330, %v2266
        %v2971 = vpack.c.b16 %v2331, %v2267
        %v2972 = vpack.c.b16 %v2332, %v2268
        %v2973 = vpack.c.b16 %v2333, %v2269
        %v2974 = vpack.c.b16 %v2334, %v2270
        %v2975 = vpack.c.b16 %v2335, %v2271
        %v2976 = vpack.c.b16 %v2336, %v2272
        %v2977 = vpack.c.b16 %v2337, %v2273
        %v2978 = vpack.c.b16 %v2338, %v2274
        %v2979 = vpack.c.b16 %v2339, %v2275
        %v2980 = vpack.c.b16 %v2340, %v2276
        %v2981 = vpack.c.b16 %v2341, %v2277
        %v2982 = vpack.c.b16 %v2342, %v2278
        %v2983 = vpack.c.b16 %v2343, %v2279
        %v2984 = vpack.c.b16 %v2344, %v2280
        %v2985 = vpack.c.b16 %v2345, %v2281
        %v2986 = vpack.c.b16 %v2346, %v2282
        %v2987 = vpack.c.b16 %v2347, %v2283
        %v2988 = vpack.c.b16 %v2348, %v2284
        %v2989 = vpack.c.b16 %v2349, %v2285
        %v2990 = vpack.c.b16 %v2350, %v2286
        %v2991 = vpack.c.b16 %v2351, %v2287
        %v2992 = vpack.c.b16 %v2352, %v2288
        %v2993 = vpack.c.b16 %v2353, %v2289
        %v2994 = vpack.c.b16 %v2354, %v2290
        %v2995 = vpack.c.b16 %v2355, %v2291
        %v2996 = vpack.c.b16 %v2356, %v2292
        %v2997 = vpack.c.b16 %v2357, %v2293
        %v2998 = vpack.c.b16 %v2358, %v2294
        %v2999 = vpack.c.b16 %v2359, %v2295
        %v3000 = vpack.c.b16 %v2360, %v2296
        %v3001 = vpack.c.b16 %v2361, %v2297
        %v3002 = vpack.c.b16 %v2426, %v2362
        %v3003 = vpack.c.b16 %v2427, %v2363
        %v3004 = vpack.c.b16 %v2428, %v2364
        %v3005 = vpack.c.b16 %v2429, %v2365
        %v3006 = vpack.c.b16 %v2430, %v2366
        %v3007 = vpack.c.b16 %v2431, %v2367
        %v3008 = vpack.c.b16 %v2432, %v2368
        %v3009 = vpack.c.b16 %v2433, %v2369
        %v3010 = vpack.c.b16 %v2434, %v2370
        %v3011 = vpack.c.b16 %v2435, %v2371
        %v3012 = vpack.c.b16 %v2436, %v2372
        %v3013 = vpack.c.b16 %v2437, %v2373
        %v3014 = vpack.c.b16 %v2438, %v2374
        %v3015 = vpack.c.b16 %v2439, %v2375
        %v3016 = vpack.c.b16 %v2440, %v2376
        %v3017 = vpack.c.b16 %v2441, %v2377
        %v3018 = vpack.c.b16 %v2442, %v2378
        %v3019 = vpack.c.b16 %v2443, %v2379
        %v3020 = vpack.c.b16 %v2444, %v2380
        %v3021 = vpack.c.b16 %v2445, %v2381
        %v3022 = vpack.c.b16 %v2446, %v2382
        %v3023 = vpack.c.b16 %v2447, %v2383
        %v3024 = vpack.c.b16 %v2448, %v2384
        %v3025 = vpack.c.b16 %v2449, %v2385
        %v3026 = vpack.c.b16 %v2450, %v2386
        %v3027 = vpack.c.b16 %v2451, %v2387
        %v3028 = vpack.c.b16 %v2452, %v2388
        %v3029 = vpack.c.b16 %v2453, %v2389
        %v3030 = vpack.c.b16 %v2454, %v2390
        %v3031 = vpack.c.b16 %v2455, %v2391
        %v3032 = vpack.c.b16 %v2456, %v2392
        %v3033 = vpack.c.b16 %v2457, %v2393
        %v3034 = vpack.c.b16 %v2458, %v2394
        %v3035 = vpack.c.b16 %v2459, %v2395
        %v3036 = vpack.c.b16 %v2460, %v2396
        %v3037 = vpack.c.b16 %v2461, %v2397
        %v3038 = vpack.c.b16 %v2462, %v2398
        %v3039 = vpack.c.b16 %v2463, %v2399
        %v3040 = vpack.c.b16 %v2464, %v2400
        %v3041 = vpack.c.b16 %v2465, %v2401
        %v3042 = vpack.c.b16 %v2466, %v2402
        %v3043 = vpack.c.b16 %v2467, %v2403
        %v3044 = vpack.c.b16 %v2468, %v2404
        %v3045 = vpack.c.b16 %v2469, %v2405
        %v3046 = vpack.c.b16 %v2470, %v2406
        %v3047 = vpack.c.b16 %v2471, %v2407
        %v3048 = vpack.c.b16 %v2472, %v2408
        %v3049 = vpack.c.b16 %v2473, %v2409
        %v3050 = vpack.c.b16 %v2474, %v2410
        %v3051 = vpack.c.b16 %v2475, %v2411
        %v3052 = vpack.c.b16 %v2476, %v2412
        %v3053 = vpack.c.b16 %v2477, %v2413
        %v3054 = vpack.c.b16 %v2478, %v2414
        %v3055 = vpack.c.b16 %v2479, %v2415
        %v3056 = vpack.c.b16 %v2480, %v2416
        %v3057 = vpack.c.b16 %v2481, %v2417
        %v3058 = vpack.c.b16 %v2482, %v2418
        %v3059 = vpack.c.b16 %v2483, %v2419
        %v3060 = vpack.c.b16 %v2484, %v2420
        %v3061 = vpack.c.b16 %v2485, %v2421
        %v3062 = vpack.c.b16 %v2486, %v2422
        %v3063 = vpack.c.b16 %v2487, %v2423
        %v3064 = vpack.c.b16 %v2488, %v2424
        %v3065 = vpack.c.b16 %v2489, %v2425
        %v3066 = vpack.c.b16 %v2554, %v2490
        %v3067 = vpack.c.b16 %v2555, %v2491
        %v3068 = vpack.c.b16 %v2556, %v2492
        %v3069 = vpack.c.b16 %v2557, %v2493
        %v3070 = vpack.c.b16 %v2558, %v2494
        %v3071 = vpack.c.b16 %v2559, %v2495
        %v3072 = vpack.c.b16 %v2560, %v2496
        %v3073 = vpack.c.b16 %v2561, %v2497
        %v3074 = vpack.c.b16 %v2562, %v2498
        %v3075 = vpack.c.b16 %v2563, %v2499
        %v3076 = vpack.c.b16 %v2564, %v2500
        %v3077 = vpack.c.b16 %v2565, %v2501
        %v3078 = vpack.c.b16 %v2566, %v2502
        %v3079 = vpack.c.b16 %v2567, %v2503
        %v3080 = vpack.c.b16 %v2568, %v2504
        %v3081 = vpack.c.b16 %v2569, %v2505
        %v3082 = vpack.c.b16 %v2570, %v2506
        %v3083 = vpack.c.b16 %v2571, %v2507
        %v3084 = vpack.c.b16 %v2572, %v2508
        %v3085 = vpack.c.b16 %v2573, %v2509
        %v3086 = vpack.c.b16 %v2574, %v2510
        %v3087 = vpack.c.b16 %v2575, %v2511
        %v3088 = vpack.c.b16 %v2576, %v2512
        %v3089 = vpack.c.b16 %v2577, %v2513
        %v3090 = vpack.c.b16 %v2578, %v2514
        %v3091 = vpack.c.b16 %v2579, %v2515
        %v3092 = vpack.c.b16 %v2580, %v2516
        %v3093 = vpack.c.b16 %v2581, %v2517
        %v3094 = vpack.c.b16 %v2582, %v2518
        %v3095 = vpack.c.b16 %v2583, %v2519
        %v3096 = vpack.c.b16 %v2584, %v2520
        %v3097 = vpack.c.b16 %v2585, %v2521
        %v3098 = vpack.c.b16 %v2586, %v2522
        %v3099 = vpack.c.b16 %v2587, %v2523
        %v3100 = vpack.c.b16 %v2588, %v2524
        %v3101 = vpack.c.b16 %v2589, %v2525
        %v3102 = vpack.c.b16 %v2590, %v2526
        %v3103 = vpack.c.b16 %v2591, %v2527
        %v3104 = vpack.c.b16 %v2592, %v2528
        %v3105 = vpack.c.b16 %v2593, %v2529
        %v3106 = vpack.c.b16 %v2594, %v2530
        %v3107 = vpack.c.b16 %v2595, %v2531
        %v3108 = vpack.c.b16 %v2596, %v2532
        %v3109 = vpack.c.b16 %v2597, %v2533
        %v3110 = vpack.c.b16 %v2598, %v2534
        %v3111 = vpack.c.b16 %v2599, %v2535
        %v3112 = vpack.c.b16 %v2600, %v2536
        %v3113 = vpack.c.b16 %v2601, %v2537
        %v3114 = vpack.c.b16 %v2602, %v2538
        %v3115 = vpack.c.b16 %v2603, %v2539
        %v3116 = vpack.c.b16 %v2604, %v2540
        %v3117 = vpack.c.b16 %v2605, %v2541
        %v3118 = vpack.c.b16 %v2606, %v2542
        %v3119 = vpack.c.b16 %v2607, %v2543
        %v3120 = vpack.c.b16 %v2608, %v2544
        %v3121 = vpack.c.b16 %v2609, %v2545
        %v3122 = vpack.c.b16 %v2610, %v2546
        %v3123 = vpack.c.b16 %v2611, %v2547
        %v3124 = vpack.c.b16 %v2612, %v2548
        %v3125 = vpack.c.b16 %v2613, %v2549
        %v3126 = vpack.c.b16 %v2614, %v2550
        %v3127 = vpack.c.b16 %v2615, %v2551
        %v3128 = vpack.c.b16 %v2616, %v2552
        %v3129 = vpack.c.b16 %v2617, %v2553
        %3642 = vmatprep.subr.bf16.mxu0 %v3067
        %3643 = vmatpush1.bf16.msra.mxu0 %v3066
        %3644 = vmatprep.subr.bf16.mxu0 %v3003
        %3645 = vmatpush1.bf16.msra.mxu0 %v3002
        %3646 = vmatprep.subr.bf16.mxu0 %v2939
        %3647 = vmatpush1.bf16.msra.mxu0 %v2938
        %3648 = vmatprep.subr.bf16.mxu0 %v2875
        %3649 = vmatpush1.bf16.msra.mxu0 %v2874
        %3650 = vmatprep.subr.bf16.mxu0 %v2811
        %3651 = vmatpush1.bf16.msra.mxu0 %v2810
        %3652 = vmatprep.subr.bf16.mxu0 %v2747
        %3653 = vmatpush1.bf16.msra.mxu0 %v2746
        %3654 = vmatprep.subr.bf16.mxu0 %v2683
        %3655 = vmatpush1.bf16.msra.mxu0 %v2682
        %3656 = vmatprep.subr.bf16.mxu0 %v2619
        %3657 = vmatpush1.bf16.msra.mxu0 %v2618
        %3658 = vmatprep.subr.bf16.mxu0 0
        %3659 = vmatpush2.bf16.msra.mxu0 0
        %3660 = vmatprep.subr.bf16.mxu0 0
        %3661 = vmatpush2.bf16.msra.mxu0 0
        %3662 = vmatprep.subr.bf16.mxu0 0
        %3663 = vmatpush2.bf16.msra.mxu0 0
        %3664 = vmatprep.subr.bf16.mxu0 0
        %3665 = vmatpush2.bf16.msra.mxu0 0
        %3666 = vmatprep.subr.bf16.mxu0 0
        %3667 = vmatpush2.bf16.msra.mxu0 0
        %3668 = vmatprep.subr.bf16.mxu0 0
        %3669 = vmatpush2.bf16.msra.mxu0 0
        %3670 = vmatprep.subr.bf16.mxu0 0
        %3671 = vmatpush2.bf16.msra.mxu0 0
        %3672 = vmatprep.subr.bf16.mxu0 0
        %3673 = vmatpush2.bf16.msra.mxu0 0
        %3674 = vmatprep.mubr.bf16.mxu0 0
        %3675 = vmatmul.mubr.bf16.gmra.mxu0 %v233
        %v3676 = vpop.f32.mrf.mxu0
        %v3677 = vadd.f32 %v765, %v3676
        %v3678 = vpop.f32.mrf.mxu0
        %v3679 = vadd.f32 %v769, %v3678
        %v3680 = vpop.f32.mrf.mxu0
        %v3681 = vpop.f32.mrf.mxu0
        %3682 = vdwg.mxu0
        %3683 = vmatprep.subr.bf16.mxu0 %v3069
        %3684 = vmatpush1.bf16.msra.mxu0 %v3068
        %3685 = vmatprep.subr.bf16.mxu0 %v3005
        %3686 = vmatpush1.bf16.msra.mxu0 %v3004
        %3687 = vmatprep.subr.bf16.mxu0 %v2941
        %3688 = vmatpush1.bf16.msra.mxu0 %v2940
        %3689 = vmatprep.subr.bf16.mxu0 %v2877
        %3690 = vmatpush1.bf16.msra.mxu0 %v2876
        %3691 = vmatprep.subr.bf16.mxu0 %v2813
        %3692 = vmatpush1.bf16.msra.mxu0 %v2812
        %3693 = vmatprep.subr.bf16.mxu0 %v2749
        %3694 = vmatpush1.bf16.msra.mxu0 %v2748
        %3695 = vmatprep.subr.bf16.mxu0 %v2685
        %3696 = vmatpush1.bf16.msra.mxu0 %v2684
        %3697 = vmatprep.subr.bf16.mxu0 %v2621
        %3698 = vmatpush1.bf16.msra.mxu0 %v2620
        %3699 = vmatprep.subr.bf16.mxu0 0
        %3700 = vmatpush2.bf16.msra.mxu0 0
        %3701 = vmatprep.subr.bf16.mxu0 0
        %3702 = vmatpush2.bf16.msra.mxu0 0
        %3703 = vmatprep.subr.bf16.mxu0 0
        %3704 = vmatpush2.bf16.msra.mxu0 0
        %3705 = vmatprep.subr.bf16.mxu0 0
        %3706 = vmatpush2.bf16.msra.mxu0 0
        %3707 = vmatprep.subr.bf16.mxu0 0
        %3708 = vmatpush2.bf16.msra.mxu0 0
        %3709 = vmatprep.subr.bf16.mxu0 0
        %3710 = vmatpush2.bf16.msra.mxu0 0
        %3711 = vmatprep.subr.bf16.mxu0 0
        %3712 = vmatpush2.bf16.msra.mxu0 0
        %3713 = vmatprep.subr.bf16.mxu0 0
        %3714 = vmatpush2.bf16.msra.mxu0 0
        %3715 = vmatprep.mubr.bf16.mxu0 0
        %3716 = vmatmul.mubr.bf16.gmra.mxu0 %v233
        %v3717 = vpop.f32.mrf.mxu0
        %v3718 = vadd.f32 %v773, %v3717
        %v3719 = vpop.f32.mrf.mxu0
        %v3720 = vadd.f32 %v777, %v3719
        %v3721 = vpop.f32.mrf.mxu0
        %v3722 = vpop.f32.mrf.mxu0
        %3723 = vdwg.mxu0
        %3724 = vmatprep.subr.bf16.mxu0 %v3071
        %3725 = vmatpush1.bf16.msra.mxu0 %v3070
        %3726 = vmatprep.subr.bf16.mxu0 %v3007
        %3727 = vmatpush1.bf16.msra.mxu0 %v3006
        %3728 = vmatprep.subr.bf16.mxu0 %v2943
        %3729 = vmatpush1.bf16.msra.mxu0 %v2942
        %3730 = vmatprep.subr.bf16.mxu0 %v2879
        %3731 = vmatpush1.bf16.msra.mxu0 %v2878
        %3732 = vmatprep.subr.bf16.mxu0 %v2815
        %3733 = vmatpush1.bf16.msra.mxu0 %v2814
        %3734 = vmatprep.subr.bf16.mxu0 %v2751
        %3735 = vmatpush1.bf16.msra.mxu0 %v2750
        %3736 = vmatprep.subr.bf16.mxu0 %v2687
        %3737 = vmatpush1.bf16.msra.mxu0 %v2686
        %3738 = vmatprep.subr.bf16.mxu0 %v2623
        %3739 = vmatpush1.bf16.msra.mxu0 %v2622
        %3740 = vmatprep.subr.bf16.mxu0 0
        %3741 = vmatpush2.bf16.msra.mxu0 0
        %3742 = vmatprep.subr.bf16.mxu0 0
        %3743 = vmatpush2.bf16.msra.mxu0 0
        %3744 = vmatprep.subr.bf16.mxu0 0
        %3745 = vmatpush2.bf16.msra.mxu0 0
        %3746 = vmatprep.subr.bf16.mxu0 0
        %3747 = vmatpush2.bf16.msra.mxu0 0
        %3748 = vmatprep.subr.bf16.mxu0 0
        %3749 = vmatpush2.bf16.msra.mxu0 0
        %3750 = vmatprep.subr.bf16.mxu0 0
        %3751 = vmatpush2.bf16.msra.mxu0 0
        %3752 = vmatprep.subr.bf16.mxu0 0
        %3753 = vmatpush2.bf16.msra.mxu0 0
        %3754 = vmatprep.subr.bf16.mxu0 0
        %3755 = vmatpush2.bf16.msra.mxu0 0
        %3756 = vmatprep.mubr.bf16.mxu0 0
        %3757 = vmatmul.mubr.bf16.gmra.mxu0 %v233
        %v3758 = vpop.f32.mrf.mxu0
        %v3759 = vadd.f32 %v781, %v3758
        %v3760 = vpop.f32.mrf.mxu0
        %v3761 = vadd.f32 %v785, %v3760
        %v3762 = vpop.f32.mrf.mxu0
        %v3763 = vpop.f32.mrf.mxu0
        %3764 = vdwg.mxu0
        %3765 = vmatprep.subr.bf16.mxu0 %v3073
        %3766 = vmatpush1.bf16.msra.mxu0 %v3072
        %3767 = vmatprep.subr.bf16.mxu0 %v3009
        %3768 = vmatpush1.bf16.msra.mxu0 %v3008
        %3769 = vmatprep.subr.bf16.mxu0 %v2945
        %3770 = vmatpush1.bf16.msra.mxu0 %v2944
        %3771 = vmatprep.subr.bf16.mxu0 %v2881
        %3772 = vmatpush1.bf16.msra.mxu0 %v2880
        %3773 = vmatprep.subr.bf16.mxu0 %v2817
        %3774 = vmatpush1.bf16.msra.mxu0 %v2816
        %3775 = vmatprep.subr.bf16.mxu0 %v2753
        %3776 = vmatpush1.bf16.msra.mxu0 %v2752
        %3777 = vmatprep.subr.bf16.mxu0 %v2689
        %3778 = vmatpush1.bf16.msra.mxu0 %v2688
        %3779 = vmatprep.subr.bf16.mxu0 %v2625
        %3780 = vmatpush1.bf16.msra.mxu0 %v2624
        %3781 = vmatprep.subr.bf16.mxu0 0
        %3782 = vmatpush2.bf16.msra.mxu0 0
        %3783 = vmatprep.subr.bf16.mxu0 0
        %3784 = vmatpush2.bf16.msra.mxu0 0
        %3785 = vmatprep.subr.bf16.mxu0 0
        %3786 = vmatpush2.bf16.msra.mxu0 0
        %3787 = vmatprep.subr.bf16.mxu0 0
        %3788 = vmatpush2.bf16.msra.mxu0 0
        %3789 = vmatprep.subr.bf16.mxu0 0
        %3790 = vmatpush2.bf16.msra.mxu0 0
        %3791 = vmatprep.subr.bf16.mxu0 0
        %3792 = vmatpush2.bf16.msra.mxu0 0
        %3793 = vmatprep.subr.bf16.mxu0 0
        %3794 = vmatpush2.bf16.msra.mxu0 0
        %3795 = vmatprep.subr.bf16.mxu0 0
        %3796 = vmatpush2.bf16.msra.mxu0 0
        %3797 = vmatprep.mubr.bf16.mxu0 0
        %3798 = vmatmul.mubr.bf16.gmra.mxu0 %v233
        %v3799 = vpop.f32.mrf.mxu0
        %v3800 = vadd.f32 %v789, %v3799
        %v3801 = vpop.f32.mrf.mxu0
        %v3802 = vadd.f32 %v793, %v3801
        %v3803 = vpop.f32.mrf.mxu0
        %v3804 = vpop.f32.mrf.mxu0
        %3805 = vdwg.mxu0
        %3806 = vmatprep.subr.bf16.mxu0 %v3075
        %3807 = vmatpush1.bf16.msra.mxu0 %v3074
        %3808 = vmatprep.subr.bf16.mxu0 %v3011
        %3809 = vmatpush1.bf16.msra.mxu0 %v3010
        %3810 = vmatprep.subr.bf16.mxu0 %v2947
        %3811 = vmatpush1.bf16.msra.mxu0 %v2946
        %3812 = vmatprep.subr.bf16.mxu0 %v2883
        %3813 = vmatpush1.bf16.msra.mxu0 %v2882
        %3814 = vmatprep.subr.bf16.mxu0 %v2819
        %3815 = vmatpush1.bf16.msra.mxu0 %v2818
        %3816 = vmatprep.subr.bf16.mxu0 %v2755
        %3817 = vmatpush1.bf16.msra.mxu0 %v2754
        %3818 = vmatprep.subr.bf16.mxu0 %v2691
        %3819 = vmatpush1.bf16.msra.mxu0 %v2690
        %3820 = vmatprep.subr.bf16.mxu0 %v2627
        %3821 = vmatpush1.bf16.msra.mxu0 %v2626
        %3822 = vmatprep.subr.bf16.mxu0 0
        %3823 = vmatpush2.bf16.msra.mxu0 0
        %3824 = vmatprep.subr.bf16.mxu0 0
        %3825 = vmatpush2.bf16.msra.mxu0 0
        %3826 = vmatprep.subr.bf16.mxu0 0
        %3827 = vmatpush2.bf16.msra.mxu0 0
        %3828 = vmatprep.subr.bf16.mxu0 0
        %3829 = vmatpush2.bf16.msra.mxu0 0
        %3830 = vmatprep.subr.bf16.mxu0 0
        %3831 = vmatpush2.bf16.msra.mxu0 0
        %3832 = vmatprep.subr.bf16.mxu0 0
        %3833 = vmatpush2.bf16.msra.mxu0 0
        %3834 = vmatprep.subr.bf16.mxu0 0
        %3835 = vmatpush2.bf16.msra.mxu0 0
        %3836 = vmatprep.subr.bf16.mxu0 0
        %3837 = vmatpush2.bf16.msra.mxu0 0
        %3838 = vmatprep.mubr.bf16.mxu0 0
        %3839 = vmatmul.mubr.bf16.gmra.mxu0 %v233
        %v3840 = vpop.f32.mrf.mxu0
        %v3841 = vadd.f32 %v797, %v3840
        %v3842 = vpop.f32.mrf.mxu0
        %v3843 = vadd.f32 %v801, %v3842
        %v3844 = vpop.f32.mrf.mxu0
        %v3845 = vpop.f32.mrf.mxu0
        %3846 = vdwg.mxu0
        %3847 = vmatprep.subr.bf16.mxu0 %v3077
        %3848 = vmatpush1.bf16.msra.mxu0 %v3076
        %3849 = vmatprep.subr.bf16.mxu0 %v3013
        %3850 = vmatpush1.bf16.msra.mxu0 %v3012
        %3851 = vmatprep.subr.bf16.mxu0 %v2949
        %3852 = vmatpush1.bf16.msra.mxu0 %v2948
        %3853 = vmatprep.subr.bf16.mxu0 %v2885
        %3854 = vmatpush1.bf16.msra.mxu0 %v2884
        %3855 = vmatprep.subr.bf16.mxu0 %v2821
        %3856 = vmatpush1.bf16.msra.mxu0 %v2820
        %3857 = vmatprep.subr.bf16.mxu0 %v2757
        %3858 = vmatpush1.bf16.msra.mxu0 %v2756
        %3859 = vmatprep.subr.bf16.mxu0 %v2693
        %3860 = vmatpush1.bf16.msra.mxu0 %v2692
        %3861 = vmatprep.subr.bf16.mxu0 %v2629
        %3862 = vmatpush1.bf16.msra.mxu0 %v2628
        %3863 = vmatprep.subr.bf16.mxu0 0
        %3864 = vmatpush2.bf16.msra.mxu0 0
        %3865 = vmatprep.subr.bf16.mxu0 0
        %3866 = vmatpush2.bf16.msra.mxu0 0
        %3867 = vmatprep.subr.bf16.mxu0 0
        %3868 = vmatpush2.bf16.msra.mxu0 0
        %3869 = vmatprep.subr.bf16.mxu0 0
        %3870 = vmatpush2.bf16.msra.mxu0 0
        %3871 = vmatprep.subr.bf16.mxu0 0
        %3872 = vmatpush2.bf16.msra.mxu0 0
        %3873 = vmatprep.subr.bf16.mxu0 0
        %3874 = vmatpush2.bf16.msra.mxu0 0
        %3875 = vmatprep.subr.bf16.mxu0 0
        %3876 = vmatpush2.bf16.msra.mxu0 0
        %3877 = vmatprep.subr.bf16.mxu0 0
        %3878 = vmatpush2.bf16.msra.mxu0 0
        %3879 = vmatprep.mubr.bf16.mxu0 0
        %3880 = vmatmul.mubr.bf16.gmra.mxu0 %v233
        %v3881 = vpop.f32.mrf.mxu0
        %v3882 = vadd.f32 %v805, %v3881
        %v3883 = vpop.f32.mrf.mxu0
        %v3884 = vadd.f32 %v809, %v3883
        %v3885 = vpop.f32.mrf.mxu0
        %v3886 = vpop.f32.mrf.mxu0
        %3887 = vdwg.mxu0
        %3888 = vmatprep.subr.bf16.mxu0 %v3079
        %3889 = vmatpush1.bf16.msra.mxu0 %v3078
        %3890 = vmatprep.subr.bf16.mxu0 %v3015
        %3891 = vmatpush1.bf16.msra.mxu0 %v3014
        %3892 = vmatprep.subr.bf16.mxu0 %v2951
        %3893 = vmatpush1.bf16.msra.mxu0 %v2950
        %3894 = vmatprep.subr.bf16.mxu0 %v2887
        %3895 = vmatpush1.bf16.msra.mxu0 %v2886
        %3896 = vmatprep.subr.bf16.mxu0 %v2823
        %3897 = vmatpush1.bf16.msra.mxu0 %v2822
        %3898 = vmatprep.subr.bf16.mxu0 %v2759
        %3899 = vmatpush1.bf16.msra.mxu0 %v2758
        %3900 = vmatprep.subr.bf16.mxu0 %v2695
        %3901 = vmatpush1.bf16.msra.mxu0 %v2694
        %3902 = vmatprep.subr.bf16.mxu0 %v2631
        %3903 = vmatpush1.bf16.msra.mxu0 %v2630
        %3904 = vmatprep.subr.bf16.mxu0 0
        %3905 = vmatpush2.bf16.msra.mxu0 0
        %3906 = vmatprep.subr.bf16.mxu0 0
        %3907 = vmatpush2.bf16.msra.mxu0 0
        %3908 = vmatprep.subr.bf16.mxu0 0
        %3909 = vmatpush2.bf16.msra.mxu0 0
        %3910 = vmatprep.subr.bf16.mxu0 0
        %3911 = vmatpush2.bf16.msra.mxu0 0
        %3912 = vmatprep.subr.bf16.mxu0 0
        %3913 = vmatpush2.bf16.msra.mxu0 0
        %3914 = vmatprep.subr.bf16.mxu0 0
        %3915 = vmatpush2.bf16.msra.mxu0 0
        %3916 = vmatprep.subr.bf16.mxu0 0
        %3917 = vmatpush2.bf16.msra.mxu0 0
        %3918 = vmatprep.subr.bf16.mxu0 0
        %3919 = vmatpush2.bf16.msra.mxu0 0
        %3920 = vmatprep.mubr.bf16.mxu0 0
        %3921 = vmatmul.mubr.bf16.gmra.mxu0 %v233
        %v3922 = vpop.f32.mrf.mxu0
        %v3923 = vadd.f32 %v813, %v3922
        %v3924 = vpop.f32.mrf.mxu0
        %v3925 = vadd.f32 %v817, %v3924
        %v3926 = vpop.f32.mrf.mxu0
        %v3927 = vpop.f32.mrf.mxu0
        %3928 = vdwg.mxu0
        %3929 = vmatprep.subr.bf16.mxu0 %v3081
        %3930 = vmatpush1.bf16.msra.mxu0 %v3080
        %3931 = vmatprep.subr.bf16.mxu0 %v3017
        %3932 = vmatpush1.bf16.msra.mxu0 %v3016
        %3933 = vmatprep.subr.bf16.mxu0 %v2953
        %3934 = vmatpush1.bf16.msra.mxu0 %v2952
        %3935 = vmatprep.subr.bf16.mxu0 %v2889
        %3936 = vmatpush1.bf16.msra.mxu0 %v2888
        %3937 = vmatprep.subr.bf16.mxu0 %v2825
        %3938 = vmatpush1.bf16.msra.mxu0 %v2824
        %3939 = vmatprep.subr.bf16.mxu0 %v2761
        %3940 = vmatpush1.bf16.msra.mxu0 %v2760
        %3941 = vmatprep.subr.bf16.mxu0 %v2697
        %3942 = vmatpush1.bf16.msra.mxu0 %v2696
        %3943 = vmatprep.subr.bf16.mxu0 %v2633
        %3944 = vmatpush1.bf16.msra.mxu0 %v2632
        %3945 = vmatprep.subr.bf16.mxu0 0
        %3946 = vmatpush2.bf16.msra.mxu0 0
        %3947 = vmatprep.subr.bf16.mxu0 0
        %3948 = vmatpush2.bf16.msra.mxu0 0
        %3949 = vmatprep.subr.bf16.mxu0 0
        %3950 = vmatpush2.bf16.msra.mxu0 0
        %3951 = vmatprep.subr.bf16.mxu0 0
        %3952 = vmatpush2.bf16.msra.mxu0 0
        %3953 = vmatprep.subr.bf16.mxu0 0
        %3954 = vmatpush2.bf16.msra.mxu0 0
        %3955 = vmatprep.subr.bf16.mxu0 0
        %3956 = vmatpush2.bf16.msra.mxu0 0
        %3957 = vmatprep.subr.bf16.mxu0 0
        %3958 = vmatpush2.bf16.msra.mxu0 0
        %3959 = vmatprep.subr.bf16.mxu0 0
        %3960 = vmatpush2.bf16.msra.mxu0 0
        %3961 = vmatprep.mubr.bf16.mxu0 0
        %3962 = vmatmul.mubr.bf16.gmra.mxu0 %v233
        %v3963 = vpop.f32.mrf.mxu0
        %v3964 = vadd.f32 %v821, %v3963
        %v3965 = vpop.f32.mrf.mxu0
        %v3966 = vadd.f32 %v825, %v3965
        %v3967 = vpop.f32.mrf.mxu0
        %v3968 = vpop.f32.mrf.mxu0
        %3969 = vdwg.mxu0
        %3970 = vmatprep.subr.bf16.mxu0 %v3083
        %3971 = vmatpush1.bf16.msra.mxu0 %v3082
        %3972 = vmatprep.subr.bf16.mxu0 %v3019
        %3973 = vmatpush1.bf16.msra.mxu0 %v3018
        %3974 = vmatprep.subr.bf16.mxu0 %v2955
        %3975 = vmatpush1.bf16.msra.mxu0 %v2954
        %3976 = vmatprep.subr.bf16.mxu0 %v2891
        %3977 = vmatpush1.bf16.msra.mxu0 %v2890
        %3978 = vmatprep.subr.bf16.mxu0 %v2827
        %3979 = vmatpush1.bf16.msra.mxu0 %v2826
        %3980 = vmatprep.subr.bf16.mxu0 %v2763
        %3981 = vmatpush1.bf16.msra.mxu0 %v2762
        %3982 = vmatprep.subr.bf16.mxu0 %v2699
        %3983 = vmatpush1.bf16.msra.mxu0 %v2698
        %3984 = vmatprep.subr.bf16.mxu0 %v2635
        %3985 = vmatpush1.bf16.msra.mxu0 %v2634
        %3986 = vmatprep.subr.bf16.mxu0 0
        %3987 = vmatpush2.bf16.msra.mxu0 0
        %3988 = vmatprep.subr.bf16.mxu0 0
        %3989 = vmatpush2.bf16.msra.mxu0 0
        %3990 = vmatprep.subr.bf16.mxu0 0
        %3991 = vmatpush2.bf16.msra.mxu0 0
        %3992 = vmatprep.subr.bf16.mxu0 0
        %3993 = vmatpush2.bf16.msra.mxu0 0
        %3994 = vmatprep.subr.bf16.mxu0 0
        %3995 = vmatpush2.bf16.msra.mxu0 0
        %3996 = vmatprep.subr.bf16.mxu0 0
        %3997 = vmatpush2.bf16.msra.mxu0 0
        %3998 = vmatprep.subr.bf16.mxu0 0
        %3999 = vmatpush2.bf16.msra.mxu0 0
        %4000 = vmatprep.subr.bf16.mxu0 0
        %4001 = vmatpush2.bf16.msra.mxu0 0
        %4002 = vmatprep.mubr.bf16.mxu0 0
        %4003 = vmatmul.mubr.bf16.gmra.mxu0 %v233
        %v4004 = vpop.f32.mrf.mxu0
        %v4005 = vadd.f32 %v829, %v4004
        %v4006 = vpop.f32.mrf.mxu0
        %v4007 = vadd.f32 %v833, %v4006
        %v4008 = vpop.f32.mrf.mxu0
        %v4009 = vpop.f32.mrf.mxu0
        %4010 = vdwg.mxu0
        %4011 = vmatprep.subr.bf16.mxu0 %v3085
        %4012 = vmatpush1.bf16.msra.mxu0 %v3084
        %4013 = vmatprep.subr.bf16.mxu0 %v3021
        %4014 = vmatpush1.bf16.msra.mxu0 %v3020
        %4015 = vmatprep.subr.bf16.mxu0 %v2957
        %4016 = vmatpush1.bf16.msra.mxu0 %v2956
        %4017 = vmatprep.subr.bf16.mxu0 %v2893
        %4018 = vmatpush1.bf16.msra.mxu0 %v2892
        %4019 = vmatprep.subr.bf16.mxu0 %v2829
        %4020 = vmatpush1.bf16.msra.mxu0 %v2828
        %4021 = vmatprep.subr.bf16.mxu0 %v2765
        %4022 = vmatpush1.bf16.msra.mxu0 %v2764
        %4023 = vmatprep.subr.bf16.mxu0 %v2701
        %4024 = vmatpush1.bf16.msra.mxu0 %v2700
        %4025 = vmatprep.subr.bf16.mxu0 %v2637
        %4026 = vmatpush1.bf16.msra.mxu0 %v2636
        %4027 = vmatprep.subr.bf16.mxu0 0
        %4028 = vmatpush2.bf16.msra.mxu0 0
        %4029 = vmatprep.subr.bf16.mxu0 0
        %4030 = vmatpush2.bf16.msra.mxu0 0
        %4031 = vmatprep.subr.bf16.mxu0 0
        %4032 = vmatpush2.bf16.msra.mxu0 0
        %4033 = vmatprep.subr.bf16.mxu0 0
        %4034 = vmatpush2.bf16.msra.mxu0 0
        %4035 = vmatprep.subr.bf16.mxu0 0
        %4036 = vmatpush2.bf16.msra.mxu0 0
        %4037 = vmatprep.subr.bf16.mxu0 0
        %4038 = vmatpush2.bf16.msra.mxu0 0
        %4039 = vmatprep.subr.bf16.mxu0 0
        %4040 = vmatpush2.bf16.msra.mxu0 0
        %4041 = vmatprep.subr.bf16.mxu0 0
        %4042 = vmatpush2.bf16.msra.mxu0 0
        %4043 = vmatprep.mubr.bf16.mxu0 0
        %4044 = vmatmul.mubr.bf16.gmra.mxu0 %v233
        %v4045 = vpop.f32.mrf.mxu0
        %v4046 = vadd.f32 %v837, %v4045
        %v4047 = vpop.f32.mrf.mxu0
        %v4048 = vadd.f32 %v841, %v4047
        %v4049 = vpop.f32.mrf.mxu0
        %v4050 = vpop.f32.mrf.mxu0
        %4051 = vdwg.mxu0
        %4052 = vmatprep.subr.bf16.mxu0 %v3087
        %4053 = vmatpush1.bf16.msra.mxu0 %v3086
        %4054 = vmatprep.subr.bf16.mxu0 %v3023
        %4055 = vmatpush1.bf16.msra.mxu0 %v3022
        %4056 = vmatprep.subr.bf16.mxu0 %v2959
        %4057 = vmatpush1.bf16.msra.mxu0 %v2958
        %4058 = vmatprep.subr.bf16.mxu0 %v2895
        %4059 = vmatpush1.bf16.msra.mxu0 %v2894
        %4060 = vmatprep.subr.bf16.mxu0 %v2831
        %4061 = vmatpush1.bf16.msra.mxu0 %v2830
        %4062 = vmatprep.subr.bf16.mxu0 %v2767
        %4063 = vmatpush1.bf16.msra.mxu0 %v2766
        %4064 = vmatprep.subr.bf16.mxu0 %v2703
        %4065 = vmatpush1.bf16.msra.mxu0 %v2702
        %4066 = vmatprep.subr.bf16.mxu0 %v2639
        %4067 = vmatpush1.bf16.msra.mxu0 %v2638
        %4068 = vmatprep.subr.bf16.mxu0 0
        %4069 = vmatpush2.bf16.msra.mxu0 0
        %4070 = vmatprep.subr.bf16.mxu0 0
        %4071 = vmatpush2.bf16.msra.mxu0 0
        %4072 = vmatprep.subr.bf16.mxu0 0
        %4073 = vmatpush2.bf16.msra.mxu0 0
        %4074 = vmatprep.subr.bf16.mxu0 0
        %4075 = vmatpush2.bf16.msra.mxu0 0
        %4076 = vmatprep.subr.bf16.mxu0 0
        %4077 = vmatpush2.bf16.msra.mxu0 0
        %4078 = vmatprep.subr.bf16.mxu0 0
        %4079 = vmatpush2.bf16.msra.mxu0 0
        %4080 = vmatprep.subr.bf16.mxu0 0
        %4081 = vmatpush2.bf16.msra.mxu0 0
        %4082 = vmatprep.subr.bf16.mxu0 0
        %4083 = vmatpush2.bf16.msra.mxu0 0
        %4084 = vmatprep.mubr.bf16.mxu0 0
        %4085 = vmatmul.mubr.bf16.gmra.mxu0 %v233
        %v4086 = vpop.f32.mrf.mxu0
        %v4087 = vadd.f32 %v845, %v4086
        %v4088 = vpop.f32.mrf.mxu0
        %v4089 = vadd.f32 %v849, %v4088
        %v4090 = vpop.f32.mrf.mxu0
        %v4091 = vpop.f32.mrf.mxu0
        %4092 = vdwg.mxu0
        %4093 = vmatprep.subr.bf16.mxu0 %v3089
        %4094 = vmatpush1.bf16.msra.mxu0 %v3088
        %4095 = vmatprep.subr.bf16.mxu0 %v3025
        %4096 = vmatpush1.bf16.msra.mxu0 %v3024
        %4097 = vmatprep.subr.bf16.mxu0 %v2961
        %4098 = vmatpush1.bf16.msra.mxu0 %v2960
        %4099 = vmatprep.subr.bf16.mxu0 %v2897
        %4100 = vmatpush1.bf16.msra.mxu0 %v2896
        %4101 = vmatprep.subr.bf16.mxu0 %v2833
        %4102 = vmatpush1.bf16.msra.mxu0 %v2832
        %4103 = vmatprep.subr.bf16.mxu0 %v2769
        %4104 = vmatpush1.bf16.msra.mxu0 %v2768
        %4105 = vmatprep.subr.bf16.mxu0 %v2705
        %4106 = vmatpush1.bf16.msra.mxu0 %v2704
        %4107 = vmatprep.subr.bf16.mxu0 %v2641
        %4108 = vmatpush1.bf16.msra.mxu0 %v2640
        %4109 = vmatprep.subr.bf16.mxu0 0
        %4110 = vmatpush2.bf16.msra.mxu0 0
        %4111 = vmatprep.subr.bf16.mxu0 0
        %4112 = vmatpush2.bf16.msra.mxu0 0
        %4113 = vmatprep.subr.bf16.mxu0 0
        %4114 = vmatpush2.bf16.msra.mxu0 0
        %4115 = vmatprep.subr.bf16.mxu0 0
        %4116 = vmatpush2.bf16.msra.mxu0 0
        %4117 = vmatprep.subr.bf16.mxu0 0
        %4118 = vmatpush2.bf16.msra.mxu0 0
        %4119 = vmatprep.subr.bf16.mxu0 0
        %4120 = vmatpush2.bf16.msra.mxu0 0
        %4121 = vmatprep.subr.bf16.mxu0 0
        %4122 = vmatpush2.bf16.msra.mxu0 0
        %4123 = vmatprep.subr.bf16.mxu0 0
        %4124 = vmatpush2.bf16.msra.mxu0 0
        %4125 = vmatprep.mubr.bf16.mxu0 0
        %4126 = vmatmul.mubr.bf16.gmra.mxu0 %v233
        %v4127 = vpop.f32.mrf.mxu0
        %v4128 = vadd.f32 %v853, %v4127
        %v4129 = vpop.f32.mrf.mxu0
        %v4130 = vadd.f32 %v857, %v4129
        %v4131 = vpop.f32.mrf.mxu0
        %v4132 = vpop.f32.mrf.mxu0
        %4133 = vdwg.mxu0
        %4134 = vmatprep.subr.bf16.mxu0 %v3091
        %4135 = vmatpush1.bf16.msra.mxu0 %v3090
        %4136 = vmatprep.subr.bf16.mxu0 %v3027
        %4137 = vmatpush1.bf16.msra.mxu0 %v3026
        %4138 = vmatprep.subr.bf16.mxu0 %v2963
        %4139 = vmatpush1.bf16.msra.mxu0 %v2962
        %4140 = vmatprep.subr.bf16.mxu0 %v2899
        %4141 = vmatpush1.bf16.msra.mxu0 %v2898
        %4142 = vmatprep.subr.bf16.mxu0 %v2835
        %4143 = vmatpush1.bf16.msra.mxu0 %v2834
        %4144 = vmatprep.subr.bf16.mxu0 %v2771
        %4145 = vmatpush1.bf16.msra.mxu0 %v2770
        %4146 = vmatprep.subr.bf16.mxu0 %v2707
        %4147 = vmatpush1.bf16.msra.mxu0 %v2706
        %4148 = vmatprep.subr.bf16.mxu0 %v2643
        %4149 = vmatpush1.bf16.msra.mxu0 %v2642
        %4150 = vmatprep.subr.bf16.mxu0 0
        %4151 = vmatpush2.bf16.msra.mxu0 0
        %4152 = vmatprep.subr.bf16.mxu0 0
        %4153 = vmatpush2.bf16.msra.mxu0 0
        %4154 = vmatprep.subr.bf16.mxu0 0
        %4155 = vmatpush2.bf16.msra.mxu0 0
        %4156 = vmatprep.subr.bf16.mxu0 0
        %4157 = vmatpush2.bf16.msra.mxu0 0
        %4158 = vmatprep.subr.bf16.mxu0 0
        %4159 = vmatpush2.bf16.msra.mxu0 0
        %4160 = vmatprep.subr.bf16.mxu0 0
        %4161 = vmatpush2.bf16.msra.mxu0 0
        %4162 = vmatprep.subr.bf16.mxu0 0
        %4163 = vmatpush2.bf16.msra.mxu0 0
        %4164 = vmatprep.subr.bf16.mxu0 0
        %4165 = vmatpush2.bf16.msra.mxu0 0
        %4166 = vmatprep.mubr.bf16.mxu0 0
        %4167 = vmatmul.mubr.bf16.gmra.mxu0 %v233
        %v4168 = vpop.f32.mrf.mxu0
        %v4169 = vadd.f32 %v861, %v4168
        %v4170 = vpop.f32.mrf.mxu0
        %v4171 = vadd.f32 %v865, %v4170
        %v4172 = vpop.f32.mrf.mxu0
        %v4173 = vpop.f32.mrf.mxu0
        %4174 = vdwg.mxu0
        %4175 = vmatprep.subr.bf16.mxu0 %v3093
        %4176 = vmatpush1.bf16.msra.mxu0 %v3092
        %4177 = vmatprep.subr.bf16.mxu0 %v3029
        %4178 = vmatpush1.bf16.msra.mxu0 %v3028
        %4179 = vmatprep.subr.bf16.mxu0 %v2965
        %4180 = vmatpush1.bf16.msra.mxu0 %v2964
        %4181 = vmatprep.subr.bf16.mxu0 %v2901
        %4182 = vmatpush1.bf16.msra.mxu0 %v2900
        %4183 = vmatprep.subr.bf16.mxu0 %v2837
        %4184 = vmatpush1.bf16.msra.mxu0 %v2836
        %4185 = vmatprep.subr.bf16.mxu0 %v2773
        %4186 = vmatpush1.bf16.msra.mxu0 %v2772
        %4187 = vmatprep.subr.bf16.mxu0 %v2709
        %4188 = vmatpush1.bf16.msra.mxu0 %v2708
        %4189 = vmatprep.subr.bf16.mxu0 %v2645
        %4190 = vmatpush1.bf16.msra.mxu0 %v2644
        %4191 = vmatprep.subr.bf16.mxu0 0
        %4192 = vmatpush2.bf16.msra.mxu0 0
        %4193 = vmatprep.subr.bf16.mxu0 0
        %4194 = vmatpush2.bf16.msra.mxu0 0
        %4195 = vmatprep.subr.bf16.mxu0 0
        %4196 = vmatpush2.bf16.msra.mxu0 0
        %4197 = vmatprep.subr.bf16.mxu0 0
        %4198 = vmatpush2.bf16.msra.mxu0 0
        %4199 = vmatprep.subr.bf16.mxu0 0
        %4200 = vmatpush2.bf16.msra.mxu0 0
        %4201 = vmatprep.subr.bf16.mxu0 0
        %4202 = vmatpush2.bf16.msra.mxu0 0
        %4203 = vmatprep.subr.bf16.mxu0 0
        %4204 = vmatpush2.bf16.msra.mxu0 0
        %4205 = vmatprep.subr.bf16.mxu0 0
        %4206 = vmatpush2.bf16.msra.mxu0 0
        %4207 = vmatprep.mubr.bf16.mxu0 0
        %4208 = vmatmul.mubr.bf16.gmra.mxu0 %v233
        %v4209 = vpop.f32.mrf.mxu0
        %v4210 = vadd.f32 %v869, %v4209
        %v4211 = vpop.f32.mrf.mxu0
        %v4212 = vadd.f32 %v873, %v4211
        %v4213 = vpop.f32.mrf.mxu0
        %v4214 = vpop.f32.mrf.mxu0
        %4215 = vdwg.mxu0
        %4216 = vmatprep.subr.bf16.mxu0 %v3095
        %4217 = vmatpush1.bf16.msra.mxu0 %v3094
        %4218 = vmatprep.subr.bf16.mxu0 %v3031
        %4219 = vmatpush1.bf16.msra.mxu0 %v3030
        %4220 = vmatprep.subr.bf16.mxu0 %v2967
        %4221 = vmatpush1.bf16.msra.mxu0 %v2966
        %4222 = vmatprep.subr.bf16.mxu0 %v2903
        %4223 = vmatpush1.bf16.msra.mxu0 %v2902
        %4224 = vmatprep.subr.bf16.mxu0 %v2839
        %4225 = vmatpush1.bf16.msra.mxu0 %v2838
        %4226 = vmatprep.subr.bf16.mxu0 %v2775
        %4227 = vmatpush1.bf16.msra.mxu0 %v2774
        %4228 = vmatprep.subr.bf16.mxu0 %v2711
        %4229 = vmatpush1.bf16.msra.mxu0 %v2710
        %4230 = vmatprep.subr.bf16.mxu0 %v2647
        %4231 = vmatpush1.bf16.msra.mxu0 %v2646
        %4232 = vmatprep.subr.bf16.mxu0 0
        %4233 = vmatpush2.bf16.msra.mxu0 0
        %4234 = vmatprep.subr.bf16.mxu0 0
        %4235 = vmatpush2.bf16.msra.mxu0 0
        %4236 = vmatprep.subr.bf16.mxu0 0
        %4237 = vmatpush2.bf16.msra.mxu0 0
        %4238 = vmatprep.subr.bf16.mxu0 0
        %4239 = vmatpush2.bf16.msra.mxu0 0
        %4240 = vmatprep.subr.bf16.mxu0 0
        %4241 = vmatpush2.bf16.msra.mxu0 0
        %4242 = vmatprep.subr.bf16.mxu0 0
        %4243 = vmatpush2.bf16.msra.mxu0 0
        %4244 = vmatprep.subr.bf16.mxu0 0
        %4245 = vmatpush2.bf16.msra.mxu0 0
        %4246 = vmatprep.subr.bf16.mxu0 0
        %4247 = vmatpush2.bf16.msra.mxu0 0
        %4248 = vmatprep.mubr.bf16.mxu0 0
        %4249 = vmatmul.mubr.bf16.gmra.mxu0 %v233
        %v4250 = vpop.f32.mrf.mxu0
        %v4251 = vadd.f32 %v877, %v4250
        %v4252 = vpop.f32.mrf.mxu0
        %v4253 = vadd.f32 %v881, %v4252
        %v4254 = vpop.f32.mrf.mxu0
        %v4255 = vpop.f32.mrf.mxu0
        %4256 = vdwg.mxu0
        %4257 = vmatprep.subr.bf16.mxu0 %v3097
        %4258 = vmatpush1.bf16.msra.mxu0 %v3096
        %4259 = vmatprep.subr.bf16.mxu0 %v3033
        %4260 = vmatpush1.bf16.msra.mxu0 %v3032
        %4261 = vmatprep.subr.bf16.mxu0 %v2969
        %4262 = vmatpush1.bf16.msra.mxu0 %v2968
        %4263 = vmatprep.subr.bf16.mxu0 %v2905
        %4264 = vmatpush1.bf16.msra.mxu0 %v2904
        %4265 = vmatprep.subr.bf16.mxu0 %v2841
        %4266 = vmatpush1.bf16.msra.mxu0 %v2840
        %4267 = vmatprep.subr.bf16.mxu0 %v2777
        %4268 = vmatpush1.bf16.msra.mxu0 %v2776
        %4269 = vmatprep.subr.bf16.mxu0 %v2713
        %4270 = vmatpush1.bf16.msra.mxu0 %v2712
        %4271 = vmatprep.subr.bf16.mxu0 %v2649
        %4272 = vmatpush1.bf16.msra.mxu0 %v2648
        %4273 = vmatprep.subr.bf16.mxu0 0
        %4274 = vmatpush2.bf16.msra.mxu0 0
        %4275 = vmatprep.subr.bf16.mxu0 0
        %4276 = vmatpush2.bf16.msra.mxu0 0
        %4277 = vmatprep.subr.bf16.mxu0 0
        %4278 = vmatpush2.bf16.msra.mxu0 0
        %4279 = vmatprep.subr.bf16.mxu0 0
        %4280 = vmatpush2.bf16.msra.mxu0 0
        %4281 = vmatprep.subr.bf16.mxu0 0
        %4282 = vmatpush2.bf16.msra.mxu0 0
        %4283 = vmatprep.subr.bf16.mxu0 0
        %4284 = vmatpush2.bf16.msra.mxu0 0
        %4285 = vmatprep.subr.bf16.mxu0 0
        %4286 = vmatpush2.bf16.msra.mxu0 0
        %4287 = vmatprep.subr.bf16.mxu0 0
        %4288 = vmatpush2.bf16.msra.mxu0 0
        %4289 = vmatprep.mubr.bf16.mxu0 0
        %4290 = vmatmul.mubr.bf16.gmra.mxu0 %v233
        %v4291 = vpop.f32.mrf.mxu0
        %v4292 = vadd.f32 %v885, %v4291
        %v4293 = vpop.f32.mrf.mxu0
        %v4294 = vadd.f32 %v889, %v4293
        %v4295 = vpop.f32.mrf.mxu0
        %v4296 = vpop.f32.mrf.mxu0
        %4297 = vdwg.mxu0
        %4298 = vmatprep.subr.bf16.mxu0 %v3099
        %4299 = vmatpush1.bf16.msra.mxu0 %v3098
        %4300 = vmatprep.subr.bf16.mxu0 %v3035
        %4301 = vmatpush1.bf16.msra.mxu0 %v3034
        %4302 = vmatprep.subr.bf16.mxu0 %v2971
        %4303 = vmatpush1.bf16.msra.mxu0 %v2970
        %4304 = vmatprep.subr.bf16.mxu0 %v2907
        %4305 = vmatpush1.bf16.msra.mxu0 %v2906
        %4306 = vmatprep.subr.bf16.mxu0 %v2843
        %4307 = vmatpush1.bf16.msra.mxu0 %v2842
        %4308 = vmatprep.subr.bf16.mxu0 %v2779
        %4309 = vmatpush1.bf16.msra.mxu0 %v2778
        %4310 = vmatprep.subr.bf16.mxu0 %v2715
        %4311 = vmatpush1.bf16.msra.mxu0 %v2714
        %4312 = vmatprep.subr.bf16.mxu0 %v2651
        %4313 = vmatpush1.bf16.msra.mxu0 %v2650
        %4314 = vmatprep.subr.bf16.mxu0 0
        %4315 = vmatpush2.bf16.msra.mxu0 0
        %4316 = vmatprep.subr.bf16.mxu0 0
        %4317 = vmatpush2.bf16.msra.mxu0 0
        %4318 = vmatprep.subr.bf16.mxu0 0
        %4319 = vmatpush2.bf16.msra.mxu0 0
        %4320 = vmatprep.subr.bf16.mxu0 0
        %4321 = vmatpush2.bf16.msra.mxu0 0
        %4322 = vmatprep.subr.bf16.mxu0 0
        %4323 = vmatpush2.bf16.msra.mxu0 0
        %4324 = vmatprep.subr.bf16.mxu0 0
        %4325 = vmatpush2.bf16.msra.mxu0 0
        %4326 = vmatprep.subr.bf16.mxu0 0
        %4327 = vmatpush2.bf16.msra.mxu0 0
        %4328 = vmatprep.subr.bf16.mxu0 0
        %4329 = vmatpush2.bf16.msra.mxu0 0
        %4330 = vmatprep.mubr.bf16.mxu0 0
        %4331 = vmatmul.mubr.bf16.gmra.mxu0 %v233
        %v4332 = vpop.f32.mrf.mxu0
        %v4333 = vadd.f32 %v893, %v4332
        %v4334 = vpop.f32.mrf.mxu0
        %v4335 = vadd.f32 %v897, %v4334
        %v4336 = vpop.f32.mrf.mxu0
        %v4337 = vpop.f32.mrf.mxu0
        %4338 = vdwg.mxu0
        %4339 = vmatprep.subr.bf16.mxu0 %v3101
        %4340 = vmatpush1.bf16.msra.mxu0 %v3100
        %4341 = vmatprep.subr.bf16.mxu0 %v3037
        %4342 = vmatpush1.bf16.msra.mxu0 %v3036
        %4343 = vmatprep.subr.bf16.mxu0 %v2973
        %4344 = vmatpush1.bf16.msra.mxu0 %v2972
        %4345 = vmatprep.subr.bf16.mxu0 %v2909
        %4346 = vmatpush1.bf16.msra.mxu0 %v2908
        %4347 = vmatprep.subr.bf16.mxu0 %v2845
        %4348 = vmatpush1.bf16.msra.mxu0 %v2844
        %4349 = vmatprep.subr.bf16.mxu0 %v2781
        %4350 = vmatpush1.bf16.msra.mxu0 %v2780
        %4351 = vmatprep.subr.bf16.mxu0 %v2717
        %4352 = vmatpush1.bf16.msra.mxu0 %v2716
        %4353 = vmatprep.subr.bf16.mxu0 %v2653
        %4354 = vmatpush1.bf16.msra.mxu0 %v2652
        %4355 = vmatprep.subr.bf16.mxu0 0
        %4356 = vmatpush2.bf16.msra.mxu0 0
        %4357 = vmatprep.subr.bf16.mxu0 0
        %4358 = vmatpush2.bf16.msra.mxu0 0
        %4359 = vmatprep.subr.bf16.mxu0 0
        %4360 = vmatpush2.bf16.msra.mxu0 0
        %4361 = vmatprep.subr.bf16.mxu0 0
        %4362 = vmatpush2.bf16.msra.mxu0 0
        %4363 = vmatprep.subr.bf16.mxu0 0
        %4364 = vmatpush2.bf16.msra.mxu0 0
        %4365 = vmatprep.subr.bf16.mxu0 0
        %4366 = vmatpush2.bf16.msra.mxu0 0
        %4367 = vmatprep.subr.bf16.mxu0 0
        %4368 = vmatpush2.bf16.msra.mxu0 0
        %4369 = vmatprep.subr.bf16.mxu0 0
        %4370 = vmatpush2.bf16.msra.mxu0 0
        %4371 = vmatprep.mubr.bf16.mxu0 0
        %4372 = vmatmul.mubr.bf16.gmra.mxu0 %v233
        %v4373 = vpop.f32.mrf.mxu0
        %v4374 = vadd.f32 %v901, %v4373
        %v4375 = vpop.f32.mrf.mxu0
        %v4376 = vadd.f32 %v905, %v4375
        %v4377 = vpop.f32.mrf.mxu0
        %v4378 = vpop.f32.mrf.mxu0
        %4379 = vdwg.mxu0
        %4380 = vmatprep.subr.bf16.mxu0 %v3103
        %4381 = vmatpush1.bf16.msra.mxu0 %v3102
        %4382 = vmatprep.subr.bf16.mxu0 %v3039
        %4383 = vmatpush1.bf16.msra.mxu0 %v3038
        %4384 = vmatprep.subr.bf16.mxu0 %v2975
        %4385 = vmatpush1.bf16.msra.mxu0 %v2974
        %4386 = vmatprep.subr.bf16.mxu0 %v2911
        %4387 = vmatpush1.bf16.msra.mxu0 %v2910
        %4388 = vmatprep.subr.bf16.mxu0 %v2847
        %4389 = vmatpush1.bf16.msra.mxu0 %v2846
        %4390 = vmatprep.subr.bf16.mxu0 %v2783
        %4391 = vmatpush1.bf16.msra.mxu0 %v2782
        %4392 = vmatprep.subr.bf16.mxu0 %v2719
        %4393 = vmatpush1.bf16.msra.mxu0 %v2718
        %4394 = vmatprep.subr.bf16.mxu0 %v2655
        %4395 = vmatpush1.bf16.msra.mxu0 %v2654
        %4396 = vmatprep.subr.bf16.mxu0 0
        %4397 = vmatpush2.bf16.msra.mxu0 0
        %4398 = vmatprep.subr.bf16.mxu0 0
        %4399 = vmatpush2.bf16.msra.mxu0 0
        %4400 = vmatprep.subr.bf16.mxu0 0
        %4401 = vmatpush2.bf16.msra.mxu0 0
        %4402 = vmatprep.subr.bf16.mxu0 0
        %4403 = vmatpush2.bf16.msra.mxu0 0
        %4404 = vmatprep.subr.bf16.mxu0 0
        %4405 = vmatpush2.bf16.msra.mxu0 0
        %4406 = vmatprep.subr.bf16.mxu0 0
        %4407 = vmatpush2.bf16.msra.mxu0 0
        %4408 = vmatprep.subr.bf16.mxu0 0
        %4409 = vmatpush2.bf16.msra.mxu0 0
        %4410 = vmatprep.subr.bf16.mxu0 0
        %4411 = vmatpush2.bf16.msra.mxu0 0
        %4412 = vmatprep.mubr.bf16.mxu0 0
        %4413 = vmatmul.mubr.bf16.gmra.mxu0 %v233
        %v4414 = vpop.f32.mrf.mxu0
        %v4415 = vadd.f32 %v909, %v4414
        %v4416 = vpop.f32.mrf.mxu0
        %v4417 = vadd.f32 %v913, %v4416
        %v4418 = vpop.f32.mrf.mxu0
        %v4419 = vpop.f32.mrf.mxu0
        %4420 = vdwg.mxu0
        %4421 = vmatprep.subr.bf16.mxu0 %v3105
        %4422 = vmatpush1.bf16.msra.mxu0 %v3104
        %4423 = vmatprep.subr.bf16.mxu0 %v3041
        %4424 = vmatpush1.bf16.msra.mxu0 %v3040
        %4425 = vmatprep.subr.bf16.mxu0 %v2977
        %4426 = vmatpush1.bf16.msra.mxu0 %v2976
        %4427 = vmatprep.subr.bf16.mxu0 %v2913
        %4428 = vmatpush1.bf16.msra.mxu0 %v2912
        %4429 = vmatprep.subr.bf16.mxu0 %v2849
        %4430 = vmatpush1.bf16.msra.mxu0 %v2848
        %4431 = vmatprep.subr.bf16.mxu0 %v2785
        %4432 = vmatpush1.bf16.msra.mxu0 %v2784
        %4433 = vmatprep.subr.bf16.mxu0 %v2721
        %4434 = vmatpush1.bf16.msra.mxu0 %v2720
        %4435 = vmatprep.subr.bf16.mxu0 %v2657
        %4436 = vmatpush1.bf16.msra.mxu0 %v2656
        %4437 = vmatprep.subr.bf16.mxu0 0
        %4438 = vmatpush2.bf16.msra.mxu0 0
        %4439 = vmatprep.subr.bf16.mxu0 0
        %4440 = vmatpush2.bf16.msra.mxu0 0
        %4441 = vmatprep.subr.bf16.mxu0 0
        %4442 = vmatpush2.bf16.msra.mxu0 0
        %4443 = vmatprep.subr.bf16.mxu0 0
        %4444 = vmatpush2.bf16.msra.mxu0 0
        %4445 = vmatprep.subr.bf16.mxu0 0
        %4446 = vmatpush2.bf16.msra.mxu0 0
        %4447 = vmatprep.subr.bf16.mxu0 0
        %4448 = vmatpush2.bf16.msra.mxu0 0
        %4449 = vmatprep.subr.bf16.mxu0 0
        %4450 = vmatpush2.bf16.msra.mxu0 0
        %4451 = vmatprep.subr.bf16.mxu0 0
        %4452 = vmatpush2.bf16.msra.mxu0 0
        %4453 = vmatprep.mubr.bf16.mxu0 0
        %4454 = vmatmul.mubr.bf16.gmra.mxu0 %v233
        %v4455 = vpop.f32.mrf.mxu0
        %v4456 = vadd.f32 %v917, %v4455
        %v4457 = vpop.f32.mrf.mxu0
        %v4458 = vadd.f32 %v921, %v4457
        %v4459 = vpop.f32.mrf.mxu0
        %v4460 = vpop.f32.mrf.mxu0
        %4461 = vdwg.mxu0
        %4462 = vmatprep.subr.bf16.mxu0 %v3107
        %4463 = vmatpush1.bf16.msra.mxu0 %v3106
        %4464 = vmatprep.subr.bf16.mxu0 %v3043
        %4465 = vmatpush1.bf16.msra.mxu0 %v3042
        %4466 = vmatprep.subr.bf16.mxu0 %v2979
        %4467 = vmatpush1.bf16.msra.mxu0 %v2978
        %4468 = vmatprep.subr.bf16.mxu0 %v2915
        %4469 = vmatpush1.bf16.msra.mxu0 %v2914
        %4470 = vmatprep.subr.bf16.mxu0 %v2851
        %4471 = vmatpush1.bf16.msra.mxu0 %v2850
        %4472 = vmatprep.subr.bf16.mxu0 %v2787
        %4473 = vmatpush1.bf16.msra.mxu0 %v2786
        %4474 = vmatprep.subr.bf16.mxu0 %v2723
        %4475 = vmatpush1.bf16.msra.mxu0 %v2722
        %4476 = vmatprep.subr.bf16.mxu0 %v2659
        %4477 = vmatpush1.bf16.msra.mxu0 %v2658
        %4478 = vmatprep.subr.bf16.mxu0 0
        %4479 = vmatpush2.bf16.msra.mxu0 0
        %4480 = vmatprep.subr.bf16.mxu0 0
        %4481 = vmatpush2.bf16.msra.mxu0 0
        %4482 = vmatprep.subr.bf16.mxu0 0
        %4483 = vmatpush2.bf16.msra.mxu0 0
        %4484 = vmatprep.subr.bf16.mxu0 0
        %4485 = vmatpush2.bf16.msra.mxu0 0
        %4486 = vmatprep.subr.bf16.mxu0 0
        %4487 = vmatpush2.bf16.msra.mxu0 0
        %4488 = vmatprep.subr.bf16.mxu0 0
        %4489 = vmatpush2.bf16.msra.mxu0 0
        %4490 = vmatprep.subr.bf16.mxu0 0
        %4491 = vmatpush2.bf16.msra.mxu0 0
        %4492 = vmatprep.subr.bf16.mxu0 0
        %4493 = vmatpush2.bf16.msra.mxu0 0
        %4494 = vmatprep.mubr.bf16.mxu0 0
        %4495 = vmatmul.mubr.bf16.gmra.mxu0 %v233
        %v4496 = vpop.f32.mrf.mxu0
        %v4497 = vadd.f32 %v925, %v4496
        %v4498 = vpop.f32.mrf.mxu0
        %v4499 = vadd.f32 %v929, %v4498
        %v4500 = vpop.f32.mrf.mxu0
        %v4501 = vpop.f32.mrf.mxu0
        %4502 = vdwg.mxu0
        %4503 = vmatprep.subr.bf16.mxu0 %v3109
        %4504 = vmatpush1.bf16.msra.mxu0 %v3108
        %4505 = vmatprep.subr.bf16.mxu0 %v3045
        %4506 = vmatpush1.bf16.msra.mxu0 %v3044
        %4507 = vmatprep.subr.bf16.mxu0 %v2981
        %4508 = vmatpush1.bf16.msra.mxu0 %v2980
        %4509 = vmatprep.subr.bf16.mxu0 %v2917
        %4510 = vmatpush1.bf16.msra.mxu0 %v2916
        %4511 = vmatprep.subr.bf16.mxu0 %v2853
        %4512 = vmatpush1.bf16.msra.mxu0 %v2852
        %4513 = vmatprep.subr.bf16.mxu0 %v2789
        %4514 = vmatpush1.bf16.msra.mxu0 %v2788
        %4515 = vmatprep.subr.bf16.mxu0 %v2725
        %4516 = vmatpush1.bf16.msra.mxu0 %v2724
        %4517 = vmatprep.subr.bf16.mxu0 %v2661
        %4518 = vmatpush1.bf16.msra.mxu0 %v2660
        %4519 = vmatprep.subr.bf16.mxu0 0
        %4520 = vmatpush2.bf16.msra.mxu0 0
        %4521 = vmatprep.subr.bf16.mxu0 0
        %4522 = vmatpush2.bf16.msra.mxu0 0
        %4523 = vmatprep.subr.bf16.mxu0 0
        %4524 = vmatpush2.bf16.msra.mxu0 0
        %4525 = vmatprep.subr.bf16.mxu0 0
        %4526 = vmatpush2.bf16.msra.mxu0 0
        %4527 = vmatprep.subr.bf16.mxu0 0
        %4528 = vmatpush2.bf16.msra.mxu0 0
        %4529 = vmatprep.subr.bf16.mxu0 0
        %4530 = vmatpush2.bf16.msra.mxu0 0
        %4531 = vmatprep.subr.bf16.mxu0 0
        %4532 = vmatpush2.bf16.msra.mxu0 0
        %4533 = vmatprep.subr.bf16.mxu0 0
        %4534 = vmatpush2.bf16.msra.mxu0 0
        %4535 = vmatprep.mubr.bf16.mxu0 0
        %4536 = vmatmul.mubr.bf16.gmra.mxu0 %v233
        %v4537 = vpop.f32.mrf.mxu0
        %v4538 = vadd.f32 %v933, %v4537
        %v4539 = vpop.f32.mrf.mxu0
        %v4540 = vadd.f32 %v937, %v4539
        %v4541 = vpop.f32.mrf.mxu0
        %v4542 = vpop.f32.mrf.mxu0
        %4543 = vdwg.mxu0
        %4544 = vmatprep.subr.bf16.mxu0 %v3111
        %4545 = vmatpush1.bf16.msra.mxu0 %v3110
        %4546 = vmatprep.subr.bf16.mxu0 %v3047
        %4547 = vmatpush1.bf16.msra.mxu0 %v3046
        %4548 = vmatprep.subr.bf16.mxu0 %v2983
        %4549 = vmatpush1.bf16.msra.mxu0 %v2982
        %4550 = vmatprep.subr.bf16.mxu0 %v2919
        %4551 = vmatpush1.bf16.msra.mxu0 %v2918
        %4552 = vmatprep.subr.bf16.mxu0 %v2855
        %4553 = vmatpush1.bf16.msra.mxu0 %v2854
        %4554 = vmatprep.subr.bf16.mxu0 %v2791
        %4555 = vmatpush1.bf16.msra.mxu0 %v2790
        %4556 = vmatprep.subr.bf16.mxu0 %v2727
        %4557 = vmatpush1.bf16.msra.mxu0 %v2726
        %4558 = vmatprep.subr.bf16.mxu0 %v2663
        %4559 = vmatpush1.bf16.msra.mxu0 %v2662
        %4560 = vmatprep.subr.bf16.mxu0 0
        %4561 = vmatpush2.bf16.msra.mxu0 0
        %4562 = vmatprep.subr.bf16.mxu0 0
        %4563 = vmatpush2.bf16.msra.mxu0 0
        %4564 = vmatprep.subr.bf16.mxu0 0
        %4565 = vmatpush2.bf16.msra.mxu0 0
        %4566 = vmatprep.subr.bf16.mxu0 0
        %4567 = vmatpush2.bf16.msra.mxu0 0
        %4568 = vmatprep.subr.bf16.mxu0 0
        %4569 = vmatpush2.bf16.msra.mxu0 0
        %4570 = vmatprep.subr.bf16.mxu0 0
        %4571 = vmatpush2.bf16.msra.mxu0 0
        %4572 = vmatprep.subr.bf16.mxu0 0
        %4573 = vmatpush2.bf16.msra.mxu0 0
        %4574 = vmatprep.subr.bf16.mxu0 0
        %4575 = vmatpush2.bf16.msra.mxu0 0
        %4576 = vmatprep.mubr.bf16.mxu0 0
        %4577 = vmatmul.mubr.bf16.gmra.mxu0 %v233
        %v4578 = vpop.f32.mrf.mxu0
        %v4579 = vadd.f32 %v941, %v4578
        %v4580 = vpop.f32.mrf.mxu0
        %v4581 = vadd.f32 %v945, %v4580
        %v4582 = vpop.f32.mrf.mxu0
        %v4583 = vpop.f32.mrf.mxu0
        %4584 = vdwg.mxu0
        %4585 = vmatprep.subr.bf16.mxu0 %v3113
        %4586 = vmatpush1.bf16.msra.mxu0 %v3112
        %4587 = vmatprep.subr.bf16.mxu0 %v3049
        %4588 = vmatpush1.bf16.msra.mxu0 %v3048
        %4589 = vmatprep.subr.bf16.mxu0 %v2985
        %4590 = vmatpush1.bf16.msra.mxu0 %v2984
        %4591 = vmatprep.subr.bf16.mxu0 %v2921
        %4592 = vmatpush1.bf16.msra.mxu0 %v2920
        %4593 = vmatprep.subr.bf16.mxu0 %v2857
        %4594 = vmatpush1.bf16.msra.mxu0 %v2856
        %4595 = vmatprep.subr.bf16.mxu0 %v2793
        %4596 = vmatpush1.bf16.msra.mxu0 %v2792
        %4597 = vmatprep.subr.bf16.mxu0 %v2729
        %4598 = vmatpush1.bf16.msra.mxu0 %v2728
        %4599 = vmatprep.subr.bf16.mxu0 %v2665
        %4600 = vmatpush1.bf16.msra.mxu0 %v2664
        %4601 = vmatprep.subr.bf16.mxu0 0
        %4602 = vmatpush2.bf16.msra.mxu0 0
        %4603 = vmatprep.subr.bf16.mxu0 0
        %4604 = vmatpush2.bf16.msra.mxu0 0
        %4605 = vmatprep.subr.bf16.mxu0 0
        %4606 = vmatpush2.bf16.msra.mxu0 0
        %4607 = vmatprep.subr.bf16.mxu0 0
        %4608 = vmatpush2.bf16.msra.mxu0 0
        %4609 = vmatprep.subr.bf16.mxu0 0
        %4610 = vmatpush2.bf16.msra.mxu0 0
        %4611 = vmatprep.subr.bf16.mxu0 0
        %4612 = vmatpush2.bf16.msra.mxu0 0
        %4613 = vmatprep.subr.bf16.mxu0 0
        %4614 = vmatpush2.bf16.msra.mxu0 0
        %4615 = vmatprep.subr.bf16.mxu0 0
        %4616 = vmatpush2.bf16.msra.mxu0 0
        %4617 = vmatprep.mubr.bf16.mxu0 0
        %4618 = vmatmul.mubr.bf16.gmra.mxu0 %v233
        %v4619 = vpop.f32.mrf.mxu0
        %v4620 = vadd.f32 %v949, %v4619
        %v4621 = vpop.f32.mrf.mxu0
        %v4622 = vadd.f32 %v953, %v4621
        %v4623 = vpop.f32.mrf.mxu0
        %v4624 = vpop.f32.mrf.mxu0
        %4625 = vdwg.mxu0
        %4626 = vmatprep.subr.bf16.mxu0 %v3115
        %4627 = vmatpush1.bf16.msra.mxu0 %v3114
        %4628 = vmatprep.subr.bf16.mxu0 %v3051
        %4629 = vmatpush1.bf16.msra.mxu0 %v3050
        %4630 = vmatprep.subr.bf16.mxu0 %v2987
        %4631 = vmatpush1.bf16.msra.mxu0 %v2986
        %4632 = vmatprep.subr.bf16.mxu0 %v2923
        %4633 = vmatpush1.bf16.msra.mxu0 %v2922
        %4634 = vmatprep.subr.bf16.mxu0 %v2859
        %4635 = vmatpush1.bf16.msra.mxu0 %v2858
        %4636 = vmatprep.subr.bf16.mxu0 %v2795
        %4637 = vmatpush1.bf16.msra.mxu0 %v2794
        %4638 = vmatprep.subr.bf16.mxu0 %v2731
        %4639 = vmatpush1.bf16.msra.mxu0 %v2730
        %4640 = vmatprep.subr.bf16.mxu0 %v2667
        %4641 = vmatpush1.bf16.msra.mxu0 %v2666
        %4642 = vmatprep.subr.bf16.mxu0 0
        %4643 = vmatpush2.bf16.msra.mxu0 0
        %4644 = vmatprep.subr.bf16.mxu0 0
        %4645 = vmatpush2.bf16.msra.mxu0 0
        %4646 = vmatprep.subr.bf16.mxu0 0
        %4647 = vmatpush2.bf16.msra.mxu0 0
        %4648 = vmatprep.subr.bf16.mxu0 0
        %4649 = vmatpush2.bf16.msra.mxu0 0
        %4650 = vmatprep.subr.bf16.mxu0 0
        %4651 = vmatpush2.bf16.msra.mxu0 0
        %4652 = vmatprep.subr.bf16.mxu0 0
        %4653 = vmatpush2.bf16.msra.mxu0 0
        %4654 = vmatprep.subr.bf16.mxu0 0
        %4655 = vmatpush2.bf16.msra.mxu0 0
        %4656 = vmatprep.subr.bf16.mxu0 0
        %4657 = vmatpush2.bf16.msra.mxu0 0
        %4658 = vmatprep.mubr.bf16.mxu0 0
        %4659 = vmatmul.mubr.bf16.gmra.mxu0 %v233
        %v4660 = vpop.f32.mrf.mxu0
        %v4661 = vadd.f32 %v957, %v4660
        %v4662 = vpop.f32.mrf.mxu0
        %v4663 = vadd.f32 %v961, %v4662
        %v4664 = vpop.f32.mrf.mxu0
        %v4665 = vpop.f32.mrf.mxu0
        %4666 = vdwg.mxu0
        %4667 = vmatprep.subr.bf16.mxu0 %v3117
        %4668 = vmatpush1.bf16.msra.mxu0 %v3116
        %4669 = vmatprep.subr.bf16.mxu0 %v3053
        %4670 = vmatpush1.bf16.msra.mxu0 %v3052
        %4671 = vmatprep.subr.bf16.mxu0 %v2989
        %4672 = vmatpush1.bf16.msra.mxu0 %v2988
        %4673 = vmatprep.subr.bf16.mxu0 %v2925
        %4674 = vmatpush1.bf16.msra.mxu0 %v2924
        %4675 = vmatprep.subr.bf16.mxu0 %v2861
        %4676 = vmatpush1.bf16.msra.mxu0 %v2860
        %4677 = vmatprep.subr.bf16.mxu0 %v2797
        %4678 = vmatpush1.bf16.msra.mxu0 %v2796
        %4679 = vmatprep.subr.bf16.mxu0 %v2733
        %4680 = vmatpush1.bf16.msra.mxu0 %v2732
        %4681 = vmatprep.subr.bf16.mxu0 %v2669
        %4682 = vmatpush1.bf16.msra.mxu0 %v2668
        %4683 = vmatprep.subr.bf16.mxu0 0
        %4684 = vmatpush2.bf16.msra.mxu0 0
        %4685 = vmatprep.subr.bf16.mxu0 0
        %4686 = vmatpush2.bf16.msra.mxu0 0
        %4687 = vmatprep.subr.bf16.mxu0 0
        %4688 = vmatpush2.bf16.msra.mxu0 0
        %4689 = vmatprep.subr.bf16.mxu0 0
        %4690 = vmatpush2.bf16.msra.mxu0 0
        %4691 = vmatprep.subr.bf16.mxu0 0
        %4692 = vmatpush2.bf16.msra.mxu0 0
        %4693 = vmatprep.subr.bf16.mxu0 0
        %4694 = vmatpush2.bf16.msra.mxu0 0
        %4695 = vmatprep.subr.bf16.mxu0 0
        %4696 = vmatpush2.bf16.msra.mxu0 0
        %4697 = vmatprep.subr.bf16.mxu0 0
        %4698 = vmatpush2.bf16.msra.mxu0 0
        %4699 = vmatprep.mubr.bf16.mxu0 0
        %4700 = vmatmul.mubr.bf16.gmra.mxu0 %v233
        %v4701 = vpop.f32.mrf.mxu0
        %v4702 = vadd.f32 %v965, %v4701
        %v4703 = vpop.f32.mrf.mxu0
        %v4704 = vadd.f32 %v969, %v4703
        %v4705 = vpop.f32.mrf.mxu0
        %v4706 = vpop.f32.mrf.mxu0
        %4707 = vdwg.mxu0
        %4708 = vmatprep.subr.bf16.mxu0 %v3119
        %4709 = vmatpush1.bf16.msra.mxu0 %v3118
        %4710 = vmatprep.subr.bf16.mxu0 %v3055
        %4711 = vmatpush1.bf16.msra.mxu0 %v3054
        %4712 = vmatprep.subr.bf16.mxu0 %v2991
        %4713 = vmatpush1.bf16.msra.mxu0 %v2990
        %4714 = vmatprep.subr.bf16.mxu0 %v2927
        %4715 = vmatpush1.bf16.msra.mxu0 %v2926
        %4716 = vmatprep.subr.bf16.mxu0 %v2863
        %4717 = vmatpush1.bf16.msra.mxu0 %v2862
        %4718 = vmatprep.subr.bf16.mxu0 %v2799
        %4719 = vmatpush1.bf16.msra.mxu0 %v2798
        %4720 = vmatprep.subr.bf16.mxu0 %v2735
        %4721 = vmatpush1.bf16.msra.mxu0 %v2734
        %4722 = vmatprep.subr.bf16.mxu0 %v2671
        %4723 = vmatpush1.bf16.msra.mxu0 %v2670
        %4724 = vmatprep.subr.bf16.mxu0 0
        %4725 = vmatpush2.bf16.msra.mxu0 0
        %4726 = vmatprep.subr.bf16.mxu0 0
        %4727 = vmatpush2.bf16.msra.mxu0 0
        %4728 = vmatprep.subr.bf16.mxu0 0
        %4729 = vmatpush2.bf16.msra.mxu0 0
        %4730 = vmatprep.subr.bf16.mxu0 0
        %4731 = vmatpush2.bf16.msra.mxu0 0
        %4732 = vmatprep.subr.bf16.mxu0 0
        %4733 = vmatpush2.bf16.msra.mxu0 0
        %4734 = vmatprep.subr.bf16.mxu0 0
        %4735 = vmatpush2.bf16.msra.mxu0 0
        %4736 = vmatprep.subr.bf16.mxu0 0
        %4737 = vmatpush2.bf16.msra.mxu0 0
        %4738 = vmatprep.subr.bf16.mxu0 0
        %4739 = vmatpush2.bf16.msra.mxu0 0
        %4740 = vmatprep.mubr.bf16.mxu0 0
        %4741 = vmatmul.mubr.bf16.gmra.mxu0 %v233
        %v4742 = vpop.f32.mrf.mxu0
        %v4743 = vadd.f32 %v973, %v4742
        %v4744 = vpop.f32.mrf.mxu0
        %v4745 = vadd.f32 %v977, %v4744
        %v4746 = vpop.f32.mrf.mxu0
        %v4747 = vpop.f32.mrf.mxu0
        %4748 = vdwg.mxu0
        %4749 = vmatprep.subr.bf16.mxu0 %v3121
        %4750 = vmatpush1.bf16.msra.mxu0 %v3120
        %4751 = vmatprep.subr.bf16.mxu0 %v3057
        %4752 = vmatpush1.bf16.msra.mxu0 %v3056
        %4753 = vmatprep.subr.bf16.mxu0 %v2993
        %4754 = vmatpush1.bf16.msra.mxu0 %v2992
        %4755 = vmatprep.subr.bf16.mxu0 %v2929
        %4756 = vmatpush1.bf16.msra.mxu0 %v2928
        %4757 = vmatprep.subr.bf16.mxu0 %v2865
        %4758 = vmatpush1.bf16.msra.mxu0 %v2864
        %4759 = vmatprep.subr.bf16.mxu0 %v2801
        %4760 = vmatpush1.bf16.msra.mxu0 %v2800
        %4761 = vmatprep.subr.bf16.mxu0 %v2737
        %4762 = vmatpush1.bf16.msra.mxu0 %v2736
        %4763 = vmatprep.subr.bf16.mxu0 %v2673
        %4764 = vmatpush1.bf16.msra.mxu0 %v2672
        %4765 = vmatprep.subr.bf16.mxu0 0
        %4766 = vmatpush2.bf16.msra.mxu0 0
        %4767 = vmatprep.subr.bf16.mxu0 0
        %4768 = vmatpush2.bf16.msra.mxu0 0
        %4769 = vmatprep.subr.bf16.mxu0 0
        %4770 = vmatpush2.bf16.msra.mxu0 0
        %4771 = vmatprep.subr.bf16.mxu0 0
        %4772 = vmatpush2.bf16.msra.mxu0 0
        %4773 = vmatprep.subr.bf16.mxu0 0
        %4774 = vmatpush2.bf16.msra.mxu0 0
        %4775 = vmatprep.subr.bf16.mxu0 0
        %4776 = vmatpush2.bf16.msra.mxu0 0
        %4777 = vmatprep.subr.bf16.mxu0 0
        %4778 = vmatpush2.bf16.msra.mxu0 0
        %4779 = vmatprep.subr.bf16.mxu0 0
        %4780 = vmatpush2.bf16.msra.mxu0 0
        %4781 = vmatprep.mubr.bf16.mxu0 0
        %4782 = vmatmul.mubr.bf16.gmra.mxu0 %v233
        %v4783 = vpop.f32.mrf.mxu0
        %v4784 = vadd.f32 %v981, %v4783
        %v4785 = vpop.f32.mrf.mxu0
        %v4786 = vadd.f32 %v985, %v4785
        %v4787 = vpop.f32.mrf.mxu0
        %v4788 = vpop.f32.mrf.mxu0
        %4789 = vdwg.mxu0
        %4790 = vmatprep.subr.bf16.mxu0 %v3123
        %4791 = vmatpush1.bf16.msra.mxu0 %v3122
        %4792 = vmatprep.subr.bf16.mxu0 %v3059
        %4793 = vmatpush1.bf16.msra.mxu0 %v3058
        %4794 = vmatprep.subr.bf16.mxu0 %v2995
        %4795 = vmatpush1.bf16.msra.mxu0 %v2994
        %4796 = vmatprep.subr.bf16.mxu0 %v2931
        %4797 = vmatpush1.bf16.msra.mxu0 %v2930
        %4798 = vmatprep.subr.bf16.mxu0 %v2867
        %4799 = vmatpush1.bf16.msra.mxu0 %v2866
        %4800 = vmatprep.subr.bf16.mxu0 %v2803
        %4801 = vmatpush1.bf16.msra.mxu0 %v2802
        %4802 = vmatprep.subr.bf16.mxu0 %v2739
        %4803 = vmatpush1.bf16.msra.mxu0 %v2738
        %4804 = vmatprep.subr.bf16.mxu0 %v2675
        %4805 = vmatpush1.bf16.msra.mxu0 %v2674
        %4806 = vmatprep.subr.bf16.mxu0 0
        %4807 = vmatpush2.bf16.msra.mxu0 0
        %4808 = vmatprep.subr.bf16.mxu0 0
        %4809 = vmatpush2.bf16.msra.mxu0 0
        %4810 = vmatprep.subr.bf16.mxu0 0
        %4811 = vmatpush2.bf16.msra.mxu0 0
        %4812 = vmatprep.subr.bf16.mxu0 0
        %4813 = vmatpush2.bf16.msra.mxu0 0
        %4814 = vmatprep.subr.bf16.mxu0 0
        %4815 = vmatpush2.bf16.msra.mxu0 0
        %4816 = vmatprep.subr.bf16.mxu0 0
        %4817 = vmatpush2.bf16.msra.mxu0 0
        %4818 = vmatprep.subr.bf16.mxu0 0
        %4819 = vmatpush2.bf16.msra.mxu0 0
        %4820 = vmatprep.subr.bf16.mxu0 0
        %4821 = vmatpush2.bf16.msra.mxu0 0
        %4822 = vmatprep.mubr.bf16.mxu0 0
        %4823 = vmatmul.mubr.bf16.gmra.mxu0 %v233
        %v4824 = vpop.f32.mrf.mxu0
        %v4825 = vadd.f32 %v989, %v4824
        %v4826 = vpop.f32.mrf.mxu0
        %v4827 = vadd.f32 %v993, %v4826
        %v4828 = vpop.f32.mrf.mxu0
        %v4829 = vpop.f32.mrf.mxu0
        %4830 = vdwg.mxu0
        %4831 = vmatprep.subr.bf16.mxu0 %v3125
        %4832 = vmatpush1.bf16.msra.mxu0 %v3124
        %4833 = vmatprep.subr.bf16.mxu0 %v3061
        %4834 = vmatpush1.bf16.msra.mxu0 %v3060
        %4835 = vmatprep.subr.bf16.mxu0 %v2997
        %4836 = vmatpush1.bf16.msra.mxu0 %v2996
        %4837 = vmatprep.subr.bf16.mxu0 %v2933
        %4838 = vmatpush1.bf16.msra.mxu0 %v2932
        %4839 = vmatprep.subr.bf16.mxu0 %v2869
        %4840 = vmatpush1.bf16.msra.mxu0 %v2868
        %4841 = vmatprep.subr.bf16.mxu0 %v2805
        %4842 = vmatpush1.bf16.msra.mxu0 %v2804
        %4843 = vmatprep.subr.bf16.mxu0 %v2741
        %4844 = vmatpush1.bf16.msra.mxu0 %v2740
        %4845 = vmatprep.subr.bf16.mxu0 %v2677
        %4846 = vmatpush1.bf16.msra.mxu0 %v2676
        %4847 = vmatprep.subr.bf16.mxu0 0
        %4848 = vmatpush2.bf16.msra.mxu0 0
        %4849 = vmatprep.subr.bf16.mxu0 0
        %4850 = vmatpush2.bf16.msra.mxu0 0
        %4851 = vmatprep.subr.bf16.mxu0 0
        %4852 = vmatpush2.bf16.msra.mxu0 0
        %4853 = vmatprep.subr.bf16.mxu0 0
        %4854 = vmatpush2.bf16.msra.mxu0 0
        %4855 = vmatprep.subr.bf16.mxu0 0
        %4856 = vmatpush2.bf16.msra.mxu0 0
        %4857 = vmatprep.subr.bf16.mxu0 0
        %4858 = vmatpush2.bf16.msra.mxu0 0
        %4859 = vmatprep.subr.bf16.mxu0 0
        %4860 = vmatpush2.bf16.msra.mxu0 0
        %4861 = vmatprep.subr.bf16.mxu0 0
        %4862 = vmatpush2.bf16.msra.mxu0 0
        %4863 = vmatprep.mubr.bf16.mxu0 0
        %4864 = vmatmul.mubr.bf16.gmra.mxu0 %v233
        %v4865 = vpop.f32.mrf.mxu0
        %v4866 = vadd.f32 %v997, %v4865
        %v4867 = vpop.f32.mrf.mxu0
        %v4868 = vadd.f32 %v1001, %v4867
        %v4869 = vpop.f32.mrf.mxu0
        %v4870 = vpop.f32.mrf.mxu0
        %4871 = vdwg.mxu0
        %4872 = vmatprep.subr.bf16.mxu0 %v3127
        %4873 = vmatpush1.bf16.msra.mxu0 %v3126
        %4874 = vmatprep.subr.bf16.mxu0 %v3063
        %4875 = vmatpush1.bf16.msra.mxu0 %v3062
        %4876 = vmatprep.subr.bf16.mxu0 %v2999
        %4877 = vmatpush1.bf16.msra.mxu0 %v2998
        %4878 = vmatprep.subr.bf16.mxu0 %v2935
        %4879 = vmatpush1.bf16.msra.mxu0 %v2934
        %4880 = vmatprep.subr.bf16.mxu0 %v2871
        %4881 = vmatpush1.bf16.msra.mxu0 %v2870
        %4882 = vmatprep.subr.bf16.mxu0 %v2807
        %4883 = vmatpush1.bf16.msra.mxu0 %v2806
        %4884 = vmatprep.subr.bf16.mxu0 %v2743
        %4885 = vmatpush1.bf16.msra.mxu0 %v2742
        %4886 = vmatprep.subr.bf16.mxu0 %v2679
        %4887 = vmatpush1.bf16.msra.mxu0 %v2678
        %4888 = vmatprep.subr.bf16.mxu0 0
        %4889 = vmatpush2.bf16.msra.mxu0 0
        %4890 = vmatprep.subr.bf16.mxu0 0
        %4891 = vmatpush2.bf16.msra.mxu0 0
        %4892 = vmatprep.subr.bf16.mxu0 0
        %4893 = vmatpush2.bf16.msra.mxu0 0
        %4894 = vmatprep.subr.bf16.mxu0 0
        %4895 = vmatpush2.bf16.msra.mxu0 0
        %4896 = vmatprep.subr.bf16.mxu0 0
        %4897 = vmatpush2.bf16.msra.mxu0 0
        %4898 = vmatprep.subr.bf16.mxu0 0
        %4899 = vmatpush2.bf16.msra.mxu0 0
        %4900 = vmatprep.subr.bf16.mxu0 0
        %4901 = vmatpush2.bf16.msra.mxu0 0
        %4902 = vmatprep.subr.bf16.mxu0 0
        %4903 = vmatpush2.bf16.msra.mxu0 0
        %4904 = vmatprep.mubr.bf16.mxu0 0
        %4905 = vmatmul.mubr.bf16.gmra.mxu0 %v233
        %v4906 = vpop.f32.mrf.mxu0
        %v4907 = vadd.f32 %v1005, %v4906
        %v4908 = vpop.f32.mrf.mxu0
        %v4909 = vadd.f32 %v1009, %v4908
        %v4910 = vpop.f32.mrf.mxu0
        %v4911 = vpop.f32.mrf.mxu0
        %4912 = vdwg.mxu0
        %4913 = vmatprep.subr.bf16.mxu0 %v3129
        %4914 = vmatpush1.bf16.msra.mxu0 %v3128
        %4915 = vmatprep.subr.bf16.mxu0 %v3065
        %4916 = vmatpush1.bf16.msra.mxu0 %v3064
        %4917 = vmatprep.subr.bf16.mxu0 %v3001
        %4918 = vmatpush1.bf16.msra.mxu0 %v3000
        %4919 = vmatprep.subr.bf16.mxu0 %v2937
        %4920 = vmatpush1.bf16.msra.mxu0 %v2936
        %4921 = vmatprep.subr.bf16.mxu0 %v2873
        %4922 = vmatpush1.bf16.msra.mxu0 %v2872
        %4923 = vmatprep.subr.bf16.mxu0 %v2809
        %4924 = vmatpush1.bf16.msra.mxu0 %v2808
        %4925 = vmatprep.subr.bf16.mxu0 %v2745
        %4926 = vmatpush1.bf16.msra.mxu0 %v2744
        %4927 = vmatprep.subr.bf16.mxu0 %v2681
        %4928 = vmatpush1.bf16.msra.mxu0 %v2680
        %4929 = vmatprep.subr.bf16.mxu0 0
        %4930 = vmatpush2.bf16.msra.mxu0 0
        %4931 = vmatprep.subr.bf16.mxu0 0
        %4932 = vmatpush2.bf16.msra.mxu0 0
        %4933 = vmatprep.subr.bf16.mxu0 0
        %4934 = vmatpush2.bf16.msra.mxu0 0
        %4935 = vmatprep.subr.bf16.mxu0 0
        %4936 = vmatpush2.bf16.msra.mxu0 0
        %4937 = vmatprep.subr.bf16.mxu0 0
        %4938 = vmatpush2.bf16.msra.mxu0 0
        %4939 = vmatprep.subr.bf16.mxu0 0
        %4940 = vmatpush2.bf16.msra.mxu0 0
        %4941 = vmatprep.subr.bf16.mxu0 0
        %4942 = vmatpush2.bf16.msra.mxu0 0
        %4943 = vmatprep.subr.bf16.mxu0 0
        %4944 = vmatpush2.bf16.msra.mxu0 0
        %4945 = vmatprep.mubr.bf16.mxu0 0
        %4946 = vmatmul.mubr.bf16.gmra.mxu0 %v233
        %v4947 = vpop.f32.mrf.mxu0
        %v4948 = vadd.f32 %v1013, %v4947
        %v4949 = vpop.f32.mrf.mxu0
        %v4950 = vadd.f32 %v1017, %v4949
        %v4951 = vpop.f32.mrf.mxu0
        %v4952 = vpop.f32.mrf.mxu0
        %4953 = vdwg.mxu0
        %4954 = vst [vmem:[%s230] sm:$0xff] %v3677
        %4955 = vst [vmem:[%s230 + $0x8] sm:$0xff] %v3679
        %4956 = vst [vmem:[%s230 + $0x10] sm:$0xff] %v3718
        %4957 = vst [vmem:[%s230 + $0x18] sm:$0xff] %v3720
        %4958 = vst [vmem:[%s230 + $0x20] sm:$0xff] %v3759
        %4959 = vst [vmem:[%s230 + $0x28] sm:$0xff] %v3761
        %4960 = vst [vmem:[%s230 + $0x30] sm:$0xff] %v3800
        %4961 = vst [vmem:[%s230 + $0x38] sm:$0xff] %v3802
        %4962 = vst [vmem:[%s230 + $0x40] sm:$0xff] %v3841
        %4963 = vst [vmem:[%s230 + $0x48] sm:$0xff] %v3843
        %4964 = vst [vmem:[%s230 + $0x50] sm:$0xff] %v3882
        %4965 = vst [vmem:[%s230 + $0x58] sm:$0xff] %v3884
        %4966 = vst [vmem:[%s230 + $0x60] sm:$0xff] %v3923
        %4967 = vst [vmem:[%s230 + $0x68] sm:$0xff] %v3925
        %4968 = vst [vmem:[%s230 + $0x70] sm:$0xff] %v3964
        %4969 = vst [vmem:[%s230 + $0x78] sm:$0xff] %v3966
        %4970 = vst [vmem:[%s230 + $0x80] sm:$0xff] %v4005
        %4971 = vst [vmem:[%s230 + $0x88] sm:$0xff] %v4007
        %4972 = vst [vmem:[%s230 + $0x90] sm:$0xff] %v4046
        %4973 = vst [vmem:[%s230 + $0x98] sm:$0xff] %v4048
        %4974 = vst [vmem:[%s230 + $0xa0] sm:$0xff] %v4087
        %4975 = vst [vmem:[%s230 + $0xa8] sm:$0xff] %v4089
        %4976 = vst [vmem:[%s230 + $0xb0] sm:$0xff] %v4128
        %4977 = vst [vmem:[%s230 + $0xb8] sm:$0xff] %v4130
        %4978 = vst [vmem:[%s230 + $0xc0] sm:$0xff] %v4169
        %4979 = vst [vmem:[%s230 + $0xc8] sm:$0xff] %v4171
        %4980 = vst [vmem:[%s230 + $0xd0] sm:$0xff] %v4210
        %4981 = vst [vmem:[%s230 + $0xd8] sm:$0xff] %v4212
        %4982 = vst [vmem:[%s230 + $0xe0] sm:$0xff] %v4251
        %4983 = vst [vmem:[%s230 + $0xe8] sm:$0xff] %v4253
        %4984 = vst [vmem:[%s230 + $0xf0] sm:$0xff] %v4292
        %4985 = vst [vmem:[%s230 + $0xf8] sm:$0xff] %v4294
        %4986 = vst [vmem:[%s230 + $0x100] sm:$0xff] %v4333
        %4987 = vst [vmem:[%s230 + $0x108] sm:$0xff] %v4335
        %4988 = vst [vmem:[%s230 + $0x110] sm:$0xff] %v4374
        %4989 = vst [vmem:[%s230 + $0x118] sm:$0xff] %v4376
        %4990 = vst [vmem:[%s230 + $0x120] sm:$0xff] %v4415
        %4991 = vst [vmem:[%s230 + $0x128] sm:$0xff] %v4417
        %4992 = vst [vmem:[%s230 + $0x130] sm:$0xff] %v4456
        %4993 = vst [vmem:[%s230 + $0x138] sm:$0xff] %v4458
        %4994 = vst [vmem:[%s230 + $0x140] sm:$0xff] %v4497
        %4995 = vst [vmem:[%s230 + $0x148] sm:$0xff] %v4499
        %4996 = vst [vmem:[%s230 + $0x150] sm:$0xff] %v4538
        %4997 = vst [vmem:[%s230 + $0x158] sm:$0xff] %v4540
        %4998 = vst [vmem:[%s230 + $0x160] sm:$0xff] %v4579
        %4999 = vst [vmem:[%s230 + $0x168] sm:$0xff] %v4581
        %5000 = vst [vmem:[%s230 + $0x170] sm:$0xff] %v4620
        %5001 = vst [vmem:[%s230 + $0x178] sm:$0xff] %v4622
        %5002 = vst [vmem:[%s230 + $0x180] sm:$0xff] %v4661
        %5003 = vst [vmem:[%s230 + $0x188] sm:$0xff] %v4663
        %5004 = vst [vmem:[%s230 + $0x190] sm:$0xff] %v4702
        %5005 = vst [vmem:[%s230 + $0x198] sm:$0xff] %v4704
        %5006 = vst [vmem:[%s230 + $0x1a0] sm:$0xff] %v4743
        %5007 = vst [vmem:[%s230 + $0x1a8] sm:$0xff] %v4745
        %5008 = vst [vmem:[%s230 + $0x1b0] sm:$0xff] %v4784
        %5009 = vst [vmem:[%s230 + $0x1b8] sm:$0xff] %v4786
        %5010 = vst [vmem:[%s230 + $0x1c0] sm:$0xff] %v4825
        %5011 = vst [vmem:[%s230 + $0x1c8] sm:$0xff] %v4827
        %5012 = vst [vmem:[%s230 + $0x1d0] sm:$0xff] %v4866
        %5013 = vst [vmem:[%s230 + $0x1d8] sm:$0xff] %v4868
        %5014 = vst [vmem:[%s230 + $0x1e0] sm:$0xff] %v4907
        %5015 = vst [vmem:[%s230 + $0x1e8] sm:$0xff] %v4909
        %5016 = vst [vmem:[%s230 + $0x1f0] sm:$0xff] %v4948
        %5017 = vst [vmem:[%s230 + $0x1f8] sm:$0xff] %v4950
        %s5018 = smul.u32 64, %s20
        %p5019 = scmp.lt.s32.totalorder %s5018, 127
        %s5020 = scalar_select %p5019, %s5018, 127
        %s5021 = smul.addr %s5020, 8
        %s5022 = scalar_lea.vmem %s3, %s5021
        // Predicated region
        $region41: #{feature_map_generator.3} parent=31 // pred_check
          %p5023 = pneg %p111
        $region42: #{feature_map_generator.3} parent=31 // pred_check_branch
          %5025 = sbr.rel (%p5023) target = $region44
        $region43: #{feature_map_generator.3} parent=31 // pred_region
          %s5026 = smul.u32 64, %s20
        $region44: #{feature_map_generator.3} parent=31 // pred_fallthru
          _
      $region32: #{feature_map_generator.3} parent=5 // pred_fallthru
        _
      %p5027 = scmp.le.s32.totalorder 2, %s15
      // Predicated region
      $region45: #{feature_map_generator.3} parent=5 // pred_check
        %p5028 = pneg %p5027
      $region46: #{feature_map_generator.3} parent=5 // pred_check_branch
        %5030 = sbr.rel (%p5028) target = $region48
      $region47: #{feature_map_generator.3} parent=5 // pred_region
        %s5031 = ssub.s32 %s15, 2
        // Predicated region
        $region49: #{feature_map_generator.3} parent=47 // pred_check
          %p5032 = pneg %p117
        $region50: #{feature_map_generator.3} parent=47 // pred_check_branch
          %5034 = sbr.rel (%p5032) target = $region52
        $region51: #{feature_map_generator.3} parent=47 // pred_region
          %s5035 = smul.u32 64, %s21
          %p5036 = scmp.lt.s32.totalorder %s5035, 127
          %s5037 = scalar_select %p5036, %s5035, 127
          %s5038 = smul.addr %s5037, 8
          %s5039 = scalar_lea.vmem %s3, %s5038
        $region52: #{feature_map_generator.3} parent=47 // pred_fallthru
          _
      $region48: #{feature_map_generator.3} parent=5 // pred_fallthru
        _
    $region6: #{feature_map_generator.3} parent=1 // loop_footer
      %s19 = sadd.s32 1, %s15
    $region7: #{feature_map_generator.3} parent=1 // loop_footer_branch
      %14 = sbr.rel target = $region3
    $region8: #{feature_map_generator.3} parent=1 // loop_exit
      _
    %5040 = vsyncpa [#allocation3], 1
    %s5041 = scalar_lea.sflag [#allocation3], 1
    %5042 = vsyncpa %s5041, 1
    %5043 = vsyncpa [#allocation5], 1
    %s5044 = scalar_lea.sflag [#allocation5], 1
    %5045 = vsyncpa %s5044, 1

</llo_original>
